<compile_context>
chip_gen: v7x
topology: tpu7x:2x2x1
jax: 0.10.0
libtpu: 0.0.40
codegen_flags: <defaults>
</compile_context>

<pallas_src>
import functools
import math

import jax
import jax.numpy as jnp
from jax.experimental import pallas as pl
from jax.experimental.pallas import tpu as pltpu


def _mm(a, w):
    """Matmul on the MXU: bf16 operands, f32 accumulation."""
    return jnp.dot(a.astype(jnp.bfloat16), w,
                   preferred_element_type=jnp.float32)


def _bn_silu(y, sb):
    """Folded eval-mode BatchNorm (sb rows = scale, bias) + SiLU, in f32."""
    y = y * sb[0:1, :] + sb[1:2, :]
    return y * jax.nn.sigmoid(y)


def _csp_kernel(num_blocks, shortcut, H, W,
                x_ref, w12_ref, sb12_ref, wb1_ref, sbb1_ref, wb2_ref,
                sbb2_ref, w3a_ref, w3b_ref, sb3_ref, o_ref, zpad_ref):
    HW = H * W
    hidden = wb1_ref.shape[-1]

    # Zero the padded scratch slab once per grid step; only its interior is
    # rewritten below, so the 1-pixel halo stays zero (== conv padding=1).
    zpad_ref[...] = jnp.zeros(zpad_ref.shape, zpad_ref.dtype)

    x2d = x_ref[0]                                            # (HW, Cin) f32

    # cv1 + cv2 fused into a single matmul over the shared input.
    y12 = _bn_silu(_mm(x2d, w12_ref[...]), sb12_ref[...])     # (HW, 2*hidden)
    y1 = y12[:, :hidden]
    y2 = y12[:, hidden:]

    # Bottlenecks: 1x1 -> 3x3 (single K=9*hidden im2col dot) -> residual.
    for b in range(num_blocks):
        z = _bn_silu(_mm(y1, wb1_ref[b]), sbb1_ref[b])        # (HW, hidden)
        # Pad in VMEM: write interior only; halo stays zero.
        zpad_ref[1:H + 1, 1:W + 1, :] = z.reshape(H, W, hidden)
        taps = []
        for dy in range(3):
            for dx in range(3):
                taps.append(
                    zpad_ref[dy:dy + H, dx:dx + W, :].reshape(HW, hidden))
        patches = jnp.concatenate(taps, axis=-1)              # (HW, 9*hidden)
        yb = _bn_silu(_mm(patches, wb2_ref[b]), sbb2_ref[b])  # (HW, hidden)
        y1 = (y1 + yb) if shortcut else yb

    # cv3 with split weight: out = silu(bn(y1 @ W3a + y2 @ W3b)) -- no concat.
    acc = _mm(y1, w3a_ref[...]) + _mm(y2, w3b_ref[...])       # (HW, Cout)
    o_ref[0] = _bn_silu(acc, sb3_ref[...])


def csp_block_forward(x_nchw, params, shortcut=True):
    """CSPBlock forward. x_nchw: (N, Cin, H, W) f32 -> (N, Cout, H, W) f32."""
    N, Cin, H, W = x_nchw.shape
    HW = H * W
    hidden = params["w12"].shape[1] // 2
    Cout = params["w3a"].shape[1]
    num_blocks = params["wb1"].shape[0]

    # NCHW -> NHWC-flat (channels on the contraction axis).
    x = jnp.transpose(x_nchw, (0, 2, 3, 1)).astype(jnp.float32)
    x = x.reshape(N, HW, Cin)

    kernel = functools.partial(_csp_kernel, num_blocks, bool(shortcut), H, W)
    out = pl.pallas_call(
        kernel,
        out_shape=jax.ShapeDtypeStruct((N, HW, Cout), jnp.float32),
        grid=(N,),
        in_specs=[
            pl.BlockSpec((1, HW, Cin), lambda n: (n, 0, 0)),
            pl.BlockSpec((Cin, 2 * hidden), lambda n: (0, 0)),
            pl.BlockSpec((2, 2 * hidden), lambda n: (0, 0)),
            pl.BlockSpec((num_blocks, hidden, hidden), lambda n: (0, 0, 0)),
            pl.BlockSpec((num_blocks, 2, hidden), lambda n: (0, 0, 0)),
            pl.BlockSpec((num_blocks, 9 * hidden, hidden),
                         lambda n: (0, 0, 0)),
            pl.BlockSpec((num_blocks, 2, hidden), lambda n: (0, 0, 0)),
            pl.BlockSpec((hidden, Cout), lambda n: (0, 0)),
            pl.BlockSpec((hidden, Cout), lambda n: (0, 0)),
            pl.BlockSpec((2, Cout), lambda n: (0, 0)),
        ],
        out_specs=pl.BlockSpec((1, HW, Cout), lambda n: (n, 0, 0)),
        scratch_shapes=[pltpu.VMEM((H + 2, W + 2, hidden), jnp.float32)],
        compiler_params=pltpu.CompilerParams(
            dimension_semantics=("parallel",)),
    )(x, params["w12"], params["sb12"], params["wb1"], params["sbb1"],
      params["wb2"], params["sbb2"], params["w3a"], params["w3b"],
      params["sb3"])

    out = out.reshape(N, H, W, Cout)
    return jnp.transpose(out, (0, 3, 1, 2))   # back to NCHW


# ----------------------------------------------------------------------------
# Deterministic parameter construction (Conv2d OIHW init + folded BatchNorm)
# ----------------------------------------------------------------------------
def _conv_weight(key, cin, cout, ksize):
    """PyTorch Conv2d default-init weight (OIHW), converted for the kernel."""
    fan_in = cin * ksize * ksize
    bound = 1.0 / math.sqrt(fan_in)
    w = jax.random.uniform(key, (cout, cin, ksize, ksize), jnp.float32,
                           -bound, bound)
    if ksize == 1:
        return w[:, :, 0, 0].T                                   # (cin, cout)
    # im2col layout: row index = (kh*3 + kw)*cin + cin_idx, matching the
    # in-kernel tap concatenation order.
    return jnp.transpose(w, (2, 3, 1, 0)).reshape(ksize * ksize * cin, cout)


def _fold_bn(key, cout, eps=1e-5):
    """Eval-mode BatchNorm folded into stacked (scale, bias) of shape (2, C)."""
    k1, k2, k3, k4 = jax.random.split(key, 4)
    gamma = jax.random.uniform(k1, (cout,), jnp.float32, 0.8, 1.2)
    beta = 0.1 * jax.random.normal(k2, (cout,), jnp.float32)
    rmean = 0.1 * jax.random.normal(k3, (cout,), jnp.float32)
    rvar = jax.random.uniform(k4, (cout,), jnp.float32, 0.5, 1.5)
    scale = gamma / jnp.sqrt(rvar + eps)
    bias = beta - rmean * scale
    return jnp.stack([scale, bias], axis=0)


def make_csp_params(key, in_channels, out_channels, num_blocks, expansion=0.5):
    hidden = int(out_channels * expansion)
    keys = jax.random.split(key, 6 + 4 * num_blocks)
    bf16 = jnp.bfloat16

    # cv1 / cv2 (1x1 convs over the same input) merged into one weight.
    w12 = jnp.concatenate([_conv_weight(keys[0], in_channels, hidden, 1),
                           _conv_weight(keys[2], in_channels, hidden, 1)],
                          axis=1)
    sb12 = jnp.concatenate([_fold_bn(keys[1], hidden),
                            _fold_bn(keys[3], hidden)], axis=1)

    # cv3 split along its input channels: rows [:hidden] see y1, [hidden:] y2.
    w3 = _conv_weight(keys[4], 2 * hidden, out_channels, 1)
    sb3 = _fold_bn(keys[5], out_channels)

    wb1, sbb1, wb2, sbb2 = [], [], [], []
    for b in range(num_blocks):
        k0, k1, k2, k3 = keys[6 + 4 * b: 10 + 4 * b]
        wb1.append(_conv_weight(k0, hidden, hidden, 1))   # bottleneck cv1 1x1
        sbb1.append(_fold_bn(k1, hidden))
        wb2.append(_conv_weight(k2, hidden, hidden, 3))   # bottleneck cv2 3x3
        sbb2.append(_fold_bn(k3, hidden))

    return {
        "w12": w12.astype(bf16),
        "sb12": sb12,
        "wb1": jnp.stack(wb1).astype(bf16),
        "sbb1": jnp.stack(sbb1),
        "wb2": jnp.stack(wb2).astype(bf16),
        "sbb2": jnp.stack(sbb2),
        "w3a": w3[:hidden].astype(bf16),
        "w3b": w3[hidden:].astype(bf16),
        "sb3": sb3,
    }


if __name__ == "__main__":
    key = jax.random.PRNGKey(0)
    kx, kp = jax.random.split(key)

    # CSPBlock(in_channels=4, out_channels=8, num_blocks=2, shortcut=True)
    in_channels, out_channels, num_blocks = 4, 8, 2
    N, H, W = 2, 16, 16

    x = jax.random.normal(kx, (N, in_channels, H, W), jnp.float32)
    params = make_csp_params(kp, in_channels, out_channels, num_blocks)

    out = csp_block_forward(x, params, shortcut=True)
    out = jax.block_until_ready(out)

    assert out.shape == (N, out_channels, H, W), out.shape
    assert out.dtype == jnp.float32
    assert bool(jnp.all(jnp.isfinite(out)))
    print("KERNEL_OK")
</pallas_src>

<mosaic_0001>
module attributes {stable_mosaic.version = 11 : i64} {
  func.func @_csp_kernel(%arg0: i32, %arg1: memref<1x256x4xf32, #tpu.memory_space<vmem>>, %arg2: memref<4x8xbf16, #tpu.memory_space<vmem>>, %arg3: memref<2x8xf32, #tpu.memory_space<vmem>>, %arg4: memref<2x4x4xbf16, #tpu.memory_space<vmem>>, %arg5: memref<2x2x4xf32, #tpu.memory_space<vmem>>, %arg6: memref<2x36x4xbf16, #tpu.memory_space<vmem>>, %arg7: memref<2x2x4xf32, #tpu.memory_space<vmem>>, %arg8: memref<4x8xbf16, #tpu.memory_space<vmem>>, %arg9: memref<4x8xbf16, #tpu.memory_space<vmem>>, %arg10: memref<2x8xf32, #tpu.memory_space<vmem>>, %arg11: memref<1x256x8xf32, #tpu.memory_space<vmem>>, %arg12: memref<18x18x4xf32, #tpu.memory_space<vmem>>) attributes {dimension_semantics = [#tpu.dimension_semantics<parallel>], iteration_bounds = array<i64: 2>, scalar_prefetch = 0 : i64, scratch_operands = 1 : i64, tpu.core_type = #tpu.core_type<tc>, window_params = [{transform_indices = @transform_0, window_bounds = array<i64: 1, 256, 4>}, {pipeline_mode = #tpu.pipeline_mode<synchronous>, transform_indices = @transform_1, window_bounds = array<i64: 4, 8>}, {pipeline_mode = #tpu.pipeline_mode<synchronous>, transform_indices = @transform_2, window_bounds = array<i64: 2, 8>}, {pipeline_mode = #tpu.pipeline_mode<synchronous>, transform_indices = @transform_3, window_bounds = array<i64: 2, 4, 4>}, {pipeline_mode = #tpu.pipeline_mode<synchronous>, transform_indices = @transform_4, window_bounds = array<i64: 2, 2, 4>}, {pipeline_mode = #tpu.pipeline_mode<synchronous>, transform_indices = @transform_5, window_bounds = array<i64: 2, 36, 4>}, {pipeline_mode = #tpu.pipeline_mode<synchronous>, transform_indices = @transform_6, window_bounds = array<i64: 2, 2, 4>}, {pipeline_mode = #tpu.pipeline_mode<synchronous>, transform_indices = @transform_7, window_bounds = array<i64: 4, 8>}, {pipeline_mode = #tpu.pipeline_mode<synchronous>, transform_indices = @transform_8, window_bounds = array<i64: 4, 8>}, {pipeline_mode = #tpu.pipeline_mode<synchronous>, transform_indices = @transform_9, window_bounds = array<i64: 2, 8>}, {transform_indices = @transform_10, window_bounds = array<i64: 1, 256, 8>}]} {
    %cst = arith.constant 0.000000e+00 : f32
    %0 = vector.broadcast %cst : f32 to vector<18x18x4xf32>
    %c0 = arith.constant 0 : index
    %c0_0 = arith.constant 0 : index
    %c0_1 = arith.constant 0 : index
    %1 = vector.load %arg12[%c0, %c0_0, %c0_1] : memref<18x18x4xf32, #tpu.memory_space<vmem>>, vector<18x18x4xf32>
    tpu.vector_store %arg12[%c0, %c0_0, %c0_1], %0 {strides = array<i32>} : memref<18x18x4xf32, #tpu.memory_space<vmem>>, vector<18x18x4xf32>,
    %c0_2 = arith.constant 0 : index
    %c0_3 = arith.constant 0 : index
    %c0_4 = arith.constant 0 : index
    %2 = vector.load %arg1[%c0_2, %c0_3, %c0_4] : memref<1x256x4xf32, #tpu.memory_space<vmem>>, vector<1x256x4xf32>
    %3 = vector.shape_cast %2 : vector<1x256x4xf32> to vector<256x4xf32>
    %c0_5 = arith.constant 0 : index
    %c0_6 = arith.constant 0 : index
    %4 = vector.load %arg2[%c0_5, %c0_6] : memref<4x8xbf16, #tpu.memory_space<vmem>>, vector<4x8xbf16>
    %5 = arith.truncf %3 : vector<256x4xf32> to vector<256x4xbf16>
    %cst_7 = arith.constant dense<0.000000e+00> : vector<256x8xf32>
    %6 = tpu.matmul %5, %4, %cst_7 {dimension_numbers = #tpu.dot_dimension_numbers<[1], [0], [0], [1], [0, 0, 1, 1], [], []>} : vector<256x4xbf16>, vector<4x8xbf16>, vector<256x8xf32> -> vector<256x8xf32>
    %c0_8 = arith.constant 0 : index
    %c0_9 = arith.constant 0 : index
    %7 = vector.load %arg3[%c0_8, %c0_9] : memref<2x8xf32, #tpu.memory_space<vmem>>, vector<2x8xf32>
    %8 = vector.extract_strided_slice %7 {offsets = [0, 0], sizes = [1, 8], strides = [1, 1]} : vector<2x8xf32> to vector<1x8xf32>
    %9 = vector.broadcast %8 : vector<1x8xf32> to vector<256x8xf32>
    %10 = arith.mulf %6, %9 : vector<256x8xf32>
    %11 = vector.extract_strided_slice %7 {offsets = [1, 0], sizes = [1, 8], strides = [1, 1]} : vector<2x8xf32> to vector<1x8xf32>
    %12 = vector.broadcast %11 : vector<1x8xf32> to vector<256x8xf32>
    %13 = arith.addf %10, %12 : vector<256x8xf32>
    %14 = arith.negf %13 : vector<256x8xf32>
    %15 = math.exp %14 : vector<256x8xf32>
    %cst_10 = arith.constant 1.000000e+00 : f32
    %16 = vector.broadcast %cst_10 : f32 to vector<256x8xf32>
    %17 = arith.addf %16, %15 : vector<256x8xf32>
    %18 = arith.divf %16, %17 : vector<256x8xf32>
    %19 = arith.mulf %13, %18 : vector<256x8xf32>
    %20 = vector.extract_strided_slice %19 {offsets = [0, 0], sizes = [256, 4], strides = [1, 1]} : vector<256x8xf32> to vector<256x4xf32>
    %21 = vector.extract_strided_slice %19 {offsets = [0, 4], sizes = [256, 4], strides = [1, 1]} : vector<256x8xf32> to vector<256x4xf32>
    %c0_11 = arith.constant 0 : index
    %c0_12 = arith.constant 0 : index
    %c0_13 = arith.constant 0 : index
    %22 = vector.load %arg4[%c0_11, %c0_12, %c0_13] : memref<2x4x4xbf16, #tpu.memory_space<vmem>>, vector<1x4x4xbf16>
    %23 = vector.shape_cast %22 : vector<1x4x4xbf16> to vector<4x4xbf16>
    %24 = arith.truncf %20 : vector<256x4xf32> to vector<256x4xbf16>
    %cst_14 = arith.constant dense<0.000000e+00> : vector<256x4xf32>
    %25 = tpu.matmul %24, %23, %cst_14 {dimension_numbers = #tpu.dot_dimension_numbers<[1], [0], [0], [1], [0, 0, 1, 1], [], []>} : vector<256x4xbf16>, vector<4x4xbf16>, vector<256x4xf32> -> vector<256x4xf32>
    %c0_15 = arith.constant 0 : index
    %c0_16 = arith.constant 0 : index
    %c0_17 = arith.constant 0 : index
    %26 = vector.load %arg5[%c0_15, %c0_16, %c0_17] : memref<2x2x4xf32, #tpu.memory_space<vmem>>, vector<1x2x4xf32>
    %27 = vector.shape_cast %26 : vector<1x2x4xf32> to vector<2x4xf32>
    %28 = vector.extract_strided_slice %27 {offsets = [0, 0], sizes = [1, 4], strides = [1, 1]} : vector<2x4xf32> to vector<1x4xf32>
    %29 = vector.broadcast %28 : vector<1x4xf32> to vector<256x4xf32>
    %30 = arith.mulf %25, %29 : vector<256x4xf32>
    %31 = vector.extract_strided_slice %27 {offsets = [1, 0], sizes = [1, 4], strides = [1, 1]} : vector<2x4xf32> to vector<1x4xf32>
    %32 = vector.broadcast %31 : vector<1x4xf32> to vector<256x4xf32>
    %33 = arith.addf %30, %32 : vector<256x4xf32>
    %34 = arith.negf %33 : vector<256x4xf32>
    %35 = math.exp %34 : vector<256x4xf32>
    %cst_18 = arith.constant 1.000000e+00 : f32
    %36 = vector.broadcast %cst_18 : f32 to vector<256x4xf32>
    %37 = arith.addf %36, %35 : vector<256x4xf32>
    %38 = arith.divf %36, %37 : vector<256x4xf32>
    %39 = arith.mulf %33, %38 : vector<256x4xf32>
    %40 = vector.shape_cast %39 : vector<256x4xf32> to vector<16x16x4xf32>
    %c1 = arith.constant 1 : index
    %c1_19 = arith.constant 1 : index
    %c0_20 = arith.constant 0 : index
    %41 = vector.load %arg12[%c1, %c1_19, %c0_20] : memref<18x18x4xf32, #tpu.memory_space<vmem>>, vector<16x16x4xf32>
    tpu.vector_store %arg12[%c1, %c1_19, %c0_20], %40 {strides = array<i32>} : memref<18x18x4xf32, #tpu.memory_space<vmem>>, vector<16x16x4xf32>,
    %c0_21 = arith.constant 0 : index
    %c0_22 = arith.constant 0 : index
    %c0_23 = arith.constant 0 : index
    %42 = vector.load %arg12[%c0_21, %c0_22, %c0_23] : memref<18x18x4xf32, #tpu.memory_space<vmem>>, vector<16x16x4xf32>
    %43 = vector.shape_cast %42 : vector<16x16x4xf32> to vector<256x4xf32>
    %c0_24 = arith.constant 0 : index
    %c1_25 = arith.constant 1 : index
    %c0_26 = arith.constant 0 : index
    %44 = vector.load %arg12[%c0_24, %c1_25, %c0_26] : memref<18x18x4xf32, #tpu.memory_space<vmem>>, vector<16x16x4xf32>
    %45 = vector.shape_cast %44 : vector<16x16x4xf32> to vector<256x4xf32>
    %c0_27 = arith.constant 0 : index
    %c2 = arith.constant 2 : index
    %c0_28 = arith.constant 0 : index
    %46 = vector.load %arg12[%c0_27, %c2, %c0_28] : memref<18x18x4xf32, #tpu.memory_space<vmem>>, vector<16x16x4xf32>
    %47 = vector.shape_cast %46 : vector<16x16x4xf32> to vector<256x4xf32>
    %c1_29 = arith.constant 1 : index
    %c0_30 = arith.constant 0 : index
    %c0_31 = arith.constant 0 : index
    %48 = vector.load %arg12[%c1_29, %c0_30, %c0_31] : memref<18x18x4xf32, #tpu.memory_space<vmem>>, vector<16x16x4xf32>
    %49 = vector.shape_cast %48 : vector<16x16x4xf32> to vector<256x4xf32>
    %c1_32 = arith.constant 1 : index
    %c1_33 = arith.constant 1 : index
    %c0_34 = arith.constant 0 : index
    %50 = vector.load %arg12[%c1_32, %c1_33, %c0_34] : memref<18x18x4xf32, #tpu.memory_space<vmem>>, vector<16x16x4xf32>
    %51 = vector.shape_cast %50 : vector<16x16x4xf32> to vector<256x4xf32>
    %c1_35 = arith.constant 1 : index
    %c2_36 = arith.constant 2 : index
    %c0_37 = arith.constant 0 : index
    %52 = vector.load %arg12[%c1_35, %c2_36, %c0_37] : memref<18x18x4xf32, #tpu.memory_space<vmem>>, vector<16x16x4xf32>
    %53 = vector.shape_cast %52 : vector<16x16x4xf32> to vector<256x4xf32>
    %c2_38 = arith.constant 2 : index
    %c0_39 = arith.constant 0 : index
    %c0_40 = arith.constant 0 : index
    %54 = vector.load %arg12[%c2_38, %c0_39, %c0_40] : memref<18x18x4xf32, #tpu.memory_space<vmem>>, vector<16x16x4xf32>
    %55 = vector.shape_cast %54 : vector<16x16x4xf32> to vector<256x4xf32>
    %c2_41 = arith.constant 2 : index
    %c1_42 = arith.constant 1 : index
    %c0_43 = arith.constant 0 : index
    %56 = vector.load %arg12[%c2_41, %c1_42, %c0_43] : memref<18x18x4xf32, #tpu.memory_space<vmem>>, vector<16x16x4xf32>
    %57 = vector.shape_cast %56 : vector<16x16x4xf32> to vector<256x4xf32>
    %c2_44 = arith.constant 2 : index
    %c2_45 = arith.constant 2 : index
    %c0_46 = arith.constant 0 : index
    %58 = vector.load %arg12[%c2_44, %c2_45, %c0_46] : memref<18x18x4xf32, #tpu.memory_space<vmem>>, vector<16x16x4xf32>
    %59 = vector.shape_cast %58 : vector<16x16x4xf32> to vector<256x4xf32>
    %60 = tpu.concatenate %43, %45, %47, %49, %51, %53, %55, %57, %59 in 1 : vector<256x4xf32>, vector<256x4xf32>, vector<256x4xf32>, vector<256x4xf32>, vector<256x4xf32>, vector<256x4xf32>, vector<256x4xf32>, vector<256x4xf32>, vector<256x4xf32> -> vector<256x36xf32>
    %c0_47 = arith.constant 0 : index
    %c0_48 = arith.constant 0 : index
    %c0_49 = arith.constant 0 : index
    %61 = vector.load %arg6[%c0_47, %c0_48, %c0_49] : memref<2x36x4xbf16, #tpu.memory_space<vmem>>, vector<1x36x4xbf16>
    %62 = vector.shape_cast %61 : vector<1x36x4xbf16> to vector<36x4xbf16>
    %63 = arith.truncf %60 : vector<256x36xf32> to vector<256x36xbf16>
    %cst_50 = arith.constant dense<0.000000e+00> : vector<256x4xf32>
    %64 = tpu.matmul %63, %62, %cst_50 {dimension_numbers = #tpu.dot_dimension_numbers<[1], [0], [0], [1], [0, 0, 1, 1], [], []>} : vector<256x36xbf16>, vector<36x4xbf16>, vector<256x4xf32> -> vector<256x4xf32>
    %c0_51 = arith.constant 0 : index
    %c0_52 = arith.constant 0 : index
    %c0_53 = arith.constant 0 : index
    %65 = vector.load %arg7[%c0_51, %c0_52, %c0_53] : memref<2x2x4xf32, #tpu.memory_space<vmem>>, vector<1x2x4xf32>
    %66 = vector.shape_cast %65 : vector<1x2x4xf32> to vector<2x4xf32>
    %67 = vector.extract_strided_slice %66 {offsets = [0, 0], sizes = [1, 4], strides = [1, 1]} : vector<2x4xf32> to vector<1x4xf32>
    %68 = vector.broadcast %67 : vector<1x4xf32> to vector<256x4xf32>
    %69 = arith.mulf %64, %68 : vector<256x4xf32>
    %70 = vector.extract_strided_slice %66 {offsets = [1, 0], sizes = [1, 4], strides = [1, 1]} : vector<2x4xf32> to vector<1x4xf32>
    %71 = vector.broadcast %70 : vector<1x4xf32> to vector<256x4xf32>
    %72 = arith.addf %69, %71 : vector<256x4xf32>
    %73 = arith.negf %72 : vector<256x4xf32>
    %74 = math.exp %73 : vector<256x4xf32>
    %cst_54 = arith.constant 1.000000e+00 : f32
    %75 = vector.broadcast %cst_54 : f32 to vector<256x4xf32>
    %76 = arith.addf %75, %74 : vector<256x4xf32>
    %77 = arith.divf %75, %76 : vector<256x4xf32>
    %78 = arith.mulf %72, %77 : vector<256x4xf32>
    %79 = arith.addf %20, %78 : vector<256x4xf32>
    %c1_55 = arith.constant 1 : index
    %c0_56 = arith.constant 0 : index
    %c0_57 = arith.constant 0 : index
    %80 = vector.load %arg4[%c1_55, %c0_56, %c0_57] : memref<2x4x4xbf16, #tpu.memory_space<vmem>>, vector<1x4x4xbf16>
    %81 = vector.shape_cast %80 : vector<1x4x4xbf16> to vector<4x4xbf16>
    %82 = arith.truncf %79 : vector<256x4xf32> to vector<256x4xbf16>
    %cst_58 = arith.constant dense<0.000000e+00> : vector<256x4xf32>
    %83 = tpu.matmul %82, %81, %cst_58 {dimension_numbers = #tpu.dot_dimension_numbers<[1], [0], [0], [1], [0, 0, 1, 1], [], []>} : vector<256x4xbf16>, vector<4x4xbf16>, vector<256x4xf32> -> vector<256x4xf32>
    %c1_59 = arith.constant 1 : index
    %c0_60 = arith.constant 0 : index
    %c0_61 = arith.constant 0 : index
    %84 = vector.load %arg5[%c1_59, %c0_60, %c0_61] : memref<2x2x4xf32, #tpu.memory_space<vmem>>, vector<1x2x4xf32>
    %85 = vector.shape_cast %84 : vector<1x2x4xf32> to vector<2x4xf32>
    %86 = vector.extract_strided_slice %85 {offsets = [0, 0], sizes = [1, 4], strides = [1, 1]} : vector<2x4xf32> to vector<1x4xf32>
    %87 = vector.broadcast %86 : vector<1x4xf32> to vector<256x4xf32>
    %88 = arith.mulf %83, %87 : vector<256x4xf32>
    %89 = vector.extract_strided_slice %85 {offsets = [1, 0], sizes = [1, 4], strides = [1, 1]} : vector<2x4xf32> to vector<1x4xf32>
    %90 = vector.broadcast %89 : vector<1x4xf32> to vector<256x4xf32>
    %91 = arith.addf %88, %90 : vector<256x4xf32>
    %92 = arith.negf %91 : vector<256x4xf32>
    %93 = math.exp %92 : vector<256x4xf32>
    %cst_62 = arith.constant 1.000000e+00 : f32
    %94 = vector.broadcast %cst_62 : f32 to vector<256x4xf32>
    %95 = arith.addf %94, %93 : vector<256x4xf32>
    %96 = arith.divf %94, %95 : vector<256x4xf32>
    %97 = arith.mulf %91, %96 : vector<256x4xf32>
    %98 = vector.shape_cast %97 : vector<256x4xf32> to vector<16x16x4xf32>
    %c1_63 = arith.constant 1 : index
    %c1_64 = arith.constant 1 : index
    %c0_65 = arith.constant 0 : index
    %99 = vector.load %arg12[%c1_63, %c1_64, %c0_65] : memref<18x18x4xf32, #tpu.memory_space<vmem>>, vector<16x16x4xf32>
    tpu.vector_store %arg12[%c1_63, %c1_64, %c0_65], %98 {strides = array<i32>} : memref<18x18x4xf32, #tpu.memory_space<vmem>>, vector<16x16x4xf32>,
    %c0_66 = arith.constant 0 : index
    %c0_67 = arith.constant 0 : index
    %c0_68 = arith.constant 0 : index
    %100 = vector.load %arg12[%c0_66, %c0_67, %c0_68] : memref<18x18x4xf32, #tpu.memory_space<vmem>>, vector<16x16x4xf32>
    %101 = vector.shape_cast %100 : vector<16x16x4xf32> to vector<256x4xf32>
    %c0_69 = arith.constant 0 : index
    %c1_70 = arith.constant 1 : index
    %c0_71 = arith.constant 0 : index
    %102 = vector.load %arg12[%c0_69, %c1_70, %c0_71] : memref<18x18x4xf32, #tpu.memory_space<vmem>>, vector<16x16x4xf32>
    %103 = vector.shape_cast %102 : vector<16x16x4xf32> to vector<256x4xf32>
    %c0_72 = arith.constant 0 : index
    %c2_73 = arith.constant 2 : index
    %c0_74 = arith.constant 0 : index
    %104 = vector.load %arg12[%c0_72, %c2_73, %c0_74] : memref<18x18x4xf32, #tpu.memory_space<vmem>>, vector<16x16x4xf32>
    %105 = vector.shape_cast %104 : vector<16x16x4xf32> to vector<256x4xf32>
    %c1_75 = arith.constant 1 : index
    %c0_76 = arith.constant 0 : index
    %c0_77 = arith.constant 0 : index
    %106 = vector.load %arg12[%c1_75, %c0_76, %c0_77] : memref<18x18x4xf32, #tpu.memory_space<vmem>>, vector<16x16x4xf32>
    %107 = vector.shape_cast %106 : vector<16x16x4xf32> to vector<256x4xf32>
    %c1_78 = arith.constant 1 : index
    %c1_79 = arith.constant 1 : index
    %c0_80 = arith.constant 0 : index
    %108 = vector.load %arg12[%c1_78, %c1_79, %c0_80] : memref<18x18x4xf32, #tpu.memory_space<vmem>>, vector<16x16x4xf32>
    %109 = vector.shape_cast %108 : vector<16x16x4xf32> to vector<256x4xf32>
    %c1_81 = arith.constant 1 : index
    %c2_82 = arith.constant 2 : index
    %c0_83 = arith.constant 0 : index
    %110 = vector.load %arg12[%c1_81, %c2_82, %c0_83] : memref<18x18x4xf32, #tpu.memory_space<vmem>>, vector<16x16x4xf32>
    %111 = vector.shape_cast %110 : vector<16x16x4xf32> to vector<256x4xf32>
    %c2_84 = arith.constant 2 : index
    %c0_85 = arith.constant 0 : index
    %c0_86 = arith.constant 0 : index
    %112 = vector.load %arg12[%c2_84, %c0_85, %c0_86] : memref<18x18x4xf32, #tpu.memory_space<vmem>>, vector<16x16x4xf32>
    %113 = vector.shape_cast %112 : vector<16x16x4xf32> to vector<256x4xf32>
    %c2_87 = arith.constant 2 : index
    %c1_88 = arith.constant 1 : index
    %c0_89 = arith.constant 0 : index
    %114 = vector.load %arg12[%c2_87, %c1_88, %c0_89] : memref<18x18x4xf32, #tpu.memory_space<vmem>>, vector<16x16x4xf32>
    %115 = vector.shape_cast %114 : vector<16x16x4xf32> to vector<256x4xf32>
    %c2_90 = arith.constant 2 : index
    %c2_91 = arith.constant 2 : index
    %c0_92 = arith.constant 0 : index
    %116 = vector.load %arg12[%c2_90, %c2_91, %c0_92] : memref<18x18x4xf32, #tpu.memory_space<vmem>>, vector<16x16x4xf32>
    %117 = vector.shape_cast %116 : vector<16x16x4xf32> to vector<256x4xf32>
    %118 = tpu.concatenate %101, %103, %105, %107, %109, %111, %113, %115, %117 in 1 : vector<256x4xf32>, vector<256x4xf32>, vector<256x4xf32>, vector<256x4xf32>, vector<256x4xf32>, vector<256x4xf32>, vector<256x4xf32>, vector<256x4xf32>, vector<256x4xf32> -> vector<256x36xf32>
    %c1_93 = arith.constant 1 : index
    %c0_94 = arith.constant 0 : index
    %c0_95 = arith.constant 0 : index
    %119 = vector.load %arg6[%c1_93, %c0_94, %c0_95] : memref<2x36x4xbf16, #tpu.memory_space<vmem>>, vector<1x36x4xbf16>
    %120 = vector.shape_cast %119 : vector<1x36x4xbf16> to vector<36x4xbf16>
    %121 = arith.truncf %118 : vector<256x36xf32> to vector<256x36xbf16>
    %cst_96 = arith.constant dense<0.000000e+00> : vector<256x4xf32>
    %122 = tpu.matmul %121, %120, %cst_96 {dimension_numbers = #tpu.dot_dimension_numbers<[1], [0], [0], [1], [0, 0, 1, 1], [], []>} : vector<256x36xbf16>, vector<36x4xbf16>, vector<256x4xf32> -> vector<256x4xf32>
    %c1_97 = arith.constant 1 : index
    %c0_98 = arith.constant 0 : index
    %c0_99 = arith.constant 0 : index
    %123 = vector.load %arg7[%c1_97, %c0_98, %c0_99] : memref<2x2x4xf32, #tpu.memory_space<vmem>>, vector<1x2x4xf32>
    %124 = vector.shape_cast %123 : vector<1x2x4xf32> to vector<2x4xf32>
    %125 = vector.extract_strided_slice %124 {offsets = [0, 0], sizes = [1, 4], strides = [1, 1]} : vector<2x4xf32> to vector<1x4xf32>
    %126 = vector.broadcast %125 : vector<1x4xf32> to vector<256x4xf32>
    %127 = arith.mulf %122, %126 : vector<256x4xf32>
    %128 = vector.extract_strided_slice %124 {offsets = [1, 0], sizes = [1, 4], strides = [1, 1]} : vector<2x4xf32> to vector<1x4xf32>
    %129 = vector.broadcast %128 : vector<1x4xf32> to vector<256x4xf32>
    %130 = arith.addf %127, %129 : vector<256x4xf32>
    %131 = arith.negf %130 : vector<256x4xf32>
    %132 = math.exp %131 : vector<256x4xf32>
    %cst_100 = arith.constant 1.000000e+00 : f32
    %133 = vector.broadcast %cst_100 : f32 to vector<256x4xf32>
    %134 = arith.addf %133, %132 : vector<256x4xf32>
    %135 = arith.divf %133, %134 : vector<256x4xf32>
    %136 = arith.mulf %130, %135 : vector<256x4xf32>
    %137 = arith.addf %79, %136 : vector<256x4xf32>
    %c0_101 = arith.constant 0 : index
    %c0_102 = arith.constant 0 : index
    %138 = vector.load %arg8[%c0_101, %c0_102] : memref<4x8xbf16, #tpu.memory_space<vmem>>, vector<4x8xbf16>
    %139 = arith.truncf %137 : vector<256x4xf32> to vector<256x4xbf16>
    %cst_103 = arith.constant dense<0.000000e+00> : vector<256x8xf32>
    %140 = tpu.matmul %139, %138, %cst_103 {dimension_numbers = #tpu.dot_dimension_numbers<[1], [0], [0], [1], [0, 0, 1, 1], [], []>} : vector<256x4xbf16>, vector<4x8xbf16>, vector<256x8xf32> -> vector<256x8xf32>
    %c0_104 = arith.constant 0 : index
    %c0_105 = arith.constant 0 : index
    %141 = vector.load %arg9[%c0_104, %c0_105] : memref<4x8xbf16, #tpu.memory_space<vmem>>, vector<4x8xbf16>
    %142 = arith.truncf %21 : vector<256x4xf32> to vector<256x4xbf16>
    %cst_106 = arith.constant dense<0.000000e+00> : vector<256x8xf32>
    %143 = tpu.matmul %142, %141, %cst_106 {dimension_numbers = #tpu.dot_dimension_numbers<[1], [0], [0], [1], [0, 0, 1, 1], [], []>} : vector<256x4xbf16>, vector<4x8xbf16>, vector<256x8xf32> -> vector<256x8xf32>
    %144 = arith.addf %140, %143 : vector<256x8xf32>
    %c0_107 = arith.constant 0 : index
    %c0_108 = arith.constant 0 : index
    %145 = vector.load %arg10[%c0_107, %c0_108] : memref<2x8xf32, #tpu.memory_space<vmem>>, vector<2x8xf32>
    %146 = vector.extract_strided_slice %145 {offsets = [0, 0], sizes = [1, 8], strides = [1, 1]} : vector<2x8xf32> to vector<1x8xf32>
    %147 = vector.broadcast %146 : vector<1x8xf32> to vector<256x8xf32>
    %148 = arith.mulf %144, %147 : vector<256x8xf32>
    %149 = vector.extract_strided_slice %145 {offsets = [1, 0], sizes = [1, 8], strides = [1, 1]} : vector<2x8xf32> to vector<1x8xf32>
    %150 = vector.broadcast %149 : vector<1x8xf32> to vector<256x8xf32>
    %151 = arith.addf %148, %150 : vector<256x8xf32>
    %152 = arith.negf %151 : vector<256x8xf32>
    %153 = math.exp %152 : vector<256x8xf32>
    %cst_109 = arith.constant 1.000000e+00 : f32
    %154 = vector.broadcast %cst_109 : f32 to vector<256x8xf32>
    %155 = arith.addf %154, %153 : vector<256x8xf32>
    %156 = arith.divf %154, %155 : vector<256x8xf32>
    %157 = arith.mulf %151, %156 : vector<256x8xf32>
    %c0_110 = arith.constant 0 : index
    %c0_111 = arith.constant 0 : index
    %c0_112 = arith.constant 0 : index
    %158 = vector.load %arg11[%c0_110, %c0_111, %c0_112] : memref<1x256x8xf32, #tpu.memory_space<vmem>>, vector<1x256x8xf32>
    %159 = vector.shape_cast %158 : vector<1x256x8xf32> to vector<256x8xf32>
    %160 = vector.shape_cast %157 : vector<256x8xf32> to vector<1x256x8xf32>
    tpu.vector_store %arg11[%c0_110, %c0_111, %c0_112], %160 {strides = array<i32>} : memref<1x256x8xf32, #tpu.memory_space<vmem>>, vector<1x256x8xf32>,
    return
  }
  func.func @transform_0(%arg0: i32) -> (i32, i32, i32) {
    %c0_i32 = arith.constant 0 : i32
    %c0_i32_0 = arith.constant 0 : i32
    %c0_i32_1 = arith.constant 0 : i32
    return %arg0, %c0_i32, %c0_i32_0 : i32, i32, i32
  }
  func.func @transform_1(%arg0: i32) -> (i32, i32) {
    %c0_i32 = arith.constant 0 : i32
    %c0_i32_0 = arith.constant 0 : i32
    %c0_i32_1 = arith.constant 0 : i32
    return %c0_i32, %c0_i32_0 : i32, i32
  }
  func.func @transform_2(%arg0: i32) -> (i32, i32) {
    %c0_i32 = arith.constant 0 : i32
    %c0_i32_0 = arith.constant 0 : i32
    %c0_i32_1 = arith.constant 0 : i32
    return %c0_i32, %c0_i32_0 : i32, i32
  }
  func.func @transform_3(%arg0: i32) -> (i32, i32, i32) {
    %c0_i32 = arith.constant 0 : i32
    %c0_i32_0 = arith.constant 0 : i32
    %c0_i32_1 = arith.constant 0 : i32
    %c0_i32_2 = arith.constant 0 : i32
    return %c0_i32, %c0_i32_0, %c0_i32_1 : i32, i32, i32
  }
  func.func @transform_4(%arg0: i32) -> (i32, i32, i32) {
    %c0_i32 = arith.constant 0 : i32
    %c0_i32_0 = arith.constant 0 : i32
    %c0_i32_1 = arith.constant 0 : i32
    %c0_i32_2 = arith.constant 0 : i32
    return %c0_i32, %c0_i32_0, %c0_i32_1 : i32, i32, i32
  }
  func.func @transform_5(%arg0: i32) -> (i32, i32, i32) {
    %c0_i32 = arith.constant 0 : i32
    %c0_i32_0 = arith.constant 0 : i32
    %c0_i32_1 = arith.constant 0 : i32
    %c0_i32_2 = arith.constant 0 : i32
    return %c0_i32, %c0_i32_0, %c0_i32_1 : i32, i32, i32
  }
  func.func @transform_6(%arg0: i32) -> (i32, i32, i32) {
    %c0_i32 = arith.constant 0 : i32
    %c0_i32_0 = arith.constant 0 : i32
    %c0_i32_1 = arith.constant 0 : i32
    %c0_i32_2 = arith.constant 0 : i32
    return %c0_i32, %c0_i32_0, %c0_i32_1 : i32, i32, i32
  }
  func.func @transform_7(%arg0: i32) -> (i32, i32) {
    %c0_i32 = arith.constant 0 : i32
    %c0_i32_0 = arith.constant 0 : i32
    %c0_i32_1 = arith.constant 0 : i32
    return %c0_i32, %c0_i32_0 : i32, i32
  }
  func.func @transform_8(%arg0: i32) -> (i32, i32) {
    %c0_i32 = arith.constant 0 : i32
    %c0_i32_0 = arith.constant 0 : i32
    %c0_i32_1 = arith.constant 0 : i32
    return %c0_i32, %c0_i32_0 : i32, i32
  }
  func.func @transform_9(%arg0: i32) -> (i32, i32) {
    %c0_i32 = arith.constant 0 : i32
    %c0_i32_0 = arith.constant 0 : i32
    %c0_i32_1 = arith.constant 0 : i32
    return %c0_i32, %c0_i32_0 : i32, i32
  }
  func.func @transform_10(%arg0: i32) -> (i32, i32, i32) {
    %c0_i32 = arith.constant 0 : i32
    %c0_i32_0 = arith.constant 0 : i32
    %c0_i32_1 = arith.constant 0 : i32
    return %arg0, %c0_i32, %c0_i32_0 : i32, i32, i32
  }
}

</mosaic_0001>

<llo_original>
// kernel: tpu_custom_call.1
$region0: #{tpu_custom_call.1}
  #allocation0 [shape = 'u32[]', space=smem, size = 0x4, offset = 0x4, fixed_abs, tag = 'smem constant byte address 0x4 - core index']
  #allocation1 [shape = 'u32[144,128]{1,0:T(1,128)}', space=vmem, size = 0x12000, scoped, tag = 'internal scratch']
  #allocation2 [shape = 'f32[18,18,4]{2,1,0:T(8,128)}', space=vmem, size = 0x36000, scoped, tag = 'scratch operand']
  %s0 = inlined_call_operand.vmem [shape: f32[2,256,4], index: 0, kind: input, shape index: {}]
  %s1 = inlined_call_operand.vmem [shape: bf16[4,8], index: 1, kind: input, shape index: {}]
  %s2 = inlined_call_operand.vmem [shape: f32[2,8], index: 2, kind: input, shape index: {}]
  %s3 = inlined_call_operand.vmem [shape: bf16[2,4,4], index: 3, kind: input, shape index: {}]
  %s4 = inlined_call_operand.vmem [shape: f32[2,2,4], index: 4, kind: input, shape index: {}]
  %s5 = inlined_call_operand.vmem [shape: bf16[2,36,4], index: 5, kind: input, shape index: {}]
  %s6 = inlined_call_operand.vmem [shape: f32[2,2,4], index: 6, kind: input, shape index: {}]
  %s7 = inlined_call_operand.vmem [shape: bf16[4,8], index: 7, kind: input, shape index: {}]
  %s8 = inlined_call_operand.vmem [shape: bf16[4,8], index: 8, kind: input, shape index: {}]
  %s9 = inlined_call_operand.vmem [shape: f32[2,8], index: 9, kind: input, shape index: {}]
  %s10 = inlined_call_operand.vmem [shape: f32[2,256,8], index: 10, kind: output, shape index: {}]
  %s11 = sld [smem:[#allocation0]]
  $region73: #{tpu_custom_call.1} parent=0
    _
  %s13 = ssub.s32 1, %s11
  %s14 = scalar_select 0, %s13, %s11
  loop: start=0, step=1, limit=4
  $region2: #{tpu_custom_call.1} parent=0 // loop_pre_header
    _
  $region3: #{tpu_custom_call.1} parent=0 // loop_header
    %s16 = sphi 0, %s20
    %p17 = scmp.ge.s32.totalorder %s16, 4
    %s26 = sphi 0, %s28
    %s29 = sphi 0, %s26
    %s30 = sphi 0, %s29
    %s46 = sphi 0, %s30
    %s50 = sphi 0, %s50
    %s52 = sphi 0, %s50
    %s53 = sphi 0, %s52
    %s67 = sphi 0, %s53
    %s71 = sphi 0, %s71
    %s73 = sphi 0, %s71
    %s74 = sphi 0, %s73
    %s88 = sphi 0, %s74
    %s92 = sphi 0, %s92
    %s94 = sphi 0, %s92
    %s95 = sphi 0, %s94
    %s109 = sphi 0, %s95
    %s113 = sphi 0, %s113
    %s115 = sphi 0, %s113
    %s116 = sphi 0, %s115
    %s130 = sphi 0, %s116
    %s134 = sphi 0, %s134
    %s136 = sphi 0, %s134
    %s137 = sphi 0, %s136
    %s151 = sphi 0, %s137
    %s155 = sphi 0, %s155
    %s157 = sphi 0, %s155
    %s158 = sphi 0, %s157
    %s172 = sphi 0, %s158
    %s176 = sphi 0, %s176
    %s178 = sphi 0, %s176
    %s179 = sphi 0, %s178
    %s193 = sphi 0, %s179
    %s197 = sphi 0, %s197
    %s199 = sphi 0, %s197
    %s200 = sphi 0, %s199
    %s214 = sphi 0, %s200
    %s218 = sphi 0, %s218
    %s220 = sphi 0, %s218
    %s221 = sphi 0, %s220
    %s235 = sphi 0, %s221
    %s241 = sphi 0, %s243
    %s244 = sphi 0, %s241
    %s245 = sphi 0, %s244
    %s261 = sphi 0, %s245
  $region4: #{tpu_custom_call.1} parent=0 // loop_header_branch
    %19 = sbr.rel (%p17) target = $region8
  $region5: #{tpu_custom_call.1} parent=0 // loop_body
    %s21 = ssub.s32 %s16, 1
    %s22 = ssub.s32 %s16, 2
    %s23 = sadd.s32 %s16, 1
    %s24 = ssub.s32 %s16, %s23
    %p25 = scmp.eq.s32.totalorder %s24, 0
    %s27 = sadd.s32 %s26, 1
    %s28 = scalar_select %p25, %s26, %s27
    %p31 = pneg %p25
    %p32 = scmp.eq.s32.totalorder %s16, 1
    %p33 = por %p31, %p32
    %p34 = scmp.ne.s32.totalorder %s26, %s29
    %p35 = scmp.eq.s32.totalorder %s16, 0
    %p36 = por %p34, %p35
    %p37 = scmp.ne.s32.totalorder %s26, %s29
    %p38 = scmp.eq.s32.totalorder %s21, 1
    %p39 = por %p37, %p38
    %p40 = scmp.ne.s32.totalorder %s29, %s30
    %p41 = scmp.eq.s32.totalorder %s21, 0
    %p42 = por %p40, %p41
    %p43 = scmp.ne.s32.totalorder %s29, %s30
    %p44 = scmp.eq.s32.totalorder %s22, 1
    %p45 = por %p43, %p44
    %p47 = scmp.ne.s32.totalorder %s30, %s46
    %p48 = scmp.eq.s32.totalorder %s22, 0
    %p49 = por %p47, %p48
    %s51 = sadd.s32 %s50, 1
    %p54 = scmp.eq.s32.totalorder %s16, 1
    %p55 = scmp.ne.s32.totalorder %s50, %s52
    %p56 = scmp.eq.s32.totalorder %s16, 0
    %p57 = por %p55, %p56
    %p58 = scmp.ne.s32.totalorder %s50, %s52
    %p59 = scmp.eq.s32.totalorder %s21, 1
    %p60 = por %p58, %p59
    %p61 = scmp.ne.s32.totalorder %s52, %s53
    %p62 = scmp.eq.s32.totalorder %s21, 0
    %p63 = por %p61, %p62
    %p64 = scmp.ne.s32.totalorder %s52, %s53
    %p65 = scmp.eq.s32.totalorder %s22, 1
    %p66 = por %p64, %p65
    %p68 = scmp.ne.s32.totalorder %s53, %s67
    %p69 = scmp.eq.s32.totalorder %s22, 0
    %p70 = por %p68, %p69
    %s72 = sadd.s32 %s71, 1
    %p75 = scmp.eq.s32.totalorder %s16, 1
    %p76 = scmp.ne.s32.totalorder %s71, %s73
    %p77 = scmp.eq.s32.totalorder %s16, 0
    %p78 = por %p76, %p77
    %p79 = scmp.ne.s32.totalorder %s71, %s73
    %p80 = scmp.eq.s32.totalorder %s21, 1
    %p81 = por %p79, %p80
    %p82 = scmp.ne.s32.totalorder %s73, %s74
    %p83 = scmp.eq.s32.totalorder %s21, 0
    %p84 = por %p82, %p83
    %p85 = scmp.ne.s32.totalorder %s73, %s74
    %p86 = scmp.eq.s32.totalorder %s22, 1
    %p87 = por %p85, %p86
    %p89 = scmp.ne.s32.totalorder %s74, %s88
    %p90 = scmp.eq.s32.totalorder %s22, 0
    %p91 = por %p89, %p90
    %s93 = sadd.s32 %s92, 1
    %p96 = scmp.eq.s32.totalorder %s16, 1
    %p97 = scmp.ne.s32.totalorder %s92, %s94
    %p98 = scmp.eq.s32.totalorder %s16, 0
    %p99 = por %p97, %p98
    %p100 = scmp.ne.s32.totalorder %s92, %s94
    %p101 = scmp.eq.s32.totalorder %s21, 1
    %p102 = por %p100, %p101
    %p103 = scmp.ne.s32.totalorder %s94, %s95
    %p104 = scmp.eq.s32.totalorder %s21, 0
    %p105 = por %p103, %p104
    %p106 = scmp.ne.s32.totalorder %s94, %s95
    %p107 = scmp.eq.s32.totalorder %s22, 1
    %p108 = por %p106, %p107
    %p110 = scmp.ne.s32.totalorder %s95, %s109
    %p111 = scmp.eq.s32.totalorder %s22, 0
    %p112 = por %p110, %p111
    %s114 = sadd.s32 %s113, 1
    %p117 = scmp.eq.s32.totalorder %s16, 1
    %p118 = scmp.ne.s32.totalorder %s113, %s115
    %p119 = scmp.eq.s32.totalorder %s16, 0
    %p120 = por %p118, %p119
    %p121 = scmp.ne.s32.totalorder %s113, %s115
    %p122 = scmp.eq.s32.totalorder %s21, 1
    %p123 = por %p121, %p122
    %p124 = scmp.ne.s32.totalorder %s115, %s116
    %p125 = scmp.eq.s32.totalorder %s21, 0
    %p126 = por %p124, %p125
    %p127 = scmp.ne.s32.totalorder %s115, %s116
    %p128 = scmp.eq.s32.totalorder %s22, 1
    %p129 = por %p127, %p128
    %p131 = scmp.ne.s32.totalorder %s116, %s130
    %p132 = scmp.eq.s32.totalorder %s22, 0
    %p133 = por %p131, %p132
    %s135 = sadd.s32 %s134, 1
    %p138 = scmp.eq.s32.totalorder %s16, 1
    %p139 = scmp.ne.s32.totalorder %s134, %s136
    %p140 = scmp.eq.s32.totalorder %s16, 0
    %p141 = por %p139, %p140
    %p142 = scmp.ne.s32.totalorder %s134, %s136
    %p143 = scmp.eq.s32.totalorder %s21, 1
    %p144 = por %p142, %p143
    %p145 = scmp.ne.s32.totalorder %s136, %s137
    %p146 = scmp.eq.s32.totalorder %s21, 0
    %p147 = por %p145, %p146
    %p148 = scmp.ne.s32.totalorder %s136, %s137
    %p149 = scmp.eq.s32.totalorder %s22, 1
    %p150 = por %p148, %p149
    %p152 = scmp.ne.s32.totalorder %s137, %s151
    %p153 = scmp.eq.s32.totalorder %s22, 0
    %p154 = por %p152, %p153
    %s156 = sadd.s32 %s155, 1
    %p159 = scmp.eq.s32.totalorder %s16, 1
    %p160 = scmp.ne.s32.totalorder %s155, %s157
    %p161 = scmp.eq.s32.totalorder %s16, 0
    %p162 = por %p160, %p161
    %p163 = scmp.ne.s32.totalorder %s155, %s157
    %p164 = scmp.eq.s32.totalorder %s21, 1
    %p165 = por %p163, %p164
    %p166 = scmp.ne.s32.totalorder %s157, %s158
    %p167 = scmp.eq.s32.totalorder %s21, 0
    %p168 = por %p166, %p167
    %p169 = scmp.ne.s32.totalorder %s157, %s158
    %p170 = scmp.eq.s32.totalorder %s22, 1
    %p171 = por %p169, %p170
    %p173 = scmp.ne.s32.totalorder %s158, %s172
    %p174 = scmp.eq.s32.totalorder %s22, 0
    %p175 = por %p173, %p174
    %s177 = sadd.s32 %s176, 1
    %p180 = scmp.eq.s32.totalorder %s16, 1
    %p181 = scmp.ne.s32.totalorder %s176, %s178
    %p182 = scmp.eq.s32.totalorder %s16, 0
    %p183 = por %p181, %p182
    %p184 = scmp.ne.s32.totalorder %s176, %s178
    %p185 = scmp.eq.s32.totalorder %s21, 1
    %p186 = por %p184, %p185
    %p187 = scmp.ne.s32.totalorder %s178, %s179
    %p188 = scmp.eq.s32.totalorder %s21, 0
    %p189 = por %p187, %p188
    %p190 = scmp.ne.s32.totalorder %s178, %s179
    %p191 = scmp.eq.s32.totalorder %s22, 1
    %p192 = por %p190, %p191
    %p194 = scmp.ne.s32.totalorder %s179, %s193
    %p195 = scmp.eq.s32.totalorder %s22, 0
    %p196 = por %p194, %p195
    %s198 = sadd.s32 %s197, 1
    %p201 = scmp.eq.s32.totalorder %s16, 1
    %p202 = scmp.ne.s32.totalorder %s197, %s199
    %p203 = scmp.eq.s32.totalorder %s16, 0
    %p204 = por %p202, %p203
    %p205 = scmp.ne.s32.totalorder %s197, %s199
    %p206 = scmp.eq.s32.totalorder %s21, 1
    %p207 = por %p205, %p206
    %p208 = scmp.ne.s32.totalorder %s199, %s200
    %p209 = scmp.eq.s32.totalorder %s21, 0
    %p210 = por %p208, %p209
    %p211 = scmp.ne.s32.totalorder %s199, %s200
    %p212 = scmp.eq.s32.totalorder %s22, 1
    %p213 = por %p211, %p212
    %p215 = scmp.ne.s32.totalorder %s200, %s214
    %p216 = scmp.eq.s32.totalorder %s22, 0
    %p217 = por %p215, %p216
    %s219 = sadd.s32 %s218, 1
    %p222 = scmp.eq.s32.totalorder %s16, 1
    %p223 = scmp.ne.s32.totalorder %s218, %s220
    %p224 = scmp.eq.s32.totalorder %s16, 0
    %p225 = por %p223, %p224
    %p226 = scmp.ne.s32.totalorder %s218, %s220
    %p227 = scmp.eq.s32.totalorder %s21, 1
    %p228 = por %p226, %p227
    %p229 = scmp.ne.s32.totalorder %s220, %s221
    %p230 = scmp.eq.s32.totalorder %s21, 0
    %p231 = por %p229, %p230
    %p232 = scmp.ne.s32.totalorder %s220, %s221
    %p233 = scmp.eq.s32.totalorder %s22, 1
    %p234 = por %p232, %p233
    %p236 = scmp.ne.s32.totalorder %s221, %s235
    %p237 = scmp.eq.s32.totalorder %s22, 0
    %p238 = por %p236, %p237
    %s239 = ssub.s32 %s16, %s23
    %p240 = scmp.eq.s32.totalorder %s239, 0
    %s242 = sadd.s32 %s241, 1
    %s243 = scalar_select %p240, %s241, %s242
    %p246 = pneg %p240
    %p247 = scmp.eq.s32.totalorder %s16, 1
    %p248 = por %p246, %p247
    %p249 = scmp.ne.s32.totalorder %s241, %s244
    %p250 = scmp.eq.s32.totalorder %s16, 0
    %p251 = por %p249, %p250
    %p252 = scmp.ne.s32.totalorder %s241, %s244
    %p253 = scmp.eq.s32.totalorder %s21, 1
    %p254 = por %p252, %p253
    %p255 = scmp.ne.s32.totalorder %s244, %s245
    %p256 = scmp.eq.s32.totalorder %s21, 0
    %p257 = por %p255, %p256
    %p258 = scmp.ne.s32.totalorder %s244, %s245
    %p259 = scmp.eq.s32.totalorder %s22, 1
    %p260 = por %p258, %p259
    %p262 = scmp.ne.s32.totalorder %s245, %s261
    %p263 = scmp.eq.s32.totalorder %s22, 0
    %p264 = por %p262, %p263
    %p265 = scmp.le.s32.totalorder 1, %s16
    %p266 = scmp.lt.s32.totalorder %s16, 3
    %p267 = pnand %p265, %p266
    %p268 = pneg %p267
    // Predicated region
    $region9: #{tpu_custom_call.1} parent=5 // pred_check
      _
    $region10: #{tpu_custom_call.1} parent=5 // pred_check_branch
      %270 = sbr.rel (%p267) target = $region12
    $region11: #{tpu_custom_call.1} parent=5 // pred_region
      %s271 = ssub.s32 %s16, 1
      // Predicated region
      $region13: #{tpu_custom_call.1} parent=11 // pred_check
        %p272 = pneg %p63
      $region14: #{tpu_custom_call.1} parent=11 // pred_check_branch
        %274 = sbr.rel (%p272) target = $region16
      $region15: #{tpu_custom_call.1} parent=11 // pred_region
        _
      $region16: #{tpu_custom_call.1} parent=11 // pred_fallthru
        _
      // Predicated region
      $region17: #{tpu_custom_call.1} parent=11 // pred_check
        %p275 = pneg %p84
      $region18: #{tpu_custom_call.1} parent=11 // pred_check_branch
        %277 = sbr.rel (%p275) target = $region20
      $region19: #{tpu_custom_call.1} parent=11 // pred_region
        _
      $region20: #{tpu_custom_call.1} parent=11 // pred_fallthru
        _
      // Predicated region
      $region21: #{tpu_custom_call.1} parent=11 // pred_check
        %p278 = pneg %p105
      $region22: #{tpu_custom_call.1} parent=11 // pred_check_branch
        %280 = sbr.rel (%p278) target = $region24
      $region23: #{tpu_custom_call.1} parent=11 // pred_region
        _
      $region24: #{tpu_custom_call.1} parent=11 // pred_fallthru
        _
      // Predicated region
      $region25: #{tpu_custom_call.1} parent=11 // pred_check
        %p281 = pneg %p126
      $region26: #{tpu_custom_call.1} parent=11 // pred_check_branch
        %283 = sbr.rel (%p281) target = $region28
      $region27: #{tpu_custom_call.1} parent=11 // pred_region
        _
      $region28: #{tpu_custom_call.1} parent=11 // pred_fallthru
        _
      // Predicated region
      $region29: #{tpu_custom_call.1} parent=11 // pred_check
        %p284 = pneg %p147
      $region30: #{tpu_custom_call.1} parent=11 // pred_check_branch
        %286 = sbr.rel (%p284) target = $region32
      $region31: #{tpu_custom_call.1} parent=11 // pred_region
        _
      $region32: #{tpu_custom_call.1} parent=11 // pred_fallthru
        _
      // Predicated region
      $region33: #{tpu_custom_call.1} parent=11 // pred_check
        %p287 = pneg %p168
      $region34: #{tpu_custom_call.1} parent=11 // pred_check_branch
        %289 = sbr.rel (%p287) target = $region36
      $region35: #{tpu_custom_call.1} parent=11 // pred_region
        _
      $region36: #{tpu_custom_call.1} parent=11 // pred_fallthru
        _
      // Predicated region
      $region37: #{tpu_custom_call.1} parent=11 // pred_check
        %p290 = pneg %p189
      $region38: #{tpu_custom_call.1} parent=11 // pred_check_branch
        %292 = sbr.rel (%p290) target = $region40
      $region39: #{tpu_custom_call.1} parent=11 // pred_region
        _
      $region40: #{tpu_custom_call.1} parent=11 // pred_fallthru
        _
      // Predicated region
      $region41: #{tpu_custom_call.1} parent=11 // pred_check
        %p293 = pneg %p210
      $region42: #{tpu_custom_call.1} parent=11 // pred_check_branch
        %295 = sbr.rel (%p293) target = $region44
      $region43: #{tpu_custom_call.1} parent=11 // pred_region
        _
      $region44: #{tpu_custom_call.1} parent=11 // pred_fallthru
        _
      // Predicated region
      $region45: #{tpu_custom_call.1} parent=11 // pred_check
        %p296 = pneg %p231
      $region46: #{tpu_custom_call.1} parent=11 // pred_check_branch
        %298 = sbr.rel (%p296) target = $region48
      $region47: #{tpu_custom_call.1} parent=11 // pred_region
        _
      $region48: #{tpu_custom_call.1} parent=11 // pred_fallthru
        _
    $region12: #{tpu_custom_call.1} parent=5 // pred_fallthru
      _
    %p299 = scmp.lt.s32.totalorder %s16, 2
    // Predicated region
    $region49: #{tpu_custom_call.1} parent=5 // pred_check
      %p300 = pneg %p299
    $region50: #{tpu_custom_call.1} parent=5 // pred_check_branch
      %302 = sbr.rel (%p300) target = $region52
    $region51: #{tpu_custom_call.1} parent=5 // pred_region
      // Predicated region
      $region53: #{tpu_custom_call.1} parent=51 // pred_check
        %p303 = pneg %p36
      $region54: #{tpu_custom_call.1} parent=51 // pred_check_branch
        %305 = sbr.rel (%p303) target = $region56
      $region55: #{tpu_custom_call.1} parent=51 // pred_region
        %p306 = scmp.lt.s32.totalorder %s16, 1
        %s307 = scalar_select %p306, %s16, 1
        %s308 = smul.addr %s307, 32
        %s309 = smul.addr %s308, 8
        %s310 = scalar_lea.vmem %s0, %s309
      $region56: #{tpu_custom_call.1} parent=51 // pred_fallthru
        _
    $region52: #{tpu_custom_call.1} parent=5 // pred_fallthru
      _
    %p311 = scmp.le.s32.totalorder 1, %s16
    %p312 = scmp.lt.s32.totalorder %s16, 3
    %p313 = pnand %p311, %p312
    %p314 = pneg %p313
    // Predicated region
    $region57: #{tpu_custom_call.1} parent=5 // pred_check
      _
    $region58: #{tpu_custom_call.1} parent=5 // pred_check_branch
      %316 = sbr.rel (%p313) target = $region60
    $region59: #{tpu_custom_call.1} parent=5 // pred_region
      %s317 = ssub.s32 %s16, 1
      %p318 = scmp.lt.s32.totalorder %s21, 1
      %s319 = scalar_select %p318, %s21, 1
      %s320 = smul.addr %s319, 32
      %s321 = smul.addr %s320, 8
      %s322 = scalar_lea.vmem %s0, %s321
      %p323 = pneg %p42
      %p324 = pneg %p39
      %p325 = pneg %p63
      %p326 = pneg %p60
      %p327 = pneg %p84
      %p328 = pneg %p81
      %p329 = pneg %p105
      %p330 = pneg %p102
      %p331 = pneg %p126
      %p332 = pneg %p123
      %p333 = pneg %p147
      %p334 = pneg %p144
      %p335 = pneg %p168
      %p336 = pneg %p165
      %p337 = pneg %p189
      %p338 = pneg %p186
      %p339 = pneg %p210
      %p340 = pneg %p207
      %p341 = pneg %p231
      %p342 = pneg %p228
      %p343 = pneg %p257
      %p344 = pneg %p254
      %p345 = scmp.lt.s32.totalorder %s21, 1
      %s346 = scalar_select %p345, %s21, 1
      %s347 = smul.addr %s346, 32
      %s348 = smul.addr %s347, 8
      %s349 = scalar_lea.vmem %s10, %s348
      %p350 = scmp.lt.s32.totalorder %s21, 1
      %s351 = scalar_select %p350, %s21, 1
      %s352 = smul.addr %s351, 32
      %s353 = smul.addr %s352, 8
      %s354 = scalar_lea.vmem %s0, %s353
      %p355 = scmp.lt.s32.totalorder %s21, 1
      %s356 = scalar_select %p355, %s21, 1
      %s357 = smul.addr %s356, 32
      %s358 = smul.addr %s357, 8
      %s359 = scalar_lea.vmem %s10, %s358
      %vm361 = vcmask 31744
      %362 = vst.msk [vmem:[#allocation2] sm:$0xff] %vm361, 0.0
      %363 = vst.msk [vmem:[#allocation2 + $0x8] sm:$0xff] %vm361, 0.0
      %vm364 = vcmask 25600
      %365 = vst.msk [vmem:[#allocation2 + $0x10] sm:$0x3] %vm364, 0.0
      %366 = vst.msk [vmem:[#allocation2 + $0x18] sm:$0xff] %vm361, 0.0
      %367 = vst.msk [vmem:[#allocation2 + $0x20] sm:$0xff] %vm361, 0.0
      %368 = vst.msk [vmem:[#allocation2 + $0x28] sm:$0x3] %vm364, 0.0
      %369 = vst.msk [vmem:[#allocation2 + $0x30] sm:$0xff] %vm361, 0.0
      %370 = vst.msk [vmem:[#allocation2 + $0x38] sm:$0xff] %vm361, 0.0
      %371 = vst.msk [vmem:[#allocation2 + $0x40] sm:$0x3] %vm364, 0.0
      %372 = vst.msk [vmem:[#allocation2 + $0x48] sm:$0xff] %vm361, 0.0
      %373 = vst.msk [vmem:[#allocation2 + $0x50] sm:$0xff] %vm361, 0.0
      %374 = vst.msk [vmem:[#allocation2 + $0x58] sm:$0x3] %vm364, 0.0
      %375 = vst.msk [vmem:[#allocation2 + $0x60] sm:$0xff] %vm361, 0.0
      %376 = vst.msk [vmem:[#allocation2 + $0x68] sm:$0xff] %vm361, 0.0
      %377 = vst.msk [vmem:[#allocation2 + $0x70] sm:$0x3] %vm364, 0.0
      %378 = vst.msk [vmem:[#allocation2 + $0x78] sm:$0xff] %vm361, 0.0
      %379 = vst.msk [vmem:[#allocation2 + $0x80] sm:$0xff] %vm361, 0.0
      %380 = vst.msk [vmem:[#allocation2 + $0x88] sm:$0x3] %vm364, 0.0
      %381 = vst.msk [vmem:[#allocation2 + $0x90] sm:$0xff] %vm361, 0.0
      %382 = vst.msk [vmem:[#allocation2 + $0x98] sm:$0xff] %vm361, 0.0
      %383 = vst.msk [vmem:[#allocation2 + $0xa0] sm:$0x3] %vm364, 0.0
      %384 = vst.msk [vmem:[#allocation2 + $0xa8] sm:$0xff] %vm361, 0.0
      %385 = vst.msk [vmem:[#allocation2 + $0xb0] sm:$0xff] %vm361, 0.0
      %386 = vst.msk [vmem:[#allocation2 + $0xb8] sm:$0x3] %vm364, 0.0
      %387 = vst.msk [vmem:[#allocation2 + $0xc0] sm:$0xff] %vm361, 0.0
      %388 = vst.msk [vmem:[#allocation2 + $0xc8] sm:$0xff] %vm361, 0.0
      %389 = vst.msk [vmem:[#allocation2 + $0xd0] sm:$0x3] %vm364, 0.0
      %390 = vst.msk [vmem:[#allocation2 + $0xd8] sm:$0xff] %vm361, 0.0
      %391 = vst.msk [vmem:[#allocation2 + $0xe0] sm:$0xff] %vm361, 0.0
      %392 = vst.msk [vmem:[#allocation2 + $0xe8] sm:$0x3] %vm364, 0.0
      %393 = vst.msk [vmem:[#allocation2 + $0xf0] sm:$0xff] %vm361, 0.0
      %394 = vst.msk [vmem:[#allocation2 + $0xf8] sm:$0xff] %vm361, 0.0
      %395 = vst.msk [vmem:[#allocation2 + $0x100] sm:$0x3] %vm364, 0.0
      %396 = vst.msk [vmem:[#allocation2 + $0x108] sm:$0xff] %vm361, 0.0
      %397 = vst.msk [vmem:[#allocation2 + $0x110] sm:$0xff] %vm361, 0.0
      %398 = vst.msk [vmem:[#allocation2 + $0x118] sm:$0x3] %vm364, 0.0
      %399 = vst.msk [vmem:[#allocation2 + $0x120] sm:$0xff] %vm361, 0.0
      %400 = vst.msk [vmem:[#allocation2 + $0x128] sm:$0xff] %vm361, 0.0
      %401 = vst.msk [vmem:[#allocation2 + $0x130] sm:$0x3] %vm364, 0.0
      %402 = vst.msk [vmem:[#allocation2 + $0x138] sm:$0xff] %vm361, 0.0
      %403 = vst.msk [vmem:[#allocation2 + $0x140] sm:$0xff] %vm361, 0.0
      %404 = vst.msk [vmem:[#allocation2 + $0x148] sm:$0x3] %vm364, 0.0
      %405 = vst.msk [vmem:[#allocation2 + $0x150] sm:$0xff] %vm361, 0.0
      %406 = vst.msk [vmem:[#allocation2 + $0x158] sm:$0xff] %vm361, 0.0
      %407 = vst.msk [vmem:[#allocation2 + $0x160] sm:$0x3] %vm364, 0.0
      %408 = vst.msk [vmem:[#allocation2 + $0x168] sm:$0xff] %vm361, 0.0
      %409 = vst.msk [vmem:[#allocation2 + $0x170] sm:$0xff] %vm361, 0.0
      %410 = vst.msk [vmem:[#allocation2 + $0x178] sm:$0x3] %vm364, 0.0
      %411 = vst.msk [vmem:[#allocation2 + $0x180] sm:$0xff] %vm361, 0.0
      %412 = vst.msk [vmem:[#allocation2 + $0x188] sm:$0xff] %vm361, 0.0
      %413 = vst.msk [vmem:[#allocation2 + $0x190] sm:$0x3] %vm364, 0.0
      %414 = vst.msk [vmem:[#allocation2 + $0x198] sm:$0xff] %vm361, 0.0
      %415 = vst.msk [vmem:[#allocation2 + $0x1a0] sm:$0xff] %vm361, 0.0
      %416 = vst.msk [vmem:[#allocation2 + $0x1a8] sm:$0x3] %vm364, 0.0
      %v417 = vld [vmem:[%s354] sm:$0xff]
      %v418 = vld [vmem:[%s354 + $0x8] sm:$0xff]
      %v419 = vld [vmem:[%s354 + $0x10] sm:$0xff]
      %v420 = vld [vmem:[%s354 + $0x18] sm:$0xff]
      %v421 = vld [vmem:[%s354 + $0x20] sm:$0xff]
      %v422 = vld [vmem:[%s354 + $0x28] sm:$0xff]
      %v423 = vld [vmem:[%s354 + $0x30] sm:$0xff]
      %v424 = vld [vmem:[%s354 + $0x38] sm:$0xff]
      %v425 = vld [vmem:[%s354 + $0x40] sm:$0xff]
      %v426 = vld [vmem:[%s354 + $0x48] sm:$0xff]
      %v427 = vld [vmem:[%s354 + $0x50] sm:$0xff]
      %v428 = vld [vmem:[%s354 + $0x58] sm:$0xff]
      %v429 = vld [vmem:[%s354 + $0x60] sm:$0xff]
      %v430 = vld [vmem:[%s354 + $0x68] sm:$0xff]
      %v431 = vld [vmem:[%s354 + $0x70] sm:$0xff]
      %v432 = vld [vmem:[%s354 + $0x78] sm:$0xff]
      %v433 = vld [vmem:[%s354 + $0x80] sm:$0xff]
      %v434 = vld [vmem:[%s354 + $0x88] sm:$0xff]
      %v435 = vld [vmem:[%s354 + $0x90] sm:$0xff]
      %v436 = vld [vmem:[%s354 + $0x98] sm:$0xff]
      %v437 = vld [vmem:[%s354 + $0xa0] sm:$0xff]
      %v438 = vld [vmem:[%s354 + $0xa8] sm:$0xff]
      %v439 = vld [vmem:[%s354 + $0xb0] sm:$0xff]
      %v440 = vld [vmem:[%s354 + $0xb8] sm:$0xff]
      %v441 = vld [vmem:[%s354 + $0xc0] sm:$0xff]
      %v442 = vld [vmem:[%s354 + $0xc8] sm:$0xff]
      %v443 = vld [vmem:[%s354 + $0xd0] sm:$0xff]
      %v444 = vld [vmem:[%s354 + $0xd8] sm:$0xff]
      %v445 = vld [vmem:[%s354 + $0xe0] sm:$0xff]
      %v446 = vld [vmem:[%s354 + $0xe8] sm:$0xff]
      %v447 = vld [vmem:[%s354 + $0xf0] sm:$0xff]
      %v448 = vld [vmem:[%s354 + $0xf8] sm:$0xff]
      %v449 = vld [vmem:[%s1] sm:$0x3]
      %v450 = vpack.c.bf16 %v418, %v417
      %v451 = vpack.c.bf16 %v420, %v419
      %v452 = vpack.c.bf16 %v422, %v421
      %v453 = vpack.c.bf16 %v424, %v423
      %v454 = vpack.c.bf16 %v426, %v425
      %v455 = vpack.c.bf16 %v428, %v427
      %v456 = vpack.c.bf16 %v430, %v429
      %v457 = vpack.c.bf16 %v432, %v431
      %v458 = vpack.c.bf16 %v434, %v433
      %v459 = vpack.c.bf16 %v436, %v435
      %v460 = vpack.c.bf16 %v438, %v437
      %v461 = vpack.c.bf16 %v440, %v439
      %v462 = vpack.c.bf16 %v442, %v441
      %v463 = vpack.c.bf16 %v444, %v443
      %v464 = vpack.c.bf16 %v446, %v445
      %v465 = vpack.c.bf16 %v448, %v447
      %v467 = vsel %vm361, %v450, 0
      %v470 = vsel %vm361, %v451, 0
      %v473 = vsel %vm361, %v452, 0
      %v476 = vsel %vm361, %v453, 0
      %v479 = vsel %vm361, %v454, 0
      %v482 = vsel %vm361, %v455, 0
      %v485 = vsel %vm361, %v456, 0
      %v488 = vsel %vm361, %v457, 0
      %v491 = vsel %vm361, %v458, 0
      %v494 = vsel %vm361, %v459, 0
      %v497 = vsel %vm361, %v460, 0
      %v500 = vsel %vm361, %v461, 0
      %v503 = vsel %vm361, %v462, 0
      %v506 = vsel %vm361, %v463, 0
      %v509 = vsel %vm361, %v464, 0
      %v512 = vsel %vm361, %v465, 0
      %vm514 = vcmask 1041408
      %v516 = vsel %vm514, %v449, 0
      %518 = vmatprep.subr.bf16.mxu0 0
      %519 = vmatpush1.bf16.msra.mxu0 %v516
      %520 = vmatprep.subr.bf16.mxu0 0
      %521 = vmatpush1.bf16.msra.mxu0 0
      %522 = vmatprep.subr.bf16.mxu0 0
      %523 = vmatpush1.bf16.msra.mxu0 0
      %524 = vmatprep.subr.bf16.mxu0 0
      %525 = vmatpush1.bf16.msra.mxu0 0
      %526 = vmatprep.subr.bf16.mxu0 0
      %527 = vmatpush1.bf16.msra.mxu0 0
      %528 = vmatprep.subr.bf16.mxu0 0
      %529 = vmatpush1.bf16.msra.mxu0 0
      %530 = vmatprep.subr.bf16.mxu0 0
      %531 = vmatpush1.bf16.msra.mxu0 0
      %532 = vmatprep.subr.bf16.mxu0 0
      %533 = vmatpush1.bf16.msra.mxu0 0
      %534 = vmatprep.subr.bf16.mxu0 0
      %535 = vmatpush1.bf16.msra.mxu0 0
      %536 = vmatprep.subr.bf16.mxu0 0
      %537 = vmatpush1.bf16.msra.mxu0 0
      %538 = vmatprep.subr.bf16.mxu0 0
      %539 = vmatpush1.bf16.msra.mxu0 0
      %540 = vmatprep.subr.bf16.mxu0 0
      %541 = vmatpush1.bf16.msra.mxu0 0
      %542 = vmatprep.subr.bf16.mxu0 0
      %543 = vmatpush1.bf16.msra.mxu0 0
      %544 = vmatprep.subr.bf16.mxu0 0
      %545 = vmatpush1.bf16.msra.mxu0 0
      %546 = vmatprep.subr.bf16.mxu0 0
      %547 = vmatpush1.bf16.msra.mxu0 0
      %548 = vmatprep.subr.bf16.mxu0 0
      %549 = vmatpush1.bf16.msra.mxu0 0
      %550 = vmatprep.mubr.bf16.mxu0 0
      %551 = vmatmul.mubr.bf16.gmra.mrb[0].mxu0 %v467
      %v552 = vpop.f32.mrb[0].mxu0
      %v553 = vadd.f32 0.0, %v552
      %v554 = vpop.f32.mrb[0].mxu0
      %v555 = vpop.f32.mrb[0].mxu0
      %v556 = vadd.f32 0.0, %v555
      %v557 = vpop.f32.mrb[0].mxu0
      %558 = vmatprep.mubr.bf16.mxu0 0
      %559 = vmatmul.mubr.bf16.gmra.mrb[0].mxu0 %v470
      %v560 = vpop.f32.mrb[0].mxu0
      %v561 = vadd.f32 0.0, %v560
      %v562 = vpop.f32.mrb[0].mxu0
      %v563 = vpop.f32.mrb[0].mxu0
      %v564 = vadd.f32 0.0, %v563
      %v565 = vpop.f32.mrb[0].mxu0
      %566 = vmatprep.mubr.bf16.mxu0 0
      %567 = vmatmul.mubr.bf16.gmra.mrb[0].mxu0 %v473
      %v568 = vpop.f32.mrb[0].mxu0
      %v569 = vadd.f32 0.0, %v568
      %v570 = vpop.f32.mrb[0].mxu0
      %v571 = vpop.f32.mrb[0].mxu0
      %v572 = vadd.f32 0.0, %v571
      %v573 = vpop.f32.mrb[0].mxu0
      %574 = vmatprep.mubr.bf16.mxu0 0
      %575 = vmatmul.mubr.bf16.gmra.mrb[0].mxu0 %v476
      %v576 = vpop.f32.mrb[0].mxu0
      %v577 = vadd.f32 0.0, %v576
      %v578 = vpop.f32.mrb[0].mxu0
      %v579 = vpop.f32.mrb[0].mxu0
      %v580 = vadd.f32 0.0, %v579
      %v581 = vpop.f32.mrb[0].mxu0
      %582 = vmatprep.mubr.bf16.mxu0 0
      %583 = vmatmul.mubr.bf16.gmra.mrb[0].mxu0 %v479
      %v584 = vpop.f32.mrb[0].mxu0
      %v585 = vadd.f32 0.0, %v584
      %v586 = vpop.f32.mrb[0].mxu0
      %v587 = vpop.f32.mrb[0].mxu0
      %v588 = vadd.f32 0.0, %v587
      %v589 = vpop.f32.mrb[0].mxu0
      %590 = vmatprep.mubr.bf16.mxu0 0
      %591 = vmatmul.mubr.bf16.gmra.mrb[0].mxu0 %v482
      %v592 = vpop.f32.mrb[0].mxu0
      %v593 = vadd.f32 0.0, %v592
      %v594 = vpop.f32.mrb[0].mxu0
      %v595 = vpop.f32.mrb[0].mxu0
      %v596 = vadd.f32 0.0, %v595
      %v597 = vpop.f32.mrb[0].mxu0
      %598 = vmatprep.mubr.bf16.mxu0 0
      %599 = vmatmul.mubr.bf16.gmra.mrb[0].mxu0 %v485
      %v600 = vpop.f32.mrb[0].mxu0
      %v601 = vadd.f32 0.0, %v600
      %v602 = vpop.f32.mrb[0].mxu0
      %v603 = vpop.f32.mrb[0].mxu0
      %v604 = vadd.f32 0.0, %v603
      %v605 = vpop.f32.mrb[0].mxu0
      %606 = vmatprep.mubr.bf16.mxu0 0
      %607 = vmatmul.mubr.bf16.gmra.mrb[0].mxu0 %v488
      %v608 = vpop.f32.mrb[0].mxu0
      %v609 = vadd.f32 0.0, %v608
      %v610 = vpop.f32.mrb[0].mxu0
      %v611 = vpop.f32.mrb[0].mxu0
      %v612 = vadd.f32 0.0, %v611
      %v613 = vpop.f32.mrb[0].mxu0
      %614 = vmatprep.mubr.bf16.mxu0 0
      %615 = vmatmul.mubr.bf16.gmra.mrb[0].mxu0 %v491
      %v616 = vpop.f32.mrb[0].mxu0
      %v617 = vadd.f32 0.0, %v616
      %v618 = vpop.f32.mrb[0].mxu0
      %v619 = vpop.f32.mrb[0].mxu0
      %v620 = vadd.f32 0.0, %v619
      %v621 = vpop.f32.mrb[0].mxu0
      %622 = vmatprep.mubr.bf16.mxu0 0
      %623 = vmatmul.mubr.bf16.gmra.mrb[0].mxu0 %v494
      %v624 = vpop.f32.mrb[0].mxu0
      %v625 = vadd.f32 0.0, %v624
      %v626 = vpop.f32.mrb[0].mxu0
      %v627 = vpop.f32.mrb[0].mxu0
      %v628 = vadd.f32 0.0, %v627
      %v629 = vpop.f32.mrb[0].mxu0
      %630 = vmatprep.mubr.bf16.mxu0 0
      %631 = vmatmul.mubr.bf16.gmra.mrb[0].mxu0 %v497
      %v632 = vpop.f32.mrb[0].mxu0
      %v633 = vadd.f32 0.0, %v632
      %v634 = vpop.f32.mrb[0].mxu0
      %v635 = vpop.f32.mrb[0].mxu0
      %v636 = vadd.f32 0.0, %v635
      %v637 = vpop.f32.mrb[0].mxu0
      %638 = vmatprep.mubr.bf16.mxu0 0
      %639 = vmatmul.mubr.bf16.gmra.mrb[0].mxu0 %v500
      %v640 = vpop.f32.mrb[0].mxu0
      %v641 = vadd.f32 0.0, %v640
      %v642 = vpop.f32.mrb[0].mxu0
      %v643 = vpop.f32.mrb[0].mxu0
      %v644 = vadd.f32 0.0, %v643
      %v645 = vpop.f32.mrb[0].mxu0
      %646 = vmatprep.mubr.bf16.mxu0 0
      %647 = vmatmul.mubr.bf16.gmra.mrb[0].mxu0 %v503
      %v648 = vpop.f32.mrb[0].mxu0
      %v649 = vadd.f32 0.0, %v648
      %v650 = vpop.f32.mrb[0].mxu0
      %v651 = vpop.f32.mrb[0].mxu0
      %v652 = vadd.f32 0.0, %v651
      %v653 = vpop.f32.mrb[0].mxu0
      %654 = vmatprep.mubr.bf16.mxu0 0
      %655 = vmatmul.mubr.bf16.gmra.mrb[0].mxu0 %v506
      %v656 = vpop.f32.mrb[0].mxu0
      %v657 = vadd.f32 0.0, %v656
      %v658 = vpop.f32.mrb[0].mxu0
      %v659 = vpop.f32.mrb[0].mxu0
      %v660 = vadd.f32 0.0, %v659
      %v661 = vpop.f32.mrb[0].mxu0
      %662 = vmatprep.mubr.bf16.mxu0 0
      %663 = vmatmul.mubr.bf16.gmra.mrb[0].mxu0 %v509
      %v664 = vpop.f32.mrb[0].mxu0
      %v665 = vadd.f32 0.0, %v664
      %v666 = vpop.f32.mrb[0].mxu0
      %v667 = vpop.f32.mrb[0].mxu0
      %v668 = vadd.f32 0.0, %v667
      %v669 = vpop.f32.mrb[0].mxu0
      %670 = vmatprep.mubr.bf16.mxu0 0
      %671 = vmatmul.mubr.bf16.gmra.mrb[0].mxu0 %v512
      %v672 = vpop.f32.mrb[0].mxu0
      %v673 = vadd.f32 0.0, %v672
      %v674 = vpop.f32.mrb[0].mxu0
      %v675 = vpop.f32.mrb[0].mxu0
      %v676 = vadd.f32 0.0, %v675
      %v677 = vpop.f32.mrb[0].mxu0
      %678 = vdwg.mxu0
      %v679 = vld [vmem:[%s2] sm:$0x3]
      %v680 = vlaneseq
      %v681 = vshrl.u32 %v680, 7
      %v682 = vsub.s32 0, %v681
      %v683 = vrot.slane %v679, %v682
      %v684 = vmul.f32 %v553, %v683
      %v685 = vmul.f32 %v556, %v683
      %v686 = vmul.f32 %v561, %v683
      %v687 = vmul.f32 %v564, %v683
      %v688 = vmul.f32 %v569, %v683
      %v689 = vmul.f32 %v572, %v683
      %v690 = vmul.f32 %v577, %v683
      %v691 = vmul.f32 %v580, %v683
      %v692 = vmul.f32 %v585, %v683
      %v693 = vmul.f32 %v588, %v683
      %v694 = vmul.f32 %v593, %v683
      %v695 = vmul.f32 %v596, %v683
      %v696 = vmul.f32 %v601, %v683
      %v697 = vmul.f32 %v604, %v683
      %v698 = vmul.f32 %v609, %v683
      %v699 = vmul.f32 %v612, %v683
      %v700 = vmul.f32 %v617, %v683
      %v701 = vmul.f32 %v620, %v683
      %v702 = vmul.f32 %v625, %v683
      %v703 = vmul.f32 %v628, %v683
      %v704 = vmul.f32 %v633, %v683
      %v705 = vmul.f32 %v636, %v683
      %v706 = vmul.f32 %v641, %v683
      %v707 = vmul.f32 %v644, %v683
      %v708 = vmul.f32 %v649, %v683
      %v709 = vmul.f32 %v652, %v683
      %v710 = vmul.f32 %v657, %v683
      %v711 = vmul.f32 %v660, %v683
      %v712 = vmul.f32 %v665, %v683
      %v713 = vmul.f32 %v668, %v683
      %v714 = vmul.f32 %v673, %v683
      %v715 = vmul.f32 %v676, %v683
      %v716 = vlaneseq
      %v717 = vshrl.u32 %v716, 7
      %v718 = vsub.s32 1, %v717
      %v719 = vrot.slane %v679, %v718
      %v720 = vadd.f32 %v684, %v719
      %v721 = vadd.f32 %v685, %v719
      %v722 = vadd.f32 %v686, %v719
      %v723 = vadd.f32 %v687, %v719
      %v724 = vadd.f32 %v688, %v719
      %v725 = vadd.f32 %v689, %v719
      %v726 = vadd.f32 %v690, %v719
      %v727 = vadd.f32 %v691, %v719
      %v728 = vadd.f32 %v692, %v719
      %v729 = vadd.f32 %v693, %v719
      %v730 = vadd.f32 %v694, %v719
      %v731 = vadd.f32 %v695, %v719
      %v732 = vadd.f32 %v696, %v719
      %v733 = vadd.f32 %v697, %v719
      %v734 = vadd.f32 %v698, %v719
      %v735 = vadd.f32 %v699, %v719
      %v736 = vadd.f32 %v700, %v719
      %v737 = vadd.f32 %v701, %v719
      %v738 = vadd.f32 %v702, %v719
      %v739 = vadd.f32 %v703, %v719
      %v740 = vadd.f32 %v704, %v719
      %v741 = vadd.f32 %v705, %v719
      %v742 = vadd.f32 %v706, %v719
      %v743 = vadd.f32 %v707, %v719
      %v744 = vadd.f32 %v708, %v719
      %v745 = vadd.f32 %v709, %v719
      %v746 = vadd.f32 %v710, %v719
      %v747 = vadd.f32 %v711, %v719
      %v748 = vadd.f32 %v712, %v719
      %v749 = vadd.f32 %v713, %v719
      %v750 = vadd.f32 %v714, %v719
      %v751 = vadd.f32 %v715, %v719
      %v752 = vxor.u32 %v720, 2147483648
      %v753 = vxor.u32 %v721, 2147483648
      %v754 = vxor.u32 %v722, 2147483648
      %v755 = vxor.u32 %v723, 2147483648
      %v756 = vxor.u32 %v724, 2147483648
      %v757 = vxor.u32 %v725, 2147483648
      %v758 = vxor.u32 %v726, 2147483648
      %v759 = vxor.u32 %v727, 2147483648
      %v760 = vxor.u32 %v728, 2147483648
      %v761 = vxor.u32 %v729, 2147483648
      %v762 = vxor.u32 %v730, 2147483648
      %v763 = vxor.u32 %v731, 2147483648
      %v764 = vxor.u32 %v732, 2147483648
      %v765 = vxor.u32 %v733, 2147483648
      %v766 = vxor.u32 %v734, 2147483648
      %v767 = vxor.u32 %v735, 2147483648
      %v768 = vxor.u32 %v736, 2147483648
      %v769 = vxor.u32 %v737, 2147483648
      %v770 = vxor.u32 %v738, 2147483648
      %v771 = vxor.u32 %v739, 2147483648
      %v772 = vxor.u32 %v740, 2147483648
      %v773 = vxor.u32 %v741, 2147483648
      %v774 = vxor.u32 %v742, 2147483648
      %v775 = vxor.u32 %v743, 2147483648
      %v776 = vxor.u32 %v744, 2147483648
      %v777 = vxor.u32 %v745, 2147483648
      %v778 = vxor.u32 %v746, 2147483648
      %v779 = vxor.u32 %v747, 2147483648
      %v780 = vxor.u32 %v748, 2147483648
      %v781 = vxor.u32 %v749, 2147483648
      %v782 = vxor.u32 %v750, 2147483648
      %v783 = vxor.u32 %v751, 2147483648
      %v784 = vmul.f32 %v752, 1.442695
      %v785 = vpow.pop %v784
      %v786 = vmul.f32 %v753, 1.442695
      %v787 = vpow.pop %v786
      %v788 = vmul.f32 %v754, 1.442695
      %v789 = vpow.pop %v788
      %v790 = vmul.f32 %v755, 1.442695
      %v791 = vpow.pop %v790
      %v792 = vmul.f32 %v756, 1.442695
      %v793 = vpow.pop %v792
      %v794 = vmul.f32 %v757, 1.442695
      %v795 = vpow.pop %v794
      %v796 = vmul.f32 %v758, 1.442695
      %v797 = vpow.pop %v796
      %v798 = vmul.f32 %v759, 1.442695
      %v799 = vpow.pop %v798
      %v800 = vmul.f32 %v760, 1.442695
      %v801 = vpow.pop %v800
      %v802 = vmul.f32 %v761, 1.442695
      %v803 = vpow.pop %v802
      %v804 = vmul.f32 %v762, 1.442695
      %v805 = vpow.pop %v804
      %v806 = vmul.f32 %v763, 1.442695
      %v807 = vpow.pop %v806
      %v808 = vmul.f32 %v764, 1.442695
      %v809 = vpow.pop %v808
      %v810 = vmul.f32 %v765, 1.442695
      %v811 = vpow.pop %v810
      %v812 = vmul.f32 %v766, 1.442695
      %v813 = vpow.pop %v812
      %v814 = vmul.f32 %v767, 1.442695
      %v815 = vpow.pop %v814
      %v816 = vmul.f32 %v768, 1.442695
      %v817 = vpow.pop %v816
      %v818 = vmul.f32 %v769, 1.442695
      %v819 = vpow.pop %v818
      %v820 = vmul.f32 %v770, 1.442695
      %v821 = vpow.pop %v820
      %v822 = vmul.f32 %v771, 1.442695
      %v823 = vpow.pop %v822
      %v824 = vmul.f32 %v772, 1.442695
      %v825 = vpow.pop %v824
      %v826 = vmul.f32 %v773, 1.442695
      %v827 = vpow.pop %v826
      %v828 = vmul.f32 %v774, 1.442695
      %v829 = vpow.pop %v828
      %v830 = vmul.f32 %v775, 1.442695
      %v831 = vpow.pop %v830
      %v832 = vmul.f32 %v776, 1.442695
      %v833 = vpow.pop %v832
      %v834 = vmul.f32 %v777, 1.442695
      %v835 = vpow.pop %v834
      %v836 = vmul.f32 %v778, 1.442695
      %v837 = vpow.pop %v836
      %v838 = vmul.f32 %v779, 1.442695
      %v839 = vpow.pop %v838
      %v840 = vmul.f32 %v780, 1.442695
      %v841 = vpow.pop %v840
      %v842 = vmul.f32 %v781, 1.442695
      %v843 = vpow.pop %v842
      %v844 = vmul.f32 %v782, 1.442695
      %v845 = vpow.pop %v844
      %v846 = vmul.f32 %v783, 1.442695
      %v847 = vpow.pop %v846
      %v848 = vadd.f32 %v785, 1.0
      %v849 = vadd.f32 %v787, 1.0
      %v850 = vadd.f32 %v789, 1.0
      %v851 = vadd.f32 %v791, 1.0
      %v852 = vadd.f32 %v793, 1.0
      %v853 = vadd.f32 %v795, 1.0
      %v854 = vadd.f32 %v797, 1.0
      %v855 = vadd.f32 %v799, 1.0
      %v856 = vadd.f32 %v801, 1.0
      %v857 = vadd.f32 %v803, 1.0
      %v858 = vadd.f32 %v805, 1.0
      %v859 = vadd.f32 %v807, 1.0
      %v860 = vadd.f32 %v809, 1.0
      %v861 = vadd.f32 %v811, 1.0
      %v862 = vadd.f32 %v813, 1.0
      %v863 = vadd.f32 %v815, 1.0
      %v864 = vadd.f32 %v817, 1.0
      %v865 = vadd.f32 %v819, 1.0
      %v866 = vadd.f32 %v821, 1.0
      %v867 = vadd.f32 %v823, 1.0
      %v868 = vadd.f32 %v825, 1.0
      %v869 = vadd.f32 %v827, 1.0
      %v870 = vadd.f32 %v829, 1.0
      %v871 = vadd.f32 %v831, 1.0
      %v872 = vadd.f32 %v833, 1.0
      %v873 = vadd.f32 %v835, 1.0
      %v874 = vadd.f32 %v837, 1.0
      %v875 = vadd.f32 %v839, 1.0
      %v876 = vadd.f32 %v841, 1.0
      %v877 = vadd.f32 %v843, 1.0
      %v878 = vadd.f32 %v845, 1.0
      %v879 = vadd.f32 %v847, 1.0
      %v880 = vrcp.pop %v848
      %v881 = vmul.f32 1.0, %v880
      %v882 = vrcp.pop %v849
      %v883 = vmul.f32 1.0, %v882
      %v884 = vrcp.pop %v850
      %v885 = vmul.f32 1.0, %v884
      %v886 = vrcp.pop %v851
      %v887 = vmul.f32 1.0, %v886
      %v888 = vrcp.pop %v852
      %v889 = vmul.f32 1.0, %v888
      %v890 = vrcp.pop %v853
      %v891 = vmul.f32 1.0, %v890
      %v892 = vrcp.pop %v854
      %v893 = vmul.f32 1.0, %v892
      %v894 = vrcp.pop %v855
      %v895 = vmul.f32 1.0, %v894
      %v896 = vrcp.pop %v856
      %v897 = vmul.f32 1.0, %v896
      %v898 = vrcp.pop %v857
      %v899 = vmul.f32 1.0, %v898
      %v900 = vrcp.pop %v858
      %v901 = vmul.f32 1.0, %v900
      %v902 = vrcp.pop %v859
      %v903 = vmul.f32 1.0, %v902
      %v904 = vrcp.pop %v860
      %v905 = vmul.f32 1.0, %v904
      %v906 = vrcp.pop %v861
      %v907 = vmul.f32 1.0, %v906
      %v908 = vrcp.pop %v862
      %v909 = vmul.f32 1.0, %v908
      %v910 = vrcp.pop %v863
      %v911 = vmul.f32 1.0, %v910
      %v912 = vrcp.pop %v864
      %v913 = vmul.f32 1.0, %v912
      %v914 = vrcp.pop %v865
      %v915 = vmul.f32 1.0, %v914
      %v916 = vrcp.pop %v866
      %v917 = vmul.f32 1.0, %v916
      %v918 = vrcp.pop %v867
      %v919 = vmul.f32 1.0, %v918
      %v920 = vrcp.pop %v868
      %v921 = vmul.f32 1.0, %v920
      %v922 = vrcp.pop %v869
      %v923 = vmul.f32 1.0, %v922
      %v924 = vrcp.pop %v870
      %v925 = vmul.f32 1.0, %v924
      %v926 = vrcp.pop %v871
      %v927 = vmul.f32 1.0, %v926
      %v928 = vrcp.pop %v872
      %v929 = vmul.f32 1.0, %v928
      %v930 = vrcp.pop %v873
      %v931 = vmul.f32 1.0, %v930
      %v932 = vrcp.pop %v874
      %v933 = vmul.f32 1.0, %v932
      %v934 = vrcp.pop %v875
      %v935 = vmul.f32 1.0, %v934
      %v936 = vrcp.pop %v876
      %v937 = vmul.f32 1.0, %v936
      %v938 = vrcp.pop %v877
      %v939 = vmul.f32 1.0, %v938
      %v940 = vrcp.pop %v878
      %v941 = vmul.f32 1.0, %v940
      %v942 = vrcp.pop %v879
      %v943 = vmul.f32 1.0, %v942
      %v944 = vmul.f32 %v720, %v881
      %v945 = vmul.f32 %v721, %v883
      %v946 = vmul.f32 %v722, %v885
      %v947 = vmul.f32 %v723, %v887
      %v948 = vmul.f32 %v724, %v889
      %v949 = vmul.f32 %v725, %v891
      %v950 = vmul.f32 %v726, %v893
      %v951 = vmul.f32 %v727, %v895
      %v952 = vmul.f32 %v728, %v897
      %v953 = vmul.f32 %v729, %v899
      %v954 = vmul.f32 %v730, %v901
      %v955 = vmul.f32 %v731, %v903
      %v956 = vmul.f32 %v732, %v905
      %v957 = vmul.f32 %v733, %v907
      %v958 = vmul.f32 %v734, %v909
      %v959 = vmul.f32 %v735, %v911
      %v960 = vmul.f32 %v736, %v913
      %v961 = vmul.f32 %v737, %v915
      %v962 = vmul.f32 %v738, %v917
      %v963 = vmul.f32 %v739, %v919
      %v964 = vmul.f32 %v740, %v921
      %v965 = vmul.f32 %v741, %v923
      %v966 = vmul.f32 %v742, %v925
      %v967 = vmul.f32 %v743, %v927
      %v968 = vmul.f32 %v744, %v929
      %v969 = vmul.f32 %v745, %v931
      %v970 = vmul.f32 %v746, %v933
      %v971 = vmul.f32 %v747, %v935
      %v972 = vmul.f32 %v748, %v937
      %v973 = vmul.f32 %v749, %v939
      %v974 = vmul.f32 %v750, %v941
      %v975 = vmul.f32 %v751, %v943
      %v976 = vld [vmem:[%s3] sm:$0x3]
      %v977 = vpack.c.bf16 %v945, %v944
      %v978 = vpack.c.bf16 %v947, %v946
      %v979 = vpack.c.bf16 %v949, %v948
      %v980 = vpack.c.bf16 %v951, %v950
      %v981 = vpack.c.bf16 %v953, %v952
      %v982 = vpack.c.bf16 %v955, %v954
      %v983 = vpack.c.bf16 %v957, %v956
      %v984 = vpack.c.bf16 %v959, %v958
      %v985 = vpack.c.bf16 %v961, %v960
      %v986 = vpack.c.bf16 %v963, %v962
      %v987 = vpack.c.bf16 %v965, %v964
      %v988 = vpack.c.bf16 %v967, %v966
      %v989 = vpack.c.bf16 %v969, %v968
      %v990 = vpack.c.bf16 %v971, %v970
      %v991 = vpack.c.bf16 %v973, %v972
      %v992 = vpack.c.bf16 %v975, %v974
      %v994 = vsel %vm361, %v977, 0
      %v997 = vsel %vm361, %v978, 0
      %v1000 = vsel %vm361, %v979, 0
      %v1003 = vsel %vm361, %v980, 0
      %v1006 = vsel %vm361, %v981, 0
      %v1009 = vsel %vm361, %v982, 0
      %v1012 = vsel %vm361, %v983, 0
      %v1015 = vsel %vm361, %v984, 0
      %v1018 = vsel %vm361, %v985, 0
      %v1021 = vsel %vm361, %v986, 0
      %v1024 = vsel %vm361, %v987, 0
      %v1027 = vsel %vm361, %v988, 0
      %v1030 = vsel %vm361, %v989, 0
      %v1033 = vsel %vm361, %v990, 0
      %v1036 = vsel %vm361, %v991, 0
      %v1039 = vsel %vm361, %v992, 0
      %v1042 = vsel %vm514, %v976, 0
      %1044 = vmatprep.subr.bf16.mxu0 0
      %1045 = vmatpush1.bf16.msra.mxu0 %v1042
      %1046 = vmatprep.subr.bf16.mxu0 0
      %1047 = vmatpush1.bf16.msra.mxu0 0
      %1048 = vmatprep.subr.bf16.mxu0 0
      %1049 = vmatpush1.bf16.msra.mxu0 0
      %1050 = vmatprep.subr.bf16.mxu0 0
      %1051 = vmatpush1.bf16.msra.mxu0 0
      %1052 = vmatprep.subr.bf16.mxu0 0
      %1053 = vmatpush1.bf16.msra.mxu0 0
      %1054 = vmatprep.subr.bf16.mxu0 0
      %1055 = vmatpush1.bf16.msra.mxu0 0
      %1056 = vmatprep.subr.bf16.mxu0 0
      %1057 = vmatpush1.bf16.msra.mxu0 0
      %1058 = vmatprep.subr.bf16.mxu0 0
      %1059 = vmatpush1.bf16.msra.mxu0 0
      %1060 = vmatprep.subr.bf16.mxu0 0
      %1061 = vmatpush1.bf16.msra.mxu0 0
      %1062 = vmatprep.subr.bf16.mxu0 0
      %1063 = vmatpush1.bf16.msra.mxu0 0
      %1064 = vmatprep.subr.bf16.mxu0 0
      %1065 = vmatpush1.bf16.msra.mxu0 0
      %1066 = vmatprep.subr.bf16.mxu0 0
      %1067 = vmatpush1.bf16.msra.mxu0 0
      %1068 = vmatprep.subr.bf16.mxu0 0
      %1069 = vmatpush1.bf16.msra.mxu0 0
      %1070 = vmatprep.subr.bf16.mxu0 0
      %1071 = vmatpush1.bf16.msra.mxu0 0
      %1072 = vmatprep.subr.bf16.mxu0 0
      %1073 = vmatpush1.bf16.msra.mxu0 0
      %1074 = vmatprep.subr.bf16.mxu0 0
      %1075 = vmatpush1.bf16.msra.mxu0 0
      %1076 = vmatprep.mubr.bf16.mxu0 0
      %1077 = vmatmul.mubr.bf16.gmra.mrb[0].mxu0 %v994
      %v1078 = vpop.f32.mrb[0].mxu0
      %v1079 = vadd.f32 0.0, %v1078
      %v1080 = vpop.f32.mrb[0].mxu0
      %v1081 = vpop.f32.mrb[0].mxu0
      %v1082 = vadd.f32 0.0, %v1081
      %v1083 = vpop.f32.mrb[0].mxu0
      %1084 = vmatprep.mubr.bf16.mxu0 0
      %1085 = vmatmul.mubr.bf16.gmra.mrb[0].mxu0 %v997
      %v1086 = vpop.f32.mrb[0].mxu0
      %v1087 = vadd.f32 0.0, %v1086
      %v1088 = vpop.f32.mrb[0].mxu0
      %v1089 = vpop.f32.mrb[0].mxu0
      %v1090 = vadd.f32 0.0, %v1089
      %v1091 = vpop.f32.mrb[0].mxu0
      %1092 = vmatprep.mubr.bf16.mxu0 0
      %1093 = vmatmul.mubr.bf16.gmra.mrb[0].mxu0 %v1000
      %v1094 = vpop.f32.mrb[0].mxu0
      %v1095 = vadd.f32 0.0, %v1094
      %v1096 = vpop.f32.mrb[0].mxu0
      %v1097 = vpop.f32.mrb[0].mxu0
      %v1098 = vadd.f32 0.0, %v1097
      %v1099 = vpop.f32.mrb[0].mxu0
      %1100 = vmatprep.mubr.bf16.mxu0 0
      %1101 = vmatmul.mubr.bf16.gmra.mrb[0].mxu0 %v1003
      %v1102 = vpop.f32.mrb[0].mxu0
      %v1103 = vadd.f32 0.0, %v1102
      %v1104 = vpop.f32.mrb[0].mxu0
      %v1105 = vpop.f32.mrb[0].mxu0
      %v1106 = vadd.f32 0.0, %v1105
      %v1107 = vpop.f32.mrb[0].mxu0
      %1108 = vmatprep.mubr.bf16.mxu0 0
      %1109 = vmatmul.mubr.bf16.gmra.mrb[0].mxu0 %v1006
      %v1110 = vpop.f32.mrb[0].mxu0
      %v1111 = vadd.f32 0.0, %v1110
      %v1112 = vpop.f32.mrb[0].mxu0
      %v1113 = vpop.f32.mrb[0].mxu0
      %v1114 = vadd.f32 0.0, %v1113
      %v1115 = vpop.f32.mrb[0].mxu0
      %1116 = vmatprep.mubr.bf16.mxu0 0
      %1117 = vmatmul.mubr.bf16.gmra.mrb[0].mxu0 %v1009
      %v1118 = vpop.f32.mrb[0].mxu0
      %v1119 = vadd.f32 0.0, %v1118
      %v1120 = vpop.f32.mrb[0].mxu0
      %v1121 = vpop.f32.mrb[0].mxu0
      %v1122 = vadd.f32 0.0, %v1121
      %v1123 = vpop.f32.mrb[0].mxu0
      %1124 = vmatprep.mubr.bf16.mxu0 0
      %1125 = vmatmul.mubr.bf16.gmra.mrb[0].mxu0 %v1012
      %v1126 = vpop.f32.mrb[0].mxu0
      %v1127 = vadd.f32 0.0, %v1126
      %v1128 = vpop.f32.mrb[0].mxu0
      %v1129 = vpop.f32.mrb[0].mxu0
      %v1130 = vadd.f32 0.0, %v1129
      %v1131 = vpop.f32.mrb[0].mxu0
      %1132 = vmatprep.mubr.bf16.mxu0 0
      %1133 = vmatmul.mubr.bf16.gmra.mrb[0].mxu0 %v1015
      %v1134 = vpop.f32.mrb[0].mxu0
      %v1135 = vadd.f32 0.0, %v1134
      %v1136 = vpop.f32.mrb[0].mxu0
      %v1137 = vpop.f32.mrb[0].mxu0
      %v1138 = vadd.f32 0.0, %v1137
      %v1139 = vpop.f32.mrb[0].mxu0
      %1140 = vmatprep.mubr.bf16.mxu0 0
      %1141 = vmatmul.mubr.bf16.gmra.mrb[0].mxu0 %v1018
      %v1142 = vpop.f32.mrb[0].mxu0
      %v1143 = vadd.f32 0.0, %v1142
      %v1144 = vpop.f32.mrb[0].mxu0
      %v1145 = vpop.f32.mrb[0].mxu0
      %v1146 = vadd.f32 0.0, %v1145
      %v1147 = vpop.f32.mrb[0].mxu0
      %1148 = vmatprep.mubr.bf16.mxu0 0
      %1149 = vmatmul.mubr.bf16.gmra.mrb[0].mxu0 %v1021
      %v1150 = vpop.f32.mrb[0].mxu0
      %v1151 = vadd.f32 0.0, %v1150
      %v1152 = vpop.f32.mrb[0].mxu0
      %v1153 = vpop.f32.mrb[0].mxu0
      %v1154 = vadd.f32 0.0, %v1153
      %v1155 = vpop.f32.mrb[0].mxu0
      %1156 = vmatprep.mubr.bf16.mxu0 0
      %1157 = vmatmul.mubr.bf16.gmra.mrb[0].mxu0 %v1024
      %v1158 = vpop.f32.mrb[0].mxu0
      %v1159 = vadd.f32 0.0, %v1158
      %v1160 = vpop.f32.mrb[0].mxu0
      %v1161 = vpop.f32.mrb[0].mxu0
      %v1162 = vadd.f32 0.0, %v1161
      %v1163 = vpop.f32.mrb[0].mxu0
      %1164 = vmatprep.mubr.bf16.mxu0 0
      %1165 = vmatmul.mubr.bf16.gmra.mrb[0].mxu0 %v1027
      %v1166 = vpop.f32.mrb[0].mxu0
      %v1167 = vadd.f32 0.0, %v1166
      %v1168 = vpop.f32.mrb[0].mxu0
      %v1169 = vpop.f32.mrb[0].mxu0
      %v1170 = vadd.f32 0.0, %v1169
      %v1171 = vpop.f32.mrb[0].mxu0
      %1172 = vmatprep.mubr.bf16.mxu0 0
      %1173 = vmatmul.mubr.bf16.gmra.mrb[0].mxu0 %v1030
      %v1174 = vpop.f32.mrb[0].mxu0
      %v1175 = vadd.f32 0.0, %v1174
      %v1176 = vpop.f32.mrb[0].mxu0
      %v1177 = vpop.f32.mrb[0].mxu0
      %v1178 = vadd.f32 0.0, %v1177
      %v1179 = vpop.f32.mrb[0].mxu0
      %1180 = vmatprep.mubr.bf16.mxu0 0
      %1181 = vmatmul.mubr.bf16.gmra.mrb[0].mxu0 %v1033
      %v1182 = vpop.f32.mrb[0].mxu0
      %v1183 = vadd.f32 0.0, %v1182
      %v1184 = vpop.f32.mrb[0].mxu0
      %v1185 = vpop.f32.mrb[0].mxu0
      %v1186 = vadd.f32 0.0, %v1185
      %v1187 = vpop.f32.mrb[0].mxu0
      %1188 = vmatprep.mubr.bf16.mxu0 0
      %1189 = vmatmul.mubr.bf16.gmra.mrb[0].mxu0 %v1036
      %v1190 = vpop.f32.mrb[0].mxu0
      %v1191 = vadd.f32 0.0, %v1190
      %v1192 = vpop.f32.mrb[0].mxu0
      %v1193 = vpop.f32.mrb[0].mxu0
      %v1194 = vadd.f32 0.0, %v1193
      %v1195 = vpop.f32.mrb[0].mxu0
      %1196 = vmatprep.mubr.bf16.mxu0 0
      %1197 = vmatmul.mubr.bf16.gmra.mrb[0].mxu0 %v1039
      %v1198 = vpop.f32.mrb[0].mxu0
      %v1199 = vadd.f32 0.0, %v1198
      %v1200 = vpop.f32.mrb[0].mxu0
      %v1201 = vpop.f32.mrb[0].mxu0
      %v1202 = vadd.f32 0.0, %v1201
      %v1203 = vpop.f32.mrb[0].mxu0
      %1204 = vdwg.mxu0
      %v1205 = vld [vmem:[%s4] sm:$0x3]
      %v1206 = vlaneseq
      %v1207 = vshrl.u32 %v1206, 7
      %v1208 = vsub.s32 0, %v1207
      %v1209 = vrot.slane %v1205, %v1208
      %v1210 = vmul.f32 %v1079, %v1209
      %v1211 = vmul.f32 %v1082, %v1209
      %v1212 = vmul.f32 %v1087, %v1209
      %v1213 = vmul.f32 %v1090, %v1209
      %v1214 = vmul.f32 %v1095, %v1209
      %v1215 = vmul.f32 %v1098, %v1209
      %v1216 = vmul.f32 %v1103, %v1209
      %v1217 = vmul.f32 %v1106, %v1209
      %v1218 = vmul.f32 %v1111, %v1209
      %v1219 = vmul.f32 %v1114, %v1209
      %v1220 = vmul.f32 %v1119, %v1209
      %v1221 = vmul.f32 %v1122, %v1209
      %v1222 = vmul.f32 %v1127, %v1209
      %v1223 = vmul.f32 %v1130, %v1209
      %v1224 = vmul.f32 %v1135, %v1209
      %v1225 = vmul.f32 %v1138, %v1209
      %v1226 = vmul.f32 %v1143, %v1209
      %v1227 = vmul.f32 %v1146, %v1209
      %v1228 = vmul.f32 %v1151, %v1209
      %v1229 = vmul.f32 %v1154, %v1209
      %v1230 = vmul.f32 %v1159, %v1209
      %v1231 = vmul.f32 %v1162, %v1209
      %v1232 = vmul.f32 %v1167, %v1209
      %v1233 = vmul.f32 %v1170, %v1209
      %v1234 = vmul.f32 %v1175, %v1209
      %v1235 = vmul.f32 %v1178, %v1209
      %v1236 = vmul.f32 %v1183, %v1209
      %v1237 = vmul.f32 %v1186, %v1209
      %v1238 = vmul.f32 %v1191, %v1209
      %v1239 = vmul.f32 %v1194, %v1209
      %v1240 = vmul.f32 %v1199, %v1209
      %v1241 = vmul.f32 %v1202, %v1209
      %v1242 = vlaneseq
      %v1243 = vshrl.u32 %v1242, 7
      %v1244 = vsub.s32 1, %v1243
      %v1245 = vrot.slane %v1205, %v1244
      %v1246 = vadd.f32 %v1210, %v1245
      %v1247 = vadd.f32 %v1211, %v1245
      %v1248 = vadd.f32 %v1212, %v1245
      %v1249 = vadd.f32 %v1213, %v1245
      %v1250 = vadd.f32 %v1214, %v1245
      %v1251 = vadd.f32 %v1215, %v1245
      %v1252 = vadd.f32 %v1216, %v1245
      %v1253 = vadd.f32 %v1217, %v1245
      %v1254 = vadd.f32 %v1218, %v1245
      %v1255 = vadd.f32 %v1219, %v1245
      %v1256 = vadd.f32 %v1220, %v1245
      %v1257 = vadd.f32 %v1221, %v1245
      %v1258 = vadd.f32 %v1222, %v1245
      %v1259 = vadd.f32 %v1223, %v1245
      %v1260 = vadd.f32 %v1224, %v1245
      %v1261 = vadd.f32 %v1225, %v1245
      %v1262 = vadd.f32 %v1226, %v1245
      %v1263 = vadd.f32 %v1227, %v1245
      %v1264 = vadd.f32 %v1228, %v1245
      %v1265 = vadd.f32 %v1229, %v1245
      %v1266 = vadd.f32 %v1230, %v1245
      %v1267 = vadd.f32 %v1231, %v1245
      %v1268 = vadd.f32 %v1232, %v1245
      %v1269 = vadd.f32 %v1233, %v1245
      %v1270 = vadd.f32 %v1234, %v1245
      %v1271 = vadd.f32 %v1235, %v1245
      %v1272 = vadd.f32 %v1236, %v1245
      %v1273 = vadd.f32 %v1237, %v1245
      %v1274 = vadd.f32 %v1238, %v1245
      %v1275 = vadd.f32 %v1239, %v1245
      %v1276 = vadd.f32 %v1240, %v1245
      %v1277 = vadd.f32 %v1241, %v1245
      %v1278 = vxor.u32 %v1246, 2147483648
      %v1279 = vxor.u32 %v1247, 2147483648
      %v1280 = vxor.u32 %v1248, 2147483648
      %v1281 = vxor.u32 %v1249, 2147483648
      %v1282 = vxor.u32 %v1250, 2147483648
      %v1283 = vxor.u32 %v1251, 2147483648
      %v1284 = vxor.u32 %v1252, 2147483648
      %v1285 = vxor.u32 %v1253, 2147483648
      %v1286 = vxor.u32 %v1254, 2147483648
      %v1287 = vxor.u32 %v1255, 2147483648
      %v1288 = vxor.u32 %v1256, 2147483648
      %v1289 = vxor.u32 %v1257, 2147483648
      %v1290 = vxor.u32 %v1258, 2147483648
      %v1291 = vxor.u32 %v1259, 2147483648
      %v1292 = vxor.u32 %v1260, 2147483648
      %v1293 = vxor.u32 %v1261, 2147483648
      %v1294 = vxor.u32 %v1262, 2147483648
      %v1295 = vxor.u32 %v1263, 2147483648
      %v1296 = vxor.u32 %v1264, 2147483648
      %v1297 = vxor.u32 %v1265, 2147483648
      %v1298 = vxor.u32 %v1266, 2147483648
      %v1299 = vxor.u32 %v1267, 2147483648
      %v1300 = vxor.u32 %v1268, 2147483648
      %v1301 = vxor.u32 %v1269, 2147483648
      %v1302 = vxor.u32 %v1270, 2147483648
      %v1303 = vxor.u32 %v1271, 2147483648
      %v1304 = vxor.u32 %v1272, 2147483648
      %v1305 = vxor.u32 %v1273, 2147483648
      %v1306 = vxor.u32 %v1274, 2147483648
      %v1307 = vxor.u32 %v1275, 2147483648
      %v1308 = vxor.u32 %v1276, 2147483648
      %v1309 = vxor.u32 %v1277, 2147483648
      %v1310 = vmul.f32 %v1278, 1.442695
      %v1311 = vpow.pop %v1310
      %v1312 = vmul.f32 %v1279, 1.442695
      %v1313 = vpow.pop %v1312
      %v1314 = vmul.f32 %v1280, 1.442695
      %v1315 = vpow.pop %v1314
      %v1316 = vmul.f32 %v1281, 1.442695
      %v1317 = vpow.pop %v1316
      %v1318 = vmul.f32 %v1282, 1.442695
      %v1319 = vpow.pop %v1318
      %v1320 = vmul.f32 %v1283, 1.442695
      %v1321 = vpow.pop %v1320
      %v1322 = vmul.f32 %v1284, 1.442695
      %v1323 = vpow.pop %v1322
      %v1324 = vmul.f32 %v1285, 1.442695
      %v1325 = vpow.pop %v1324
      %v1326 = vmul.f32 %v1286, 1.442695
      %v1327 = vpow.pop %v1326
      %v1328 = vmul.f32 %v1287, 1.442695
      %v1329 = vpow.pop %v1328
      %v1330 = vmul.f32 %v1288, 1.442695
      %v1331 = vpow.pop %v1330
      %v1332 = vmul.f32 %v1289, 1.442695
      %v1333 = vpow.pop %v1332
      %v1334 = vmul.f32 %v1290, 1.442695
      %v1335 = vpow.pop %v1334
      %v1336 = vmul.f32 %v1291, 1.442695
      %v1337 = vpow.pop %v1336
      %v1338 = vmul.f32 %v1292, 1.442695
      %v1339 = vpow.pop %v1338
      %v1340 = vmul.f32 %v1293, 1.442695
      %v1341 = vpow.pop %v1340
      %v1342 = vmul.f32 %v1294, 1.442695
      %v1343 = vpow.pop %v1342
      %v1344 = vmul.f32 %v1295, 1.442695
      %v1345 = vpow.pop %v1344
      %v1346 = vmul.f32 %v1296, 1.442695
      %v1347 = vpow.pop %v1346
      %v1348 = vmul.f32 %v1297, 1.442695
      %v1349 = vpow.pop %v1348
      %v1350 = vmul.f32 %v1298, 1.442695
      %v1351 = vpow.pop %v1350
      %v1352 = vmul.f32 %v1299, 1.442695
      %v1353 = vpow.pop %v1352
      %v1354 = vmul.f32 %v1300, 1.442695
      %v1355 = vpow.pop %v1354
      %v1356 = vmul.f32 %v1301, 1.442695
      %v1357 = vpow.pop %v1356
      %v1358 = vmul.f32 %v1302, 1.442695
      %v1359 = vpow.pop %v1358
      %v1360 = vmul.f32 %v1303, 1.442695
      %v1361 = vpow.pop %v1360
      %v1362 = vmul.f32 %v1304, 1.442695
      %v1363 = vpow.pop %v1362
      %v1364 = vmul.f32 %v1305, 1.442695
      %v1365 = vpow.pop %v1364
      %v1366 = vmul.f32 %v1306, 1.442695
      %v1367 = vpow.pop %v1366
      %v1368 = vmul.f32 %v1307, 1.442695
      %v1369 = vpow.pop %v1368
      %v1370 = vmul.f32 %v1308, 1.442695
      %v1371 = vpow.pop %v1370
      %v1372 = vmul.f32 %v1309, 1.442695
      %v1373 = vpow.pop %v1372
      %v1374 = vadd.f32 %v1311, 1.0
      %v1375 = vadd.f32 %v1313, 1.0
      %v1376 = vadd.f32 %v1315, 1.0
      %v1377 = vadd.f32 %v1317, 1.0
      %v1378 = vadd.f32 %v1319, 1.0
      %v1379 = vadd.f32 %v1321, 1.0
      %v1380 = vadd.f32 %v1323, 1.0
      %v1381 = vadd.f32 %v1325, 1.0
      %v1382 = vadd.f32 %v1327, 1.0
      %v1383 = vadd.f32 %v1329, 1.0
      %v1384 = vadd.f32 %v1331, 1.0
      %v1385 = vadd.f32 %v1333, 1.0
      %v1386 = vadd.f32 %v1335, 1.0
      %v1387 = vadd.f32 %v1337, 1.0
      %v1388 = vadd.f32 %v1339, 1.0
      %v1389 = vadd.f32 %v1341, 1.0
      %v1390 = vadd.f32 %v1343, 1.0
      %v1391 = vadd.f32 %v1345, 1.0
      %v1392 = vadd.f32 %v1347, 1.0
      %v1393 = vadd.f32 %v1349, 1.0
      %v1394 = vadd.f32 %v1351, 1.0
      %v1395 = vadd.f32 %v1353, 1.0
      %v1396 = vadd.f32 %v1355, 1.0
      %v1397 = vadd.f32 %v1357, 1.0
      %v1398 = vadd.f32 %v1359, 1.0
      %v1399 = vadd.f32 %v1361, 1.0
      %v1400 = vadd.f32 %v1363, 1.0
      %v1401 = vadd.f32 %v1365, 1.0
      %v1402 = vadd.f32 %v1367, 1.0
      %v1403 = vadd.f32 %v1369, 1.0
      %v1404 = vadd.f32 %v1371, 1.0
      %v1405 = vadd.f32 %v1373, 1.0
      %v1406 = vrcp.pop %v1374
      %v1407 = vmul.f32 1.0, %v1406
      %v1408 = vrcp.pop %v1375
      %v1409 = vmul.f32 1.0, %v1408
      %v1410 = vrcp.pop %v1376
      %v1411 = vmul.f32 1.0, %v1410
      %v1412 = vrcp.pop %v1377
      %v1413 = vmul.f32 1.0, %v1412
      %v1414 = vrcp.pop %v1378
      %v1415 = vmul.f32 1.0, %v1414
      %v1416 = vrcp.pop %v1379
      %v1417 = vmul.f32 1.0, %v1416
      %v1418 = vrcp.pop %v1380
      %v1419 = vmul.f32 1.0, %v1418
      %v1420 = vrcp.pop %v1381
      %v1421 = vmul.f32 1.0, %v1420
      %v1422 = vrcp.pop %v1382
      %v1423 = vmul.f32 1.0, %v1422
      %v1424 = vrcp.pop %v1383
      %v1425 = vmul.f32 1.0, %v1424
      %v1426 = vrcp.pop %v1384
      %v1427 = vmul.f32 1.0, %v1426
      %v1428 = vrcp.pop %v1385
      %v1429 = vmul.f32 1.0, %v1428
      %v1430 = vrcp.pop %v1386
      %v1431 = vmul.f32 1.0, %v1430
      %v1432 = vrcp.pop %v1387
      %v1433 = vmul.f32 1.0, %v1432
      %v1434 = vrcp.pop %v1388
      %v1435 = vmul.f32 1.0, %v1434
      %v1436 = vrcp.pop %v1389
      %v1437 = vmul.f32 1.0, %v1436
      %v1438 = vrcp.pop %v1390
      %v1439 = vmul.f32 1.0, %v1438
      %v1440 = vrcp.pop %v1391
      %v1441 = vmul.f32 1.0, %v1440
      %v1442 = vrcp.pop %v1392
      %v1443 = vmul.f32 1.0, %v1442
      %v1444 = vrcp.pop %v1393
      %v1445 = vmul.f32 1.0, %v1444
      %v1446 = vrcp.pop %v1394
      %v1447 = vmul.f32 1.0, %v1446
      %v1448 = vrcp.pop %v1395
      %v1449 = vmul.f32 1.0, %v1448
      %v1450 = vrcp.pop %v1396
      %v1451 = vmul.f32 1.0, %v1450
      %v1452 = vrcp.pop %v1397
      %v1453 = vmul.f32 1.0, %v1452
      %v1454 = vrcp.pop %v1398
      %v1455 = vmul.f32 1.0, %v1454
      %v1456 = vrcp.pop %v1399
      %v1457 = vmul.f32 1.0, %v1456
      %v1458 = vrcp.pop %v1400
      %v1459 = vmul.f32 1.0, %v1458
      %v1460 = vrcp.pop %v1401
      %v1461 = vmul.f32 1.0, %v1460
      %v1462 = vrcp.pop %v1402
      %v1463 = vmul.f32 1.0, %v1462
      %v1464 = vrcp.pop %v1403
      %v1465 = vmul.f32 1.0, %v1464
      %v1466 = vrcp.pop %v1404
      %v1467 = vmul.f32 1.0, %v1466
      %v1468 = vrcp.pop %v1405
      %v1469 = vmul.f32 1.0, %v1468
      %v1470 = vmul.f32 %v1246, %v1407
      %v1471 = vmul.f32 %v1247, %v1409
      %v1472 = vmul.f32 %v1248, %v1411
      %v1473 = vmul.f32 %v1249, %v1413
      %v1474 = vmul.f32 %v1250, %v1415
      %v1475 = vmul.f32 %v1251, %v1417
      %v1476 = vmul.f32 %v1252, %v1419
      %v1477 = vmul.f32 %v1253, %v1421
      %v1478 = vmul.f32 %v1254, %v1423
      %v1479 = vmul.f32 %v1255, %v1425
      %v1480 = vmul.f32 %v1256, %v1427
      %v1481 = vmul.f32 %v1257, %v1429
      %v1482 = vmul.f32 %v1258, %v1431
      %v1483 = vmul.f32 %v1259, %v1433
      %v1484 = vmul.f32 %v1260, %v1435
      %v1485 = vmul.f32 %v1261, %v1437
      %v1486 = vmul.f32 %v1262, %v1439
      %v1487 = vmul.f32 %v1263, %v1441
      %v1488 = vmul.f32 %v1264, %v1443
      %v1489 = vmul.f32 %v1265, %v1445
      %v1490 = vmul.f32 %v1266, %v1447
      %v1491 = vmul.f32 %v1267, %v1449
      %v1492 = vmul.f32 %v1268, %v1451
      %v1493 = vmul.f32 %v1269, %v1453
      %v1494 = vmul.f32 %v1270, %v1455
      %v1495 = vmul.f32 %v1271, %v1457
      %v1496 = vmul.f32 %v1272, %v1459
      %v1497 = vmul.f32 %v1273, %v1461
      %v1498 = vmul.f32 %v1274, %v1463
      %v1499 = vmul.f32 %v1275, %v1465
      %v1500 = vmul.f32 %v1276, %v1467
      %v1501 = vmul.f32 %v1277, %v1469
      %s1502 = scalar_lea.vmem [#allocation2], 24
      %1503 = vst.msk [vmem:[%s1502 + $0x1] sm:$0xff] %vm361, %v1470
      %1504 = vst.msk [vmem:[%s1502 + $0x9] sm:$0xff] %vm361, %v1471
      %1505 = vst.msk [vmem:[%s1502 + $0x19] sm:$0xff] %vm361, %v1472
      %1506 = vst.msk [vmem:[%s1502 + $0x21] sm:$0xff] %vm361, %v1473
      %1507 = vst.msk [vmem:[%s1502 + $0x31] sm:$0xff] %vm361, %v1474
      %1508 = vst.msk [vmem:[%s1502 + $0x39] sm:$0xff] %vm361, %v1475
      %1509 = vst.msk [vmem:[%s1502 + $0x49] sm:$0xff] %vm361, %v1476
      %1510 = vst.msk [vmem:[%s1502 + $0x51] sm:$0xff] %vm361, %v1477
      %1511 = vst.msk [vmem:[%s1502 + $0x61] sm:$0xff] %vm361, %v1478
      %1512 = vst.msk [vmem:[%s1502 + $0x69] sm:$0xff] %vm361, %v1479
      %1513 = vst.msk [vmem:[%s1502 + $0x79] sm:$0xff] %vm361, %v1480
      %1514 = vst.msk [vmem:[%s1502 + $0x81] sm:$0xff] %vm361, %v1481
      %1515 = vst.msk [vmem:[%s1502 + $0x91] sm:$0xff] %vm361, %v1482
      %1516 = vst.msk [vmem:[%s1502 + $0x99] sm:$0xff] %vm361, %v1483
      %1517 = vst.msk [vmem:[%s1502 + $0xa9] sm:$0xff] %vm361, %v1484
      %1518 = vst.msk [vmem:[%s1502 + $0xb1] sm:$0xff] %vm361, %v1485
      %1519 = vst.msk [vmem:[%s1502 + $0xc1] sm:$0xff] %vm361, %v1486
      %1520 = vst.msk [vmem:[%s1502 + $0xc9] sm:$0xff] %vm361, %v1487
      %1521 = vst.msk [vmem:[%s1502 + $0xd9] sm:$0xff] %vm361, %v1488
      %1522 = vst.msk [vmem:[%s1502 + $0xe1] sm:$0xff] %vm361, %v1489
      %1523 = vst.msk [vmem:[%s1502 + $0xf1] sm:$0xff] %vm361, %v1490
      %1524 = vst.msk [vmem:[%s1502 + $0xf9] sm:$0xff] %vm361, %v1491
      %1525 = vst.msk [vmem:[%s1502 + $0x109] sm:$0xff] %vm361, %v1492
      %1526 = vst.msk [vmem:[%s1502 + $0x111] sm:$0xff] %vm361, %v1493
      %1527 = vst.msk [vmem:[%s1502 + $0x121] sm:$0xff] %vm361, %v1494
      %1528 = vst.msk [vmem:[%s1502 + $0x129] sm:$0xff] %vm361, %v1495
      %1529 = vst.msk [vmem:[%s1502 + $0x139] sm:$0xff] %vm361, %v1496
      %1530 = vst.msk [vmem:[%s1502 + $0x141] sm:$0xff] %vm361, %v1497
      %1531 = vst.msk [vmem:[%s1502 + $0x151] sm:$0xff] %vm361, %v1498
      %1532 = vst.msk [vmem:[%s1502 + $0x159] sm:$0xff] %vm361, %v1499
      %1533 = vst.msk [vmem:[%s1502 + $0x169] sm:$0xff] %vm361, %v1500
      %1534 = vst.msk [vmem:[%s1502 + $0x171] sm:$0xff] %vm361, %v1501
      %v1535 = vld [vmem:[#allocation2] sm:$0xff]
      %v1536 = vld [vmem:[#allocation2 + $0x8] sm:$0xff]
      %v1537 = vld [vmem:[#allocation2 + $0x18] sm:$0xff]
      %v1538 = vld [vmem:[#allocation2 + $0x20] sm:$0xff]
      %v1539 = vld [vmem:[#allocation2 + $0x30] sm:$0xff]
      %v1540 = vld [vmem:[#allocation2 + $0x38] sm:$0xff]
      %v1541 = vld [vmem:[#allocation2 + $0x48] sm:$0xff]
      %v1542 = vld [vmem:[#allocation2 + $0x50] sm:$0xff]
      %v1543 = vld [vmem:[#allocation2 + $0x60] sm:$0xff]
      %v1544 = vld [vmem:[#allocation2 + $0x68] sm:$0xff]
      %v1545 = vld [vmem:[#allocation2 + $0x78] sm:$0xff]
      %v1546 = vld [vmem:[#allocation2 + $0x80] sm:$0xff]
      %v1547 = vld [vmem:[#allocation2 + $0x90] sm:$0xff]
      %v1548 = vld [vmem:[#allocation2 + $0x98] sm:$0xff]
      %v1549 = vld [vmem:[#allocation2 + $0xa8] sm:$0xff]
      %v1550 = vld [vmem:[#allocation2 + $0xb0] sm:$0xff]
      %v1551 = vld [vmem:[#allocation2 + $0xc0] sm:$0xff]
      %v1552 = vld [vmem:[#allocation2 + $0xc8] sm:$0xff]
      %v1553 = vld [vmem:[#allocation2 + $0xd8] sm:$0xff]
      %v1554 = vld [vmem:[#allocation2 + $0xe0] sm:$0xff]
      %v1555 = vld [vmem:[#allocation2 + $0xf0] sm:$0xff]
      %v1556 = vld [vmem:[#allocation2 + $0xf8] sm:$0xff]
      %v1557 = vld [vmem:[#allocation2 + $0x108] sm:$0xff]
      %v1558 = vld [vmem:[#allocation2 + $0x110] sm:$0xff]
      %v1559 = vld [vmem:[#allocation2 + $0x120] sm:$0xff]
      %v1560 = vld [vmem:[#allocation2 + $0x128] sm:$0xff]
      %v1561 = vld [vmem:[#allocation2 + $0x138] sm:$0xff]
      %v1562 = vld [vmem:[#allocation2 + $0x140] sm:$0xff]
      %v1563 = vld [vmem:[#allocation2 + $0x150] sm:$0xff]
      %v1564 = vld [vmem:[#allocation2 + $0x158] sm:$0xff]
      %v1565 = vld [vmem:[#allocation2 + $0x168] sm:$0xff]
      %v1566 = vld [vmem:[#allocation2 + $0x170] sm:$0xff]
      %v1567 = vld [vmem:[#allocation2 + $0x1] sm:$0xff]
      %v1568 = vld [vmem:[#allocation2 + $0x9] sm:$0xff]
      %v1569 = vld [vmem:[#allocation2 + $0x19] sm:$0xff]
      %v1570 = vld [vmem:[#allocation2 + $0x21] sm:$0xff]
      %v1571 = vld [vmem:[#allocation2 + $0x31] sm:$0xff]
      %v1572 = vld [vmem:[#allocation2 + $0x39] sm:$0xff]
      %v1573 = vld [vmem:[#allocation2 + $0x49] sm:$0xff]
      %v1574 = vld [vmem:[#allocation2 + $0x51] sm:$0xff]
      %v1575 = vld [vmem:[#allocation2 + $0x61] sm:$0xff]
      %v1576 = vld [vmem:[#allocation2 + $0x69] sm:$0xff]
      %v1577 = vld [vmem:[#allocation2 + $0x79] sm:$0xff]
      %v1578 = vld [vmem:[#allocation2 + $0x81] sm:$0xff]
      %v1579 = vld [vmem:[#allocation2 + $0x91] sm:$0xff]
      %v1580 = vld [vmem:[#allocation2 + $0x99] sm:$0xff]
      %v1581 = vld [vmem:[#allocation2 + $0xa9] sm:$0xff]
      %v1582 = vld [vmem:[#allocation2 + $0xb1] sm:$0xff]
      %v1583 = vld [vmem:[#allocation2 + $0xc1] sm:$0xff]
      %v1584 = vld [vmem:[#allocation2 + $0xc9] sm:$0xff]
      %v1585 = vld [vmem:[#allocation2 + $0xd9] sm:$0xff]
      %v1586 = vld [vmem:[#allocation2 + $0xe1] sm:$0xff]
      %v1587 = vld [vmem:[#allocation2 + $0xf1] sm:$0xff]
      %v1588 = vld [vmem:[#allocation2 + $0xf9] sm:$0xff]
      %v1589 = vld [vmem:[#allocation2 + $0x109] sm:$0xff]
      %v1590 = vld [vmem:[#allocation2 + $0x111] sm:$0xff]
      %v1591 = vld [vmem:[#allocation2 + $0x121] sm:$0xff]
      %v1592 = vld [vmem:[#allocation2 + $0x129] sm:$0xff]
      %v1593 = vld [vmem:[#allocation2 + $0x139] sm:$0xff]
      %v1594 = vld [vmem:[#allocation2 + $0x141] sm:$0xff]
      %v1595 = vld [vmem:[#allocation2 + $0x151] sm:$0xff]
      %v1596 = vld [vmem:[#allocation2 + $0x159] sm:$0xff]
      %v1597 = vld [vmem:[#allocation2 + $0x169] sm:$0xff]
      %v1598 = vld [vmem:[#allocation2 + $0x171] sm:$0xff]
      %v1599 = vld [vmem:[#allocation2 + $0x2] sm:$0xff]
      %v1600 = vld [vmem:[#allocation2 + $0xa] sm:$0xff]
      %v1601 = vld [vmem:[#allocation2 + $0x1a] sm:$0xff]
      %v1602 = vld [vmem:[#allocation2 + $0x22] sm:$0xff]
      %v1603 = vld [vmem:[#allocation2 + $0x32] sm:$0xff]
      %v1604 = vld [vmem:[#allocation2 + $0x3a] sm:$0xff]
      %v1605 = vld [vmem:[#allocation2 + $0x4a] sm:$0xff]
      %v1606 = vld [vmem:[#allocation2 + $0x52] sm:$0xff]
      %v1607 = vld [vmem:[#allocation2 + $0x62] sm:$0xff]
      %v1608 = vld [vmem:[#allocation2 + $0x6a] sm:$0xff]
      %v1609 = vld [vmem:[#allocation2 + $0x7a] sm:$0xff]
      %v1610 = vld [vmem:[#allocation2 + $0x82] sm:$0xff]
      %v1611 = vld [vmem:[#allocation2 + $0x92] sm:$0xff]
      %v1612 = vld [vmem:[#allocation2 + $0x9a] sm:$0xff]
      %v1613 = vld [vmem:[#allocation2 + $0xaa] sm:$0xff]
      %v1614 = vld [vmem:[#allocation2 + $0xb2] sm:$0xff]
      %v1615 = vld [vmem:[#allocation2 + $0xc2] sm:$0xff]
      %v1616 = vld [vmem:[#allocation2 + $0xca] sm:$0xff]
      %v1617 = vld [vmem:[#allocation2 + $0xda] sm:$0xff]
      %v1618 = vld [vmem:[#allocation2 + $0xe2] sm:$0xff]
      %v1619 = vld [vmem:[#allocation2 + $0xf2] sm:$0xff]
      %v1620 = vld [vmem:[#allocation2 + $0xfa] sm:$0xff]
      %v1621 = vld [vmem:[#allocation2 + $0x10a] sm:$0xff]
      %v1622 = vld [vmem:[#allocation2 + $0x112] sm:$0xff]
      %v1623 = vld [vmem:[#allocation2 + $0x122] sm:$0xff]
      %v1624 = vld [vmem:[#allocation2 + $0x12a] sm:$0xff]
      %v1625 = vld [vmem:[#allocation2 + $0x13a] sm:$0xff]
      %v1626 = vld [vmem:[#allocation2 + $0x142] sm:$0xff]
      %v1627 = vld [vmem:[#allocation2 + $0x152] sm:$0xff]
      %v1628 = vld [vmem:[#allocation2 + $0x15a] sm:$0xff]
      %v1629 = vld [vmem:[#allocation2 + $0x16a] sm:$0xff]
      %v1630 = vld [vmem:[#allocation2 + $0x172] sm:$0xff]
      %v1631 = vld [vmem:[%s1502] sm:$0xff]
      %v1632 = vld [vmem:[%s1502 + $0x8] sm:$0xff]
      %v1633 = vld [vmem:[%s1502 + $0x18] sm:$0xff]
      %v1634 = vld [vmem:[%s1502 + $0x20] sm:$0xff]
      %v1635 = vld [vmem:[%s1502 + $0x30] sm:$0xff]
      %v1636 = vld [vmem:[%s1502 + $0x38] sm:$0xff]
      %v1637 = vld [vmem:[%s1502 + $0x48] sm:$0xff]
      %v1638 = vld [vmem:[%s1502 + $0x50] sm:$0xff]
      %v1639 = vld [vmem:[%s1502 + $0x60] sm:$0xff]
      %v1640 = vld [vmem:[%s1502 + $0x68] sm:$0xff]
      %v1641 = vld [vmem:[%s1502 + $0x78] sm:$0xff]
      %v1642 = vld [vmem:[%s1502 + $0x80] sm:$0xff]
      %v1643 = vld [vmem:[%s1502 + $0x90] sm:$0xff]
      %v1644 = vld [vmem:[%s1502 + $0x98] sm:$0xff]
      %v1645 = vld [vmem:[%s1502 + $0xa8] sm:$0xff]
      %v1646 = vld [vmem:[%s1502 + $0xb0] sm:$0xff]
      %v1647 = vld [vmem:[%s1502 + $0xc0] sm:$0xff]
      %v1648 = vld [vmem:[%s1502 + $0xc8] sm:$0xff]
      %v1649 = vld [vmem:[%s1502 + $0xd8] sm:$0xff]
      %v1650 = vld [vmem:[%s1502 + $0xe0] sm:$0xff]
      %v1651 = vld [vmem:[%s1502 + $0xf0] sm:$0xff]
      %v1652 = vld [vmem:[%s1502 + $0xf8] sm:$0xff]
      %v1653 = vld [vmem:[%s1502 + $0x108] sm:$0xff]
      %v1654 = vld [vmem:[%s1502 + $0x110] sm:$0xff]
      %v1655 = vld [vmem:[%s1502 + $0x120] sm:$0xff]
      %v1656 = vld [vmem:[%s1502 + $0x128] sm:$0xff]
      %v1657 = vld [vmem:[%s1502 + $0x138] sm:$0xff]
      %v1658 = vld [vmem:[%s1502 + $0x140] sm:$0xff]
      %v1659 = vld [vmem:[%s1502 + $0x150] sm:$0xff]
      %v1660 = vld [vmem:[%s1502 + $0x158] sm:$0xff]
      %v1661 = vld [vmem:[%s1502 + $0x168] sm:$0xff]
      %v1662 = vld [vmem:[%s1502 + $0x170] sm:$0xff]
      %v1663 = vld [vmem:[%s1502 + $0x1] sm:$0xff]
      %v1664 = vld [vmem:[%s1502 + $0x9] sm:$0xff]
      %v1665 = vld [vmem:[%s1502 + $0x19] sm:$0xff]
      %v1666 = vld [vmem:[%s1502 + $0x21] sm:$0xff]
      %v1667 = vld [vmem:[%s1502 + $0x31] sm:$0xff]
      %v1668 = vld [vmem:[%s1502 + $0x39] sm:$0xff]
      %v1669 = vld [vmem:[%s1502 + $0x49] sm:$0xff]
      %v1670 = vld [vmem:[%s1502 + $0x51] sm:$0xff]
      %v1671 = vld [vmem:[%s1502 + $0x61] sm:$0xff]
      %v1672 = vld [vmem:[%s1502 + $0x69] sm:$0xff]
      %v1673 = vld [vmem:[%s1502 + $0x79] sm:$0xff]
      %v1674 = vld [vmem:[%s1502 + $0x81] sm:$0xff]
      %v1675 = vld [vmem:[%s1502 + $0x91] sm:$0xff]
      %v1676 = vld [vmem:[%s1502 + $0x99] sm:$0xff]
      %v1677 = vld [vmem:[%s1502 + $0xa9] sm:$0xff]
      %v1678 = vld [vmem:[%s1502 + $0xb1] sm:$0xff]
      %v1679 = vld [vmem:[%s1502 + $0xc1] sm:$0xff]
      %v1680 = vld [vmem:[%s1502 + $0xc9] sm:$0xff]
      %v1681 = vld [vmem:[%s1502 + $0xd9] sm:$0xff]
      %v1682 = vld [vmem:[%s1502 + $0xe1] sm:$0xff]
      %v1683 = vld [vmem:[%s1502 + $0xf1] sm:$0xff]
      %v1684 = vld [vmem:[%s1502 + $0xf9] sm:$0xff]
      %v1685 = vld [vmem:[%s1502 + $0x109] sm:$0xff]
      %v1686 = vld [vmem:[%s1502 + $0x111] sm:$0xff]
      %v1687 = vld [vmem:[%s1502 + $0x121] sm:$0xff]
      %v1688 = vld [vmem:[%s1502 + $0x129] sm:$0xff]
      %v1689 = vld [vmem:[%s1502 + $0x139] sm:$0xff]
      %v1690 = vld [vmem:[%s1502 + $0x141] sm:$0xff]
      %v1691 = vld [vmem:[%s1502 + $0x151] sm:$0xff]
      %v1692 = vld [vmem:[%s1502 + $0x159] sm:$0xff]
      %v1693 = vld [vmem:[%s1502 + $0x169] sm:$0xff]
      %v1694 = vld [vmem:[%s1502 + $0x171] sm:$0xff]
      %v1695 = vld [vmem:[%s1502 + $0x2] sm:$0xff]
      %v1696 = vld [vmem:[%s1502 + $0xa] sm:$0xff]
      %v1697 = vld [vmem:[%s1502 + $0x1a] sm:$0xff]
      %v1698 = vld [vmem:[%s1502 + $0x22] sm:$0xff]
      %v1699 = vld [vmem:[%s1502 + $0x32] sm:$0xff]
      %v1700 = vld [vmem:[%s1502 + $0x3a] sm:$0xff]
      %v1701 = vld [vmem:[%s1502 + $0x4a] sm:$0xff]
      %v1702 = vld [vmem:[%s1502 + $0x52] sm:$0xff]
      %v1703 = vld [vmem:[%s1502 + $0x62] sm:$0xff]
      %v1704 = vld [vmem:[%s1502 + $0x6a] sm:$0xff]
      %v1705 = vld [vmem:[%s1502 + $0x7a] sm:$0xff]
      %v1706 = vld [vmem:[%s1502 + $0x82] sm:$0xff]
      %v1707 = vld [vmem:[%s1502 + $0x92] sm:$0xff]
      %v1708 = vld [vmem:[%s1502 + $0x9a] sm:$0xff]
      %v1709 = vld [vmem:[%s1502 + $0xaa] sm:$0xff]
      %v1710 = vld [vmem:[%s1502 + $0xb2] sm:$0xff]
      %v1711 = vld [vmem:[%s1502 + $0xc2] sm:$0xff]
      %v1712 = vld [vmem:[%s1502 + $0xca] sm:$0xff]
      %v1713 = vld [vmem:[%s1502 + $0xda] sm:$0xff]
      %v1714 = vld [vmem:[%s1502 + $0xe2] sm:$0xff]
      %v1715 = vld [vmem:[%s1502 + $0xf2] sm:$0xff]
      %v1716 = vld [vmem:[%s1502 + $0xfa] sm:$0xff]
      %v1717 = vld [vmem:[%s1502 + $0x10a] sm:$0xff]
      %v1718 = vld [vmem:[%s1502 + $0x112] sm:$0xff]
      %v1719 = vld [vmem:[%s1502 + $0x122] sm:$0xff]
      %v1720 = vld [vmem:[%s1502 + $0x12a] sm:$0xff]
      %v1721 = vld [vmem:[%s1502 + $0x13a] sm:$0xff]
      %v1722 = vld [vmem:[%s1502 + $0x142] sm:$0xff]
      %v1723 = vld [vmem:[%s1502 + $0x152] sm:$0xff]
      %v1724 = vld [vmem:[%s1502 + $0x15a] sm:$0xff]
      %v1725 = vld [vmem:[%s1502 + $0x16a] sm:$0xff]
      %v1726 = vld [vmem:[%s1502 + $0x172] sm:$0xff]
      %s1727 = scalar_lea.vmem [#allocation2], 48
      %v1728 = vld [vmem:[%s1727] sm:$0xff]
      %v1729 = vld [vmem:[%s1727 + $0x8] sm:$0xff]
      %v1730 = vld [vmem:[%s1727 + $0x18] sm:$0xff]
      %v1731 = vld [vmem:[%s1727 + $0x20] sm:$0xff]
      %v1732 = vld [vmem:[%s1727 + $0x30] sm:$0xff]
      %v1733 = vld [vmem:[%s1727 + $0x38] sm:$0xff]
      %v1734 = vld [vmem:[%s1727 + $0x48] sm:$0xff]
      %v1735 = vld [vmem:[%s1727 + $0x50] sm:$0xff]
      %v1736 = vld [vmem:[%s1727 + $0x60] sm:$0xff]
      %v1737 = vld [vmem:[%s1727 + $0x68] sm:$0xff]
      %v1738 = vld [vmem:[%s1727 + $0x78] sm:$0xff]
      %v1739 = vld [vmem:[%s1727 + $0x80] sm:$0xff]
      %v1740 = vld [vmem:[%s1727 + $0x90] sm:$0xff]
      %v1741 = vld [vmem:[%s1727 + $0x98] sm:$0xff]
      %v1742 = vld [vmem:[%s1727 + $0xa8] sm:$0xff]
      %v1743 = vld [vmem:[%s1727 + $0xb0] sm:$0xff]
      %v1744 = vld [vmem:[%s1727 + $0xc0] sm:$0xff]
      %v1745 = vld [vmem:[%s1727 + $0xc8] sm:$0xff]
      %v1746 = vld [vmem:[%s1727 + $0xd8] sm:$0xff]
      %v1747 = vld [vmem:[%s1727 + $0xe0] sm:$0xff]
      %v1748 = vld [vmem:[%s1727 + $0xf0] sm:$0xff]
      %v1749 = vld [vmem:[%s1727 + $0xf8] sm:$0xff]
      %v1750 = vld [vmem:[%s1727 + $0x108] sm:$0xff]
      %v1751 = vld [vmem:[%s1727 + $0x110] sm:$0xff]
      %v1752 = vld [vmem:[%s1727 + $0x120] sm:$0xff]
      %v1753 = vld [vmem:[%s1727 + $0x128] sm:$0xff]
      %v1754 = vld [vmem:[%s1727 + $0x138] sm:$0xff]
      %v1755 = vld [vmem:[%s1727 + $0x140] sm:$0xff]
      %v1756 = vld [vmem:[%s1727 + $0x150] sm:$0xff]
      %v1757 = vld [vmem:[%s1727 + $0x158] sm:$0xff]
      %v1758 = vld [vmem:[%s1727 + $0x168] sm:$0xff]
      %v1759 = vld [vmem:[%s1727 + $0x170] sm:$0xff]
      %v1760 = vld [vmem:[%s1727 + $0x1] sm:$0xff]
      %v1761 = vld [vmem:[%s1727 + $0x9] sm:$0xff]
      %v1762 = vld [vmem:[%s1727 + $0x19] sm:$0xff]
      %v1763 = vld [vmem:[%s1727 + $0x21] sm:$0xff]
      %v1764 = vld [vmem:[%s1727 + $0x31] sm:$0xff]
      %v1765 = vld [vmem:[%s1727 + $0x39] sm:$0xff]
      %v1766 = vld [vmem:[%s1727 + $0x49] sm:$0xff]
      %v1767 = vld [vmem:[%s1727 + $0x51] sm:$0xff]
      %v1768 = vld [vmem:[%s1727 + $0x61] sm:$0xff]
      %v1769 = vld [vmem:[%s1727 + $0x69] sm:$0xff]
      %v1770 = vld [vmem:[%s1727 + $0x79] sm:$0xff]
      %v1771 = vld [vmem:[%s1727 + $0x81] sm:$0xff]
      %v1772 = vld [vmem:[%s1727 + $0x91] sm:$0xff]
      %v1773 = vld [vmem:[%s1727 + $0x99] sm:$0xff]
      %v1774 = vld [vmem:[%s1727 + $0xa9] sm:$0xff]
      %v1775 = vld [vmem:[%s1727 + $0xb1] sm:$0xff]
      %v1776 = vld [vmem:[%s1727 + $0xc1] sm:$0xff]
      %v1777 = vld [vmem:[%s1727 + $0xc9] sm:$0xff]
      %v1778 = vld [vmem:[%s1727 + $0xd9] sm:$0xff]
      %v1779 = vld [vmem:[%s1727 + $0xe1] sm:$0xff]
      %v1780 = vld [vmem:[%s1727 + $0xf1] sm:$0xff]
      %v1781 = vld [vmem:[%s1727 + $0xf9] sm:$0xff]
      %v1782 = vld [vmem:[%s1727 + $0x109] sm:$0xff]
      %v1783 = vld [vmem:[%s1727 + $0x111] sm:$0xff]
      %v1784 = vld [vmem:[%s1727 + $0x121] sm:$0xff]
      %v1785 = vld [vmem:[%s1727 + $0x129] sm:$0xff]
      %v1786 = vld [vmem:[%s1727 + $0x139] sm:$0xff]
      %v1787 = vld [vmem:[%s1727 + $0x141] sm:$0xff]
      %v1788 = vld [vmem:[%s1727 + $0x151] sm:$0xff]
      %v1789 = vld [vmem:[%s1727 + $0x159] sm:$0xff]
      %v1790 = vld [vmem:[%s1727 + $0x169] sm:$0xff]
      %v1791 = vld [vmem:[%s1727 + $0x171] sm:$0xff]
      %v1792 = vld [vmem:[%s1727 + $0x2] sm:$0xff]
      %v1793 = vld [vmem:[%s1727 + $0xa] sm:$0xff]
      %v1794 = vld [vmem:[%s1727 + $0x1a] sm:$0xff]
      %v1795 = vld [vmem:[%s1727 + $0x22] sm:$0xff]
      %v1796 = vld [vmem:[%s1727 + $0x32] sm:$0xff]
      %v1797 = vld [vmem:[%s1727 + $0x3a] sm:$0xff]
      %v1798 = vld [vmem:[%s1727 + $0x4a] sm:$0xff]
      %v1799 = vld [vmem:[%s1727 + $0x52] sm:$0xff]
      %v1800 = vld [vmem:[%s1727 + $0x62] sm:$0xff]
      %v1801 = vld [vmem:[%s1727 + $0x6a] sm:$0xff]
      %v1802 = vld [vmem:[%s1727 + $0x7a] sm:$0xff]
      %v1803 = vld [vmem:[%s1727 + $0x82] sm:$0xff]
      %v1804 = vld [vmem:[%s1727 + $0x92] sm:$0xff]
      %v1805 = vld [vmem:[%s1727 + $0x9a] sm:$0xff]
      %v1806 = vld [vmem:[%s1727 + $0xaa] sm:$0xff]
      %v1807 = vld [vmem:[%s1727 + $0xb2] sm:$0xff]
      %v1808 = vld [vmem:[%s1727 + $0xc2] sm:$0xff]
      %v1809 = vld [vmem:[%s1727 + $0xca] sm:$0xff]
      %v1810 = vld [vmem:[%s1727 + $0xda] sm:$0xff]
      %v1811 = vld [vmem:[%s1727 + $0xe2] sm:$0xff]
      %v1812 = vld [vmem:[%s1727 + $0xf2] sm:$0xff]
      %v1813 = vld [vmem:[%s1727 + $0xfa] sm:$0xff]
      %v1814 = vld [vmem:[%s1727 + $0x10a] sm:$0xff]
      %v1815 = vld [vmem:[%s1727 + $0x112] sm:$0xff]
      %v1816 = vld [vmem:[%s1727 + $0x122] sm:$0xff]
      %v1817 = vld [vmem:[%s1727 + $0x12a] sm:$0xff]
      %v1818 = vld [vmem:[%s1727 + $0x13a] sm:$0xff]
      %v1819 = vld [vmem:[%s1727 + $0x142] sm:$0xff]
      %v1820 = vld [vmem:[%s1727 + $0x152] sm:$0xff]
      %v1821 = vld [vmem:[%s1727 + $0x15a] sm:$0xff]
      %v1822 = vld [vmem:[%s1727 + $0x16a] sm:$0xff]
      %v1823 = vld [vmem:[%s1727 + $0x172] sm:$0xff]
      %1856 = vrot.lane.b32.xlu0 %v1567, 4
      %v1857 = vpop.permute.xlu0 %1856
      %1858 = vrot.lane.b32.xlu0 %v1568, 4
      %v1859 = vpop.permute.xlu0 %1858
      %1860 = vrot.lane.b32.xlu0 %v1569, 4
      %v1861 = vpop.permute.xlu0 %1860
      %1862 = vrot.lane.b32.xlu0 %v1570, 4
      %v1863 = vpop.permute.xlu0 %1862
      %1864 = vrot.lane.b32.xlu0 %v1571, 4
      %v1865 = vpop.permute.xlu0 %1864
      %1866 = vrot.lane.b32.xlu0 %v1572, 4
      %v1867 = vpop.permute.xlu0 %1866
      %1868 = vrot.lane.b32.xlu0 %v1573, 4
      %v1869 = vpop.permute.xlu0 %1868
      %1870 = vrot.lane.b32.xlu0 %v1574, 4
      %v1871 = vpop.permute.xlu0 %1870
      %1872 = vrot.lane.b32.xlu0 %v1575, 4
      %v1873 = vpop.permute.xlu0 %1872
      %1874 = vrot.lane.b32.xlu0 %v1576, 4
      %v1875 = vpop.permute.xlu0 %1874
      %1876 = vrot.lane.b32.xlu0 %v1577, 4
      %v1877 = vpop.permute.xlu0 %1876
      %1878 = vrot.lane.b32.xlu0 %v1578, 4
      %v1879 = vpop.permute.xlu0 %1878
      %1880 = vrot.lane.b32.xlu0 %v1579, 4
      %v1881 = vpop.permute.xlu0 %1880
      %1882 = vrot.lane.b32.xlu0 %v1580, 4
      %v1883 = vpop.permute.xlu0 %1882
      %1884 = vrot.lane.b32.xlu0 %v1581, 4
      %v1885 = vpop.permute.xlu0 %1884
      %1886 = vrot.lane.b32.xlu0 %v1582, 4
      %v1887 = vpop.permute.xlu0 %1886
      %1888 = vrot.lane.b32.xlu0 %v1583, 4
      %v1889 = vpop.permute.xlu0 %1888
      %1890 = vrot.lane.b32.xlu0 %v1584, 4
      %v1891 = vpop.permute.xlu0 %1890
      %1892 = vrot.lane.b32.xlu0 %v1585, 4
      %v1893 = vpop.permute.xlu0 %1892
      %1894 = vrot.lane.b32.xlu0 %v1586, 4
      %v1895 = vpop.permute.xlu0 %1894
      %1896 = vrot.lane.b32.xlu0 %v1587, 4
      %v1897 = vpop.permute.xlu0 %1896
      %1898 = vrot.lane.b32.xlu0 %v1588, 4
      %v1899 = vpop.permute.xlu0 %1898
      %1900 = vrot.lane.b32.xlu0 %v1589, 4
      %v1901 = vpop.permute.xlu0 %1900
      %1902 = vrot.lane.b32.xlu0 %v1590, 4
      %v1903 = vpop.permute.xlu0 %1902
      %1904 = vrot.lane.b32.xlu0 %v1591, 4
      %v1905 = vpop.permute.xlu0 %1904
      %1906 = vrot.lane.b32.xlu0 %v1592, 4
      %v1907 = vpop.permute.xlu0 %1906
      %1908 = vrot.lane.b32.xlu0 %v1593, 4
      %v1909 = vpop.permute.xlu0 %1908
      %1910 = vrot.lane.b32.xlu0 %v1594, 4
      %v1911 = vpop.permute.xlu0 %1910
      %1912 = vrot.lane.b32.xlu0 %v1595, 4
      %v1913 = vpop.permute.xlu0 %1912
      %1914 = vrot.lane.b32.xlu0 %v1596, 4
      %v1915 = vpop.permute.xlu0 %1914
      %1916 = vrot.lane.b32.xlu0 %v1597, 4
      %v1917 = vpop.permute.xlu0 %1916
      %1918 = vrot.lane.b32.xlu0 %v1598, 4
      %v1919 = vpop.permute.xlu0 %1918
      %1984 = vrot.lane.b32.xlu0 %v1599, 8
      %v1985 = vpop.permute.xlu0 %1984
      %1986 = vrot.lane.b32.xlu0 %v1600, 8
      %v1987 = vpop.permute.xlu0 %1986
      %1988 = vrot.lane.b32.xlu0 %v1601, 8
      %v1989 = vpop.permute.xlu0 %1988
      %1990 = vrot.lane.b32.xlu0 %v1602, 8
      %v1991 = vpop.permute.xlu0 %1990
      %1992 = vrot.lane.b32.xlu0 %v1603, 8
      %v1993 = vpop.permute.xlu0 %1992
      %1994 = vrot.lane.b32.xlu0 %v1604, 8
      %v1995 = vpop.permute.xlu0 %1994
      %1996 = vrot.lane.b32.xlu0 %v1605, 8
      %v1997 = vpop.permute.xlu0 %1996
      %1998 = vrot.lane.b32.xlu0 %v1606, 8
      %v1999 = vpop.permute.xlu0 %1998
      %2000 = vrot.lane.b32.xlu0 %v1607, 8
      %v2001 = vpop.permute.xlu0 %2000
      %2002 = vrot.lane.b32.xlu0 %v1608, 8
      %v2003 = vpop.permute.xlu0 %2002
      %2004 = vrot.lane.b32.xlu0 %v1609, 8
      %v2005 = vpop.permute.xlu0 %2004
      %2006 = vrot.lane.b32.xlu0 %v1610, 8
      %v2007 = vpop.permute.xlu0 %2006
      %2008 = vrot.lane.b32.xlu0 %v1611, 8
      %v2009 = vpop.permute.xlu0 %2008
      %2010 = vrot.lane.b32.xlu0 %v1612, 8
      %v2011 = vpop.permute.xlu0 %2010
      %2012 = vrot.lane.b32.xlu0 %v1613, 8
      %v2013 = vpop.permute.xlu0 %2012
      %2014 = vrot.lane.b32.xlu0 %v1614, 8
      %v2015 = vpop.permute.xlu0 %2014
      %2016 = vrot.lane.b32.xlu0 %v1615, 8
      %v2017 = vpop.permute.xlu0 %2016
      %2018 = vrot.lane.b32.xlu0 %v1616, 8
      %v2019 = vpop.permute.xlu0 %2018
      %2020 = vrot.lane.b32.xlu0 %v1617, 8
      %v2021 = vpop.permute.xlu0 %2020
      %2022 = vrot.lane.b32.xlu0 %v1618, 8
      %v2023 = vpop.permute.xlu0 %2022
      %2024 = vrot.lane.b32.xlu0 %v1619, 8
      %v2025 = vpop.permute.xlu0 %2024
      %2026 = vrot.lane.b32.xlu0 %v1620, 8
      %v2027 = vpop.permute.xlu0 %2026
      %2028 = vrot.lane.b32.xlu0 %v1621, 8
      %v2029 = vpop.permute.xlu0 %2028
      %2030 = vrot.lane.b32.xlu0 %v1622, 8
      %v2031 = vpop.permute.xlu0 %2030
      %2032 = vrot.lane.b32.xlu0 %v1623, 8
      %v2033 = vpop.permute.xlu0 %2032
      %2034 = vrot.lane.b32.xlu0 %v1624, 8
      %v2035 = vpop.permute.xlu0 %2034
      %2036 = vrot.lane.b32.xlu0 %v1625, 8
      %v2037 = vpop.permute.xlu0 %2036
      %2038 = vrot.lane.b32.xlu0 %v1626, 8
      %v2039 = vpop.permute.xlu0 %2038
      %2040 = vrot.lane.b32.xlu0 %v1627, 8
      %v2041 = vpop.permute.xlu0 %2040
      %2042 = vrot.lane.b32.xlu0 %v1628, 8
      %v2043 = vpop.permute.xlu0 %2042
      %2044 = vrot.lane.b32.xlu0 %v1629, 8
      %v2045 = vpop.permute.xlu0 %2044
      %2046 = vrot.lane.b32.xlu0 %v1630, 8
      %v2047 = vpop.permute.xlu0 %2046
      %2112 = vrot.lane.b32.xlu0 %v1631, 12
      %v2113 = vpop.permute.xlu0 %2112
      %2114 = vrot.lane.b32.xlu0 %v1632, 12
      %v2115 = vpop.permute.xlu0 %2114
      %2116 = vrot.lane.b32.xlu0 %v1633, 12
      %v2117 = vpop.permute.xlu0 %2116
      %2118 = vrot.lane.b32.xlu0 %v1634, 12
      %v2119 = vpop.permute.xlu0 %2118
      %2120 = vrot.lane.b32.xlu0 %v1635, 12
      %v2121 = vpop.permute.xlu0 %2120
      %2122 = vrot.lane.b32.xlu0 %v1636, 12
      %v2123 = vpop.permute.xlu0 %2122
      %2124 = vrot.lane.b32.xlu0 %v1637, 12
      %v2125 = vpop.permute.xlu0 %2124
      %2126 = vrot.lane.b32.xlu0 %v1638, 12
      %v2127 = vpop.permute.xlu0 %2126
      %2128 = vrot.lane.b32.xlu0 %v1639, 12
      %v2129 = vpop.permute.xlu0 %2128
      %2130 = vrot.lane.b32.xlu0 %v1640, 12
      %v2131 = vpop.permute.xlu0 %2130
      %2132 = vrot.lane.b32.xlu0 %v1641, 12
      %v2133 = vpop.permute.xlu0 %2132
      %2134 = vrot.lane.b32.xlu0 %v1642, 12
      %v2135 = vpop.permute.xlu0 %2134
      %2136 = vrot.lane.b32.xlu0 %v1643, 12
      %v2137 = vpop.permute.xlu0 %2136
      %2138 = vrot.lane.b32.xlu0 %v1644, 12
      %v2139 = vpop.permute.xlu0 %2138
      %2140 = vrot.lane.b32.xlu0 %v1645, 12
      %v2141 = vpop.permute.xlu0 %2140
      %2142 = vrot.lane.b32.xlu0 %v1646, 12
      %v2143 = vpop.permute.xlu0 %2142
      %2144 = vrot.lane.b32.xlu0 %v1647, 12
      %v2145 = vpop.permute.xlu0 %2144
      %2146 = vrot.lane.b32.xlu0 %v1648, 12
      %v2147 = vpop.permute.xlu0 %2146
      %2148 = vrot.lane.b32.xlu0 %v1649, 12
      %v2149 = vpop.permute.xlu0 %2148
      %2150 = vrot.lane.b32.xlu0 %v1650, 12
      %v2151 = vpop.permute.xlu0 %2150
      %2152 = vrot.lane.b32.xlu0 %v1651, 12
      %v2153 = vpop.permute.xlu0 %2152
      %2154 = vrot.lane.b32.xlu0 %v1652, 12
      %v2155 = vpop.permute.xlu0 %2154
      %2156 = vrot.lane.b32.xlu0 %v1653, 12
      %v2157 = vpop.permute.xlu0 %2156
      %2158 = vrot.lane.b32.xlu0 %v1654, 12
      %v2159 = vpop.permute.xlu0 %2158
      %2160 = vrot.lane.b32.xlu0 %v1655, 12
      %v2161 = vpop.permute.xlu0 %2160
      %2162 = vrot.lane.b32.xlu0 %v1656, 12
      %v2163 = vpop.permute.xlu0 %2162
      %2164 = vrot.lane.b32.xlu0 %v1657, 12
      %v2165 = vpop.permute.xlu0 %2164
      %2166 = vrot.lane.b32.xlu0 %v1658, 12
      %v2167 = vpop.permute.xlu0 %2166
      %2168 = vrot.lane.b32.xlu0 %v1659, 12
      %v2169 = vpop.permute.xlu0 %2168
      %2170 = vrot.lane.b32.xlu0 %v1660, 12
      %v2171 = vpop.permute.xlu0 %2170
      %2172 = vrot.lane.b32.xlu0 %v1661, 12
      %v2173 = vpop.permute.xlu0 %2172
      %2174 = vrot.lane.b32.xlu0 %v1662, 12
      %v2175 = vpop.permute.xlu0 %2174
      %2240 = vrot.lane.b32.xlu0 %v1663, 16
      %v2241 = vpop.permute.xlu0 %2240
      %2242 = vrot.lane.b32.xlu0 %v1664, 16
      %v2243 = vpop.permute.xlu0 %2242
      %2244 = vrot.lane.b32.xlu0 %v1665, 16
      %v2245 = vpop.permute.xlu0 %2244
      %2246 = vrot.lane.b32.xlu0 %v1666, 16
      %v2247 = vpop.permute.xlu0 %2246
      %2248 = vrot.lane.b32.xlu0 %v1667, 16
      %v2249 = vpop.permute.xlu0 %2248
      %2250 = vrot.lane.b32.xlu0 %v1668, 16
      %v2251 = vpop.permute.xlu0 %2250
      %2252 = vrot.lane.b32.xlu0 %v1669, 16
      %v2253 = vpop.permute.xlu0 %2252
      %2254 = vrot.lane.b32.xlu0 %v1670, 16
      %v2255 = vpop.permute.xlu0 %2254
      %2256 = vrot.lane.b32.xlu0 %v1671, 16
      %v2257 = vpop.permute.xlu0 %2256
      %2258 = vrot.lane.b32.xlu0 %v1672, 16
      %v2259 = vpop.permute.xlu0 %2258
      %2260 = vrot.lane.b32.xlu0 %v1673, 16
      %v2261 = vpop.permute.xlu0 %2260
      %2262 = vrot.lane.b32.xlu0 %v1674, 16
      %v2263 = vpop.permute.xlu0 %2262
      %2264 = vrot.lane.b32.xlu0 %v1675, 16
      %v2265 = vpop.permute.xlu0 %2264
      %2266 = vrot.lane.b32.xlu0 %v1676, 16
      %v2267 = vpop.permute.xlu0 %2266
      %2268 = vrot.lane.b32.xlu0 %v1677, 16
      %v2269 = vpop.permute.xlu0 %2268
      %2270 = vrot.lane.b32.xlu0 %v1678, 16
      %v2271 = vpop.permute.xlu0 %2270
      %2272 = vrot.lane.b32.xlu0 %v1679, 16
      %v2273 = vpop.permute.xlu0 %2272
      %2274 = vrot.lane.b32.xlu0 %v1680, 16
      %v2275 = vpop.permute.xlu0 %2274
      %2276 = vrot.lane.b32.xlu0 %v1681, 16
      %v2277 = vpop.permute.xlu0 %2276
      %2278 = vrot.lane.b32.xlu0 %v1682, 16
      %v2279 = vpop.permute.xlu0 %2278
      %2280 = vrot.lane.b32.xlu0 %v1683, 16
      %v2281 = vpop.permute.xlu0 %2280
      %2282 = vrot.lane.b32.xlu0 %v1684, 16
      %v2283 = vpop.permute.xlu0 %2282
      %2284 = vrot.lane.b32.xlu0 %v1685, 16
      %v2285 = vpop.permute.xlu0 %2284
      %2286 = vrot.lane.b32.xlu0 %v1686, 16
      %v2287 = vpop.permute.xlu0 %2286
      %2288 = vrot.lane.b32.xlu0 %v1687, 16
      %v2289 = vpop.permute.xlu0 %2288
      %2290 = vrot.lane.b32.xlu0 %v1688, 16
      %v2291 = vpop.permute.xlu0 %2290
      %2292 = vrot.lane.b32.xlu0 %v1689, 16
      %v2293 = vpop.permute.xlu0 %2292
      %2294 = vrot.lane.b32.xlu0 %v1690, 16
      %v2295 = vpop.permute.xlu0 %2294
      %2296 = vrot.lane.b32.xlu0 %v1691, 16
      %v2297 = vpop.permute.xlu0 %2296
      %2298 = vrot.lane.b32.xlu0 %v1692, 16
      %v2299 = vpop.permute.xlu0 %2298
      %2300 = vrot.lane.b32.xlu0 %v1693, 16
      %v2301 = vpop.permute.xlu0 %2300
      %2302 = vrot.lane.b32.xlu0 %v1694, 16
      %v2303 = vpop.permute.xlu0 %2302
      %2368 = vrot.lane.b32.xlu0 %v1695, 20
      %v2369 = vpop.permute.xlu0 %2368
      %2370 = vrot.lane.b32.xlu0 %v1696, 20
      %v2371 = vpop.permute.xlu0 %2370
      %2372 = vrot.lane.b32.xlu0 %v1697, 20
      %v2373 = vpop.permute.xlu0 %2372
      %2374 = vrot.lane.b32.xlu0 %v1698, 20
      %v2375 = vpop.permute.xlu0 %2374
      %2376 = vrot.lane.b32.xlu0 %v1699, 20
      %v2377 = vpop.permute.xlu0 %2376
      %2378 = vrot.lane.b32.xlu0 %v1700, 20
      %v2379 = vpop.permute.xlu0 %2378
      %2380 = vrot.lane.b32.xlu0 %v1701, 20
      %v2381 = vpop.permute.xlu0 %2380
      %2382 = vrot.lane.b32.xlu0 %v1702, 20
      %v2383 = vpop.permute.xlu0 %2382
      %2384 = vrot.lane.b32.xlu0 %v1703, 20
      %v2385 = vpop.permute.xlu0 %2384
      %2386 = vrot.lane.b32.xlu0 %v1704, 20
      %v2387 = vpop.permute.xlu0 %2386
      %2388 = vrot.lane.b32.xlu0 %v1705, 20
      %v2389 = vpop.permute.xlu0 %2388
      %2390 = vrot.lane.b32.xlu0 %v1706, 20
      %v2391 = vpop.permute.xlu0 %2390
      %2392 = vrot.lane.b32.xlu0 %v1707, 20
      %v2393 = vpop.permute.xlu0 %2392
      %2394 = vrot.lane.b32.xlu0 %v1708, 20
      %v2395 = vpop.permute.xlu0 %2394
      %2396 = vrot.lane.b32.xlu0 %v1709, 20
      %v2397 = vpop.permute.xlu0 %2396
      %2398 = vrot.lane.b32.xlu0 %v1710, 20
      %v2399 = vpop.permute.xlu0 %2398
      %2400 = vrot.lane.b32.xlu0 %v1711, 20
      %v2401 = vpop.permute.xlu0 %2400
      %2402 = vrot.lane.b32.xlu0 %v1712, 20
      %v2403 = vpop.permute.xlu0 %2402
      %2404 = vrot.lane.b32.xlu0 %v1713, 20
      %v2405 = vpop.permute.xlu0 %2404
      %2406 = vrot.lane.b32.xlu0 %v1714, 20
      %v2407 = vpop.permute.xlu0 %2406
      %2408 = vrot.lane.b32.xlu0 %v1715, 20
      %v2409 = vpop.permute.xlu0 %2408
      %2410 = vrot.lane.b32.xlu0 %v1716, 20
      %v2411 = vpop.permute.xlu0 %2410
      %2412 = vrot.lane.b32.xlu0 %v1717, 20
      %v2413 = vpop.permute.xlu0 %2412
      %2414 = vrot.lane.b32.xlu0 %v1718, 20
      %v2415 = vpop.permute.xlu0 %2414
      %2416 = vrot.lane.b32.xlu0 %v1719, 20
      %v2417 = vpop.permute.xlu0 %2416
      %2418 = vrot.lane.b32.xlu0 %v1720, 20
      %v2419 = vpop.permute.xlu0 %2418
      %2420 = vrot.lane.b32.xlu0 %v1721, 20
      %v2421 = vpop.permute.xlu0 %2420
      %2422 = vrot.lane.b32.xlu0 %v1722, 20
      %v2423 = vpop.permute.xlu0 %2422
      %2424 = vrot.lane.b32.xlu0 %v1723, 20
      %v2425 = vpop.permute.xlu0 %2424
      %2426 = vrot.lane.b32.xlu0 %v1724, 20
      %v2427 = vpop.permute.xlu0 %2426
      %2428 = vrot.lane.b32.xlu0 %v1725, 20
      %v2429 = vpop.permute.xlu0 %2428
      %2430 = vrot.lane.b32.xlu0 %v1726, 20
      %v2431 = vpop.permute.xlu0 %2430
      %2496 = vrot.lane.b32.xlu0 %v1728, 24
      %v2497 = vpop.permute.xlu0 %2496
      %2498 = vrot.lane.b32.xlu0 %v1729, 24
      %v2499 = vpop.permute.xlu0 %2498
      %2500 = vrot.lane.b32.xlu0 %v1730, 24
      %v2501 = vpop.permute.xlu0 %2500
      %2502 = vrot.lane.b32.xlu0 %v1731, 24
      %v2503 = vpop.permute.xlu0 %2502
      %2504 = vrot.lane.b32.xlu0 %v1732, 24
      %v2505 = vpop.permute.xlu0 %2504
      %2506 = vrot.lane.b32.xlu0 %v1733, 24
      %v2507 = vpop.permute.xlu0 %2506
      %2508 = vrot.lane.b32.xlu0 %v1734, 24
      %v2509 = vpop.permute.xlu0 %2508
      %2510 = vrot.lane.b32.xlu0 %v1735, 24
      %v2511 = vpop.permute.xlu0 %2510
      %2512 = vrot.lane.b32.xlu0 %v1736, 24
      %v2513 = vpop.permute.xlu0 %2512
      %2514 = vrot.lane.b32.xlu0 %v1737, 24
      %v2515 = vpop.permute.xlu0 %2514
      %2516 = vrot.lane.b32.xlu0 %v1738, 24
      %v2517 = vpop.permute.xlu0 %2516
      %2518 = vrot.lane.b32.xlu0 %v1739, 24
      %v2519 = vpop.permute.xlu0 %2518
      %2520 = vrot.lane.b32.xlu0 %v1740, 24
      %v2521 = vpop.permute.xlu0 %2520
      %2522 = vrot.lane.b32.xlu0 %v1741, 24
      %v2523 = vpop.permute.xlu0 %2522
      %2524 = vrot.lane.b32.xlu0 %v1742, 24
      %v2525 = vpop.permute.xlu0 %2524
      %2526 = vrot.lane.b32.xlu0 %v1743, 24
      %v2527 = vpop.permute.xlu0 %2526
      %2528 = vrot.lane.b32.xlu0 %v1744, 24
      %v2529 = vpop.permute.xlu0 %2528
      %2530 = vrot.lane.b32.xlu0 %v1745, 24
      %v2531 = vpop.permute.xlu0 %2530
      %2532 = vrot.lane.b32.xlu0 %v1746, 24
      %v2533 = vpop.permute.xlu0 %2532
      %2534 = vrot.lane.b32.xlu0 %v1747, 24
      %v2535 = vpop.permute.xlu0 %2534
      %2536 = vrot.lane.b32.xlu0 %v1748, 24
      %v2537 = vpop.permute.xlu0 %2536
      %2538 = vrot.lane.b32.xlu0 %v1749, 24
      %v2539 = vpop.permute.xlu0 %2538
      %2540 = vrot.lane.b32.xlu0 %v1750, 24
      %v2541 = vpop.permute.xlu0 %2540
      %2542 = vrot.lane.b32.xlu0 %v1751, 24
      %v2543 = vpop.permute.xlu0 %2542
      %2544 = vrot.lane.b32.xlu0 %v1752, 24
      %v2545 = vpop.permute.xlu0 %2544
      %2546 = vrot.lane.b32.xlu0 %v1753, 24
      %v2547 = vpop.permute.xlu0 %2546
      %2548 = vrot.lane.b32.xlu0 %v1754, 24
      %v2549 = vpop.permute.xlu0 %2548
      %2550 = vrot.lane.b32.xlu0 %v1755, 24
      %v2551 = vpop.permute.xlu0 %2550
      %2552 = vrot.lane.b32.xlu0 %v1756, 24
      %v2553 = vpop.permute.xlu0 %2552
      %2554 = vrot.lane.b32.xlu0 %v1757, 24
      %v2555 = vpop.permute.xlu0 %2554
      %2556 = vrot.lane.b32.xlu0 %v1758, 24
      %v2557 = vpop.permute.xlu0 %2556
      %2558 = vrot.lane.b32.xlu0 %v1759, 24
      %v2559 = vpop.permute.xlu0 %2558
      %2624 = vrot.lane.b32.xlu0 %v1760, 28
      %v2625 = vpop.permute.xlu0 %2624
      %2626 = vrot.lane.b32.xlu0 %v1761, 28
      %v2627 = vpop.permute.xlu0 %2626
      %2628 = vrot.lane.b32.xlu0 %v1762, 28
      %v2629 = vpop.permute.xlu0 %2628
      %2630 = vrot.lane.b32.xlu0 %v1763, 28
      %v2631 = vpop.permute.xlu0 %2630
      %2632 = vrot.lane.b32.xlu0 %v1764, 28
      %v2633 = vpop.permute.xlu0 %2632
      %2634 = vrot.lane.b32.xlu0 %v1765, 28
      %v2635 = vpop.permute.xlu0 %2634
      %2636 = vrot.lane.b32.xlu0 %v1766, 28
      %v2637 = vpop.permute.xlu0 %2636
      %2638 = vrot.lane.b32.xlu0 %v1767, 28
      %v2639 = vpop.permute.xlu0 %2638
      %2640 = vrot.lane.b32.xlu0 %v1768, 28
      %v2641 = vpop.permute.xlu0 %2640
      %2642 = vrot.lane.b32.xlu0 %v1769, 28
      %v2643 = vpop.permute.xlu0 %2642
      %2644 = vrot.lane.b32.xlu0 %v1770, 28
      %v2645 = vpop.permute.xlu0 %2644
      %2646 = vrot.lane.b32.xlu0 %v1771, 28
      %v2647 = vpop.permute.xlu0 %2646
      %2648 = vrot.lane.b32.xlu0 %v1772, 28
      %v2649 = vpop.permute.xlu0 %2648
      %2650 = vrot.lane.b32.xlu0 %v1773, 28
      %v2651 = vpop.permute.xlu0 %2650
      %2652 = vrot.lane.b32.xlu0 %v1774, 28
      %v2653 = vpop.permute.xlu0 %2652
      %2654 = vrot.lane.b32.xlu0 %v1775, 28
      %v2655 = vpop.permute.xlu0 %2654
      %2656 = vrot.lane.b32.xlu0 %v1776, 28
      %v2657 = vpop.permute.xlu0 %2656
      %2658 = vrot.lane.b32.xlu0 %v1777, 28
      %v2659 = vpop.permute.xlu0 %2658
      %2660 = vrot.lane.b32.xlu0 %v1778, 28
      %v2661 = vpop.permute.xlu0 %2660
      %2662 = vrot.lane.b32.xlu0 %v1779, 28
      %v2663 = vpop.permute.xlu0 %2662
      %2664 = vrot.lane.b32.xlu0 %v1780, 28
      %v2665 = vpop.permute.xlu0 %2664
      %2666 = vrot.lane.b32.xlu0 %v1781, 28
      %v2667 = vpop.permute.xlu0 %2666
      %2668 = vrot.lane.b32.xlu0 %v1782, 28
      %v2669 = vpop.permute.xlu0 %2668
      %2670 = vrot.lane.b32.xlu0 %v1783, 28
      %v2671 = vpop.permute.xlu0 %2670
      %2672 = vrot.lane.b32.xlu0 %v1784, 28
      %v2673 = vpop.permute.xlu0 %2672
      %2674 = vrot.lane.b32.xlu0 %v1785, 28
      %v2675 = vpop.permute.xlu0 %2674
      %2676 = vrot.lane.b32.xlu0 %v1786, 28
      %v2677 = vpop.permute.xlu0 %2676
      %2678 = vrot.lane.b32.xlu0 %v1787, 28
      %v2679 = vpop.permute.xlu0 %2678
      %2680 = vrot.lane.b32.xlu0 %v1788, 28
      %v2681 = vpop.permute.xlu0 %2680
      %2682 = vrot.lane.b32.xlu0 %v1789, 28
      %v2683 = vpop.permute.xlu0 %2682
      %2684 = vrot.lane.b32.xlu0 %v1790, 28
      %v2685 = vpop.permute.xlu0 %2684
      %2686 = vrot.lane.b32.xlu0 %v1791, 28
      %v2687 = vpop.permute.xlu0 %2686
      %2752 = vrot.lane.b32.xlu0 %v1792, 32
      %v2753 = vpop.permute.xlu0 %2752
      %2754 = vrot.lane.b32.xlu0 %v1793, 32
      %v2755 = vpop.permute.xlu0 %2754
      %2756 = vrot.lane.b32.xlu0 %v1794, 32
      %v2757 = vpop.permute.xlu0 %2756
      %2758 = vrot.lane.b32.xlu0 %v1795, 32
      %v2759 = vpop.permute.xlu0 %2758
      %2760 = vrot.lane.b32.xlu0 %v1796, 32
      %v2761 = vpop.permute.xlu0 %2760
      %2762 = vrot.lane.b32.xlu0 %v1797, 32
      %v2763 = vpop.permute.xlu0 %2762
      %2764 = vrot.lane.b32.xlu0 %v1798, 32
      %v2765 = vpop.permute.xlu0 %2764
      %2766 = vrot.lane.b32.xlu0 %v1799, 32
      %v2767 = vpop.permute.xlu0 %2766
      %2768 = vrot.lane.b32.xlu0 %v1800, 32
      %v2769 = vpop.permute.xlu0 %2768
      %2770 = vrot.lane.b32.xlu0 %v1801, 32
      %v2771 = vpop.permute.xlu0 %2770
      %2772 = vrot.lane.b32.xlu0 %v1802, 32
      %v2773 = vpop.permute.xlu0 %2772
      %2774 = vrot.lane.b32.xlu0 %v1803, 32
      %v2775 = vpop.permute.xlu0 %2774
      %2776 = vrot.lane.b32.xlu0 %v1804, 32
      %v2777 = vpop.permute.xlu0 %2776
      %2778 = vrot.lane.b32.xlu0 %v1805, 32
      %v2779 = vpop.permute.xlu0 %2778
      %2780 = vrot.lane.b32.xlu0 %v1806, 32
      %v2781 = vpop.permute.xlu0 %2780
      %2782 = vrot.lane.b32.xlu0 %v1807, 32
      %v2783 = vpop.permute.xlu0 %2782
      %2784 = vrot.lane.b32.xlu0 %v1808, 32
      %v2785 = vpop.permute.xlu0 %2784
      %2786 = vrot.lane.b32.xlu0 %v1809, 32
      %v2787 = vpop.permute.xlu0 %2786
      %2788 = vrot.lane.b32.xlu0 %v1810, 32
      %v2789 = vpop.permute.xlu0 %2788
      %2790 = vrot.lane.b32.xlu0 %v1811, 32
      %v2791 = vpop.permute.xlu0 %2790
      %2792 = vrot.lane.b32.xlu0 %v1812, 32
      %v2793 = vpop.permute.xlu0 %2792
      %2794 = vrot.lane.b32.xlu0 %v1813, 32
      %v2795 = vpop.permute.xlu0 %2794
      %2796 = vrot.lane.b32.xlu0 %v1814, 32
      %v2797 = vpop.permute.xlu0 %2796
      %2798 = vrot.lane.b32.xlu0 %v1815, 32
      %v2799 = vpop.permute.xlu0 %2798
      %2800 = vrot.lane.b32.xlu0 %v1816, 32
      %v2801 = vpop.permute.xlu0 %2800
      %2802 = vrot.lane.b32.xlu0 %v1817, 32
      %v2803 = vpop.permute.xlu0 %2802
      %2804 = vrot.lane.b32.xlu0 %v1818, 32
      %v2805 = vpop.permute.xlu0 %2804
      %2806 = vrot.lane.b32.xlu0 %v1819, 32
      %v2807 = vpop.permute.xlu0 %2806
      %2808 = vrot.lane.b32.xlu0 %v1820, 32
      %v2809 = vpop.permute.xlu0 %2808
      %2810 = vrot.lane.b32.xlu0 %v1821, 32
      %v2811 = vpop.permute.xlu0 %2810
      %2812 = vrot.lane.b32.xlu0 %v1822, 32
      %v2813 = vpop.permute.xlu0 %2812
      %2814 = vrot.lane.b32.xlu0 %v1823, 32
      %v2815 = vpop.permute.xlu0 %2814
      %v2848 = vsel %vm361, %v1535, %v1857
      %v2849 = vsel %vm361, %v1536, %v1859
      %v2850 = vsel %vm361, %v1537, %v1861
      %v2851 = vsel %vm361, %v1538, %v1863
      %v2852 = vsel %vm361, %v1539, %v1865
      %v2853 = vsel %vm361, %v1540, %v1867
      %v2854 = vsel %vm361, %v1541, %v1869
      %v2855 = vsel %vm361, %v1542, %v1871
      %v2856 = vsel %vm361, %v1543, %v1873
      %v2857 = vsel %vm361, %v1544, %v1875
      %v2858 = vsel %vm361, %v1545, %v1877
      %v2859 = vsel %vm361, %v1546, %v1879
      %v2860 = vsel %vm361, %v1547, %v1881
      %v2861 = vsel %vm361, %v1548, %v1883
      %v2862 = vsel %vm361, %v1549, %v1885
      %v2863 = vsel %vm361, %v1550, %v1887
      %v2864 = vsel %vm361, %v1551, %v1889
      %v2865 = vsel %vm361, %v1552, %v1891
      %v2866 = vsel %vm361, %v1553, %v1893
      %v2867 = vsel %vm361, %v1554, %v1895
      %v2868 = vsel %vm361, %v1555, %v1897
      %v2869 = vsel %vm361, %v1556, %v1899
      %v2870 = vsel %vm361, %v1557, %v1901
      %v2871 = vsel %vm361, %v1558, %v1903
      %v2872 = vsel %vm361, %v1559, %v1905
      %v2873 = vsel %vm361, %v1560, %v1907
      %v2874 = vsel %vm361, %v1561, %v1909
      %v2875 = vsel %vm361, %v1562, %v1911
      %v2876 = vsel %vm361, %v1563, %v1913
      %v2877 = vsel %vm361, %v1564, %v1915
      %v2878 = vsel %vm361, %v1565, %v1917
      %v2879 = vsel %vm361, %v1566, %v1919
      %vm2880 = vcmask 64512
      %v2881 = vsel %vm2880, %v2848, %v1985
      %v2882 = vsel %vm2880, %v2849, %v1987
      %v2883 = vsel %vm2880, %v2850, %v1989
      %v2884 = vsel %vm2880, %v2851, %v1991
      %v2885 = vsel %vm2880, %v2852, %v1993
      %v2886 = vsel %vm2880, %v2853, %v1995
      %v2887 = vsel %vm2880, %v2854, %v1997
      %v2888 = vsel %vm2880, %v2855, %v1999
      %v2889 = vsel %vm2880, %v2856, %v2001
      %v2890 = vsel %vm2880, %v2857, %v2003
      %v2891 = vsel %vm2880, %v2858, %v2005
      %v2892 = vsel %vm2880, %v2859, %v2007
      %v2893 = vsel %vm2880, %v2860, %v2009
      %v2894 = vsel %vm2880, %v2861, %v2011
      %v2895 = vsel %vm2880, %v2862, %v2013
      %v2896 = vsel %vm2880, %v2863, %v2015
      %v2897 = vsel %vm2880, %v2864, %v2017
      %v2898 = vsel %vm2880, %v2865, %v2019
      %v2899 = vsel %vm2880, %v2866, %v2021
      %v2900 = vsel %vm2880, %v2867, %v2023
      %v2901 = vsel %vm2880, %v2868, %v2025
      %v2902 = vsel %vm2880, %v2869, %v2027
      %v2903 = vsel %vm2880, %v2870, %v2029
      %v2904 = vsel %vm2880, %v2871, %v2031
      %v2905 = vsel %vm2880, %v2872, %v2033
      %v2906 = vsel %vm2880, %v2873, %v2035
      %v2907 = vsel %vm2880, %v2874, %v2037
      %v2908 = vsel %vm2880, %v2875, %v2039
      %v2909 = vsel %vm2880, %v2876, %v2041
      %v2910 = vsel %vm2880, %v2877, %v2043
      %v2911 = vsel %vm2880, %v2878, %v2045
      %v2912 = vsel %vm2880, %v2879, %v2047
      %vm2913 = vcmask 97280
      %v2914 = vsel %vm2913, %v2881, %v2113
      %v2915 = vsel %vm2913, %v2882, %v2115
      %v2916 = vsel %vm2913, %v2883, %v2117
      %v2917 = vsel %vm2913, %v2884, %v2119
      %v2918 = vsel %vm2913, %v2885, %v2121
      %v2919 = vsel %vm2913, %v2886, %v2123
      %v2920 = vsel %vm2913, %v2887, %v2125
      %v2921 = vsel %vm2913, %v2888, %v2127
      %v2922 = vsel %vm2913, %v2889, %v2129
      %v2923 = vsel %vm2913, %v2890, %v2131
      %v2924 = vsel %vm2913, %v2891, %v2133
      %v2925 = vsel %vm2913, %v2892, %v2135
      %v2926 = vsel %vm2913, %v2893, %v2137
      %v2927 = vsel %vm2913, %v2894, %v2139
      %v2928 = vsel %vm2913, %v2895, %v2141
      %v2929 = vsel %vm2913, %v2896, %v2143
      %v2930 = vsel %vm2913, %v2897, %v2145
      %v2931 = vsel %vm2913, %v2898, %v2147
      %v2932 = vsel %vm2913, %v2899, %v2149
      %v2933 = vsel %vm2913, %v2900, %v2151
      %v2934 = vsel %vm2913, %v2901, %v2153
      %v2935 = vsel %vm2913, %v2902, %v2155
      %v2936 = vsel %vm2913, %v2903, %v2157
      %v2937 = vsel %vm2913, %v2904, %v2159
      %v2938 = vsel %vm2913, %v2905, %v2161
      %v2939 = vsel %vm2913, %v2906, %v2163
      %v2940 = vsel %vm2913, %v2907, %v2165
      %v2941 = vsel %vm2913, %v2908, %v2167
      %v2942 = vsel %vm2913, %v2909, %v2169
      %v2943 = vsel %vm2913, %v2910, %v2171
      %v2944 = vsel %vm2913, %v2911, %v2173
      %v2945 = vsel %vm2913, %v2912, %v2175
      %vm2946 = vcmask 130048
      %v2947 = vsel %vm2946, %v2914, %v2241
      %v2948 = vsel %vm2946, %v2915, %v2243
      %v2949 = vsel %vm2946, %v2916, %v2245
      %v2950 = vsel %vm2946, %v2917, %v2247
      %v2951 = vsel %vm2946, %v2918, %v2249
      %v2952 = vsel %vm2946, %v2919, %v2251
      %v2953 = vsel %vm2946, %v2920, %v2253
      %v2954 = vsel %vm2946, %v2921, %v2255
      %v2955 = vsel %vm2946, %v2922, %v2257
      %v2956 = vsel %vm2946, %v2923, %v2259
      %v2957 = vsel %vm2946, %v2924, %v2261
      %v2958 = vsel %vm2946, %v2925, %v2263
      %v2959 = vsel %vm2946, %v2926, %v2265
      %v2960 = vsel %vm2946, %v2927, %v2267
      %v2961 = vsel %vm2946, %v2928, %v2269
      %v2962 = vsel %vm2946, %v2929, %v2271
      %v2963 = vsel %vm2946, %v2930, %v2273
      %v2964 = vsel %vm2946, %v2931, %v2275
      %v2965 = vsel %vm2946, %v2932, %v2277
      %v2966 = vsel %vm2946, %v2933, %v2279
      %v2967 = vsel %vm2946, %v2934, %v2281
      %v2968 = vsel %vm2946, %v2935, %v2283
      %v2969 = vsel %vm2946, %v2936, %v2285
      %v2970 = vsel %vm2946, %v2937, %v2287
      %v2971 = vsel %vm2946, %v2938, %v2289
      %v2972 = vsel %vm2946, %v2939, %v2291
      %v2973 = vsel %vm2946, %v2940, %v2293
      %v2974 = vsel %vm2946, %v2941, %v2295
      %v2975 = vsel %vm2946, %v2942, %v2297
      %v2976 = vsel %vm2946, %v2943, %v2299
      %v2977 = vsel %vm2946, %v2944, %v2301
      %v2978 = vsel %vm2946, %v2945, %v2303
      %vm2979 = vcmask 162816
      %v2980 = vsel %vm2979, %v2947, %v2369
      %v2981 = vsel %vm2979, %v2948, %v2371
      %v2982 = vsel %vm2979, %v2949, %v2373
      %v2983 = vsel %vm2979, %v2950, %v2375
      %v2984 = vsel %vm2979, %v2951, %v2377
      %v2985 = vsel %vm2979, %v2952, %v2379
      %v2986 = vsel %vm2979, %v2953, %v2381
      %v2987 = vsel %vm2979, %v2954, %v2383
      %v2988 = vsel %vm2979, %v2955, %v2385
      %v2989 = vsel %vm2979, %v2956, %v2387
      %v2990 = vsel %vm2979, %v2957, %v2389
      %v2991 = vsel %vm2979, %v2958, %v2391
      %v2992 = vsel %vm2979, %v2959, %v2393
      %v2993 = vsel %vm2979, %v2960, %v2395
      %v2994 = vsel %vm2979, %v2961, %v2397
      %v2995 = vsel %vm2979, %v2962, %v2399
      %v2996 = vsel %vm2979, %v2963, %v2401
      %v2997 = vsel %vm2979, %v2964, %v2403
      %v2998 = vsel %vm2979, %v2965, %v2405
      %v2999 = vsel %vm2979, %v2966, %v2407
      %v3000 = vsel %vm2979, %v2967, %v2409
      %v3001 = vsel %vm2979, %v2968, %v2411
      %v3002 = vsel %vm2979, %v2969, %v2413
      %v3003 = vsel %vm2979, %v2970, %v2415
      %v3004 = vsel %vm2979, %v2971, %v2417
      %v3005 = vsel %vm2979, %v2972, %v2419
      %v3006 = vsel %vm2979, %v2973, %v2421
      %v3007 = vsel %vm2979, %v2974, %v2423
      %v3008 = vsel %vm2979, %v2975, %v2425
      %v3009 = vsel %vm2979, %v2976, %v2427
      %v3010 = vsel %vm2979, %v2977, %v2429
      %v3011 = vsel %vm2979, %v2978, %v2431
      %vm3012 = vcmask 195584
      %v3013 = vsel %vm3012, %v2980, %v2497
      %v3014 = vsel %vm3012, %v2981, %v2499
      %v3015 = vsel %vm3012, %v2982, %v2501
      %v3016 = vsel %vm3012, %v2983, %v2503
      %v3017 = vsel %vm3012, %v2984, %v2505
      %v3018 = vsel %vm3012, %v2985, %v2507
      %v3019 = vsel %vm3012, %v2986, %v2509
      %v3020 = vsel %vm3012, %v2987, %v2511
      %v3021 = vsel %vm3012, %v2988, %v2513
      %v3022 = vsel %vm3012, %v2989, %v2515
      %v3023 = vsel %vm3012, %v2990, %v2517
      %v3024 = vsel %vm3012, %v2991, %v2519
      %v3025 = vsel %vm3012, %v2992, %v2521
      %v3026 = vsel %vm3012, %v2993, %v2523
      %v3027 = vsel %vm3012, %v2994, %v2525
      %v3028 = vsel %vm3012, %v2995, %v2527
      %v3029 = vsel %vm3012, %v2996, %v2529
      %v3030 = vsel %vm3012, %v2997, %v2531
      %v3031 = vsel %vm3012, %v2998, %v2533
      %v3032 = vsel %vm3012, %v2999, %v2535
      %v3033 = vsel %vm3012, %v3000, %v2537
      %v3034 = vsel %vm3012, %v3001, %v2539
      %v3035 = vsel %vm3012, %v3002, %v2541
      %v3036 = vsel %vm3012, %v3003, %v2543
      %v3037 = vsel %vm3012, %v3004, %v2545
      %v3038 = vsel %vm3012, %v3005, %v2547
      %v3039 = vsel %vm3012, %v3006, %v2549
      %v3040 = vsel %vm3012, %v3007, %v2551
      %v3041 = vsel %vm3012, %v3008, %v2553
      %v3042 = vsel %vm3012, %v3009, %v2555
      %v3043 = vsel %vm3012, %v3010, %v2557
      %v3044 = vsel %vm3012, %v3011, %v2559
      %vm3045 = vcmask 228352
      %v3046 = vsel %vm3045, %v3013, %v2625
      %v3047 = vsel %vm3045, %v3014, %v2627
      %v3048 = vsel %vm3045, %v3015, %v2629
      %v3049 = vsel %vm3045, %v3016, %v2631
      %v3050 = vsel %vm3045, %v3017, %v2633
      %v3051 = vsel %vm3045, %v3018, %v2635
      %v3052 = vsel %vm3045, %v3019, %v2637
      %v3053 = vsel %vm3045, %v3020, %v2639
      %v3054 = vsel %vm3045, %v3021, %v2641
      %v3055 = vsel %vm3045, %v3022, %v2643
      %v3056 = vsel %vm3045, %v3023, %v2645
      %v3057 = vsel %vm3045, %v3024, %v2647
      %v3058 = vsel %vm3045, %v3025, %v2649
      %v3059 = vsel %vm3045, %v3026, %v2651
      %v3060 = vsel %vm3045, %v3027, %v2653
      %v3061 = vsel %vm3045, %v3028, %v2655
      %v3062 = vsel %vm3045, %v3029, %v2657
      %v3063 = vsel %vm3045, %v3030, %v2659
      %v3064 = vsel %vm3045, %v3031, %v2661
      %v3065 = vsel %vm3045, %v3032, %v2663
      %v3066 = vsel %vm3045, %v3033, %v2665
      %v3067 = vsel %vm3045, %v3034, %v2667
      %v3068 = vsel %vm3045, %v3035, %v2669
      %v3069 = vsel %vm3045, %v3036, %v2671
      %v3070 = vsel %vm3045, %v3037, %v2673
      %v3071 = vsel %vm3045, %v3038, %v2675
      %v3072 = vsel %vm3045, %v3039, %v2677
      %v3073 = vsel %vm3045, %v3040, %v2679
      %v3074 = vsel %vm3045, %v3041, %v2681
      %v3075 = vsel %vm3045, %v3042, %v2683
      %v3076 = vsel %vm3045, %v3043, %v2685
      %v3077 = vsel %vm3045, %v3044, %v2687
      %vm3078 = vcmask 261120
      %v3079 = vsel %vm3078, %v3046, %v2753
      %v3080 = vsel %vm3078, %v3047, %v2755
      %v3081 = vsel %vm3078, %v3048, %v2757
      %v3082 = vsel %vm3078, %v3049, %v2759
      %v3083 = vsel %vm3078, %v3050, %v2761
      %v3084 = vsel %vm3078, %v3051, %v2763
      %v3085 = vsel %vm3078, %v3052, %v2765
      %v3086 = vsel %vm3078, %v3053, %v2767
      %v3087 = vsel %vm3078, %v3054, %v2769
      %v3088 = vsel %vm3078, %v3055, %v2771
      %v3089 = vsel %vm3078, %v3056, %v2773
      %v3090 = vsel %vm3078, %v3057, %v2775
      %v3091 = vsel %vm3078, %v3058, %v2777
      %v3092 = vsel %vm3078, %v3059, %v2779
      %v3093 = vsel %vm3078, %v3060, %v2781
      %v3094 = vsel %vm3078, %v3061, %v2783
      %v3095 = vsel %vm3078, %v3062, %v2785
      %v3096 = vsel %vm3078, %v3063, %v2787
      %v3097 = vsel %vm3078, %v3064, %v2789
      %v3098 = vsel %vm3078, %v3065, %v2791
      %v3099 = vsel %vm3078, %v3066, %v2793
      %v3100 = vsel %vm3078, %v3067, %v2795
      %v3101 = vsel %vm3078, %v3068, %v2797
      %v3102 = vsel %vm3078, %v3069, %v2799
      %v3103 = vsel %vm3078, %v3070, %v2801
      %v3104 = vsel %vm3078, %v3071, %v2803
      %v3105 = vsel %vm3078, %v3072, %v2805
      %v3106 = vsel %vm3078, %v3073, %v2807
      %v3107 = vsel %vm3078, %v3074, %v2809
      %v3108 = vsel %vm3078, %v3075, %v2811
      %v3109 = vsel %vm3078, %v3076, %v2813
      %v3110 = vsel %vm3078, %v3077, %v2815
      %v3111 = vld [vmem:[%s5] sm:$0xf]
      %v3112 = vld [vmem:[%s5 + $0x4] sm:$0xf]
      %v3113 = vld [vmem:[%s5 + $0x8] sm:$0xf]
      %v3114 = vld [vmem:[%s5 + $0xc] sm:$0xf]
      %v3115 = vld [vmem:[%s5 + $0x10] sm:$0x3]
      %v3116 = vpack.c.bf16 %v3080, %v3079
      %v3117 = vpack.c.bf16 %v3082, %v3081
      %v3118 = vpack.c.bf16 %v3084, %v3083
      %v3119 = vpack.c.bf16 %v3086, %v3085
      %v3120 = vpack.c.bf16 %v3088, %v3087
      %v3121 = vpack.c.bf16 %v3090, %v3089
      %v3122 = vpack.c.bf16 %v3092, %v3091
      %v3123 = vpack.c.bf16 %v3094, %v3093
      %v3124 = vpack.c.bf16 %v3096, %v3095
      %v3125 = vpack.c.bf16 %v3098, %v3097
      %v3126 = vpack.c.bf16 %v3100, %v3099
      %v3127 = vpack.c.bf16 %v3102, %v3101
      %v3128 = vpack.c.bf16 %v3104, %v3103
      %v3129 = vpack.c.bf16 %v3106, %v3105
      %v3130 = vpack.c.bf16 %v3108, %v3107
      %v3131 = vpack.c.bf16 %v3110, %v3109
      %v3137 = vunpack.c.l.b16 %v3111
      %v3138 = vunpack.c.l.b16 %v3112
      %v3139 = vunpack.c.l.b16 %v3113
      %v3140 = vunpack.c.l.b16 %v3114
      %v3141 = vunpack.c.l.b16 %v3115
      %v3142 = vpack.c.b16 %v3138, %v3137
      %v3143 = vpack.c.b16 %v3140, %v3139
      %v3144 = vpack.c.b16 %v3141, %v3141
      %vm3147 = vcmask 293888
      %v3149 = vsel %vm3147, %v3116, 0
      %v3152 = vsel %vm3147, %v3117, 0
      %v3155 = vsel %vm3147, %v3118, 0
      %v3158 = vsel %vm3147, %v3119, 0
      %v3161 = vsel %vm3147, %v3120, 0
      %v3164 = vsel %vm3147, %v3121, 0
      %v3167 = vsel %vm3147, %v3122, 0
      %v3170 = vsel %vm3147, %v3123, 0
      %v3173 = vsel %vm3147, %v3124, 0
      %v3176 = vsel %vm3147, %v3125, 0
      %v3179 = vsel %vm3147, %v3126, 0
      %v3182 = vsel %vm3147, %v3127, 0
      %v3185 = vsel %vm3147, %v3128, 0
      %v3188 = vsel %vm3147, %v3129, 0
      %v3191 = vsel %vm3147, %v3130, 0
      %v3194 = vsel %vm3147, %v3131, 0
      %v3197 = vsel %vm514, %v3144, 0
      %3199 = vmatprep.subr.bf16.mxu0 0
      %3200 = vmatpush1.bf16.msra.mxu0 %v3142
      %3201 = vmatprep.subr.bf16.mxu0 0
      %3202 = vmatpush1.bf16.msra.mxu0 %v3143
      %3203 = vmatprep.subr.bf16.mxu0 0
      %3204 = vmatpush1.bf16.msra.mxu0 %v3197
      %3205 = vmatprep.subr.bf16.mxu0 0
      %3206 = vmatpush1.bf16.msra.mxu0 0
      %3207 = vmatprep.subr.bf16.mxu0 0
      %3208 = vmatpush1.bf16.msra.mxu0 0
      %3209 = vmatprep.subr.bf16.mxu0 0
      %3210 = vmatpush1.bf16.msra.mxu0 0
      %3211 = vmatprep.subr.bf16.mxu0 0
      %3212 = vmatpush1.bf16.msra.mxu0 0
      %3213 = vmatprep.subr.bf16.mxu0 0
      %3214 = vmatpush1.bf16.msra.mxu0 0
      %3215 = vmatprep.subr.bf16.mxu0 0
      %3216 = vmatpush1.bf16.msra.mxu0 0
      %3217 = vmatprep.subr.bf16.mxu0 0
      %3218 = vmatpush1.bf16.msra.mxu0 0
      %3219 = vmatprep.subr.bf16.mxu0 0
      %3220 = vmatpush1.bf16.msra.mxu0 0
      %3221 = vmatprep.subr.bf16.mxu0 0
      %3222 = vmatpush1.bf16.msra.mxu0 0
      %3223 = vmatprep.subr.bf16.mxu0 0
      %3224 = vmatpush1.bf16.msra.mxu0 0
      %3225 = vmatprep.subr.bf16.mxu0 0
      %3226 = vmatpush1.bf16.msra.mxu0 0
      %3227 = vmatprep.subr.bf16.mxu0 0
      %3228 = vmatpush1.bf16.msra.mxu0 0
      %3229 = vmatprep.subr.bf16.mxu0 0
      %3230 = vmatpush1.bf16.msra.mxu0 0
      %3231 = vmatprep.mubr.bf16.mxu0 0
      %3232 = vmatmul.mubr.bf16.gmra.mrb[0].mxu0 %v3149
      %v3233 = vpop.f32.mrb[0].mxu0
      %v3234 = vadd.f32 0.0, %v3233
      %v3235 = vpop.f32.mrb[0].mxu0
      %v3236 = vpop.f32.mrb[0].mxu0
      %v3237 = vadd.f32 0.0, %v3236
      %v3238 = vpop.f32.mrb[0].mxu0
      %3239 = vmatprep.mubr.bf16.mxu0 0
      %3240 = vmatmul.mubr.bf16.gmra.mrb[0].mxu0 %v3152
      %v3241 = vpop.f32.mrb[0].mxu0
      %v3242 = vadd.f32 0.0, %v3241
      %v3243 = vpop.f32.mrb[0].mxu0
      %v3244 = vpop.f32.mrb[0].mxu0
      %v3245 = vadd.f32 0.0, %v3244
      %v3246 = vpop.f32.mrb[0].mxu0
      %3247 = vmatprep.mubr.bf16.mxu0 0
      %3248 = vmatmul.mubr.bf16.gmra.mrb[0].mxu0 %v3155
      %v3249 = vpop.f32.mrb[0].mxu0
      %v3250 = vadd.f32 0.0, %v3249
      %v3251 = vpop.f32.mrb[0].mxu0
      %v3252 = vpop.f32.mrb[0].mxu0
      %v3253 = vadd.f32 0.0, %v3252
      %v3254 = vpop.f32.mrb[0].mxu0
      %3255 = vmatprep.mubr.bf16.mxu0 0
      %3256 = vmatmul.mubr.bf16.gmra.mrb[0].mxu0 %v3158
      %v3257 = vpop.f32.mrb[0].mxu0
      %v3258 = vadd.f32 0.0, %v3257
      %v3259 = vpop.f32.mrb[0].mxu0
      %v3260 = vpop.f32.mrb[0].mxu0
      %v3261 = vadd.f32 0.0, %v3260
      %v3262 = vpop.f32.mrb[0].mxu0
      %3263 = vmatprep.mubr.bf16.mxu0 0
      %3264 = vmatmul.mubr.bf16.gmra.mrb[0].mxu0 %v3161
      %v3265 = vpop.f32.mrb[0].mxu0
      %v3266 = vadd.f32 0.0, %v3265
      %v3267 = vpop.f32.mrb[0].mxu0
      %v3268 = vpop.f32.mrb[0].mxu0
      %v3269 = vadd.f32 0.0, %v3268
      %v3270 = vpop.f32.mrb[0].mxu0
      %3271 = vmatprep.mubr.bf16.mxu0 0
      %3272 = vmatmul.mubr.bf16.gmra.mrb[0].mxu0 %v3164
      %v3273 = vpop.f32.mrb[0].mxu0
      %v3274 = vadd.f32 0.0, %v3273
      %v3275 = vpop.f32.mrb[0].mxu0
      %v3276 = vpop.f32.mrb[0].mxu0
      %v3277 = vadd.f32 0.0, %v3276
      %v3278 = vpop.f32.mrb[0].mxu0
      %3279 = vmatprep.mubr.bf16.mxu0 0
      %3280 = vmatmul.mubr.bf16.gmra.mrb[0].mxu0 %v3167
      %v3281 = vpop.f32.mrb[0].mxu0
      %v3282 = vadd.f32 0.0, %v3281
      %v3283 = vpop.f32.mrb[0].mxu0
      %v3284 = vpop.f32.mrb[0].mxu0
      %v3285 = vadd.f32 0.0, %v3284
      %v3286 = vpop.f32.mrb[0].mxu0
      %3287 = vmatprep.mubr.bf16.mxu0 0
      %3288 = vmatmul.mubr.bf16.gmra.mrb[0].mxu0 %v3170
      %v3289 = vpop.f32.mrb[0].mxu0
      %v3290 = vadd.f32 0.0, %v3289
      %v3291 = vpop.f32.mrb[0].mxu0
      %v3292 = vpop.f32.mrb[0].mxu0
      %v3293 = vadd.f32 0.0, %v3292
      %v3294 = vpop.f32.mrb[0].mxu0
      %3295 = vmatprep.mubr.bf16.mxu0 0
      %3296 = vmatmul.mubr.bf16.gmra.mrb[0].mxu0 %v3173
      %v3297 = vpop.f32.mrb[0].mxu0
      %v3298 = vadd.f32 0.0, %v3297
      %v3299 = vpop.f32.mrb[0].mxu0
      %v3300 = vpop.f32.mrb[0].mxu0
      %v3301 = vadd.f32 0.0, %v3300
      %v3302 = vpop.f32.mrb[0].mxu0
      %3303 = vmatprep.mubr.bf16.mxu0 0
      %3304 = vmatmul.mubr.bf16.gmra.mrb[0].mxu0 %v3176
      %v3305 = vpop.f32.mrb[0].mxu0
      %v3306 = vadd.f32 0.0, %v3305
      %v3307 = vpop.f32.mrb[0].mxu0
      %v3308 = vpop.f32.mrb[0].mxu0
      %v3309 = vadd.f32 0.0, %v3308
      %v3310 = vpop.f32.mrb[0].mxu0
      %3311 = vmatprep.mubr.bf16.mxu0 0
      %3312 = vmatmul.mubr.bf16.gmra.mrb[0].mxu0 %v3179
      %v3313 = vpop.f32.mrb[0].mxu0
      %v3314 = vadd.f32 0.0, %v3313
      %v3315 = vpop.f32.mrb[0].mxu0
      %v3316 = vpop.f32.mrb[0].mxu0
      %v3317 = vadd.f32 0.0, %v3316
      %v3318 = vpop.f32.mrb[0].mxu0
      %3319 = vmatprep.mubr.bf16.mxu0 0
      %3320 = vmatmul.mubr.bf16.gmra.mrb[0].mxu0 %v3182
      %v3321 = vpop.f32.mrb[0].mxu0
      %v3322 = vadd.f32 0.0, %v3321
      %v3323 = vpop.f32.mrb[0].mxu0
      %v3324 = vpop.f32.mrb[0].mxu0
      %v3325 = vadd.f32 0.0, %v3324
      %v3326 = vpop.f32.mrb[0].mxu0
      %3327 = vmatprep.mubr.bf16.mxu0 0
      %3328 = vmatmul.mubr.bf16.gmra.mrb[0].mxu0 %v3185
      %v3329 = vpop.f32.mrb[0].mxu0
      %v3330 = vadd.f32 0.0, %v3329
      %v3331 = vpop.f32.mrb[0].mxu0
      %v3332 = vpop.f32.mrb[0].mxu0
      %v3333 = vadd.f32 0.0, %v3332
      %v3334 = vpop.f32.mrb[0].mxu0
      %3335 = vmatprep.mubr.bf16.mxu0 0
      %3336 = vmatmul.mubr.bf16.gmra.mrb[0].mxu0 %v3188
      %v3337 = vpop.f32.mrb[0].mxu0
      %v3338 = vadd.f32 0.0, %v3337
      %v3339 = vpop.f32.mrb[0].mxu0
      %v3340 = vpop.f32.mrb[0].mxu0
      %v3341 = vadd.f32 0.0, %v3340
      %v3342 = vpop.f32.mrb[0].mxu0
      %3343 = vmatprep.mubr.bf16.mxu0 0
      %3344 = vmatmul.mubr.bf16.gmra.mrb[0].mxu0 %v3191
      %v3345 = vpop.f32.mrb[0].mxu0
      %v3346 = vadd.f32 0.0, %v3345
      %v3347 = vpop.f32.mrb[0].mxu0
      %v3348 = vpop.f32.mrb[0].mxu0
      %v3349 = vadd.f32 0.0, %v3348
      %v3350 = vpop.f32.mrb[0].mxu0
      %3351 = vmatprep.mubr.bf16.mxu0 0
      %3352 = vmatmul.mubr.bf16.gmra.mrb[0].mxu0 %v3194
      %v3353 = vpop.f32.mrb[0].mxu0
      %v3354 = vadd.f32 0.0, %v3353
      %v3355 = vpop.f32.mrb[0].mxu0
      %v3356 = vpop.f32.mrb[0].mxu0
      %v3357 = vadd.f32 0.0, %v3356
      %v3358 = vpop.f32.mrb[0].mxu0
      %3359 = vdwg.mxu0
      %v3360 = vld [vmem:[%s6] sm:$0x3]
      %v3361 = vlaneseq
      %v3362 = vshrl.u32 %v3361, 7
      %v3363 = vsub.s32 0, %v3362
      %v3364 = vrot.slane %v3360, %v3363
      %v3365 = vmul.f32 %v3234, %v3364
      %v3366 = vmul.f32 %v3237, %v3364
      %v3367 = vmul.f32 %v3242, %v3364
      %v3368 = vmul.f32 %v3245, %v3364
      %v3369 = vmul.f32 %v3250, %v3364
      %v3370 = vmul.f32 %v3253, %v3364
      %v3371 = vmul.f32 %v3258, %v3364
      %v3372 = vmul.f32 %v3261, %v3364
      %v3373 = vmul.f32 %v3266, %v3364
      %v3374 = vmul.f32 %v3269, %v3364
      %v3375 = vmul.f32 %v3274, %v3364
      %v3376 = vmul.f32 %v3277, %v3364
      %v3377 = vmul.f32 %v3282, %v3364
      %v3378 = vmul.f32 %v3285, %v3364
      %v3379 = vmul.f32 %v3290, %v3364
      %v3380 = vmul.f32 %v3293, %v3364
      %v3381 = vmul.f32 %v3298, %v3364
      %v3382 = vmul.f32 %v3301, %v3364
      %v3383 = vmul.f32 %v3306, %v3364
      %v3384 = vmul.f32 %v3309, %v3364
      %v3385 = vmul.f32 %v3314, %v3364
      %v3386 = vmul.f32 %v3317, %v3364
      %v3387 = vmul.f32 %v3322, %v3364
      %v3388 = vmul.f32 %v3325, %v3364
      %v3389 = vmul.f32 %v3330, %v3364
      %v3390 = vmul.f32 %v3333, %v3364
      %v3391 = vmul.f32 %v3338, %v3364
      %v3392 = vmul.f32 %v3341, %v3364
      %v3393 = vmul.f32 %v3346, %v3364
      %v3394 = vmul.f32 %v3349, %v3364
      %v3395 = vmul.f32 %v3354, %v3364
      %v3396 = vmul.f32 %v3357, %v3364
      %v3397 = vlaneseq
      %v3398 = vshrl.u32 %v3397, 7
      %v3399 = vsub.s32 1, %v3398
      %v3400 = vrot.slane %v3360, %v3399
      %v3401 = vadd.f32 %v3365, %v3400
      %v3402 = vadd.f32 %v3366, %v3400
      %v3403 = vadd.f32 %v3367, %v3400
      %v3404 = vadd.f32 %v3368, %v3400
      %v3405 = vadd.f32 %v3369, %v3400
      %v3406 = vadd.f32 %v3370, %v3400
      %v3407 = vadd.f32 %v3371, %v3400
      %v3408 = vadd.f32 %v3372, %v3400
      %v3409 = vadd.f32 %v3373, %v3400
      %v3410 = vadd.f32 %v3374, %v3400
      %v3411 = vadd.f32 %v3375, %v3400
      %v3412 = vadd.f32 %v3376, %v3400
      %v3413 = vadd.f32 %v3377, %v3400
      %v3414 = vadd.f32 %v3378, %v3400
      %v3415 = vadd.f32 %v3379, %v3400
      %v3416 = vadd.f32 %v3380, %v3400
      %v3417 = vadd.f32 %v3381, %v3400
      %v3418 = vadd.f32 %v3382, %v3400
      %v3419 = vadd.f32 %v3383, %v3400
      %v3420 = vadd.f32 %v3384, %v3400
      %v3421 = vadd.f32 %v3385, %v3400
      %v3422 = vadd.f32 %v3386, %v3400
      %v3423 = vadd.f32 %v3387, %v3400
      %v3424 = vadd.f32 %v3388, %v3400
      %v3425 = vadd.f32 %v3389, %v3400
      %v3426 = vadd.f32 %v3390, %v3400
      %v3427 = vadd.f32 %v3391, %v3400
      %v3428 = vadd.f32 %v3392, %v3400
      %v3429 = vadd.f32 %v3393, %v3400
      %v3430 = vadd.f32 %v3394, %v3400
      %v3431 = vadd.f32 %v3395, %v3400
      %v3432 = vadd.f32 %v3396, %v3400
      %v3433 = vxor.u32 %v3401, 2147483648
      %v3434 = vxor.u32 %v3402, 2147483648
      %v3435 = vxor.u32 %v3403, 2147483648
      %v3436 = vxor.u32 %v3404, 2147483648
      %v3437 = vxor.u32 %v3405, 2147483648
      %v3438 = vxor.u32 %v3406, 2147483648
      %v3439 = vxor.u32 %v3407, 2147483648
      %v3440 = vxor.u32 %v3408, 2147483648
      %v3441 = vxor.u32 %v3409, 2147483648
      %v3442 = vxor.u32 %v3410, 2147483648
      %v3443 = vxor.u32 %v3411, 2147483648
      %v3444 = vxor.u32 %v3412, 2147483648
      %v3445 = vxor.u32 %v3413, 2147483648
      %v3446 = vxor.u32 %v3414, 2147483648
      %v3447 = vxor.u32 %v3415, 2147483648
      %v3448 = vxor.u32 %v3416, 2147483648
      %v3449 = vxor.u32 %v3417, 2147483648
      %v3450 = vxor.u32 %v3418, 2147483648
      %v3451 = vxor.u32 %v3419, 2147483648
      %v3452 = vxor.u32 %v3420, 2147483648
      %v3453 = vxor.u32 %v3421, 2147483648
      %v3454 = vxor.u32 %v3422, 2147483648
      %v3455 = vxor.u32 %v3423, 2147483648
      %v3456 = vxor.u32 %v3424, 2147483648
      %v3457 = vxor.u32 %v3425, 2147483648
      %v3458 = vxor.u32 %v3426, 2147483648
      %v3459 = vxor.u32 %v3427, 2147483648
      %v3460 = vxor.u32 %v3428, 2147483648
      %v3461 = vxor.u32 %v3429, 2147483648
      %v3462 = vxor.u32 %v3430, 2147483648
      %v3463 = vxor.u32 %v3431, 2147483648
      %v3464 = vxor.u32 %v3432, 2147483648
      %v3465 = vmul.f32 %v3433, 1.442695
      %v3466 = vpow.pop %v3465
      %v3467 = vmul.f32 %v3434, 1.442695
      %v3468 = vpow.pop %v3467
      %v3469 = vmul.f32 %v3435, 1.442695
      %v3470 = vpow.pop %v3469
      %v3471 = vmul.f32 %v3436, 1.442695
      %v3472 = vpow.pop %v3471
      %v3473 = vmul.f32 %v3437, 1.442695
      %v3474 = vpow.pop %v3473
      %v3475 = vmul.f32 %v3438, 1.442695
      %v3476 = vpow.pop %v3475
      %v3477 = vmul.f32 %v3439, 1.442695
      %v3478 = vpow.pop %v3477
      %v3479 = vmul.f32 %v3440, 1.442695
      %v3480 = vpow.pop %v3479
      %v3481 = vmul.f32 %v3441, 1.442695
      %v3482 = vpow.pop %v3481
      %v3483 = vmul.f32 %v3442, 1.442695
      %v3484 = vpow.pop %v3483
      %v3485 = vmul.f32 %v3443, 1.442695
      %v3486 = vpow.pop %v3485
      %v3487 = vmul.f32 %v3444, 1.442695
      %v3488 = vpow.pop %v3487
      %v3489 = vmul.f32 %v3445, 1.442695
      %v3490 = vpow.pop %v3489
      %v3491 = vmul.f32 %v3446, 1.442695
      %v3492 = vpow.pop %v3491
      %v3493 = vmul.f32 %v3447, 1.442695
      %v3494 = vpow.pop %v3493
      %v3495 = vmul.f32 %v3448, 1.442695
      %v3496 = vpow.pop %v3495
      %v3497 = vmul.f32 %v3449, 1.442695
      %v3498 = vpow.pop %v3497
      %v3499 = vmul.f32 %v3450, 1.442695
      %v3500 = vpow.pop %v3499
      %v3501 = vmul.f32 %v3451, 1.442695
      %v3502 = vpow.pop %v3501
      %v3503 = vmul.f32 %v3452, 1.442695
      %v3504 = vpow.pop %v3503
      %v3505 = vmul.f32 %v3453, 1.442695
      %v3506 = vpow.pop %v3505
      %v3507 = vmul.f32 %v3454, 1.442695
      %v3508 = vpow.pop %v3507
      %v3509 = vmul.f32 %v3455, 1.442695
      %v3510 = vpow.pop %v3509
      %v3511 = vmul.f32 %v3456, 1.442695
      %v3512 = vpow.pop %v3511
      %v3513 = vmul.f32 %v3457, 1.442695
      %v3514 = vpow.pop %v3513
      %v3515 = vmul.f32 %v3458, 1.442695
      %v3516 = vpow.pop %v3515
      %v3517 = vmul.f32 %v3459, 1.442695
      %v3518 = vpow.pop %v3517
      %v3519 = vmul.f32 %v3460, 1.442695
      %v3520 = vpow.pop %v3519
      %v3521 = vmul.f32 %v3461, 1.442695
      %v3522 = vpow.pop %v3521
      %v3523 = vmul.f32 %v3462, 1.442695
      %v3524 = vpow.pop %v3523
      %v3525 = vmul.f32 %v3463, 1.442695
      %v3526 = vpow.pop %v3525
      %v3527 = vmul.f32 %v3464, 1.442695
      %v3528 = vpow.pop %v3527
      %v3529 = vadd.f32 %v3466, 1.0
      %v3530 = vadd.f32 %v3468, 1.0
      %v3531 = vadd.f32 %v3470, 1.0
      %v3532 = vadd.f32 %v3472, 1.0
      %v3533 = vadd.f32 %v3474, 1.0
      %v3534 = vadd.f32 %v3476, 1.0
      %v3535 = vadd.f32 %v3478, 1.0
      %v3536 = vadd.f32 %v3480, 1.0
      %v3537 = vadd.f32 %v3482, 1.0
      %v3538 = vadd.f32 %v3484, 1.0
      %v3539 = vadd.f32 %v3486, 1.0
      %v3540 = vadd.f32 %v3488, 1.0
      %v3541 = vadd.f32 %v3490, 1.0
      %v3542 = vadd.f32 %v3492, 1.0
      %v3543 = vadd.f32 %v3494, 1.0
      %v3544 = vadd.f32 %v3496, 1.0
      %v3545 = vadd.f32 %v3498, 1.0
      %v3546 = vadd.f32 %v3500, 1.0
      %v3547 = vadd.f32 %v3502, 1.0
      %v3548 = vadd.f32 %v3504, 1.0
      %v3549 = vadd.f32 %v3506, 1.0
      %v3550 = vadd.f32 %v3508, 1.0
      %v3551 = vadd.f32 %v3510, 1.0
      %v3552 = vadd.f32 %v3512, 1.0
      %v3553 = vadd.f32 %v3514, 1.0
      %v3554 = vadd.f32 %v3516, 1.0
      %v3555 = vadd.f32 %v3518, 1.0
      %v3556 = vadd.f32 %v3520, 1.0
      %v3557 = vadd.f32 %v3522, 1.0
      %v3558 = vadd.f32 %v3524, 1.0
      %v3559 = vadd.f32 %v3526, 1.0
      %v3560 = vadd.f32 %v3528, 1.0
      %v3561 = vrcp.pop %v3529
      %v3562 = vmul.f32 1.0, %v3561
      %v3563 = vrcp.pop %v3530
      %v3564 = vmul.f32 1.0, %v3563
      %v3565 = vrcp.pop %v3531
      %v3566 = vmul.f32 1.0, %v3565
      %v3567 = vrcp.pop %v3532
      %v3568 = vmul.f32 1.0, %v3567
      %v3569 = vrcp.pop %v3533
      %v3570 = vmul.f32 1.0, %v3569
      %v3571 = vrcp.pop %v3534
      %v3572 = vmul.f32 1.0, %v3571
      %v3573 = vrcp.pop %v3535
      %v3574 = vmul.f32 1.0, %v3573
      %v3575 = vrcp.pop %v3536
      %v3576 = vmul.f32 1.0, %v3575
      %v3577 = vrcp.pop %v3537
      %v3578 = vmul.f32 1.0, %v3577
      %v3579 = vrcp.pop %v3538
      %v3580 = vmul.f32 1.0, %v3579
      %v3581 = vrcp.pop %v3539
      %v3582 = vmul.f32 1.0, %v3581
      %v3583 = vrcp.pop %v3540
      %v3584 = vmul.f32 1.0, %v3583
      %v3585 = vrcp.pop %v3541
      %v3586 = vmul.f32 1.0, %v3585
      %v3587 = vrcp.pop %v3542
      %v3588 = vmul.f32 1.0, %v3587
      %v3589 = vrcp.pop %v3543
      %v3590 = vmul.f32 1.0, %v3589
      %v3591 = vrcp.pop %v3544
      %v3592 = vmul.f32 1.0, %v3591
      %v3593 = vrcp.pop %v3545
      %v3594 = vmul.f32 1.0, %v3593
      %v3595 = vrcp.pop %v3546
      %v3596 = vmul.f32 1.0, %v3595
      %v3597 = vrcp.pop %v3547
      %v3598 = vmul.f32 1.0, %v3597
      %v3599 = vrcp.pop %v3548
      %v3600 = vmul.f32 1.0, %v3599
      %v3601 = vrcp.pop %v3549
      %v3602 = vmul.f32 1.0, %v3601
      %v3603 = vrcp.pop %v3550
      %v3604 = vmul.f32 1.0, %v3603
      %v3605 = vrcp.pop %v3551
      %v3606 = vmul.f32 1.0, %v3605
      %v3607 = vrcp.pop %v3552
      %v3608 = vmul.f32 1.0, %v3607
      %v3609 = vrcp.pop %v3553
      %v3610 = vmul.f32 1.0, %v3609
      %v3611 = vrcp.pop %v3554
      %v3612 = vmul.f32 1.0, %v3611
      %v3613 = vrcp.pop %v3555
      %v3614 = vmul.f32 1.0, %v3613
      %v3615 = vrcp.pop %v3556
      %v3616 = vmul.f32 1.0, %v3615
      %v3617 = vrcp.pop %v3557
      %v3618 = vmul.f32 1.0, %v3617
      %v3619 = vrcp.pop %v3558
      %v3620 = vmul.f32 1.0, %v3619
      %v3621 = vrcp.pop %v3559
      %v3622 = vmul.f32 1.0, %v3621
      %v3623 = vrcp.pop %v3560
      %v3624 = vmul.f32 1.0, %v3623
      %v3625 = vmul.f32 %v3401, %v3562
      %v3626 = vmul.f32 %v3402, %v3564
      %v3627 = vmul.f32 %v3403, %v3566
      %v3628 = vmul.f32 %v3404, %v3568
      %v3629 = vmul.f32 %v3405, %v3570
      %v3630 = vmul.f32 %v3406, %v3572
      %v3631 = vmul.f32 %v3407, %v3574
      %v3632 = vmul.f32 %v3408, %v3576
      %v3633 = vmul.f32 %v3409, %v3578
      %v3634 = vmul.f32 %v3410, %v3580
      %v3635 = vmul.f32 %v3411, %v3582
      %v3636 = vmul.f32 %v3412, %v3584
      %v3637 = vmul.f32 %v3413, %v3586
      %v3638 = vmul.f32 %v3414, %v3588
      %v3639 = vmul.f32 %v3415, %v3590
      %v3640 = vmul.f32 %v3416, %v3592
      %v3641 = vmul.f32 %v3417, %v3594
      %v3642 = vmul.f32 %v3418, %v3596
      %v3643 = vmul.f32 %v3419, %v3598
      %v3644 = vmul.f32 %v3420, %v3600
      %v3645 = vmul.f32 %v3421, %v3602
      %v3646 = vmul.f32 %v3422, %v3604
      %v3647 = vmul.f32 %v3423, %v3606
      %v3648 = vmul.f32 %v3424, %v3608
      %v3649 = vmul.f32 %v3425, %v3610
      %v3650 = vmul.f32 %v3426, %v3612
      %v3651 = vmul.f32 %v3427, %v3614
      %v3652 = vmul.f32 %v3428, %v3616
      %v3653 = vmul.f32 %v3429, %v3618
      %v3654 = vmul.f32 %v3430, %v3620
      %v3655 = vmul.f32 %v3431, %v3622
      %v3656 = vmul.f32 %v3432, %v3624
      %v3657 = vadd.f32 %v944, %v3625
      %v3658 = vadd.f32 %v945, %v3626
      %v3659 = vadd.f32 %v946, %v3627
      %v3660 = vadd.f32 %v947, %v3628
      %v3661 = vadd.f32 %v948, %v3629
      %v3662 = vadd.f32 %v949, %v3630
      %v3663 = vadd.f32 %v950, %v3631
      %v3664 = vadd.f32 %v951, %v3632
      %v3665 = vadd.f32 %v952, %v3633
      %v3666 = vadd.f32 %v953, %v3634
      %v3667 = vadd.f32 %v954, %v3635
      %v3668 = vadd.f32 %v955, %v3636
      %v3669 = vadd.f32 %v956, %v3637
      %v3670 = vadd.f32 %v957, %v3638
      %v3671 = vadd.f32 %v958, %v3639
      %v3672 = vadd.f32 %v959, %v3640
      %v3673 = vadd.f32 %v960, %v3641
      %v3674 = vadd.f32 %v961, %v3642
      %v3675 = vadd.f32 %v962, %v3643
      %v3676 = vadd.f32 %v963, %v3644
      %v3677 = vadd.f32 %v964, %v3645
      %v3678 = vadd.f32 %v965, %v3646
      %v3679 = vadd.f32 %v966, %v3647
      %v3680 = vadd.f32 %v967, %v3648
      %v3681 = vadd.f32 %v968, %v3649
      %v3682 = vadd.f32 %v969, %v3650
      %v3683 = vadd.f32 %v970, %v3651
      %v3684 = vadd.f32 %v971, %v3652
      %v3685 = vadd.f32 %v972, %v3653
      %v3686 = vadd.f32 %v973, %v3654
      %v3687 = vadd.f32 %v974, %v3655
      %v3688 = vadd.f32 %v975, %v3656
      %s3689 = scalar_lea.vmem %s3, 2
      %v3690 = vld [vmem:[%s3689] sm:$0x3]
      %v3691 = vpack.c.bf16 %v3658, %v3657
      %v3692 = vpack.c.bf16 %v3660, %v3659
      %v3693 = vpack.c.bf16 %v3662, %v3661
      %v3694 = vpack.c.bf16 %v3664, %v3663
      %v3695 = vpack.c.bf16 %v3666, %v3665
      %v3696 = vpack.c.bf16 %v3668, %v3667
      %v3697 = vpack.c.bf16 %v3670, %v3669
      %v3698 = vpack.c.bf16 %v3672, %v3671
      %v3699 = vpack.c.bf16 %v3674, %v3673
      %v3700 = vpack.c.bf16 %v3676, %v3675
      %v3701 = vpack.c.bf16 %v3678, %v3677
      %v3702 = vpack.c.bf16 %v3680, %v3679
      %v3703 = vpack.c.bf16 %v3682, %v3681
      %v3704 = vpack.c.bf16 %v3684, %v3683
      %v3705 = vpack.c.bf16 %v3686, %v3685
      %v3706 = vpack.c.bf16 %v3688, %v3687
      %v3708 = vsel %vm361, %v3691, 0
      %v3711 = vsel %vm361, %v3692, 0
      %v3714 = vsel %vm361, %v3693, 0
      %v3717 = vsel %vm361, %v3694, 0
      %v3720 = vsel %vm361, %v3695, 0
      %v3723 = vsel %vm361, %v3696, 0
      %v3726 = vsel %vm361, %v3697, 0
      %v3729 = vsel %vm361, %v3698, 0
      %v3732 = vsel %vm361, %v3699, 0
      %v3735 = vsel %vm361, %v3700, 0
      %v3738 = vsel %vm361, %v3701, 0
      %v3741 = vsel %vm361, %v3702, 0
      %v3744 = vsel %vm361, %v3703, 0
      %v3747 = vsel %vm361, %v3704, 0
      %v3750 = vsel %vm361, %v3705, 0
      %v3753 = vsel %vm361, %v3706, 0
      %v3756 = vsel %vm514, %v3690, 0
      %3758 = vmatprep.subr.bf16.mxu0 0
      %3759 = vmatpush1.bf16.msra.mxu0 %v3756
      %3760 = vmatprep.subr.bf16.mxu0 0
      %3761 = vmatpush1.bf16.msra.mxu0 0
      %3762 = vmatprep.subr.bf16.mxu0 0
      %3763 = vmatpush1.bf16.msra.mxu0 0
      %3764 = vmatprep.subr.bf16.mxu0 0
      %3765 = vmatpush1.bf16.msra.mxu0 0
      %3766 = vmatprep.subr.bf16.mxu0 0
      %3767 = vmatpush1.bf16.msra.mxu0 0
      %3768 = vmatprep.subr.bf16.mxu0 0
      %3769 = vmatpush1.bf16.msra.mxu0 0
      %3770 = vmatprep.subr.bf16.mxu0 0
      %3771 = vmatpush1.bf16.msra.mxu0 0
      %3772 = vmatprep.subr.bf16.mxu0 0
      %3773 = vmatpush1.bf16.msra.mxu0 0
      %3774 = vmatprep.subr.bf16.mxu0 0
      %3775 = vmatpush1.bf16.msra.mxu0 0
      %3776 = vmatprep.subr.bf16.mxu0 0
      %3777 = vmatpush1.bf16.msra.mxu0 0
      %3778 = vmatprep.subr.bf16.mxu0 0
      %3779 = vmatpush1.bf16.msra.mxu0 0
      %3780 = vmatprep.subr.bf16.mxu0 0
      %3781 = vmatpush1.bf16.msra.mxu0 0
      %3782 = vmatprep.subr.bf16.mxu0 0
      %3783 = vmatpush1.bf16.msra.mxu0 0
      %3784 = vmatprep.subr.bf16.mxu0 0
      %3785 = vmatpush1.bf16.msra.mxu0 0
      %3786 = vmatprep.subr.bf16.mxu0 0
      %3787 = vmatpush1.bf16.msra.mxu0 0
      %3788 = vmatprep.subr.bf16.mxu0 0
      %3789 = vmatpush1.bf16.msra.mxu0 0
      %3790 = vmatprep.mubr.bf16.mxu0 0
      %3791 = vmatmul.mubr.bf16.gmra.mrb[0].mxu0 %v3708
      %v3792 = vpop.f32.mrb[0].mxu0
      %v3793 = vadd.f32 0.0, %v3792
      %v3794 = vpop.f32.mrb[0].mxu0
      %v3795 = vpop.f32.mrb[0].mxu0
      %v3796 = vadd.f32 0.0, %v3795
      %v3797 = vpop.f32.mrb[0].mxu0
      %3798 = vmatprep.mubr.bf16.mxu0 0
      %3799 = vmatmul.mubr.bf16.gmra.mrb[0].mxu0 %v3711
      %v3800 = vpop.f32.mrb[0].mxu0
      %v3801 = vadd.f32 0.0, %v3800
      %v3802 = vpop.f32.mrb[0].mxu0
      %v3803 = vpop.f32.mrb[0].mxu0
      %v3804 = vadd.f32 0.0, %v3803
      %v3805 = vpop.f32.mrb[0].mxu0
      %3806 = vmatprep.mubr.bf16.mxu0 0
      %3807 = vmatmul.mubr.bf16.gmra.mrb[0].mxu0 %v3714
      %v3808 = vpop.f32.mrb[0].mxu0
      %v3809 = vadd.f32 0.0, %v3808
      %v3810 = vpop.f32.mrb[0].mxu0
      %v3811 = vpop.f32.mrb[0].mxu0
      %v3812 = vadd.f32 0.0, %v3811
      %v3813 = vpop.f32.mrb[0].mxu0
      %3814 = vmatprep.mubr.bf16.mxu0 0
      %3815 = vmatmul.mubr.bf16.gmra.mrb[0].mxu0 %v3717
      %v3816 = vpop.f32.mrb[0].mxu0
      %v3817 = vadd.f32 0.0, %v3816
      %v3818 = vpop.f32.mrb[0].mxu0
      %v3819 = vpop.f32.mrb[0].mxu0
      %v3820 = vadd.f32 0.0, %v3819
      %v3821 = vpop.f32.mrb[0].mxu0
      %3822 = vmatprep.mubr.bf16.mxu0 0
      %3823 = vmatmul.mubr.bf16.gmra.mrb[0].mxu0 %v3720
      %v3824 = vpop.f32.mrb[0].mxu0
      %v3825 = vadd.f32 0.0, %v3824
      %v3826 = vpop.f32.mrb[0].mxu0
      %v3827 = vpop.f32.mrb[0].mxu0
      %v3828 = vadd.f32 0.0, %v3827
      %v3829 = vpop.f32.mrb[0].mxu0
      %3830 = vmatprep.mubr.bf16.mxu0 0
      %3831 = vmatmul.mubr.bf16.gmra.mrb[0].mxu0 %v3723
      %v3832 = vpop.f32.mrb[0].mxu0
      %v3833 = vadd.f32 0.0, %v3832
      %v3834 = vpop.f32.mrb[0].mxu0
      %v3835 = vpop.f32.mrb[0].mxu0
      %v3836 = vadd.f32 0.0, %v3835
      %v3837 = vpop.f32.mrb[0].mxu0
      %3838 = vmatprep.mubr.bf16.mxu0 0
      %3839 = vmatmul.mubr.bf16.gmra.mrb[0].mxu0 %v3726
      %v3840 = vpop.f32.mrb[0].mxu0
      %v3841 = vadd.f32 0.0, %v3840
      %v3842 = vpop.f32.mrb[0].mxu0
      %v3843 = vpop.f32.mrb[0].mxu0
      %v3844 = vadd.f32 0.0, %v3843
      %v3845 = vpop.f32.mrb[0].mxu0
      %3846 = vmatprep.mubr.bf16.mxu0 0
      %3847 = vmatmul.mubr.bf16.gmra.mrb[0].mxu0 %v3729
      %v3848 = vpop.f32.mrb[0].mxu0
      %v3849 = vadd.f32 0.0, %v3848
      %v3850 = vpop.f32.mrb[0].mxu0
      %v3851 = vpop.f32.mrb[0].mxu0
      %v3852 = vadd.f32 0.0, %v3851
      %v3853 = vpop.f32.mrb[0].mxu0
      %3854 = vmatprep.mubr.bf16.mxu0 0
      %3855 = vmatmul.mubr.bf16.gmra.mrb[0].mxu0 %v3732
      %v3856 = vpop.f32.mrb[0].mxu0
      %v3857 = vadd.f32 0.0, %v3856
      %v3858 = vpop.f32.mrb[0].mxu0
      %v3859 = vpop.f32.mrb[0].mxu0
      %v3860 = vadd.f32 0.0, %v3859
      %v3861 = vpop.f32.mrb[0].mxu0
      %3862 = vmatprep.mubr.bf16.mxu0 0
      %3863 = vmatmul.mubr.bf16.gmra.mrb[0].mxu0 %v3735
      %v3864 = vpop.f32.mrb[0].mxu0
      %v3865 = vadd.f32 0.0, %v3864
      %v3866 = vpop.f32.mrb[0].mxu0
      %v3867 = vpop.f32.mrb[0].mxu0
      %v3868 = vadd.f32 0.0, %v3867
      %v3869 = vpop.f32.mrb[0].mxu0
      %3870 = vmatprep.mubr.bf16.mxu0 0
      %3871 = vmatmul.mubr.bf16.gmra.mrb[0].mxu0 %v3738
      %v3872 = vpop.f32.mrb[0].mxu0
      %v3873 = vadd.f32 0.0, %v3872
      %v3874 = vpop.f32.mrb[0].mxu0
      %v3875 = vpop.f32.mrb[0].mxu0
      %v3876 = vadd.f32 0.0, %v3875
      %v3877 = vpop.f32.mrb[0].mxu0
      %3878 = vmatprep.mubr.bf16.mxu0 0
      %3879 = vmatmul.mubr.bf16.gmra.mrb[0].mxu0 %v3741
      %v3880 = vpop.f32.mrb[0].mxu0
      %v3881 = vadd.f32 0.0, %v3880
      %v3882 = vpop.f32.mrb[0].mxu0
      %v3883 = vpop.f32.mrb[0].mxu0
      %v3884 = vadd.f32 0.0, %v3883
      %v3885 = vpop.f32.mrb[0].mxu0
      %3886 = vmatprep.mubr.bf16.mxu0 0
      %3887 = vmatmul.mubr.bf16.gmra.mrb[0].mxu0 %v3744
      %v3888 = vpop.f32.mrb[0].mxu0
      %v3889 = vadd.f32 0.0, %v3888
      %v3890 = vpop.f32.mrb[0].mxu0
      %v3891 = vpop.f32.mrb[0].mxu0
      %v3892 = vadd.f32 0.0, %v3891
      %v3893 = vpop.f32.mrb[0].mxu0
      %3894 = vmatprep.mubr.bf16.mxu0 0
      %3895 = vmatmul.mubr.bf16.gmra.mrb[0].mxu0 %v3747
      %v3896 = vpop.f32.mrb[0].mxu0
      %v3897 = vadd.f32 0.0, %v3896
      %v3898 = vpop.f32.mrb[0].mxu0
      %v3899 = vpop.f32.mrb[0].mxu0
      %v3900 = vadd.f32 0.0, %v3899
      %v3901 = vpop.f32.mrb[0].mxu0
      %3902 = vmatprep.mubr.bf16.mxu0 0
      %3903 = vmatmul.mubr.bf16.gmra.mrb[0].mxu0 %v3750
      %v3904 = vpop.f32.mrb[0].mxu0
      %v3905 = vadd.f32 0.0, %v3904
      %v3906 = vpop.f32.mrb[0].mxu0
      %v3907 = vpop.f32.mrb[0].mxu0
      %v3908 = vadd.f32 0.0, %v3907
      %v3909 = vpop.f32.mrb[0].mxu0
      %3910 = vmatprep.mubr.bf16.mxu0 0
      %3911 = vmatmul.mubr.bf16.gmra.mrb[0].mxu0 %v3753
      %v3912 = vpop.f32.mrb[0].mxu0
      %v3913 = vadd.f32 0.0, %v3912
      %v3914 = vpop.f32.mrb[0].mxu0
      %v3915 = vpop.f32.mrb[0].mxu0
      %v3916 = vadd.f32 0.0, %v3915
      %v3917 = vpop.f32.mrb[0].mxu0
      %3918 = vdwg.mxu0
      %s3919 = scalar_lea.vmem %s4, 2
      %v3920 = vld [vmem:[%s3919] sm:$0x3]
      %v3921 = vlaneseq
      %v3922 = vshrl.u32 %v3921, 7
      %v3923 = vsub.s32 0, %v3922
      %v3924 = vrot.slane %v3920, %v3923
      %v3925 = vmul.f32 %v3793, %v3924
      %v3926 = vmul.f32 %v3796, %v3924
      %v3927 = vmul.f32 %v3801, %v3924
      %v3928 = vmul.f32 %v3804, %v3924
      %v3929 = vmul.f32 %v3809, %v3924
      %v3930 = vmul.f32 %v3812, %v3924
      %v3931 = vmul.f32 %v3817, %v3924
      %v3932 = vmul.f32 %v3820, %v3924
      %v3933 = vmul.f32 %v3825, %v3924
      %v3934 = vmul.f32 %v3828, %v3924
      %v3935 = vmul.f32 %v3833, %v3924
      %v3936 = vmul.f32 %v3836, %v3924
      %v3937 = vmul.f32 %v3841, %v3924
      %v3938 = vmul.f32 %v3844, %v3924
      %v3939 = vmul.f32 %v3849, %v3924
      %v3940 = vmul.f32 %v3852, %v3924
      %v3941 = vmul.f32 %v3857, %v3924
      %v3942 = vmul.f32 %v3860, %v3924
      %v3943 = vmul.f32 %v3865, %v3924
      %v3944 = vmul.f32 %v3868, %v3924
      %v3945 = vmul.f32 %v3873, %v3924
      %v3946 = vmul.f32 %v3876, %v3924
      %v3947 = vmul.f32 %v3881, %v3924
      %v3948 = vmul.f32 %v3884, %v3924
      %v3949 = vmul.f32 %v3889, %v3924
      %v3950 = vmul.f32 %v3892, %v3924
      %v3951 = vmul.f32 %v3897, %v3924
      %v3952 = vmul.f32 %v3900, %v3924
      %v3953 = vmul.f32 %v3905, %v3924
      %v3954 = vmul.f32 %v3908, %v3924
      %v3955 = vmul.f32 %v3913, %v3924
      %v3956 = vmul.f32 %v3916, %v3924
      %v3957 = vlaneseq
      %v3958 = vshrl.u32 %v3957, 7
      %v3959 = vsub.s32 1, %v3958
      %v3960 = vrot.slane %v3920, %v3959
      %v3961 = vadd.f32 %v3925, %v3960
      %v3962 = vadd.f32 %v3926, %v3960
      %v3963 = vadd.f32 %v3927, %v3960
      %v3964 = vadd.f32 %v3928, %v3960
      %v3965 = vadd.f32 %v3929, %v3960
      %v3966 = vadd.f32 %v3930, %v3960
      %v3967 = vadd.f32 %v3931, %v3960
      %v3968 = vadd.f32 %v3932, %v3960
      %v3969 = vadd.f32 %v3933, %v3960
      %v3970 = vadd.f32 %v3934, %v3960
      %v3971 = vadd.f32 %v3935, %v3960
      %v3972 = vadd.f32 %v3936, %v3960
      %v3973 = vadd.f32 %v3937, %v3960
      %v3974 = vadd.f32 %v3938, %v3960
      %v3975 = vadd.f32 %v3939, %v3960
      %v3976 = vadd.f32 %v3940, %v3960
      %v3977 = vadd.f32 %v3941, %v3960
      %v3978 = vadd.f32 %v3942, %v3960
      %v3979 = vadd.f32 %v3943, %v3960
      %v3980 = vadd.f32 %v3944, %v3960
      %v3981 = vadd.f32 %v3945, %v3960
      %v3982 = vadd.f32 %v3946, %v3960
      %v3983 = vadd.f32 %v3947, %v3960
      %v3984 = vadd.f32 %v3948, %v3960
      %v3985 = vadd.f32 %v3949, %v3960
      %v3986 = vadd.f32 %v3950, %v3960
      %v3987 = vadd.f32 %v3951, %v3960
      %v3988 = vadd.f32 %v3952, %v3960
      %v3989 = vadd.f32 %v3953, %v3960
      %v3990 = vadd.f32 %v3954, %v3960
      %v3991 = vadd.f32 %v3955, %v3960
      %v3992 = vadd.f32 %v3956, %v3960
      %v3993 = vxor.u32 %v3961, 2147483648
      %v3994 = vxor.u32 %v3962, 2147483648
      %v3995 = vxor.u32 %v3963, 2147483648
      %v3996 = vxor.u32 %v3964, 2147483648
      %v3997 = vxor.u32 %v3965, 2147483648
      %v3998 = vxor.u32 %v3966, 2147483648
      %v3999 = vxor.u32 %v3967, 2147483648
      %v4000 = vxor.u32 %v3968, 2147483648
      %v4001 = vxor.u32 %v3969, 2147483648
      %v4002 = vxor.u32 %v3970, 2147483648
      %v4003 = vxor.u32 %v3971, 2147483648
      %v4004 = vxor.u32 %v3972, 2147483648
      %v4005 = vxor.u32 %v3973, 2147483648
      %v4006 = vxor.u32 %v3974, 2147483648
      %v4007 = vxor.u32 %v3975, 2147483648
      %v4008 = vxor.u32 %v3976, 2147483648
      %v4009 = vxor.u32 %v3977, 2147483648
      %v4010 = vxor.u32 %v3978, 2147483648
      %v4011 = vxor.u32 %v3979, 2147483648
      %v4012 = vxor.u32 %v3980, 2147483648
      %v4013 = vxor.u32 %v3981, 2147483648
      %v4014 = vxor.u32 %v3982, 2147483648
      %v4015 = vxor.u32 %v3983, 2147483648
      %v4016 = vxor.u32 %v3984, 2147483648
      %v4017 = vxor.u32 %v3985, 2147483648
      %v4018 = vxor.u32 %v3986, 2147483648
      %v4019 = vxor.u32 %v3987, 2147483648
      %v4020 = vxor.u32 %v3988, 2147483648
      %v4021 = vxor.u32 %v3989, 2147483648
      %v4022 = vxor.u32 %v3990, 2147483648
      %v4023 = vxor.u32 %v3991, 2147483648
      %v4024 = vxor.u32 %v3992, 2147483648
      %v4025 = vmul.f32 %v3993, 1.442695
      %v4026 = vpow.pop %v4025
      %v4027 = vmul.f32 %v3994, 1.442695
      %v4028 = vpow.pop %v4027
      %v4029 = vmul.f32 %v3995, 1.442695
      %v4030 = vpow.pop %v4029
      %v4031 = vmul.f32 %v3996, 1.442695
      %v4032 = vpow.pop %v4031
      %v4033 = vmul.f32 %v3997, 1.442695
      %v4034 = vpow.pop %v4033
      %v4035 = vmul.f32 %v3998, 1.442695
      %v4036 = vpow.pop %v4035
      %v4037 = vmul.f32 %v3999, 1.442695
      %v4038 = vpow.pop %v4037
      %v4039 = vmul.f32 %v4000, 1.442695
      %v4040 = vpow.pop %v4039
      %v4041 = vmul.f32 %v4001, 1.442695
      %v4042 = vpow.pop %v4041
      %v4043 = vmul.f32 %v4002, 1.442695
      %v4044 = vpow.pop %v4043
      %v4045 = vmul.f32 %v4003, 1.442695
      %v4046 = vpow.pop %v4045
      %v4047 = vmul.f32 %v4004, 1.442695
      %v4048 = vpow.pop %v4047
      %v4049 = vmul.f32 %v4005, 1.442695
      %v4050 = vpow.pop %v4049
      %v4051 = vmul.f32 %v4006, 1.442695
      %v4052 = vpow.pop %v4051
      %v4053 = vmul.f32 %v4007, 1.442695
      %v4054 = vpow.pop %v4053
      %v4055 = vmul.f32 %v4008, 1.442695
      %v4056 = vpow.pop %v4055
      %v4057 = vmul.f32 %v4009, 1.442695
      %v4058 = vpow.pop %v4057
      %v4059 = vmul.f32 %v4010, 1.442695
      %v4060 = vpow.pop %v4059
      %v4061 = vmul.f32 %v4011, 1.442695
      %v4062 = vpow.pop %v4061
      %v4063 = vmul.f32 %v4012, 1.442695
      %v4064 = vpow.pop %v4063
      %v4065 = vmul.f32 %v4013, 1.442695
      %v4066 = vpow.pop %v4065
      %v4067 = vmul.f32 %v4014, 1.442695
      %v4068 = vpow.pop %v4067
      %v4069 = vmul.f32 %v4015, 1.442695
      %v4070 = vpow.pop %v4069
      %v4071 = vmul.f32 %v4016, 1.442695
      %v4072 = vpow.pop %v4071
      %v4073 = vmul.f32 %v4017, 1.442695
      %v4074 = vpow.pop %v4073
      %v4075 = vmul.f32 %v4018, 1.442695
      %v4076 = vpow.pop %v4075
      %v4077 = vmul.f32 %v4019, 1.442695
      %v4078 = vpow.pop %v4077
      %v4079 = vmul.f32 %v4020, 1.442695
      %v4080 = vpow.pop %v4079
      %v4081 = vmul.f32 %v4021, 1.442695
      %v4082 = vpow.pop %v4081
      %v4083 = vmul.f32 %v4022, 1.442695
      %v4084 = vpow.pop %v4083
      %v4085 = vmul.f32 %v4023, 1.442695
      %v4086 = vpow.pop %v4085
      %v4087 = vmul.f32 %v4024, 1.442695
      %v4088 = vpow.pop %v4087
      %v4089 = vadd.f32 %v4026, 1.0
      %v4090 = vadd.f32 %v4028, 1.0
      %v4091 = vadd.f32 %v4030, 1.0
      %v4092 = vadd.f32 %v4032, 1.0
      %v4093 = vadd.f32 %v4034, 1.0
      %v4094 = vadd.f32 %v4036, 1.0
      %v4095 = vadd.f32 %v4038, 1.0
      %v4096 = vadd.f32 %v4040, 1.0
      %v4097 = vadd.f32 %v4042, 1.0
      %v4098 = vadd.f32 %v4044, 1.0
      %v4099 = vadd.f32 %v4046, 1.0
      %v4100 = vadd.f32 %v4048, 1.0
      %v4101 = vadd.f32 %v4050, 1.0
      %v4102 = vadd.f32 %v4052, 1.0
      %v4103 = vadd.f32 %v4054, 1.0
      %v4104 = vadd.f32 %v4056, 1.0
      %v4105 = vadd.f32 %v4058, 1.0
      %v4106 = vadd.f32 %v4060, 1.0
      %v4107 = vadd.f32 %v4062, 1.0
      %v4108 = vadd.f32 %v4064, 1.0
      %v4109 = vadd.f32 %v4066, 1.0
      %v4110 = vadd.f32 %v4068, 1.0
      %v4111 = vadd.f32 %v4070, 1.0
      %v4112 = vadd.f32 %v4072, 1.0
      %v4113 = vadd.f32 %v4074, 1.0
      %v4114 = vadd.f32 %v4076, 1.0
      %v4115 = vadd.f32 %v4078, 1.0
      %v4116 = vadd.f32 %v4080, 1.0
      %v4117 = vadd.f32 %v4082, 1.0
      %v4118 = vadd.f32 %v4084, 1.0
      %v4119 = vadd.f32 %v4086, 1.0
      %v4120 = vadd.f32 %v4088, 1.0
      %v4121 = vrcp.pop %v4089
      %v4122 = vmul.f32 1.0, %v4121
      %v4123 = vrcp.pop %v4090
      %v4124 = vmul.f32 1.0, %v4123
      %v4125 = vrcp.pop %v4091
      %v4126 = vmul.f32 1.0, %v4125
      %v4127 = vrcp.pop %v4092
      %v4128 = vmul.f32 1.0, %v4127
      %v4129 = vrcp.pop %v4093
      %v4130 = vmul.f32 1.0, %v4129
      %v4131 = vrcp.pop %v4094
      %v4132 = vmul.f32 1.0, %v4131
      %v4133 = vrcp.pop %v4095
      %v4134 = vmul.f32 1.0, %v4133
      %v4135 = vrcp.pop %v4096
      %v4136 = vmul.f32 1.0, %v4135
      %v4137 = vrcp.pop %v4097
      %v4138 = vmul.f32 1.0, %v4137
      %v4139 = vrcp.pop %v4098
      %v4140 = vmul.f32 1.0, %v4139
      %v4141 = vrcp.pop %v4099
      %v4142 = vmul.f32 1.0, %v4141
      %v4143 = vrcp.pop %v4100
      %v4144 = vmul.f32 1.0, %v4143
      %v4145 = vrcp.pop %v4101
      %v4146 = vmul.f32 1.0, %v4145
      %v4147 = vrcp.pop %v4102
      %v4148 = vmul.f32 1.0, %v4147
      %v4149 = vrcp.pop %v4103
      %v4150 = vmul.f32 1.0, %v4149
      %v4151 = vrcp.pop %v4104
      %v4152 = vmul.f32 1.0, %v4151
      %v4153 = vrcp.pop %v4105
      %v4154 = vmul.f32 1.0, %v4153
      %v4155 = vrcp.pop %v4106
      %v4156 = vmul.f32 1.0, %v4155
      %v4157 = vrcp.pop %v4107
      %v4158 = vmul.f32 1.0, %v4157
      %v4159 = vrcp.pop %v4108
      %v4160 = vmul.f32 1.0, %v4159
      %v4161 = vrcp.pop %v4109
      %v4162 = vmul.f32 1.0, %v4161
      %v4163 = vrcp.pop %v4110
      %v4164 = vmul.f32 1.0, %v4163
      %v4165 = vrcp.pop %v4111
      %v4166 = vmul.f32 1.0, %v4165
      %v4167 = vrcp.pop %v4112
      %v4168 = vmul.f32 1.0, %v4167
      %v4169 = vrcp.pop %v4113
      %v4170 = vmul.f32 1.0, %v4169
      %v4171 = vrcp.pop %v4114
      %v4172 = vmul.f32 1.0, %v4171
      %v4173 = vrcp.pop %v4115
      %v4174 = vmul.f32 1.0, %v4173
      %v4175 = vrcp.pop %v4116
      %v4176 = vmul.f32 1.0, %v4175
      %v4177 = vrcp.pop %v4117
      %v4178 = vmul.f32 1.0, %v4177
      %v4179 = vrcp.pop %v4118
      %v4180 = vmul.f32 1.0, %v4179
      %v4181 = vrcp.pop %v4119
      %v4182 = vmul.f32 1.0, %v4181
      %v4183 = vrcp.pop %v4120
      %v4184 = vmul.f32 1.0, %v4183
      %v4185 = vmul.f32 %v3961, %v4122
      %v4186 = vmul.f32 %v3962, %v4124
      %v4187 = vmul.f32 %v3963, %v4126
      %v4188 = vmul.f32 %v3964, %v4128
      %v4189 = vmul.f32 %v3965, %v4130
      %v4190 = vmul.f32 %v3966, %v4132
      %v4191 = vmul.f32 %v3967, %v4134
      %v4192 = vmul.f32 %v3968, %v4136
      %v4193 = vmul.f32 %v3969, %v4138
      %v4194 = vmul.f32 %v3970, %v4140
      %v4195 = vmul.f32 %v3971, %v4142
      %v4196 = vmul.f32 %v3972, %v4144
      %v4197 = vmul.f32 %v3973, %v4146
      %v4198 = vmul.f32 %v3974, %v4148
      %v4199 = vmul.f32 %v3975, %v4150
      %v4200 = vmul.f32 %v3976, %v4152
      %v4201 = vmul.f32 %v3977, %v4154
      %v4202 = vmul.f32 %v3978, %v4156
      %v4203 = vmul.f32 %v3979, %v4158
      %v4204 = vmul.f32 %v3980, %v4160
      %v4205 = vmul.f32 %v3981, %v4162
      %v4206 = vmul.f32 %v3982, %v4164
      %v4207 = vmul.f32 %v3983, %v4166
      %v4208 = vmul.f32 %v3984, %v4168
      %v4209 = vmul.f32 %v3985, %v4170
      %v4210 = vmul.f32 %v3986, %v4172
      %v4211 = vmul.f32 %v3987, %v4174
      %v4212 = vmul.f32 %v3988, %v4176
      %v4213 = vmul.f32 %v3989, %v4178
      %v4214 = vmul.f32 %v3990, %v4180
      %v4215 = vmul.f32 %v3991, %v4182
      %v4216 = vmul.f32 %v3992, %v4184
      %4217 = vst.msk [vmem:[%s1502 + $0x1] sm:$0xff] %vm361, %v4185
      %4218 = vst.msk [vmem:[%s1502 + $0x9] sm:$0xff] %vm361, %v4186
      %4219 = vst.msk [vmem:[%s1502 + $0x19] sm:$0xff] %vm361, %v4187
      %4220 = vst.msk [vmem:[%s1502 + $0x21] sm:$0xff] %vm361, %v4188
      %4221 = vst.msk [vmem:[%s1502 + $0x31] sm:$0xff] %vm361, %v4189
      %4222 = vst.msk [vmem:[%s1502 + $0x39] sm:$0xff] %vm361, %v4190
      %4223 = vst.msk [vmem:[%s1502 + $0x49] sm:$0xff] %vm361, %v4191
      %4224 = vst.msk [vmem:[%s1502 + $0x51] sm:$0xff] %vm361, %v4192
      %4225 = vst.msk [vmem:[%s1502 + $0x61] sm:$0xff] %vm361, %v4193
      %4226 = vst.msk [vmem:[%s1502 + $0x69] sm:$0xff] %vm361, %v4194
      %4227 = vst.msk [vmem:[%s1502 + $0x79] sm:$0xff] %vm361, %v4195
      %4228 = vst.msk [vmem:[%s1502 + $0x81] sm:$0xff] %vm361, %v4196
      %4229 = vst.msk [vmem:[%s1502 + $0x91] sm:$0xff] %vm361, %v4197
      %4230 = vst.msk [vmem:[%s1502 + $0x99] sm:$0xff] %vm361, %v4198
      %4231 = vst.msk [vmem:[%s1502 + $0xa9] sm:$0xff] %vm361, %v4199
      %4232 = vst.msk [vmem:[%s1502 + $0xb1] sm:$0xff] %vm361, %v4200
      %4233 = vst.msk [vmem:[%s1502 + $0xc1] sm:$0xff] %vm361, %v4201
      %4234 = vst.msk [vmem:[%s1502 + $0xc9] sm:$0xff] %vm361, %v4202
      %4235 = vst.msk [vmem:[%s1502 + $0xd9] sm:$0xff] %vm361, %v4203
      %4236 = vst.msk [vmem:[%s1502 + $0xe1] sm:$0xff] %vm361, %v4204
      %4237 = vst.msk [vmem:[%s1502 + $0xf1] sm:$0xff] %vm361, %v4205
      %4238 = vst.msk [vmem:[%s1502 + $0xf9] sm:$0xff] %vm361, %v4206
      %4239 = vst.msk [vmem:[%s1502 + $0x109] sm:$0xff] %vm361, %v4207
      %4240 = vst.msk [vmem:[%s1502 + $0x111] sm:$0xff] %vm361, %v4208
      %4241 = vst.msk [vmem:[%s1502 + $0x121] sm:$0xff] %vm361, %v4209
      %4242 = vst.msk [vmem:[%s1502 + $0x129] sm:$0xff] %vm361, %v4210
      %4243 = vst.msk [vmem:[%s1502 + $0x139] sm:$0xff] %vm361, %v4211
      %4244 = vst.msk [vmem:[%s1502 + $0x141] sm:$0xff] %vm361, %v4212
      %4245 = vst.msk [vmem:[%s1502 + $0x151] sm:$0xff] %vm361, %v4213
      %4246 = vst.msk [vmem:[%s1502 + $0x159] sm:$0xff] %vm361, %v4214
      %4247 = vst.msk [vmem:[%s1502 + $0x169] sm:$0xff] %vm361, %v4215
      %4248 = vst.msk [vmem:[%s1502 + $0x171] sm:$0xff] %vm361, %v4216
      %v4249 = vld [vmem:[#allocation2] sm:$0xff]
      %v4250 = vld [vmem:[#allocation2 + $0x8] sm:$0xff]
      %v4251 = vld [vmem:[#allocation2 + $0x18] sm:$0xff]
      %v4252 = vld [vmem:[#allocation2 + $0x20] sm:$0xff]
      %v4253 = vld [vmem:[#allocation2 + $0x30] sm:$0xff]
      %v4254 = vld [vmem:[#allocation2 + $0x38] sm:$0xff]
      %v4255 = vld [vmem:[#allocation2 + $0x48] sm:$0xff]
      %v4256 = vld [vmem:[#allocation2 + $0x50] sm:$0xff]
      %v4257 = vld [vmem:[#allocation2 + $0x60] sm:$0xff]
      %v4258 = vld [vmem:[#allocation2 + $0x68] sm:$0xff]
      %v4259 = vld [vmem:[#allocation2 + $0x78] sm:$0xff]
      %v4260 = vld [vmem:[#allocation2 + $0x80] sm:$0xff]
      %v4261 = vld [vmem:[#allocation2 + $0x90] sm:$0xff]
      %v4262 = vld [vmem:[#allocation2 + $0x98] sm:$0xff]
      %v4263 = vld [vmem:[#allocation2 + $0xa8] sm:$0xff]
      %v4264 = vld [vmem:[#allocation2 + $0xb0] sm:$0xff]
      %v4265 = vld [vmem:[#allocation2 + $0xc0] sm:$0xff]
      %v4266 = vld [vmem:[#allocation2 + $0xc8] sm:$0xff]
      %v4267 = vld [vmem:[#allocation2 + $0xd8] sm:$0xff]
      %v4268 = vld [vmem:[#allocation2 + $0xe0] sm:$0xff]
      %v4269 = vld [vmem:[#allocation2 + $0xf0] sm:$0xff]
      %v4270 = vld [vmem:[#allocation2 + $0xf8] sm:$0xff]
      %v4271 = vld [vmem:[#allocation2 + $0x108] sm:$0xff]
      %v4272 = vld [vmem:[#allocation2 + $0x110] sm:$0xff]
      %v4273 = vld [vmem:[#allocation2 + $0x120] sm:$0xff]
      %v4274 = vld [vmem:[#allocation2 + $0x128] sm:$0xff]
      %v4275 = vld [vmem:[#allocation2 + $0x138] sm:$0xff]
      %v4276 = vld [vmem:[#allocation2 + $0x140] sm:$0xff]
      %v4277 = vld [vmem:[#allocation2 + $0x150] sm:$0xff]
      %v4278 = vld [vmem:[#allocation2 + $0x158] sm:$0xff]
      %v4279 = vld [vmem:[#allocation2 + $0x168] sm:$0xff]
      %v4280 = vld [vmem:[#allocation2 + $0x170] sm:$0xff]
      %v4281 = vld [vmem:[#allocation2 + $0x1] sm:$0xff]
      %v4282 = vld [vmem:[#allocation2 + $0x9] sm:$0xff]
      %v4283 = vld [vmem:[#allocation2 + $0x19] sm:$0xff]
      %v4284 = vld [vmem:[#allocation2 + $0x21] sm:$0xff]
      %v4285 = vld [vmem:[#allocation2 + $0x31] sm:$0xff]
      %v4286 = vld [vmem:[#allocation2 + $0x39] sm:$0xff]
      %v4287 = vld [vmem:[#allocation2 + $0x49] sm:$0xff]
      %v4288 = vld [vmem:[#allocation2 + $0x51] sm:$0xff]
      %v4289 = vld [vmem:[#allocation2 + $0x61] sm:$0xff]
      %v4290 = vld [vmem:[#allocation2 + $0x69] sm:$0xff]
      %v4291 = vld [vmem:[#allocation2 + $0x79] sm:$0xff]
      %v4292 = vld [vmem:[#allocation2 + $0x81] sm:$0xff]
      %v4293 = vld [vmem:[#allocation2 + $0x91] sm:$0xff]
      %v4294 = vld [vmem:[#allocation2 + $0x99] sm:$0xff]
      %v4295 = vld [vmem:[#allocation2 + $0xa9] sm:$0xff]
      %v4296 = vld [vmem:[#allocation2 + $0xb1] sm:$0xff]
      %v4297 = vld [vmem:[#allocation2 + $0xc1] sm:$0xff]
      %v4298 = vld [vmem:[#allocation2 + $0xc9] sm:$0xff]
      %v4299 = vld [vmem:[#allocation2 + $0xd9] sm:$0xff]
      %v4300 = vld [vmem:[#allocation2 + $0xe1] sm:$0xff]
      %v4301 = vld [vmem:[#allocation2 + $0xf1] sm:$0xff]
      %v4302 = vld [vmem:[#allocation2 + $0xf9] sm:$0xff]
      %v4303 = vld [vmem:[#allocation2 + $0x109] sm:$0xff]
      %v4304 = vld [vmem:[#allocation2 + $0x111] sm:$0xff]
      %v4305 = vld [vmem:[#allocation2 + $0x121] sm:$0xff]
      %v4306 = vld [vmem:[#allocation2 + $0x129] sm:$0xff]
      %v4307 = vld [vmem:[#allocation2 + $0x139] sm:$0xff]
      %v4308 = vld [vmem:[#allocation2 + $0x141] sm:$0xff]
      %v4309 = vld [vmem:[#allocation2 + $0x151] sm:$0xff]
      %v4310 = vld [vmem:[#allocation2 + $0x159] sm:$0xff]
      %v4311 = vld [vmem:[#allocation2 + $0x169] sm:$0xff]
      %v4312 = vld [vmem:[#allocation2 + $0x171] sm:$0xff]
      %v4313 = vld [vmem:[#allocation2 + $0x2] sm:$0xff]
      %v4314 = vld [vmem:[#allocation2 + $0xa] sm:$0xff]
      %v4315 = vld [vmem:[#allocation2 + $0x1a] sm:$0xff]
      %v4316 = vld [vmem:[#allocation2 + $0x22] sm:$0xff]
      %v4317 = vld [vmem:[#allocation2 + $0x32] sm:$0xff]
      %v4318 = vld [vmem:[#allocation2 + $0x3a] sm:$0xff]
      %v4319 = vld [vmem:[#allocation2 + $0x4a] sm:$0xff]
      %v4320 = vld [vmem:[#allocation2 + $0x52] sm:$0xff]
      %v4321 = vld [vmem:[#allocation2 + $0x62] sm:$0xff]
      %v4322 = vld [vmem:[#allocation2 + $0x6a] sm:$0xff]
      %v4323 = vld [vmem:[#allocation2 + $0x7a] sm:$0xff]
      %v4324 = vld [vmem:[#allocation2 + $0x82] sm:$0xff]
      %v4325 = vld [vmem:[#allocation2 + $0x92] sm:$0xff]
      %v4326 = vld [vmem:[#allocation2 + $0x9a] sm:$0xff]
      %v4327 = vld [vmem:[#allocation2 + $0xaa] sm:$0xff]
      %v4328 = vld [vmem:[#allocation2 + $0xb2] sm:$0xff]
      %v4329 = vld [vmem:[#allocation2 + $0xc2] sm:$0xff]
      %v4330 = vld [vmem:[#allocation2 + $0xca] sm:$0xff]
      %v4331 = vld [vmem:[#allocation2 + $0xda] sm:$0xff]
      %v4332 = vld [vmem:[#allocation2 + $0xe2] sm:$0xff]
      %v4333 = vld [vmem:[#allocation2 + $0xf2] sm:$0xff]
      %v4334 = vld [vmem:[#allocation2 + $0xfa] sm:$0xff]
      %v4335 = vld [vmem:[#allocation2 + $0x10a] sm:$0xff]
      %v4336 = vld [vmem:[#allocation2 + $0x112] sm:$0xff]
      %v4337 = vld [vmem:[#allocation2 + $0x122] sm:$0xff]
      %v4338 = vld [vmem:[#allocation2 + $0x12a] sm:$0xff]
      %v4339 = vld [vmem:[#allocation2 + $0x13a] sm:$0xff]
      %v4340 = vld [vmem:[#allocation2 + $0x142] sm:$0xff]
      %v4341 = vld [vmem:[#allocation2 + $0x152] sm:$0xff]
      %v4342 = vld [vmem:[#allocation2 + $0x15a] sm:$0xff]
      %v4343 = vld [vmem:[#allocation2 + $0x16a] sm:$0xff]
      %v4344 = vld [vmem:[#allocation2 + $0x172] sm:$0xff]
      %v4345 = vld [vmem:[%s1502] sm:$0xff]
      %v4346 = vld [vmem:[%s1502 + $0x8] sm:$0xff]
      %v4347 = vld [vmem:[%s1502 + $0x18] sm:$0xff]
      %v4348 = vld [vmem:[%s1502 + $0x20] sm:$0xff]
      %v4349 = vld [vmem:[%s1502 + $0x30] sm:$0xff]
      %v4350 = vld [vmem:[%s1502 + $0x38] sm:$0xff]
      %v4351 = vld [vmem:[%s1502 + $0x48] sm:$0xff]
      %v4352 = vld [vmem:[%s1502 + $0x50] sm:$0xff]
      %v4353 = vld [vmem:[%s1502 + $0x60] sm:$0xff]
      %v4354 = vld [vmem:[%s1502 + $0x68] sm:$0xff]
      %v4355 = vld [vmem:[%s1502 + $0x78] sm:$0xff]
      %v4356 = vld [vmem:[%s1502 + $0x80] sm:$0xff]
      %v4357 = vld [vmem:[%s1502 + $0x90] sm:$0xff]
      %v4358 = vld [vmem:[%s1502 + $0x98] sm:$0xff]
      %v4359 = vld [vmem:[%s1502 + $0xa8] sm:$0xff]
      %v4360 = vld [vmem:[%s1502 + $0xb0] sm:$0xff]
      %v4361 = vld [vmem:[%s1502 + $0xc0] sm:$0xff]
      %v4362 = vld [vmem:[%s1502 + $0xc8] sm:$0xff]
      %v4363 = vld [vmem:[%s1502 + $0xd8] sm:$0xff]
      %v4364 = vld [vmem:[%s1502 + $0xe0] sm:$0xff]
      %v4365 = vld [vmem:[%s1502 + $0xf0] sm:$0xff]
      %v4366 = vld [vmem:[%s1502 + $0xf8] sm:$0xff]
      %v4367 = vld [vmem:[%s1502 + $0x108] sm:$0xff]
      %v4368 = vld [vmem:[%s1502 + $0x110] sm:$0xff]
      %v4369 = vld [vmem:[%s1502 + $0x120] sm:$0xff]
      %v4370 = vld [vmem:[%s1502 + $0x128] sm:$0xff]
      %v4371 = vld [vmem:[%s1502 + $0x138] sm:$0xff]
      %v4372 = vld [vmem:[%s1502 + $0x140] sm:$0xff]
      %v4373 = vld [vmem:[%s1502 + $0x150] sm:$0xff]
      %v4374 = vld [vmem:[%s1502 + $0x158] sm:$0xff]
      %v4375 = vld [vmem:[%s1502 + $0x168] sm:$0xff]
      %v4376 = vld [vmem:[%s1502 + $0x170] sm:$0xff]
      %v4377 = vld [vmem:[%s1502 + $0x1] sm:$0xff]
      %v4378 = vld [vmem:[%s1502 + $0x9] sm:$0xff]
      %v4379 = vld [vmem:[%s1502 + $0x19] sm:$0xff]
      %v4380 = vld [vmem:[%s1502 + $0x21] sm:$0xff]
      %v4381 = vld [vmem:[%s1502 + $0x31] sm:$0xff]
      %v4382 = vld [vmem:[%s1502 + $0x39] sm:$0xff]
      %v4383 = vld [vmem:[%s1502 + $0x49] sm:$0xff]
      %v4384 = vld [vmem:[%s1502 + $0x51] sm:$0xff]
      %v4385 = vld [vmem:[%s1502 + $0x61] sm:$0xff]
      %v4386 = vld [vmem:[%s1502 + $0x69] sm:$0xff]
      %v4387 = vld [vmem:[%s1502 + $0x79] sm:$0xff]
      %v4388 = vld [vmem:[%s1502 + $0x81] sm:$0xff]
      %v4389 = vld [vmem:[%s1502 + $0x91] sm:$0xff]
      %v4390 = vld [vmem:[%s1502 + $0x99] sm:$0xff]
      %v4391 = vld [vmem:[%s1502 + $0xa9] sm:$0xff]
      %v4392 = vld [vmem:[%s1502 + $0xb1] sm:$0xff]
      %v4393 = vld [vmem:[%s1502 + $0xc1] sm:$0xff]
      %v4394 = vld [vmem:[%s1502 + $0xc9] sm:$0xff]
      %v4395 = vld [vmem:[%s1502 + $0xd9] sm:$0xff]
      %v4396 = vld [vmem:[%s1502 + $0xe1] sm:$0xff]
      %v4397 = vld [vmem:[%s1502 + $0xf1] sm:$0xff]
      %v4398 = vld [vmem:[%s1502 + $0xf9] sm:$0xff]
      %v4399 = vld [vmem:[%s1502 + $0x109] sm:$0xff]
      %v4400 = vld [vmem:[%s1502 + $0x111] sm:$0xff]
      %v4401 = vld [vmem:[%s1502 + $0x121] sm:$0xff]
      %v4402 = vld [vmem:[%s1502 + $0x129] sm:$0xff]
      %v4403 = vld [vmem:[%s1502 + $0x139] sm:$0xff]
      %v4404 = vld [vmem:[%s1502 + $0x141] sm:$0xff]
      %v4405 = vld [vmem:[%s1502 + $0x151] sm:$0xff]
      %v4406 = vld [vmem:[%s1502 + $0x159] sm:$0xff]
      %v4407 = vld [vmem:[%s1502 + $0x169] sm:$0xff]
      %v4408 = vld [vmem:[%s1502 + $0x171] sm:$0xff]
      %v4409 = vld [vmem:[%s1502 + $0x2] sm:$0xff]
      %v4410 = vld [vmem:[%s1502 + $0xa] sm:$0xff]
      %v4411 = vld [vmem:[%s1502 + $0x1a] sm:$0xff]
      %v4412 = vld [vmem:[%s1502 + $0x22] sm:$0xff]
      %v4413 = vld [vmem:[%s1502 + $0x32] sm:$0xff]
      %v4414 = vld [vmem:[%s1502 + $0x3a] sm:$0xff]
      %v4415 = vld [vmem:[%s1502 + $0x4a] sm:$0xff]
      %v4416 = vld [vmem:[%s1502 + $0x52] sm:$0xff]
      %v4417 = vld [vmem:[%s1502 + $0x62] sm:$0xff]
      %v4418 = vld [vmem:[%s1502 + $0x6a] sm:$0xff]
      %v4419 = vld [vmem:[%s1502 + $0x7a] sm:$0xff]
      %v4420 = vld [vmem:[%s1502 + $0x82] sm:$0xff]
      %v4421 = vld [vmem:[%s1502 + $0x92] sm:$0xff]
      %v4422 = vld [vmem:[%s1502 + $0x9a] sm:$0xff]
      %v4423 = vld [vmem:[%s1502 + $0xaa] sm:$0xff]
      %v4424 = vld [vmem:[%s1502 + $0xb2] sm:$0xff]
      %v4425 = vld [vmem:[%s1502 + $0xc2] sm:$0xff]
      %v4426 = vld [vmem:[%s1502 + $0xca] sm:$0xff]
      %v4427 = vld [vmem:[%s1502 + $0xda] sm:$0xff]
      %v4428 = vld [vmem:[%s1502 + $0xe2] sm:$0xff]
      %v4429 = vld [vmem:[%s1502 + $0xf2] sm:$0xff]
      %v4430 = vld [vmem:[%s1502 + $0xfa] sm:$0xff]
      %v4431 = vld [vmem:[%s1502 + $0x10a] sm:$0xff]
      %v4432 = vld [vmem:[%s1502 + $0x112] sm:$0xff]
      %v4433 = vld [vmem:[%s1502 + $0x122] sm:$0xff]
      %v4434 = vld [vmem:[%s1502 + $0x12a] sm:$0xff]
      %v4435 = vld [vmem:[%s1502 + $0x13a] sm:$0xff]
      %v4436 = vld [vmem:[%s1502 + $0x142] sm:$0xff]
      %v4437 = vld [vmem:[%s1502 + $0x152] sm:$0xff]
      %v4438 = vld [vmem:[%s1502 + $0x15a] sm:$0xff]
      %v4439 = vld [vmem:[%s1502 + $0x16a] sm:$0xff]
      %v4440 = vld [vmem:[%s1502 + $0x172] sm:$0xff]
      %v4441 = vld [vmem:[%s1727] sm:$0xff]
      %v4442 = vld [vmem:[%s1727 + $0x8] sm:$0xff]
      %v4443 = vld [vmem:[%s1727 + $0x18] sm:$0xff]
      %v4444 = vld [vmem:[%s1727 + $0x20] sm:$0xff]
      %v4445 = vld [vmem:[%s1727 + $0x30] sm:$0xff]
      %v4446 = vld [vmem:[%s1727 + $0x38] sm:$0xff]
      %v4447 = vld [vmem:[%s1727 + $0x48] sm:$0xff]
      %v4448 = vld [vmem:[%s1727 + $0x50] sm:$0xff]
      %v4449 = vld [vmem:[%s1727 + $0x60] sm:$0xff]
      %v4450 = vld [vmem:[%s1727 + $0x68] sm:$0xff]
      %v4451 = vld [vmem:[%s1727 + $0x78] sm:$0xff]
      %v4452 = vld [vmem:[%s1727 + $0x80] sm:$0xff]
      %v4453 = vld [vmem:[%s1727 + $0x90] sm:$0xff]
      %v4454 = vld [vmem:[%s1727 + $0x98] sm:$0xff]
      %v4455 = vld [vmem:[%s1727 + $0xa8] sm:$0xff]
      %v4456 = vld [vmem:[%s1727 + $0xb0] sm:$0xff]
      %v4457 = vld [vmem:[%s1727 + $0xc0] sm:$0xff]
      %v4458 = vld [vmem:[%s1727 + $0xc8] sm:$0xff]
      %v4459 = vld [vmem:[%s1727 + $0xd8] sm:$0xff]
      %v4460 = vld [vmem:[%s1727 + $0xe0] sm:$0xff]
      %v4461 = vld [vmem:[%s1727 + $0xf0] sm:$0xff]
      %v4462 = vld [vmem:[%s1727 + $0xf8] sm:$0xff]
      %v4463 = vld [vmem:[%s1727 + $0x108] sm:$0xff]
      %v4464 = vld [vmem:[%s1727 + $0x110] sm:$0xff]
      %v4465 = vld [vmem:[%s1727 + $0x120] sm:$0xff]
      %v4466 = vld [vmem:[%s1727 + $0x128] sm:$0xff]
      %v4467 = vld [vmem:[%s1727 + $0x138] sm:$0xff]
      %v4468 = vld [vmem:[%s1727 + $0x140] sm:$0xff]
      %v4469 = vld [vmem:[%s1727 + $0x150] sm:$0xff]
      %v4470 = vld [vmem:[%s1727 + $0x158] sm:$0xff]
      %v4471 = vld [vmem:[%s1727 + $0x168] sm:$0xff]
      %v4472 = vld [vmem:[%s1727 + $0x170] sm:$0xff]
      %v4473 = vld [vmem:[%s1727 + $0x1] sm:$0xff]
      %v4474 = vld [vmem:[%s1727 + $0x9] sm:$0xff]
      %v4475 = vld [vmem:[%s1727 + $0x19] sm:$0xff]
      %v4476 = vld [vmem:[%s1727 + $0x21] sm:$0xff]
      %v4477 = vld [vmem:[%s1727 + $0x31] sm:$0xff]
      %v4478 = vld [vmem:[%s1727 + $0x39] sm:$0xff]
      %v4479 = vld [vmem:[%s1727 + $0x49] sm:$0xff]
      %v4480 = vld [vmem:[%s1727 + $0x51] sm:$0xff]
      %v4481 = vld [vmem:[%s1727 + $0x61] sm:$0xff]
      %v4482 = vld [vmem:[%s1727 + $0x69] sm:$0xff]
      %v4483 = vld [vmem:[%s1727 + $0x79] sm:$0xff]
      %v4484 = vld [vmem:[%s1727 + $0x81] sm:$0xff]
      %v4485 = vld [vmem:[%s1727 + $0x91] sm:$0xff]
      %v4486 = vld [vmem:[%s1727 + $0x99] sm:$0xff]
      %v4487 = vld [vmem:[%s1727 + $0xa9] sm:$0xff]
      %v4488 = vld [vmem:[%s1727 + $0xb1] sm:$0xff]
      %v4489 = vld [vmem:[%s1727 + $0xc1] sm:$0xff]
      %v4490 = vld [vmem:[%s1727 + $0xc9] sm:$0xff]
      %v4491 = vld [vmem:[%s1727 + $0xd9] sm:$0xff]
      %v4492 = vld [vmem:[%s1727 + $0xe1] sm:$0xff]
      %v4493 = vld [vmem:[%s1727 + $0xf1] sm:$0xff]
      %v4494 = vld [vmem:[%s1727 + $0xf9] sm:$0xff]
      %v4495 = vld [vmem:[%s1727 + $0x109] sm:$0xff]
      %v4496 = vld [vmem:[%s1727 + $0x111] sm:$0xff]
      %v4497 = vld [vmem:[%s1727 + $0x121] sm:$0xff]
      %v4498 = vld [vmem:[%s1727 + $0x129] sm:$0xff]
      %v4499 = vld [vmem:[%s1727 + $0x139] sm:$0xff]
      %v4500 = vld [vmem:[%s1727 + $0x141] sm:$0xff]
      %v4501 = vld [vmem:[%s1727 + $0x151] sm:$0xff]
      %v4502 = vld [vmem:[%s1727 + $0x159] sm:$0xff]
      %v4503 = vld [vmem:[%s1727 + $0x169] sm:$0xff]
      %v4504 = vld [vmem:[%s1727 + $0x171] sm:$0xff]
      %v4505 = vld [vmem:[%s1727 + $0x2] sm:$0xff]
      %v4506 = vld [vmem:[%s1727 + $0xa] sm:$0xff]
      %v4507 = vld [vmem:[%s1727 + $0x1a] sm:$0xff]
      %v4508 = vld [vmem:[%s1727 + $0x22] sm:$0xff]
      %v4509 = vld [vmem:[%s1727 + $0x32] sm:$0xff]
      %v4510 = vld [vmem:[%s1727 + $0x3a] sm:$0xff]
      %v4511 = vld [vmem:[%s1727 + $0x4a] sm:$0xff]
      %v4512 = vld [vmem:[%s1727 + $0x52] sm:$0xff]
      %v4513 = vld [vmem:[%s1727 + $0x62] sm:$0xff]
      %v4514 = vld [vmem:[%s1727 + $0x6a] sm:$0xff]
      %v4515 = vld [vmem:[%s1727 + $0x7a] sm:$0xff]
      %v4516 = vld [vmem:[%s1727 + $0x82] sm:$0xff]
      %v4517 = vld [vmem:[%s1727 + $0x92] sm:$0xff]
      %v4518 = vld [vmem:[%s1727 + $0x9a] sm:$0xff]
      %v4519 = vld [vmem:[%s1727 + $0xaa] sm:$0xff]
      %v4520 = vld [vmem:[%s1727 + $0xb2] sm:$0xff]
      %v4521 = vld [vmem:[%s1727 + $0xc2] sm:$0xff]
      %v4522 = vld [vmem:[%s1727 + $0xca] sm:$0xff]
      %v4523 = vld [vmem:[%s1727 + $0xda] sm:$0xff]
      %v4524 = vld [vmem:[%s1727 + $0xe2] sm:$0xff]
      %v4525 = vld [vmem:[%s1727 + $0xf2] sm:$0xff]
      %v4526 = vld [vmem:[%s1727 + $0xfa] sm:$0xff]
      %v4527 = vld [vmem:[%s1727 + $0x10a] sm:$0xff]
      %v4528 = vld [vmem:[%s1727 + $0x112] sm:$0xff]
      %v4529 = vld [vmem:[%s1727 + $0x122] sm:$0xff]
      %v4530 = vld [vmem:[%s1727 + $0x12a] sm:$0xff]
      %v4531 = vld [vmem:[%s1727 + $0x13a] sm:$0xff]
      %v4532 = vld [vmem:[%s1727 + $0x142] sm:$0xff]
      %v4533 = vld [vmem:[%s1727 + $0x152] sm:$0xff]
      %v4534 = vld [vmem:[%s1727 + $0x15a] sm:$0xff]
      %v4535 = vld [vmem:[%s1727 + $0x16a] sm:$0xff]
      %v4536 = vld [vmem:[%s1727 + $0x172] sm:$0xff]
      %4569 = vrot.lane.b32.xlu0 %v4281, 4
      %v4570 = vpop.permute.xlu0 %4569
      %4571 = vrot.lane.b32.xlu0 %v4282, 4
      %v4572 = vpop.permute.xlu0 %4571
      %4573 = vrot.lane.b32.xlu0 %v4283, 4
      %v4574 = vpop.permute.xlu0 %4573
      %4575 = vrot.lane.b32.xlu0 %v4284, 4
      %v4576 = vpop.permute.xlu0 %4575
      %4577 = vrot.lane.b32.xlu0 %v4285, 4
      %v4578 = vpop.permute.xlu0 %4577
      %4579 = vrot.lane.b32.xlu0 %v4286, 4
      %v4580 = vpop.permute.xlu0 %4579
      %4581 = vrot.lane.b32.xlu0 %v4287, 4
      %v4582 = vpop.permute.xlu0 %4581
      %4583 = vrot.lane.b32.xlu0 %v4288, 4
      %v4584 = vpop.permute.xlu0 %4583
      %4585 = vrot.lane.b32.xlu0 %v4289, 4
      %v4586 = vpop.permute.xlu0 %4585
      %4587 = vrot.lane.b32.xlu0 %v4290, 4
      %v4588 = vpop.permute.xlu0 %4587
      %4589 = vrot.lane.b32.xlu0 %v4291, 4
      %v4590 = vpop.permute.xlu0 %4589
      %4591 = vrot.lane.b32.xlu0 %v4292, 4
      %v4592 = vpop.permute.xlu0 %4591
      %4593 = vrot.lane.b32.xlu0 %v4293, 4
      %v4594 = vpop.permute.xlu0 %4593
      %4595 = vrot.lane.b32.xlu0 %v4294, 4
      %v4596 = vpop.permute.xlu0 %4595
      %4597 = vrot.lane.b32.xlu0 %v4295, 4
      %v4598 = vpop.permute.xlu0 %4597
      %4599 = vrot.lane.b32.xlu0 %v4296, 4
      %v4600 = vpop.permute.xlu0 %4599
      %4601 = vrot.lane.b32.xlu0 %v4297, 4
      %v4602 = vpop.permute.xlu0 %4601
      %4603 = vrot.lane.b32.xlu0 %v4298, 4
      %v4604 = vpop.permute.xlu0 %4603
      %4605 = vrot.lane.b32.xlu0 %v4299, 4
      %v4606 = vpop.permute.xlu0 %4605
      %4607 = vrot.lane.b32.xlu0 %v4300, 4
      %v4608 = vpop.permute.xlu0 %4607
      %4609 = vrot.lane.b32.xlu0 %v4301, 4
      %v4610 = vpop.permute.xlu0 %4609
      %4611 = vrot.lane.b32.xlu0 %v4302, 4
      %v4612 = vpop.permute.xlu0 %4611
      %4613 = vrot.lane.b32.xlu0 %v4303, 4
      %v4614 = vpop.permute.xlu0 %4613
      %4615 = vrot.lane.b32.xlu0 %v4304, 4
      %v4616 = vpop.permute.xlu0 %4615
      %4617 = vrot.lane.b32.xlu0 %v4305, 4
      %v4618 = vpop.permute.xlu0 %4617
      %4619 = vrot.lane.b32.xlu0 %v4306, 4
      %v4620 = vpop.permute.xlu0 %4619
      %4621 = vrot.lane.b32.xlu0 %v4307, 4
      %v4622 = vpop.permute.xlu0 %4621
      %4623 = vrot.lane.b32.xlu0 %v4308, 4
      %v4624 = vpop.permute.xlu0 %4623
      %4625 = vrot.lane.b32.xlu0 %v4309, 4
      %v4626 = vpop.permute.xlu0 %4625
      %4627 = vrot.lane.b32.xlu0 %v4310, 4
      %v4628 = vpop.permute.xlu0 %4627
      %4629 = vrot.lane.b32.xlu0 %v4311, 4
      %v4630 = vpop.permute.xlu0 %4629
      %4631 = vrot.lane.b32.xlu0 %v4312, 4
      %v4632 = vpop.permute.xlu0 %4631
      %4697 = vrot.lane.b32.xlu0 %v4313, 8
      %v4698 = vpop.permute.xlu0 %4697
      %4699 = vrot.lane.b32.xlu0 %v4314, 8
      %v4700 = vpop.permute.xlu0 %4699
      %4701 = vrot.lane.b32.xlu0 %v4315, 8
      %v4702 = vpop.permute.xlu0 %4701
      %4703 = vrot.lane.b32.xlu0 %v4316, 8
      %v4704 = vpop.permute.xlu0 %4703
      %4705 = vrot.lane.b32.xlu0 %v4317, 8
      %v4706 = vpop.permute.xlu0 %4705
      %4707 = vrot.lane.b32.xlu0 %v4318, 8
      %v4708 = vpop.permute.xlu0 %4707
      %4709 = vrot.lane.b32.xlu0 %v4319, 8
      %v4710 = vpop.permute.xlu0 %4709
      %4711 = vrot.lane.b32.xlu0 %v4320, 8
      %v4712 = vpop.permute.xlu0 %4711
      %4713 = vrot.lane.b32.xlu0 %v4321, 8
      %v4714 = vpop.permute.xlu0 %4713
      %4715 = vrot.lane.b32.xlu0 %v4322, 8
      %v4716 = vpop.permute.xlu0 %4715
      %4717 = vrot.lane.b32.xlu0 %v4323, 8
      %v4718 = vpop.permute.xlu0 %4717
      %4719 = vrot.lane.b32.xlu0 %v4324, 8
      %v4720 = vpop.permute.xlu0 %4719
      %4721 = vrot.lane.b32.xlu0 %v4325, 8
      %v4722 = vpop.permute.xlu0 %4721
      %4723 = vrot.lane.b32.xlu0 %v4326, 8
      %v4724 = vpop.permute.xlu0 %4723
      %4725 = vrot.lane.b32.xlu0 %v4327, 8
      %v4726 = vpop.permute.xlu0 %4725
      %4727 = vrot.lane.b32.xlu0 %v4328, 8
      %v4728 = vpop.permute.xlu0 %4727
      %4729 = vrot.lane.b32.xlu0 %v4329, 8
      %v4730 = vpop.permute.xlu0 %4729
      %4731 = vrot.lane.b32.xlu0 %v4330, 8
      %v4732 = vpop.permute.xlu0 %4731
      %4733 = vrot.lane.b32.xlu0 %v4331, 8
      %v4734 = vpop.permute.xlu0 %4733
      %4735 = vrot.lane.b32.xlu0 %v4332, 8
      %v4736 = vpop.permute.xlu0 %4735
      %4737 = vrot.lane.b32.xlu0 %v4333, 8
      %v4738 = vpop.permute.xlu0 %4737
      %4739 = vrot.lane.b32.xlu0 %v4334, 8
      %v4740 = vpop.permute.xlu0 %4739
      %4741 = vrot.lane.b32.xlu0 %v4335, 8
      %v4742 = vpop.permute.xlu0 %4741
      %4743 = vrot.lane.b32.xlu0 %v4336, 8
      %v4744 = vpop.permute.xlu0 %4743
      %4745 = vrot.lane.b32.xlu0 %v4337, 8
      %v4746 = vpop.permute.xlu0 %4745
      %4747 = vrot.lane.b32.xlu0 %v4338, 8
      %v4748 = vpop.permute.xlu0 %4747
      %4749 = vrot.lane.b32.xlu0 %v4339, 8
      %v4750 = vpop.permute.xlu0 %4749
      %4751 = vrot.lane.b32.xlu0 %v4340, 8
      %v4752 = vpop.permute.xlu0 %4751
      %4753 = vrot.lane.b32.xlu0 %v4341, 8
      %v4754 = vpop.permute.xlu0 %4753
      %4755 = vrot.lane.b32.xlu0 %v4342, 8
      %v4756 = vpop.permute.xlu0 %4755
      %4757 = vrot.lane.b32.xlu0 %v4343, 8
      %v4758 = vpop.permute.xlu0 %4757
      %4759 = vrot.lane.b32.xlu0 %v4344, 8
      %v4760 = vpop.permute.xlu0 %4759
      %4825 = vrot.lane.b32.xlu0 %v4345, 12
      %v4826 = vpop.permute.xlu0 %4825
      %4827 = vrot.lane.b32.xlu0 %v4346, 12
      %v4828 = vpop.permute.xlu0 %4827
      %4829 = vrot.lane.b32.xlu0 %v4347, 12
      %v4830 = vpop.permute.xlu0 %4829
      %4831 = vrot.lane.b32.xlu0 %v4348, 12
      %v4832 = vpop.permute.xlu0 %4831
      %4833 = vrot.lane.b32.xlu0 %v4349, 12
      %v4834 = vpop.permute.xlu0 %4833
      %4835 = vrot.lane.b32.xlu0 %v4350, 12
      %v4836 = vpop.permute.xlu0 %4835
      %4837 = vrot.lane.b32.xlu0 %v4351, 12
      %v4838 = vpop.permute.xlu0 %4837
      %4839 = vrot.lane.b32.xlu0 %v4352, 12
      %v4840 = vpop.permute.xlu0 %4839
      %4841 = vrot.lane.b32.xlu0 %v4353, 12
      %v4842 = vpop.permute.xlu0 %4841
      %4843 = vrot.lane.b32.xlu0 %v4354, 12
      %v4844 = vpop.permute.xlu0 %4843
      %4845 = vrot.lane.b32.xlu0 %v4355, 12
      %v4846 = vpop.permute.xlu0 %4845
      %4847 = vrot.lane.b32.xlu0 %v4356, 12
      %v4848 = vpop.permute.xlu0 %4847
      %4849 = vrot.lane.b32.xlu0 %v4357, 12
      %v4850 = vpop.permute.xlu0 %4849
      %4851 = vrot.lane.b32.xlu0 %v4358, 12
      %v4852 = vpop.permute.xlu0 %4851
      %4853 = vrot.lane.b32.xlu0 %v4359, 12
      %v4854 = vpop.permute.xlu0 %4853
      %4855 = vrot.lane.b32.xlu0 %v4360, 12
      %v4856 = vpop.permute.xlu0 %4855
      %4857 = vrot.lane.b32.xlu0 %v4361, 12
      %v4858 = vpop.permute.xlu0 %4857
      %4859 = vrot.lane.b32.xlu0 %v4362, 12
      %v4860 = vpop.permute.xlu0 %4859
      %4861 = vrot.lane.b32.xlu0 %v4363, 12
      %v4862 = vpop.permute.xlu0 %4861
      %4863 = vrot.lane.b32.xlu0 %v4364, 12
      %v4864 = vpop.permute.xlu0 %4863
      %4865 = vrot.lane.b32.xlu0 %v4365, 12
      %v4866 = vpop.permute.xlu0 %4865
      %4867 = vrot.lane.b32.xlu0 %v4366, 12
      %v4868 = vpop.permute.xlu0 %4867
      %4869 = vrot.lane.b32.xlu0 %v4367, 12
      %v4870 = vpop.permute.xlu0 %4869
      %4871 = vrot.lane.b32.xlu0 %v4368, 12
      %v4872 = vpop.permute.xlu0 %4871
      %4873 = vrot.lane.b32.xlu0 %v4369, 12
      %v4874 = vpop.permute.xlu0 %4873
      %4875 = vrot.lane.b32.xlu0 %v4370, 12
      %v4876 = vpop.permute.xlu0 %4875
      %4877 = vrot.lane.b32.xlu0 %v4371, 12
      %v4878 = vpop.permute.xlu0 %4877
      %4879 = vrot.lane.b32.xlu0 %v4372, 12
      %v4880 = vpop.permute.xlu0 %4879
      %4881 = vrot.lane.b32.xlu0 %v4373, 12
      %v4882 = vpop.permute.xlu0 %4881
      %4883 = vrot.lane.b32.xlu0 %v4374, 12
      %v4884 = vpop.permute.xlu0 %4883
      %4885 = vrot.lane.b32.xlu0 %v4375, 12
      %v4886 = vpop.permute.xlu0 %4885
      %4887 = vrot.lane.b32.xlu0 %v4376, 12
      %v4888 = vpop.permute.xlu0 %4887
      %4953 = vrot.lane.b32.xlu0 %v4377, 16
      %v4954 = vpop.permute.xlu0 %4953
      %4955 = vrot.lane.b32.xlu0 %v4378, 16
      %v4956 = vpop.permute.xlu0 %4955
      %4957 = vrot.lane.b32.xlu0 %v4379, 16
      %v4958 = vpop.permute.xlu0 %4957
      %4959 = vrot.lane.b32.xlu0 %v4380, 16
      %v4960 = vpop.permute.xlu0 %4959
      %4961 = vrot.lane.b32.xlu0 %v4381, 16
      %v4962 = vpop.permute.xlu0 %4961
      %4963 = vrot.lane.b32.xlu0 %v4382, 16
      %v4964 = vpop.permute.xlu0 %4963
      %4965 = vrot.lane.b32.xlu0 %v4383, 16
      %v4966 = vpop.permute.xlu0 %4965
      %4967 = vrot.lane.b32.xlu0 %v4384, 16
      %v4968 = vpop.permute.xlu0 %4967
      %4969 = vrot.lane.b32.xlu0 %v4385, 16
      %v4970 = vpop.permute.xlu0 %4969
      %4971 = vrot.lane.b32.xlu0 %v4386, 16
      %v4972 = vpop.permute.xlu0 %4971
      %4973 = vrot.lane.b32.xlu0 %v4387, 16
      %v4974 = vpop.permute.xlu0 %4973
      %4975 = vrot.lane.b32.xlu0 %v4388, 16
      %v4976 = vpop.permute.xlu0 %4975
      %4977 = vrot.lane.b32.xlu0 %v4389, 16
      %v4978 = vpop.permute.xlu0 %4977
      %4979 = vrot.lane.b32.xlu0 %v4390, 16
      %v4980 = vpop.permute.xlu0 %4979
      %4981 = vrot.lane.b32.xlu0 %v4391, 16
      %v4982 = vpop.permute.xlu0 %4981
      %4983 = vrot.lane.b32.xlu0 %v4392, 16
      %v4984 = vpop.permute.xlu0 %4983
      %4985 = vrot.lane.b32.xlu0 %v4393, 16
      %v4986 = vpop.permute.xlu0 %4985
      %4987 = vrot.lane.b32.xlu0 %v4394, 16
      %v4988 = vpop.permute.xlu0 %4987
      %4989 = vrot.lane.b32.xlu0 %v4395, 16
      %v4990 = vpop.permute.xlu0 %4989
      %4991 = vrot.lane.b32.xlu0 %v4396, 16
      %v4992 = vpop.permute.xlu0 %4991
      %4993 = vrot.lane.b32.xlu0 %v4397, 16
      %v4994 = vpop.permute.xlu0 %4993
      %4995 = vrot.lane.b32.xlu0 %v4398, 16
      %v4996 = vpop.permute.xlu0 %4995
      %4997 = vrot.lane.b32.xlu0 %v4399, 16
      %v4998 = vpop.permute.xlu0 %4997
      %4999 = vrot.lane.b32.xlu0 %v4400, 16
      %v5000 = vpop.permute.xlu0 %4999
      %5001 = vrot.lane.b32.xlu0 %v4401, 16
      %v5002 = vpop.permute.xlu0 %5001
      %5003 = vrot.lane.b32.xlu0 %v4402, 16
      %v5004 = vpop.permute.xlu0 %5003
      %5005 = vrot.lane.b32.xlu0 %v4403, 16
      %v5006 = vpop.permute.xlu0 %5005
      %5007 = vrot.lane.b32.xlu0 %v4404, 16
      %v5008 = vpop.permute.xlu0 %5007
      %5009 = vrot.lane.b32.xlu0 %v4405, 16
      %v5010 = vpop.permute.xlu0 %5009
      %5011 = vrot.lane.b32.xlu0 %v4406, 16
      %v5012 = vpop.permute.xlu0 %5011
      %5013 = vrot.lane.b32.xlu0 %v4407, 16
      %v5014 = vpop.permute.xlu0 %5013
      %5015 = vrot.lane.b32.xlu0 %v4408, 16
      %v5016 = vpop.permute.xlu0 %5015
      %5081 = vrot.lane.b32.xlu0 %v4409, 20
      %v5082 = vpop.permute.xlu0 %5081
      %5083 = vrot.lane.b32.xlu0 %v4410, 20
      %v5084 = vpop.permute.xlu0 %5083
      %5085 = vrot.lane.b32.xlu0 %v4411, 20
      %v5086 = vpop.permute.xlu0 %5085
      %5087 = vrot.lane.b32.xlu0 %v4412, 20
      %v5088 = vpop.permute.xlu0 %5087
      %5089 = vrot.lane.b32.xlu0 %v4413, 20
      %v5090 = vpop.permute.xlu0 %5089
      %5091 = vrot.lane.b32.xlu0 %v4414, 20
      %v5092 = vpop.permute.xlu0 %5091
      %5093 = vrot.lane.b32.xlu0 %v4415, 20
      %v5094 = vpop.permute.xlu0 %5093
      %5095 = vrot.lane.b32.xlu0 %v4416, 20
      %v5096 = vpop.permute.xlu0 %5095
      %5097 = vrot.lane.b32.xlu0 %v4417, 20
      %v5098 = vpop.permute.xlu0 %5097
      %5099 = vrot.lane.b32.xlu0 %v4418, 20
      %v5100 = vpop.permute.xlu0 %5099
      %5101 = vrot.lane.b32.xlu0 %v4419, 20
      %v5102 = vpop.permute.xlu0 %5101
      %5103 = vrot.lane.b32.xlu0 %v4420, 20
      %v5104 = vpop.permute.xlu0 %5103
      %5105 = vrot.lane.b32.xlu0 %v4421, 20
      %v5106 = vpop.permute.xlu0 %5105
      %5107 = vrot.lane.b32.xlu0 %v4422, 20
      %v5108 = vpop.permute.xlu0 %5107
      %5109 = vrot.lane.b32.xlu0 %v4423, 20
      %v5110 = vpop.permute.xlu0 %5109
      %5111 = vrot.lane.b32.xlu0 %v4424, 20
      %v5112 = vpop.permute.xlu0 %5111
      %5113 = vrot.lane.b32.xlu0 %v4425, 20
      %v5114 = vpop.permute.xlu0 %5113
      %5115 = vrot.lane.b32.xlu0 %v4426, 20
      %v5116 = vpop.permute.xlu0 %5115
      %5117 = vrot.lane.b32.xlu0 %v4427, 20
      %v5118 = vpop.permute.xlu0 %5117
      %5119 = vrot.lane.b32.xlu0 %v4428, 20
      %v5120 = vpop.permute.xlu0 %5119
      %5121 = vrot.lane.b32.xlu0 %v4429, 20
      %v5122 = vpop.permute.xlu0 %5121
      %5123 = vrot.lane.b32.xlu0 %v4430, 20
      %v5124 = vpop.permute.xlu0 %5123
      %5125 = vrot.lane.b32.xlu0 %v4431, 20
      %v5126 = vpop.permute.xlu0 %5125
      %5127 = vrot.lane.b32.xlu0 %v4432, 20
      %v5128 = vpop.permute.xlu0 %5127
      %5129 = vrot.lane.b32.xlu0 %v4433, 20
      %v5130 = vpop.permute.xlu0 %5129
      %5131 = vrot.lane.b32.xlu0 %v4434, 20
      %v5132 = vpop.permute.xlu0 %5131
      %5133 = vrot.lane.b32.xlu0 %v4435, 20
      %v5134 = vpop.permute.xlu0 %5133
      %5135 = vrot.lane.b32.xlu0 %v4436, 20
      %v5136 = vpop.permute.xlu0 %5135
      %5137 = vrot.lane.b32.xlu0 %v4437, 20
      %v5138 = vpop.permute.xlu0 %5137
      %5139 = vrot.lane.b32.xlu0 %v4438, 20
      %v5140 = vpop.permute.xlu0 %5139
      %5141 = vrot.lane.b32.xlu0 %v4439, 20
      %v5142 = vpop.permute.xlu0 %5141
      %5143 = vrot.lane.b32.xlu0 %v4440, 20
      %v5144 = vpop.permute.xlu0 %5143
      %5209 = vrot.lane.b32.xlu0 %v4441, 24
      %v5210 = vpop.permute.xlu0 %5209
      %5211 = vrot.lane.b32.xlu0 %v4442, 24
      %v5212 = vpop.permute.xlu0 %5211
      %5213 = vrot.lane.b32.xlu0 %v4443, 24
      %v5214 = vpop.permute.xlu0 %5213
      %5215 = vrot.lane.b32.xlu0 %v4444, 24
      %v5216 = vpop.permute.xlu0 %5215
      %5217 = vrot.lane.b32.xlu0 %v4445, 24
      %v5218 = vpop.permute.xlu0 %5217
      %5219 = vrot.lane.b32.xlu0 %v4446, 24
      %v5220 = vpop.permute.xlu0 %5219
      %5221 = vrot.lane.b32.xlu0 %v4447, 24
      %v5222 = vpop.permute.xlu0 %5221
      %5223 = vrot.lane.b32.xlu0 %v4448, 24
      %v5224 = vpop.permute.xlu0 %5223
      %5225 = vrot.lane.b32.xlu0 %v4449, 24
      %v5226 = vpop.permute.xlu0 %5225
      %5227 = vrot.lane.b32.xlu0 %v4450, 24
      %v5228 = vpop.permute.xlu0 %5227
      %5229 = vrot.lane.b32.xlu0 %v4451, 24
      %v5230 = vpop.permute.xlu0 %5229
      %5231 = vrot.lane.b32.xlu0 %v4452, 24
      %v5232 = vpop.permute.xlu0 %5231
      %5233 = vrot.lane.b32.xlu0 %v4453, 24
      %v5234 = vpop.permute.xlu0 %5233
      %5235 = vrot.lane.b32.xlu0 %v4454, 24
      %v5236 = vpop.permute.xlu0 %5235
      %5237 = vrot.lane.b32.xlu0 %v4455, 24
      %v5238 = vpop.permute.xlu0 %5237
      %5239 = vrot.lane.b32.xlu0 %v4456, 24
      %v5240 = vpop.permute.xlu0 %5239
      %5241 = vrot.lane.b32.xlu0 %v4457, 24
      %v5242 = vpop.permute.xlu0 %5241
      %5243 = vrot.lane.b32.xlu0 %v4458, 24
      %v5244 = vpop.permute.xlu0 %5243
      %5245 = vrot.lane.b32.xlu0 %v4459, 24
      %v5246 = vpop.permute.xlu0 %5245
      %5247 = vrot.lane.b32.xlu0 %v4460, 24
      %v5248 = vpop.permute.xlu0 %5247
      %5249 = vrot.lane.b32.xlu0 %v4461, 24
      %v5250 = vpop.permute.xlu0 %5249
      %5251 = vrot.lane.b32.xlu0 %v4462, 24
      %v5252 = vpop.permute.xlu0 %5251
      %5253 = vrot.lane.b32.xlu0 %v4463, 24
      %v5254 = vpop.permute.xlu0 %5253
      %5255 = vrot.lane.b32.xlu0 %v4464, 24
      %v5256 = vpop.permute.xlu0 %5255
      %5257 = vrot.lane.b32.xlu0 %v4465, 24
      %v5258 = vpop.permute.xlu0 %5257
      %5259 = vrot.lane.b32.xlu0 %v4466, 24
      %v5260 = vpop.permute.xlu0 %5259
      %5261 = vrot.lane.b32.xlu0 %v4467, 24
      %v5262 = vpop.permute.xlu0 %5261
      %5263 = vrot.lane.b32.xlu0 %v4468, 24
      %v5264 = vpop.permute.xlu0 %5263
      %5265 = vrot.lane.b32.xlu0 %v4469, 24
      %v5266 = vpop.permute.xlu0 %5265
      %5267 = vrot.lane.b32.xlu0 %v4470, 24
      %v5268 = vpop.permute.xlu0 %5267
      %5269 = vrot.lane.b32.xlu0 %v4471, 24
      %v5270 = vpop.permute.xlu0 %5269
      %5271 = vrot.lane.b32.xlu0 %v4472, 24
      %v5272 = vpop.permute.xlu0 %5271
      %5337 = vrot.lane.b32.xlu0 %v4473, 28
      %v5338 = vpop.permute.xlu0 %5337
      %5339 = vrot.lane.b32.xlu0 %v4474, 28
      %v5340 = vpop.permute.xlu0 %5339
      %5341 = vrot.lane.b32.xlu0 %v4475, 28
      %v5342 = vpop.permute.xlu0 %5341
      %5343 = vrot.lane.b32.xlu0 %v4476, 28
      %v5344 = vpop.permute.xlu0 %5343
      %5345 = vrot.lane.b32.xlu0 %v4477, 28
      %v5346 = vpop.permute.xlu0 %5345
      %5347 = vrot.lane.b32.xlu0 %v4478, 28
      %v5348 = vpop.permute.xlu0 %5347
      %5349 = vrot.lane.b32.xlu0 %v4479, 28
      %v5350 = vpop.permute.xlu0 %5349
      %5351 = vrot.lane.b32.xlu0 %v4480, 28
      %v5352 = vpop.permute.xlu0 %5351
      %5353 = vrot.lane.b32.xlu0 %v4481, 28
      %v5354 = vpop.permute.xlu0 %5353
      %5355 = vrot.lane.b32.xlu0 %v4482, 28
      %v5356 = vpop.permute.xlu0 %5355
      %5357 = vrot.lane.b32.xlu0 %v4483, 28
      %v5358 = vpop.permute.xlu0 %5357
      %5359 = vrot.lane.b32.xlu0 %v4484, 28
      %v5360 = vpop.permute.xlu0 %5359
      %5361 = vrot.lane.b32.xlu0 %v4485, 28
      %v5362 = vpop.permute.xlu0 %5361
      %5363 = vrot.lane.b32.xlu0 %v4486, 28
      %v5364 = vpop.permute.xlu0 %5363
      %5365 = vrot.lane.b32.xlu0 %v4487, 28
      %v5366 = vpop.permute.xlu0 %5365
      %5367 = vrot.lane.b32.xlu0 %v4488, 28
      %v5368 = vpop.permute.xlu0 %5367
      %5369 = vrot.lane.b32.xlu0 %v4489, 28
      %v5370 = vpop.permute.xlu0 %5369
      %5371 = vrot.lane.b32.xlu0 %v4490, 28
      %v5372 = vpop.permute.xlu0 %5371
      %5373 = vrot.lane.b32.xlu0 %v4491, 28
      %v5374 = vpop.permute.xlu0 %5373
      %5375 = vrot.lane.b32.xlu0 %v4492, 28
      %v5376 = vpop.permute.xlu0 %5375
      %5377 = vrot.lane.b32.xlu0 %v4493, 28
      %v5378 = vpop.permute.xlu0 %5377
      %5379 = vrot.lane.b32.xlu0 %v4494, 28
      %v5380 = vpop.permute.xlu0 %5379
      %5381 = vrot.lane.b32.xlu0 %v4495, 28
      %v5382 = vpop.permute.xlu0 %5381
      %5383 = vrot.lane.b32.xlu0 %v4496, 28
      %v5384 = vpop.permute.xlu0 %5383
      %5385 = vrot.lane.b32.xlu0 %v4497, 28
      %v5386 = vpop.permute.xlu0 %5385
      %5387 = vrot.lane.b32.xlu0 %v4498, 28
      %v5388 = vpop.permute.xlu0 %5387
      %5389 = vrot.lane.b32.xlu0 %v4499, 28
      %v5390 = vpop.permute.xlu0 %5389
      %5391 = vrot.lane.b32.xlu0 %v4500, 28
      %v5392 = vpop.permute.xlu0 %5391
      %5393 = vrot.lane.b32.xlu0 %v4501, 28
      %v5394 = vpop.permute.xlu0 %5393
      %5395 = vrot.lane.b32.xlu0 %v4502, 28
      %v5396 = vpop.permute.xlu0 %5395
      %5397 = vrot.lane.b32.xlu0 %v4503, 28
      %v5398 = vpop.permute.xlu0 %5397
      %5399 = vrot.lane.b32.xlu0 %v4504, 28
      %v5400 = vpop.permute.xlu0 %5399
      %5465 = vrot.lane.b32.xlu0 %v4505, 32
      %v5466 = vpop.permute.xlu0 %5465
      %5467 = vrot.lane.b32.xlu0 %v4506, 32
      %v5468 = vpop.permute.xlu0 %5467
      %5469 = vrot.lane.b32.xlu0 %v4507, 32
      %v5470 = vpop.permute.xlu0 %5469
      %5471 = vrot.lane.b32.xlu0 %v4508, 32
      %v5472 = vpop.permute.xlu0 %5471
      %5473 = vrot.lane.b32.xlu0 %v4509, 32
      %v5474 = vpop.permute.xlu0 %5473
      %5475 = vrot.lane.b32.xlu0 %v4510, 32
      %v5476 = vpop.permute.xlu0 %5475
      %5477 = vrot.lane.b32.xlu0 %v4511, 32
      %v5478 = vpop.permute.xlu0 %5477
      %5479 = vrot.lane.b32.xlu0 %v4512, 32
      %v5480 = vpop.permute.xlu0 %5479
      %5481 = vrot.lane.b32.xlu0 %v4513, 32
      %v5482 = vpop.permute.xlu0 %5481
      %5483 = vrot.lane.b32.xlu0 %v4514, 32
      %v5484 = vpop.permute.xlu0 %5483
      %5485 = vrot.lane.b32.xlu0 %v4515, 32
      %v5486 = vpop.permute.xlu0 %5485
      %5487 = vrot.lane.b32.xlu0 %v4516, 32
      %v5488 = vpop.permute.xlu0 %5487
      %5489 = vrot.lane.b32.xlu0 %v4517, 32
      %v5490 = vpop.permute.xlu0 %5489
      %5491 = vrot.lane.b32.xlu0 %v4518, 32
      %v5492 = vpop.permute.xlu0 %5491
      %5493 = vrot.lane.b32.xlu0 %v4519, 32
      %v5494 = vpop.permute.xlu0 %5493
      %5495 = vrot.lane.b32.xlu0 %v4520, 32
      %v5496 = vpop.permute.xlu0 %5495
      %5497 = vrot.lane.b32.xlu0 %v4521, 32
      %v5498 = vpop.permute.xlu0 %5497
      %5499 = vrot.lane.b32.xlu0 %v4522, 32
      %v5500 = vpop.permute.xlu0 %5499
      %5501 = vrot.lane.b32.xlu0 %v4523, 32
      %v5502 = vpop.permute.xlu0 %5501
      %5503 = vrot.lane.b32.xlu0 %v4524, 32
      %v5504 = vpop.permute.xlu0 %5503
      %5505 = vrot.lane.b32.xlu0 %v4525, 32
      %v5506 = vpop.permute.xlu0 %5505
      %5507 = vrot.lane.b32.xlu0 %v4526, 32
      %v5508 = vpop.permute.xlu0 %5507
      %5509 = vrot.lane.b32.xlu0 %v4527, 32
      %v5510 = vpop.permute.xlu0 %5509
      %5511 = vrot.lane.b32.xlu0 %v4528, 32
      %v5512 = vpop.permute.xlu0 %5511
      %5513 = vrot.lane.b32.xlu0 %v4529, 32
      %v5514 = vpop.permute.xlu0 %5513
      %5515 = vrot.lane.b32.xlu0 %v4530, 32
      %v5516 = vpop.permute.xlu0 %5515
      %5517 = vrot.lane.b32.xlu0 %v4531, 32
      %v5518 = vpop.permute.xlu0 %5517
      %5519 = vrot.lane.b32.xlu0 %v4532, 32
      %v5520 = vpop.permute.xlu0 %5519
      %5521 = vrot.lane.b32.xlu0 %v4533, 32
      %v5522 = vpop.permute.xlu0 %5521
      %5523 = vrot.lane.b32.xlu0 %v4534, 32
      %v5524 = vpop.permute.xlu0 %5523
      %5525 = vrot.lane.b32.xlu0 %v4535, 32
      %v5526 = vpop.permute.xlu0 %5525
      %5527 = vrot.lane.b32.xlu0 %v4536, 32
      %v5528 = vpop.permute.xlu0 %5527
      %v5561 = vsel %vm361, %v4249, %v4570
      %v5562 = vsel %vm361, %v4250, %v4572
      %v5563 = vsel %vm361, %v4251, %v4574
      %v5564 = vsel %vm361, %v4252, %v4576
      %v5565 = vsel %vm361, %v4253, %v4578
      %v5566 = vsel %vm361, %v4254, %v4580
      %v5567 = vsel %vm361, %v4255, %v4582
      %v5568 = vsel %vm361, %v4256, %v4584
      %v5569 = vsel %vm361, %v4257, %v4586
      %v5570 = vsel %vm361, %v4258, %v4588
      %v5571 = vsel %vm361, %v4259, %v4590
      %v5572 = vsel %vm361, %v4260, %v4592
      %v5573 = vsel %vm361, %v4261, %v4594
      %v5574 = vsel %vm361, %v4262, %v4596
      %v5575 = vsel %vm361, %v4263, %v4598
      %v5576 = vsel %vm361, %v4264, %v4600
      %v5577 = vsel %vm361, %v4265, %v4602
      %v5578 = vsel %vm361, %v4266, %v4604
      %v5579 = vsel %vm361, %v4267, %v4606
      %v5580 = vsel %vm361, %v4268, %v4608
      %v5581 = vsel %vm361, %v4269, %v4610
      %v5582 = vsel %vm361, %v4270, %v4612
      %v5583 = vsel %vm361, %v4271, %v4614
      %v5584 = vsel %vm361, %v4272, %v4616
      %v5585 = vsel %vm361, %v4273, %v4618
      %v5586 = vsel %vm361, %v4274, %v4620
      %v5587 = vsel %vm361, %v4275, %v4622
      %v5588 = vsel %vm361, %v4276, %v4624
      %v5589 = vsel %vm361, %v4277, %v4626
      %v5590 = vsel %vm361, %v4278, %v4628
      %v5591 = vsel %vm361, %v4279, %v4630
      %v5592 = vsel %vm361, %v4280, %v4632
      %v5593 = vsel %vm2880, %v5561, %v4698
      %v5594 = vsel %vm2880, %v5562, %v4700
      %v5595 = vsel %vm2880, %v5563, %v4702
      %v5596 = vsel %vm2880, %v5564, %v4704
      %v5597 = vsel %vm2880, %v5565, %v4706
      %v5598 = vsel %vm2880, %v5566, %v4708
      %v5599 = vsel %vm2880, %v5567, %v4710
      %v5600 = vsel %vm2880, %v5568, %v4712
      %v5601 = vsel %vm2880, %v5569, %v4714
      %v5602 = vsel %vm2880, %v5570, %v4716
      %v5603 = vsel %vm2880, %v5571, %v4718
      %v5604 = vsel %vm2880, %v5572, %v4720
      %v5605 = vsel %vm2880, %v5573, %v4722
      %v5606 = vsel %vm2880, %v5574, %v4724
      %v5607 = vsel %vm2880, %v5575, %v4726
      %v5608 = vsel %vm2880, %v5576, %v4728
      %v5609 = vsel %vm2880, %v5577, %v4730
      %v5610 = vsel %vm2880, %v5578, %v4732
      %v5611 = vsel %vm2880, %v5579, %v4734
      %v5612 = vsel %vm2880, %v5580, %v4736
      %v5613 = vsel %vm2880, %v5581, %v4738
      %v5614 = vsel %vm2880, %v5582, %v4740
      %v5615 = vsel %vm2880, %v5583, %v4742
      %v5616 = vsel %vm2880, %v5584, %v4744
      %v5617 = vsel %vm2880, %v5585, %v4746
      %v5618 = vsel %vm2880, %v5586, %v4748
      %v5619 = vsel %vm2880, %v5587, %v4750
      %v5620 = vsel %vm2880, %v5588, %v4752
      %v5621 = vsel %vm2880, %v5589, %v4754
      %v5622 = vsel %vm2880, %v5590, %v4756
      %v5623 = vsel %vm2880, %v5591, %v4758
      %v5624 = vsel %vm2880, %v5592, %v4760
      %v5625 = vsel %vm2913, %v5593, %v4826
      %v5626 = vsel %vm2913, %v5594, %v4828
      %v5627 = vsel %vm2913, %v5595, %v4830
      %v5628 = vsel %vm2913, %v5596, %v4832
      %v5629 = vsel %vm2913, %v5597, %v4834
      %v5630 = vsel %vm2913, %v5598, %v4836
      %v5631 = vsel %vm2913, %v5599, %v4838
      %v5632 = vsel %vm2913, %v5600, %v4840
      %v5633 = vsel %vm2913, %v5601, %v4842
      %v5634 = vsel %vm2913, %v5602, %v4844
      %v5635 = vsel %vm2913, %v5603, %v4846
      %v5636 = vsel %vm2913, %v5604, %v4848
      %v5637 = vsel %vm2913, %v5605, %v4850
      %v5638 = vsel %vm2913, %v5606, %v4852
      %v5639 = vsel %vm2913, %v5607, %v4854
      %v5640 = vsel %vm2913, %v5608, %v4856
      %v5641 = vsel %vm2913, %v5609, %v4858
      %v5642 = vsel %vm2913, %v5610, %v4860
      %v5643 = vsel %vm2913, %v5611, %v4862
      %v5644 = vsel %vm2913, %v5612, %v4864
      %v5645 = vsel %vm2913, %v5613, %v4866
      %v5646 = vsel %vm2913, %v5614, %v4868
      %v5647 = vsel %vm2913, %v5615, %v4870
      %v5648 = vsel %vm2913, %v5616, %v4872
      %v5649 = vsel %vm2913, %v5617, %v4874
      %v5650 = vsel %vm2913, %v5618, %v4876
      %v5651 = vsel %vm2913, %v5619, %v4878
      %v5652 = vsel %vm2913, %v5620, %v4880
      %v5653 = vsel %vm2913, %v5621, %v4882
      %v5654 = vsel %vm2913, %v5622, %v4884
      %v5655 = vsel %vm2913, %v5623, %v4886
      %v5656 = vsel %vm2913, %v5624, %v4888
      %v5657 = vsel %vm2946, %v5625, %v4954
      %v5658 = vsel %vm2946, %v5626, %v4956
      %v5659 = vsel %vm2946, %v5627, %v4958
      %v5660 = vsel %vm2946, %v5628, %v4960
      %v5661 = vsel %vm2946, %v5629, %v4962
      %v5662 = vsel %vm2946, %v5630, %v4964
      %v5663 = vsel %vm2946, %v5631, %v4966
      %v5664 = vsel %vm2946, %v5632, %v4968
      %v5665 = vsel %vm2946, %v5633, %v4970
      %v5666 = vsel %vm2946, %v5634, %v4972
      %v5667 = vsel %vm2946, %v5635, %v4974
      %v5668 = vsel %vm2946, %v5636, %v4976
      %v5669 = vsel %vm2946, %v5637, %v4978
      %v5670 = vsel %vm2946, %v5638, %v4980
      %v5671 = vsel %vm2946, %v5639, %v4982
      %v5672 = vsel %vm2946, %v5640, %v4984
      %v5673 = vsel %vm2946, %v5641, %v4986
      %v5674 = vsel %vm2946, %v5642, %v4988
      %v5675 = vsel %vm2946, %v5643, %v4990
      %v5676 = vsel %vm2946, %v5644, %v4992
      %v5677 = vsel %vm2946, %v5645, %v4994
      %v5678 = vsel %vm2946, %v5646, %v4996
      %v5679 = vsel %vm2946, %v5647, %v4998
      %v5680 = vsel %vm2946, %v5648, %v5000
      %v5681 = vsel %vm2946, %v5649, %v5002
      %v5682 = vsel %vm2946, %v5650, %v5004
      %v5683 = vsel %vm2946, %v5651, %v5006
      %v5684 = vsel %vm2946, %v5652, %v5008
      %v5685 = vsel %vm2946, %v5653, %v5010
      %v5686 = vsel %vm2946, %v5654, %v5012
      %v5687 = vsel %vm2946, %v5655, %v5014
      %v5688 = vsel %vm2946, %v5656, %v5016
      %v5689 = vsel %vm2979, %v5657, %v5082
      %v5690 = vsel %vm2979, %v5658, %v5084
      %v5691 = vsel %vm2979, %v5659, %v5086
      %v5692 = vsel %vm2979, %v5660, %v5088
      %v5693 = vsel %vm2979, %v5661, %v5090
      %v5694 = vsel %vm2979, %v5662, %v5092
      %v5695 = vsel %vm2979, %v5663, %v5094
      %v5696 = vsel %vm2979, %v5664, %v5096
      %v5697 = vsel %vm2979, %v5665, %v5098
      %v5698 = vsel %vm2979, %v5666, %v5100
      %v5699 = vsel %vm2979, %v5667, %v5102
      %v5700 = vsel %vm2979, %v5668, %v5104
      %v5701 = vsel %vm2979, %v5669, %v5106
      %v5702 = vsel %vm2979, %v5670, %v5108
      %v5703 = vsel %vm2979, %v5671, %v5110
      %v5704 = vsel %vm2979, %v5672, %v5112
      %v5705 = vsel %vm2979, %v5673, %v5114
      %v5706 = vsel %vm2979, %v5674, %v5116
      %v5707 = vsel %vm2979, %v5675, %v5118
      %v5708 = vsel %vm2979, %v5676, %v5120
      %v5709 = vsel %vm2979, %v5677, %v5122
      %v5710 = vsel %vm2979, %v5678, %v5124
      %v5711 = vsel %vm2979, %v5679, %v5126
      %v5712 = vsel %vm2979, %v5680, %v5128
      %v5713 = vsel %vm2979, %v5681, %v5130
      %v5714 = vsel %vm2979, %v5682, %v5132
      %v5715 = vsel %vm2979, %v5683, %v5134
      %v5716 = vsel %vm2979, %v5684, %v5136
      %v5717 = vsel %vm2979, %v5685, %v5138
      %v5718 = vsel %vm2979, %v5686, %v5140
      %v5719 = vsel %vm2979, %v5687, %v5142
      %v5720 = vsel %vm2979, %v5688, %v5144
      %v5721 = vsel %vm3012, %v5689, %v5210
      %v5722 = vsel %vm3012, %v5690, %v5212
      %v5723 = vsel %vm3012, %v5691, %v5214
      %v5724 = vsel %vm3012, %v5692, %v5216
      %v5725 = vsel %vm3012, %v5693, %v5218
      %v5726 = vsel %vm3012, %v5694, %v5220
      %v5727 = vsel %vm3012, %v5695, %v5222
      %v5728 = vsel %vm3012, %v5696, %v5224
      %v5729 = vsel %vm3012, %v5697, %v5226
      %v5730 = vsel %vm3012, %v5698, %v5228
      %v5731 = vsel %vm3012, %v5699, %v5230
      %v5732 = vsel %vm3012, %v5700, %v5232
      %v5733 = vsel %vm3012, %v5701, %v5234
      %v5734 = vsel %vm3012, %v5702, %v5236
      %v5735 = vsel %vm3012, %v5703, %v5238
      %v5736 = vsel %vm3012, %v5704, %v5240
      %v5737 = vsel %vm3012, %v5705, %v5242
      %v5738 = vsel %vm3012, %v5706, %v5244
      %v5739 = vsel %vm3012, %v5707, %v5246
      %v5740 = vsel %vm3012, %v5708, %v5248
      %v5741 = vsel %vm3012, %v5709, %v5250
      %v5742 = vsel %vm3012, %v5710, %v5252
      %v5743 = vsel %vm3012, %v5711, %v5254
      %v5744 = vsel %vm3012, %v5712, %v5256
      %v5745 = vsel %vm3012, %v5713, %v5258
      %v5746 = vsel %vm3012, %v5714, %v5260
      %v5747 = vsel %vm3012, %v5715, %v5262
      %v5748 = vsel %vm3012, %v5716, %v5264
      %v5749 = vsel %vm3012, %v5717, %v5266
      %v5750 = vsel %vm3012, %v5718, %v5268
      %v5751 = vsel %vm3012, %v5719, %v5270
      %v5752 = vsel %vm3012, %v5720, %v5272
      %v5753 = vsel %vm3045, %v5721, %v5338
      %v5754 = vsel %vm3045, %v5722, %v5340
      %v5755 = vsel %vm3045, %v5723, %v5342
      %v5756 = vsel %vm3045, %v5724, %v5344
      %v5757 = vsel %vm3045, %v5725, %v5346
      %v5758 = vsel %vm3045, %v5726, %v5348
      %v5759 = vsel %vm3045, %v5727, %v5350
      %v5760 = vsel %vm3045, %v5728, %v5352
      %v5761 = vsel %vm3045, %v5729, %v5354
      %v5762 = vsel %vm3045, %v5730, %v5356
      %v5763 = vsel %vm3045, %v5731, %v5358
      %v5764 = vsel %vm3045, %v5732, %v5360
      %v5765 = vsel %vm3045, %v5733, %v5362
      %v5766 = vsel %vm3045, %v5734, %v5364
      %v5767 = vsel %vm3045, %v5735, %v5366
      %v5768 = vsel %vm3045, %v5736, %v5368
      %v5769 = vsel %vm3045, %v5737, %v5370
      %v5770 = vsel %vm3045, %v5738, %v5372
      %v5771 = vsel %vm3045, %v5739, %v5374
      %v5772 = vsel %vm3045, %v5740, %v5376
      %v5773 = vsel %vm3045, %v5741, %v5378
      %v5774 = vsel %vm3045, %v5742, %v5380
      %v5775 = vsel %vm3045, %v5743, %v5382
      %v5776 = vsel %vm3045, %v5744, %v5384
      %v5777 = vsel %vm3045, %v5745, %v5386
      %v5778 = vsel %vm3045, %v5746, %v5388
      %v5779 = vsel %vm3045, %v5747, %v5390
      %v5780 = vsel %vm3045, %v5748, %v5392
      %v5781 = vsel %vm3045, %v5749, %v5394
      %v5782 = vsel %vm3045, %v5750, %v5396
      %v5783 = vsel %vm3045, %v5751, %v5398
      %v5784 = vsel %vm3045, %v5752, %v5400
      %v5785 = vsel %vm3078, %v5753, %v5466
      %v5786 = vsel %vm3078, %v5754, %v5468
      %v5787 = vsel %vm3078, %v5755, %v5470
      %v5788 = vsel %vm3078, %v5756, %v5472
      %v5789 = vsel %vm3078, %v5757, %v5474
      %v5790 = vsel %vm3078, %v5758, %v5476
      %v5791 = vsel %vm3078, %v5759, %v5478
      %v5792 = vsel %vm3078, %v5760, %v5480
      %v5793 = vsel %vm3078, %v5761, %v5482
      %v5794 = vsel %vm3078, %v5762, %v5484
      %v5795 = vsel %vm3078, %v5763, %v5486
      %v5796 = vsel %vm3078, %v5764, %v5488
      %v5797 = vsel %vm3078, %v5765, %v5490
      %v5798 = vsel %vm3078, %v5766, %v5492
      %v5799 = vsel %vm3078, %v5767, %v5494
      %v5800 = vsel %vm3078, %v5768, %v5496
      %v5801 = vsel %vm3078, %v5769, %v5498
      %v5802 = vsel %vm3078, %v5770, %v5500
      %v5803 = vsel %vm3078, %v5771, %v5502
      %v5804 = vsel %vm3078, %v5772, %v5504
      %v5805 = vsel %vm3078, %v5773, %v5506
      %v5806 = vsel %vm3078, %v5774, %v5508
      %v5807 = vsel %vm3078, %v5775, %v5510
      %v5808 = vsel %vm3078, %v5776, %v5512
      %v5809 = vsel %vm3078, %v5777, %v5514
      %v5810 = vsel %vm3078, %v5778, %v5516
      %v5811 = vsel %vm3078, %v5779, %v5518
      %v5812 = vsel %vm3078, %v5780, %v5520
      %v5813 = vsel %vm3078, %v5781, %v5522
      %v5814 = vsel %vm3078, %v5782, %v5524
      %v5815 = vsel %vm3078, %v5783, %v5526
      %v5816 = vsel %vm3078, %v5784, %v5528
      %s5817 = scalar_lea.vmem %s5, 20
      %v5818 = vld [vmem:[%s5817] sm:$0xf]
      %v5819 = vld [vmem:[%s5817 + $0x4] sm:$0xf]
      %v5820 = vld [vmem:[%s5817 + $0x8] sm:$0xf]
      %v5821 = vld [vmem:[%s5817 + $0xc] sm:$0xf]
      %v5822 = vld [vmem:[%s5817 + $0x10] sm:$0x3]
      %v5823 = vpack.c.bf16 %v5786, %v5785
      %v5824 = vpack.c.bf16 %v5788, %v5787
      %v5825 = vpack.c.bf16 %v5790, %v5789
      %v5826 = vpack.c.bf16 %v5792, %v5791
      %v5827 = vpack.c.bf16 %v5794, %v5793
      %v5828 = vpack.c.bf16 %v5796, %v5795
      %v5829 = vpack.c.bf16 %v5798, %v5797
      %v5830 = vpack.c.bf16 %v5800, %v5799
      %v5831 = vpack.c.bf16 %v5802, %v5801
      %v5832 = vpack.c.bf16 %v5804, %v5803
      %v5833 = vpack.c.bf16 %v5806, %v5805
      %v5834 = vpack.c.bf16 %v5808, %v5807
      %v5835 = vpack.c.bf16 %v5810, %v5809
      %v5836 = vpack.c.bf16 %v5812, %v5811
      %v5837 = vpack.c.bf16 %v5814, %v5813
      %v5838 = vpack.c.bf16 %v5816, %v5815
      %v5844 = vunpack.c.l.b16 %v5818
      %v5845 = vunpack.c.l.b16 %v5819
      %v5846 = vunpack.c.l.b16 %v5820
      %v5847 = vunpack.c.l.b16 %v5821
      %v5848 = vunpack.c.l.b16 %v5822
      %v5849 = vpack.c.b16 %v5845, %v5844
      %v5850 = vpack.c.b16 %v5847, %v5846
      %v5851 = vpack.c.b16 %v5848, %v5848
      %v5855 = vsel %vm3147, %v5823, 0
      %v5858 = vsel %vm3147, %v5824, 0
      %v5861 = vsel %vm3147, %v5825, 0
      %v5864 = vsel %vm3147, %v5826, 0
      %v5867 = vsel %vm3147, %v5827, 0
      %v5870 = vsel %vm3147, %v5828, 0
      %v5873 = vsel %vm3147, %v5829, 0
      %v5876 = vsel %vm3147, %v5830, 0
      %v5879 = vsel %vm3147, %v5831, 0
      %v5882 = vsel %vm3147, %v5832, 0
      %v5885 = vsel %vm3147, %v5833, 0
      %v5888 = vsel %vm3147, %v5834, 0
      %v5891 = vsel %vm3147, %v5835, 0
      %v5894 = vsel %vm3147, %v5836, 0
      %v5897 = vsel %vm3147, %v5837, 0
      %v5900 = vsel %vm3147, %v5838, 0
      %v5903 = vsel %vm514, %v5851, 0
      %5905 = vmatprep.subr.bf16.mxu0 0
      %5906 = vmatpush1.bf16.msra.mxu0 %v5849
      %5907 = vmatprep.subr.bf16.mxu0 0
      %5908 = vmatpush1.bf16.msra.mxu0 %v5850
      %5909 = vmatprep.subr.bf16.mxu0 0
      %5910 = vmatpush1.bf16.msra.mxu0 %v5903
      %5911 = vmatprep.subr.bf16.mxu0 0
      %5912 = vmatpush1.bf16.msra.mxu0 0
      %5913 = vmatprep.subr.bf16.mxu0 0
      %5914 = vmatpush1.bf16.msra.mxu0 0
      %5915 = vmatprep.subr.bf16.mxu0 0
      %5916 = vmatpush1.bf16.msra.mxu0 0
      %5917 = vmatprep.subr.bf16.mxu0 0
      %5918 = vmatpush1.bf16.msra.mxu0 0
      %5919 = vmatprep.subr.bf16.mxu0 0
      %5920 = vmatpush1.bf16.msra.mxu0 0
      %5921 = vmatprep.subr.bf16.mxu0 0
      %5922 = vmatpush1.bf16.msra.mxu0 0
      %5923 = vmatprep.subr.bf16.mxu0 0
      %5924 = vmatpush1.bf16.msra.mxu0 0
      %5925 = vmatprep.subr.bf16.mxu0 0
      %5926 = vmatpush1.bf16.msra.mxu0 0
      %5927 = vmatprep.subr.bf16.mxu0 0
      %5928 = vmatpush1.bf16.msra.mxu0 0
      %5929 = vmatprep.subr.bf16.mxu0 0
      %5930 = vmatpush1.bf16.msra.mxu0 0
      %5931 = vmatprep.subr.bf16.mxu0 0
      %5932 = vmatpush1.bf16.msra.mxu0 0
      %5933 = vmatprep.subr.bf16.mxu0 0
      %5934 = vmatpush1.bf16.msra.mxu0 0
      %5935 = vmatprep.subr.bf16.mxu0 0
      %5936 = vmatpush1.bf16.msra.mxu0 0
      %5937 = vmatprep.mubr.bf16.mxu0 0
      %5938 = vmatmul.mubr.bf16.gmra.mrb[0].mxu0 %v5855
      %v5939 = vpop.f32.mrb[0].mxu0
      %v5940 = vadd.f32 0.0, %v5939
      %v5941 = vpop.f32.mrb[0].mxu0
      %v5942 = vpop.f32.mrb[0].mxu0
      %v5943 = vadd.f32 0.0, %v5942
      %v5944 = vpop.f32.mrb[0].mxu0
      %5945 = vmatprep.mubr.bf16.mxu0 0
      %5946 = vmatmul.mubr.bf16.gmra.mrb[0].mxu0 %v5858
      %v5947 = vpop.f32.mrb[0].mxu0
      %v5948 = vadd.f32 0.0, %v5947
      %v5949 = vpop.f32.mrb[0].mxu0
      %v5950 = vpop.f32.mrb[0].mxu0
      %v5951 = vadd.f32 0.0, %v5950
      %v5952 = vpop.f32.mrb[0].mxu0
      %5953 = vmatprep.mubr.bf16.mxu0 0
      %5954 = vmatmul.mubr.bf16.gmra.mrb[0].mxu0 %v5861
      %v5955 = vpop.f32.mrb[0].mxu0
      %v5956 = vadd.f32 0.0, %v5955
      %v5957 = vpop.f32.mrb[0].mxu0
      %v5958 = vpop.f32.mrb[0].mxu0
      %v5959 = vadd.f32 0.0, %v5958
      %v5960 = vpop.f32.mrb[0].mxu0
      %5961 = vmatprep.mubr.bf16.mxu0 0
      %5962 = vmatmul.mubr.bf16.gmra.mrb[0].mxu0 %v5864
      %v5963 = vpop.f32.mrb[0].mxu0
      %v5964 = vadd.f32 0.0, %v5963
      %v5965 = vpop.f32.mrb[0].mxu0
      %v5966 = vpop.f32.mrb[0].mxu0
      %v5967 = vadd.f32 0.0, %v5966
      %v5968 = vpop.f32.mrb[0].mxu0
      %5969 = vmatprep.mubr.bf16.mxu0 0
      %5970 = vmatmul.mubr.bf16.gmra.mrb[0].mxu0 %v5867
      %v5971 = vpop.f32.mrb[0].mxu0
      %v5972 = vadd.f32 0.0, %v5971
      %v5973 = vpop.f32.mrb[0].mxu0
      %v5974 = vpop.f32.mrb[0].mxu0
      %v5975 = vadd.f32 0.0, %v5974
      %v5976 = vpop.f32.mrb[0].mxu0
      %5977 = vmatprep.mubr.bf16.mxu0 0
      %5978 = vmatmul.mubr.bf16.gmra.mrb[0].mxu0 %v5870
      %v5979 = vpop.f32.mrb[0].mxu0
      %v5980 = vadd.f32 0.0, %v5979
      %v5981 = vpop.f32.mrb[0].mxu0
      %v5982 = vpop.f32.mrb[0].mxu0
      %v5983 = vadd.f32 0.0, %v5982
      %v5984 = vpop.f32.mrb[0].mxu0
      %5985 = vmatprep.mubr.bf16.mxu0 0
      %5986 = vmatmul.mubr.bf16.gmra.mrb[0].mxu0 %v5873
      %v5987 = vpop.f32.mrb[0].mxu0
      %v5988 = vadd.f32 0.0, %v5987
      %v5989 = vpop.f32.mrb[0].mxu0
      %v5990 = vpop.f32.mrb[0].mxu0
      %v5991 = vadd.f32 0.0, %v5990
      %v5992 = vpop.f32.mrb[0].mxu0
      %5993 = vmatprep.mubr.bf16.mxu0 0
      %5994 = vmatmul.mubr.bf16.gmra.mrb[0].mxu0 %v5876
      %v5995 = vpop.f32.mrb[0].mxu0
      %v5996 = vadd.f32 0.0, %v5995
      %v5997 = vpop.f32.mrb[0].mxu0
      %v5998 = vpop.f32.mrb[0].mxu0
      %v5999 = vadd.f32 0.0, %v5998
      %v6000 = vpop.f32.mrb[0].mxu0
      %6001 = vmatprep.mubr.bf16.mxu0 0
      %6002 = vmatmul.mubr.bf16.gmra.mrb[0].mxu0 %v5879
      %v6003 = vpop.f32.mrb[0].mxu0
      %v6004 = vadd.f32 0.0, %v6003
      %v6005 = vpop.f32.mrb[0].mxu0
      %v6006 = vpop.f32.mrb[0].mxu0
      %v6007 = vadd.f32 0.0, %v6006
      %v6008 = vpop.f32.mrb[0].mxu0
      %6009 = vmatprep.mubr.bf16.mxu0 0
      %6010 = vmatmul.mubr.bf16.gmra.mrb[0].mxu0 %v5882
      %v6011 = vpop.f32.mrb[0].mxu0
      %v6012 = vadd.f32 0.0, %v6011
      %v6013 = vpop.f32.mrb[0].mxu0
      %v6014 = vpop.f32.mrb[0].mxu0
      %v6015 = vadd.f32 0.0, %v6014
      %v6016 = vpop.f32.mrb[0].mxu0
      %6017 = vmatprep.mubr.bf16.mxu0 0
      %6018 = vmatmul.mubr.bf16.gmra.mrb[0].mxu0 %v5885
      %v6019 = vpop.f32.mrb[0].mxu0
      %v6020 = vadd.f32 0.0, %v6019
      %v6021 = vpop.f32.mrb[0].mxu0
      %v6022 = vpop.f32.mrb[0].mxu0
      %v6023 = vadd.f32 0.0, %v6022
      %v6024 = vpop.f32.mrb[0].mxu0
      %6025 = vmatprep.mubr.bf16.mxu0 0
      %6026 = vmatmul.mubr.bf16.gmra.mrb[0].mxu0 %v5888
      %v6027 = vpop.f32.mrb[0].mxu0
      %v6028 = vadd.f32 0.0, %v6027
      %v6029 = vpop.f32.mrb[0].mxu0
      %v6030 = vpop.f32.mrb[0].mxu0
      %v6031 = vadd.f32 0.0, %v6030
      %v6032 = vpop.f32.mrb[0].mxu0
      %6033 = vmatprep.mubr.bf16.mxu0 0
      %6034 = vmatmul.mubr.bf16.gmra.mrb[0].mxu0 %v5891
      %v6035 = vpop.f32.mrb[0].mxu0
      %v6036 = vadd.f32 0.0, %v6035
      %v6037 = vpop.f32.mrb[0].mxu0
      %v6038 = vpop.f32.mrb[0].mxu0
      %v6039 = vadd.f32 0.0, %v6038
      %v6040 = vpop.f32.mrb[0].mxu0
      %6041 = vmatprep.mubr.bf16.mxu0 0
      %6042 = vmatmul.mubr.bf16.gmra.mrb[0].mxu0 %v5894
      %v6043 = vpop.f32.mrb[0].mxu0
      %v6044 = vadd.f32 0.0, %v6043
      %v6045 = vpop.f32.mrb[0].mxu0
      %v6046 = vpop.f32.mrb[0].mxu0
      %v6047 = vadd.f32 0.0, %v6046
      %v6048 = vpop.f32.mrb[0].mxu0
      %6049 = vmatprep.mubr.bf16.mxu0 0
      %6050 = vmatmul.mubr.bf16.gmra.mrb[0].mxu0 %v5897
      %v6051 = vpop.f32.mrb[0].mxu0
      %v6052 = vadd.f32 0.0, %v6051
      %v6053 = vpop.f32.mrb[0].mxu0
      %v6054 = vpop.f32.mrb[0].mxu0
      %v6055 = vadd.f32 0.0, %v6054
      %v6056 = vpop.f32.mrb[0].mxu0
      %6057 = vmatprep.mubr.bf16.mxu0 0
      %6058 = vmatmul.mubr.bf16.gmra.mrb[0].mxu0 %v5900
      %v6059 = vpop.f32.mrb[0].mxu0
      %v6060 = vadd.f32 0.0, %v6059
      %v6061 = vpop.f32.mrb[0].mxu0
      %v6062 = vpop.f32.mrb[0].mxu0
      %v6063 = vadd.f32 0.0, %v6062
      %v6064 = vpop.f32.mrb[0].mxu0
      %6065 = vdwg.mxu0
      %s6066 = scalar_lea.vmem %s6, 2
      %v6067 = vld [vmem:[%s6066] sm:$0x3]
      %v6068 = vlaneseq
      %v6069 = vshrl.u32 %v6068, 7
      %v6070 = vsub.s32 0, %v6069
      %v6071 = vrot.slane %v6067, %v6070
      %v6072 = vmul.f32 %v5940, %v6071
      %v6073 = vmul.f32 %v5943, %v6071
      %v6074 = vmul.f32 %v5948, %v6071
      %v6075 = vmul.f32 %v5951, %v6071
      %v6076 = vmul.f32 %v5956, %v6071
      %v6077 = vmul.f32 %v5959, %v6071
      %v6078 = vmul.f32 %v5964, %v6071
      %v6079 = vmul.f32 %v5967, %v6071
      %v6080 = vmul.f32 %v5972, %v6071
      %v6081 = vmul.f32 %v5975, %v6071
      %v6082 = vmul.f32 %v5980, %v6071
      %v6083 = vmul.f32 %v5983, %v6071
      %v6084 = vmul.f32 %v5988, %v6071
      %v6085 = vmul.f32 %v5991, %v6071
      %v6086 = vmul.f32 %v5996, %v6071
      %v6087 = vmul.f32 %v5999, %v6071
      %v6088 = vmul.f32 %v6004, %v6071
      %v6089 = vmul.f32 %v6007, %v6071
      %v6090 = vmul.f32 %v6012, %v6071
      %v6091 = vmul.f32 %v6015, %v6071
      %v6092 = vmul.f32 %v6020, %v6071
      %v6093 = vmul.f32 %v6023, %v6071
      %v6094 = vmul.f32 %v6028, %v6071
      %v6095 = vmul.f32 %v6031, %v6071
      %v6096 = vmul.f32 %v6036, %v6071
      %v6097 = vmul.f32 %v6039, %v6071
      %v6098 = vmul.f32 %v6044, %v6071
      %v6099 = vmul.f32 %v6047, %v6071
      %v6100 = vmul.f32 %v6052, %v6071
      %v6101 = vmul.f32 %v6055, %v6071
      %v6102 = vmul.f32 %v6060, %v6071
      %v6103 = vmul.f32 %v6063, %v6071
      %v6104 = vlaneseq
      %v6105 = vshrl.u32 %v6104, 7
      %v6106 = vsub.s32 1, %v6105
      %v6107 = vrot.slane %v6067, %v6106
      %v6108 = vadd.f32 %v6072, %v6107
      %v6109 = vadd.f32 %v6073, %v6107
      %v6110 = vadd.f32 %v6074, %v6107
      %v6111 = vadd.f32 %v6075, %v6107
      %v6112 = vadd.f32 %v6076, %v6107
      %v6113 = vadd.f32 %v6077, %v6107
      %v6114 = vadd.f32 %v6078, %v6107
      %v6115 = vadd.f32 %v6079, %v6107
      %v6116 = vadd.f32 %v6080, %v6107
      %v6117 = vadd.f32 %v6081, %v6107
      %v6118 = vadd.f32 %v6082, %v6107
      %v6119 = vadd.f32 %v6083, %v6107
      %v6120 = vadd.f32 %v6084, %v6107
      %v6121 = vadd.f32 %v6085, %v6107
      %v6122 = vadd.f32 %v6086, %v6107
      %v6123 = vadd.f32 %v6087, %v6107
      %v6124 = vadd.f32 %v6088, %v6107
      %v6125 = vadd.f32 %v6089, %v6107
      %v6126 = vadd.f32 %v6090, %v6107
      %v6127 = vadd.f32 %v6091, %v6107
      %v6128 = vadd.f32 %v6092, %v6107
      %v6129 = vadd.f32 %v6093, %v6107
      %v6130 = vadd.f32 %v6094, %v6107
      %v6131 = vadd.f32 %v6095, %v6107
      %v6132 = vadd.f32 %v6096, %v6107
      %v6133 = vadd.f32 %v6097, %v6107
      %v6134 = vadd.f32 %v6098, %v6107
      %v6135 = vadd.f32 %v6099, %v6107
      %v6136 = vadd.f32 %v6100, %v6107
      %v6137 = vadd.f32 %v6101, %v6107
      %v6138 = vadd.f32 %v6102, %v6107
      %v6139 = vadd.f32 %v6103, %v6107
      %v6140 = vxor.u32 %v6108, 2147483648
      %v6141 = vxor.u32 %v6109, 2147483648
      %v6142 = vxor.u32 %v6110, 2147483648
      %v6143 = vxor.u32 %v6111, 2147483648
      %v6144 = vxor.u32 %v6112, 2147483648
      %v6145 = vxor.u32 %v6113, 2147483648
      %v6146 = vxor.u32 %v6114, 2147483648
      %v6147 = vxor.u32 %v6115, 2147483648
      %v6148 = vxor.u32 %v6116, 2147483648
      %v6149 = vxor.u32 %v6117, 2147483648
      %v6150 = vxor.u32 %v6118, 2147483648
      %v6151 = vxor.u32 %v6119, 2147483648
      %v6152 = vxor.u32 %v6120, 2147483648
      %v6153 = vxor.u32 %v6121, 2147483648
      %v6154 = vxor.u32 %v6122, 2147483648
      %v6155 = vxor.u32 %v6123, 2147483648
      %v6156 = vxor.u32 %v6124, 2147483648
      %v6157 = vxor.u32 %v6125, 2147483648
      %v6158 = vxor.u32 %v6126, 2147483648
      %v6159 = vxor.u32 %v6127, 2147483648
      %v6160 = vxor.u32 %v6128, 2147483648
      %v6161 = vxor.u32 %v6129, 2147483648
      %v6162 = vxor.u32 %v6130, 2147483648
      %v6163 = vxor.u32 %v6131, 2147483648
      %v6164 = vxor.u32 %v6132, 2147483648
      %v6165 = vxor.u32 %v6133, 2147483648
      %v6166 = vxor.u32 %v6134, 2147483648
      %v6167 = vxor.u32 %v6135, 2147483648
      %v6168 = vxor.u32 %v6136, 2147483648
      %v6169 = vxor.u32 %v6137, 2147483648
      %v6170 = vxor.u32 %v6138, 2147483648
      %v6171 = vxor.u32 %v6139, 2147483648
      %v6172 = vmul.f32 %v6140, 1.442695
      %v6173 = vpow.pop %v6172
      %v6174 = vmul.f32 %v6141, 1.442695
      %v6175 = vpow.pop %v6174
      %v6176 = vmul.f32 %v6142, 1.442695
      %v6177 = vpow.pop %v6176
      %v6178 = vmul.f32 %v6143, 1.442695
      %v6179 = vpow.pop %v6178
      %v6180 = vmul.f32 %v6144, 1.442695
      %v6181 = vpow.pop %v6180
      %v6182 = vmul.f32 %v6145, 1.442695
      %v6183 = vpow.pop %v6182
      %v6184 = vmul.f32 %v6146, 1.442695
      %v6185 = vpow.pop %v6184
      %v6186 = vmul.f32 %v6147, 1.442695
      %v6187 = vpow.pop %v6186
      %v6188 = vmul.f32 %v6148, 1.442695
      %v6189 = vpow.pop %v6188
      %v6190 = vmul.f32 %v6149, 1.442695
      %v6191 = vpow.pop %v6190
      %v6192 = vmul.f32 %v6150, 1.442695
      %v6193 = vpow.pop %v6192
      %v6194 = vmul.f32 %v6151, 1.442695
      %v6195 = vpow.pop %v6194
      %v6196 = vmul.f32 %v6152, 1.442695
      %v6197 = vpow.pop %v6196
      %v6198 = vmul.f32 %v6153, 1.442695
      %v6199 = vpow.pop %v6198
      %v6200 = vmul.f32 %v6154, 1.442695
      %v6201 = vpow.pop %v6200
      %v6202 = vmul.f32 %v6155, 1.442695
      %v6203 = vpow.pop %v6202
      %v6204 = vmul.f32 %v6156, 1.442695
      %v6205 = vpow.pop %v6204
      %v6206 = vmul.f32 %v6157, 1.442695
      %v6207 = vpow.pop %v6206
      %v6208 = vmul.f32 %v6158, 1.442695
      %v6209 = vpow.pop %v6208
      %v6210 = vmul.f32 %v6159, 1.442695
      %v6211 = vpow.pop %v6210
      %v6212 = vmul.f32 %v6160, 1.442695
      %v6213 = vpow.pop %v6212
      %v6214 = vmul.f32 %v6161, 1.442695
      %v6215 = vpow.pop %v6214
      %v6216 = vmul.f32 %v6162, 1.442695
      %v6217 = vpow.pop %v6216
      %v6218 = vmul.f32 %v6163, 1.442695
      %v6219 = vpow.pop %v6218
      %v6220 = vmul.f32 %v6164, 1.442695
      %v6221 = vpow.pop %v6220
      %v6222 = vmul.f32 %v6165, 1.442695
      %v6223 = vpow.pop %v6222
      %v6224 = vmul.f32 %v6166, 1.442695
      %v6225 = vpow.pop %v6224
      %v6226 = vmul.f32 %v6167, 1.442695
      %v6227 = vpow.pop %v6226
      %v6228 = vmul.f32 %v6168, 1.442695
      %v6229 = vpow.pop %v6228
      %v6230 = vmul.f32 %v6169, 1.442695
      %v6231 = vpow.pop %v6230
      %v6232 = vmul.f32 %v6170, 1.442695
      %v6233 = vpow.pop %v6232
      %v6234 = vmul.f32 %v6171, 1.442695
      %v6235 = vpow.pop %v6234
      %v6236 = vadd.f32 %v6173, 1.0
      %v6237 = vadd.f32 %v6175, 1.0
      %v6238 = vadd.f32 %v6177, 1.0
      %v6239 = vadd.f32 %v6179, 1.0
      %v6240 = vadd.f32 %v6181, 1.0
      %v6241 = vadd.f32 %v6183, 1.0
      %v6242 = vadd.f32 %v6185, 1.0
      %v6243 = vadd.f32 %v6187, 1.0
      %v6244 = vadd.f32 %v6189, 1.0
      %v6245 = vadd.f32 %v6191, 1.0
      %v6246 = vadd.f32 %v6193, 1.0
      %v6247 = vadd.f32 %v6195, 1.0
      %v6248 = vadd.f32 %v6197, 1.0
      %v6249 = vadd.f32 %v6199, 1.0
      %v6250 = vadd.f32 %v6201, 1.0
      %v6251 = vadd.f32 %v6203, 1.0
      %v6252 = vadd.f32 %v6205, 1.0
      %v6253 = vadd.f32 %v6207, 1.0
      %v6254 = vadd.f32 %v6209, 1.0
      %v6255 = vadd.f32 %v6211, 1.0
      %v6256 = vadd.f32 %v6213, 1.0
      %v6257 = vadd.f32 %v6215, 1.0
      %v6258 = vadd.f32 %v6217, 1.0
      %v6259 = vadd.f32 %v6219, 1.0
      %v6260 = vadd.f32 %v6221, 1.0
      %v6261 = vadd.f32 %v6223, 1.0
      %v6262 = vadd.f32 %v6225, 1.0
      %v6263 = vadd.f32 %v6227, 1.0
      %v6264 = vadd.f32 %v6229, 1.0
      %v6265 = vadd.f32 %v6231, 1.0
      %v6266 = vadd.f32 %v6233, 1.0
      %v6267 = vadd.f32 %v6235, 1.0
      %v6268 = vrcp.pop %v6236
      %v6269 = vmul.f32 1.0, %v6268
      %v6270 = vrcp.pop %v6237
      %v6271 = vmul.f32 1.0, %v6270
      %v6272 = vrcp.pop %v6238
      %v6273 = vmul.f32 1.0, %v6272
      %v6274 = vrcp.pop %v6239
      %v6275 = vmul.f32 1.0, %v6274
      %v6276 = vrcp.pop %v6240
      %v6277 = vmul.f32 1.0, %v6276
      %v6278 = vrcp.pop %v6241
      %v6279 = vmul.f32 1.0, %v6278
      %v6280 = vrcp.pop %v6242
      %v6281 = vmul.f32 1.0, %v6280
      %v6282 = vrcp.pop %v6243
      %v6283 = vmul.f32 1.0, %v6282
      %v6284 = vrcp.pop %v6244
      %v6285 = vmul.f32 1.0, %v6284
      %v6286 = vrcp.pop %v6245
      %v6287 = vmul.f32 1.0, %v6286
      %v6288 = vrcp.pop %v6246
      %v6289 = vmul.f32 1.0, %v6288
      %v6290 = vrcp.pop %v6247
      %v6291 = vmul.f32 1.0, %v6290
      %v6292 = vrcp.pop %v6248
      %v6293 = vmul.f32 1.0, %v6292
      %v6294 = vrcp.pop %v6249
      %v6295 = vmul.f32 1.0, %v6294
      %v6296 = vrcp.pop %v6250
      %v6297 = vmul.f32 1.0, %v6296
      %v6298 = vrcp.pop %v6251
      %v6299 = vmul.f32 1.0, %v6298
      %v6300 = vrcp.pop %v6252
      %v6301 = vmul.f32 1.0, %v6300
      %v6302 = vrcp.pop %v6253
      %v6303 = vmul.f32 1.0, %v6302
      %v6304 = vrcp.pop %v6254
      %v6305 = vmul.f32 1.0, %v6304
      %v6306 = vrcp.pop %v6255
      %v6307 = vmul.f32 1.0, %v6306
      %v6308 = vrcp.pop %v6256
      %v6309 = vmul.f32 1.0, %v6308
      %v6310 = vrcp.pop %v6257
      %v6311 = vmul.f32 1.0, %v6310
      %v6312 = vrcp.pop %v6258
      %v6313 = vmul.f32 1.0, %v6312
      %v6314 = vrcp.pop %v6259
      %v6315 = vmul.f32 1.0, %v6314
      %v6316 = vrcp.pop %v6260
      %v6317 = vmul.f32 1.0, %v6316
      %v6318 = vrcp.pop %v6261
      %v6319 = vmul.f32 1.0, %v6318
      %v6320 = vrcp.pop %v6262
      %v6321 = vmul.f32 1.0, %v6320
      %v6322 = vrcp.pop %v6263
      %v6323 = vmul.f32 1.0, %v6322
      %v6324 = vrcp.pop %v6264
      %v6325 = vmul.f32 1.0, %v6324
      %v6326 = vrcp.pop %v6265
      %v6327 = vmul.f32 1.0, %v6326
      %v6328 = vrcp.pop %v6266
      %v6329 = vmul.f32 1.0, %v6328
      %v6330 = vrcp.pop %v6267
      %v6331 = vmul.f32 1.0, %v6330
      %v6332 = vmul.f32 %v6108, %v6269
      %v6333 = vmul.f32 %v6109, %v6271
      %v6334 = vmul.f32 %v6110, %v6273
      %v6335 = vmul.f32 %v6111, %v6275
      %v6336 = vmul.f32 %v6112, %v6277
      %v6337 = vmul.f32 %v6113, %v6279
      %v6338 = vmul.f32 %v6114, %v6281
      %v6339 = vmul.f32 %v6115, %v6283
      %v6340 = vmul.f32 %v6116, %v6285
      %v6341 = vmul.f32 %v6117, %v6287
      %v6342 = vmul.f32 %v6118, %v6289
      %v6343 = vmul.f32 %v6119, %v6291
      %v6344 = vmul.f32 %v6120, %v6293
      %v6345 = vmul.f32 %v6121, %v6295
      %v6346 = vmul.f32 %v6122, %v6297
      %v6347 = vmul.f32 %v6123, %v6299
      %v6348 = vmul.f32 %v6124, %v6301
      %v6349 = vmul.f32 %v6125, %v6303
      %v6350 = vmul.f32 %v6126, %v6305
      %v6351 = vmul.f32 %v6127, %v6307
      %v6352 = vmul.f32 %v6128, %v6309
      %v6353 = vmul.f32 %v6129, %v6311
      %v6354 = vmul.f32 %v6130, %v6313
      %v6355 = vmul.f32 %v6131, %v6315
      %v6356 = vmul.f32 %v6132, %v6317
      %v6357 = vmul.f32 %v6133, %v6319
      %v6358 = vmul.f32 %v6134, %v6321
      %v6359 = vmul.f32 %v6135, %v6323
      %v6360 = vmul.f32 %v6136, %v6325
      %v6361 = vmul.f32 %v6137, %v6327
      %v6362 = vmul.f32 %v6138, %v6329
      %v6363 = vmul.f32 %v6139, %v6331
      %v6364 = vadd.f32 %v3657, %v6332
      %v6365 = vadd.f32 %v3658, %v6333
      %v6366 = vadd.f32 %v3659, %v6334
      %v6367 = vadd.f32 %v3660, %v6335
      %v6368 = vadd.f32 %v3661, %v6336
      %v6369 = vadd.f32 %v3662, %v6337
      %v6370 = vadd.f32 %v3663, %v6338
      %v6371 = vadd.f32 %v3664, %v6339
      %v6372 = vadd.f32 %v3665, %v6340
      %v6373 = vadd.f32 %v3666, %v6341
      %v6374 = vadd.f32 %v3667, %v6342
      %v6375 = vadd.f32 %v3668, %v6343
      %v6376 = vadd.f32 %v3669, %v6344
      %v6377 = vadd.f32 %v3670, %v6345
      %v6378 = vadd.f32 %v3671, %v6346
      %v6379 = vadd.f32 %v3672, %v6347
      %v6380 = vadd.f32 %v3673, %v6348
      %v6381 = vadd.f32 %v3674, %v6349
      %v6382 = vadd.f32 %v3675, %v6350
      %v6383 = vadd.f32 %v3676, %v6351
      %v6384 = vadd.f32 %v3677, %v6352
      %v6385 = vadd.f32 %v3678, %v6353
      %v6386 = vadd.f32 %v3679, %v6354
      %v6387 = vadd.f32 %v3680, %v6355
      %v6388 = vadd.f32 %v3681, %v6356
      %v6389 = vadd.f32 %v3682, %v6357
      %v6390 = vadd.f32 %v3683, %v6358
      %v6391 = vadd.f32 %v3684, %v6359
      %v6392 = vadd.f32 %v3685, %v6360
      %v6393 = vadd.f32 %v3686, %v6361
      %v6394 = vadd.f32 %v3687, %v6362
      %v6395 = vadd.f32 %v3688, %v6363
      %v6396 = vld [vmem:[%s7] sm:$0x3]
      %v6397 = vpack.c.bf16 %v6365, %v6364
      %v6398 = vpack.c.bf16 %v6367, %v6366
      %v6399 = vpack.c.bf16 %v6369, %v6368
      %v6400 = vpack.c.bf16 %v6371, %v6370
      %v6401 = vpack.c.bf16 %v6373, %v6372
      %v6402 = vpack.c.bf16 %v6375, %v6374
      %v6403 = vpack.c.bf16 %v6377, %v6376
      %v6404 = vpack.c.bf16 %v6379, %v6378
      %v6405 = vpack.c.bf16 %v6381, %v6380
      %v6406 = vpack.c.bf16 %v6383, %v6382
      %v6407 = vpack.c.bf16 %v6385, %v6384
      %v6408 = vpack.c.bf16 %v6387, %v6386
      %v6409 = vpack.c.bf16 %v6389, %v6388
      %v6410 = vpack.c.bf16 %v6391, %v6390
      %v6411 = vpack.c.bf16 %v6393, %v6392
      %v6412 = vpack.c.bf16 %v6395, %v6394
      %v6413 = vld [vmem:[%s8] sm:$0x3]
      %6430 = vrot.lane.b32.xlu0 %v977, 124
      %v6431 = vpop.permute.xlu0 %6430
      %6432 = vrot.lane.b32.xlu0 %v978, 124
      %v6433 = vpop.permute.xlu0 %6432
      %6434 = vrot.lane.b32.xlu0 %v979, 124
      %v6435 = vpop.permute.xlu0 %6434
      %6436 = vrot.lane.b32.xlu0 %v980, 124
      %v6437 = vpop.permute.xlu0 %6436
      %6438 = vrot.lane.b32.xlu0 %v981, 124
      %v6439 = vpop.permute.xlu0 %6438
      %6440 = vrot.lane.b32.xlu0 %v982, 124
      %v6441 = vpop.permute.xlu0 %6440
      %6442 = vrot.lane.b32.xlu0 %v983, 124
      %v6443 = vpop.permute.xlu0 %6442
      %6444 = vrot.lane.b32.xlu0 %v984, 124
      %v6445 = vpop.permute.xlu0 %6444
      %6446 = vrot.lane.b32.xlu0 %v985, 124
      %v6447 = vpop.permute.xlu0 %6446
      %6448 = vrot.lane.b32.xlu0 %v986, 124
      %v6449 = vpop.permute.xlu0 %6448
      %6450 = vrot.lane.b32.xlu0 %v987, 124
      %v6451 = vpop.permute.xlu0 %6450
      %6452 = vrot.lane.b32.xlu0 %v988, 124
      %v6453 = vpop.permute.xlu0 %6452
      %6454 = vrot.lane.b32.xlu0 %v989, 124
      %v6455 = vpop.permute.xlu0 %6454
      %6456 = vrot.lane.b32.xlu0 %v990, 124
      %v6457 = vpop.permute.xlu0 %6456
      %6458 = vrot.lane.b32.xlu0 %v991, 124
      %v6459 = vpop.permute.xlu0 %6458
      %6460 = vrot.lane.b32.xlu0 %v992, 124
      %v6461 = vpop.permute.xlu0 %6460
      %v6463 = vsel %vm361, %v6431, 0
      %v6466 = vsel %vm361, %v6433, 0
      %v6469 = vsel %vm361, %v6435, 0
      %v6472 = vsel %vm361, %v6437, 0
      %v6475 = vsel %vm361, %v6439, 0
      %v6478 = vsel %vm361, %v6441, 0
      %v6481 = vsel %vm361, %v6443, 0
      %v6484 = vsel %vm361, %v6445, 0
      %v6487 = vsel %vm361, %v6447, 0
      %v6490 = vsel %vm361, %v6449, 0
      %v6493 = vsel %vm361, %v6451, 0
      %v6496 = vsel %vm361, %v6453, 0
      %v6499 = vsel %vm361, %v6455, 0
      %v6502 = vsel %vm361, %v6457, 0
      %v6505 = vsel %vm361, %v6459, 0
      %v6508 = vsel %vm361, %v6461, 0
      %v6511 = vsel %vm514, %v6413, 0
      %6513 = vmatprep.subr.bf16.mxu0 0
      %6514 = vmatpush1.bf16.msra.mxu0 %v6511
      %6515 = vmatprep.subr.bf16.mxu0 0
      %6516 = vmatpush1.bf16.msra.mxu0 0
      %6517 = vmatprep.subr.bf16.mxu0 0
      %6518 = vmatpush1.bf16.msra.mxu0 0
      %6519 = vmatprep.subr.bf16.mxu0 0
      %6520 = vmatpush1.bf16.msra.mxu0 0
      %6521 = vmatprep.subr.bf16.mxu0 0
      %6522 = vmatpush1.bf16.msra.mxu0 0
      %6523 = vmatprep.subr.bf16.mxu0 0
      %6524 = vmatpush1.bf16.msra.mxu0 0
      %6525 = vmatprep.subr.bf16.mxu0 0
      %6526 = vmatpush1.bf16.msra.mxu0 0
      %6527 = vmatprep.subr.bf16.mxu0 0
      %6528 = vmatpush1.bf16.msra.mxu0 0
      %6529 = vmatprep.subr.bf16.mxu0 0
      %6530 = vmatpush1.bf16.msra.mxu0 0
      %6531 = vmatprep.subr.bf16.mxu0 0
      %6532 = vmatpush1.bf16.msra.mxu0 0
      %6533 = vmatprep.subr.bf16.mxu0 0
      %6534 = vmatpush1.bf16.msra.mxu0 0
      %6535 = vmatprep.subr.bf16.mxu0 0
      %6536 = vmatpush1.bf16.msra.mxu0 0
      %6537 = vmatprep.subr.bf16.mxu0 0
      %6538 = vmatpush1.bf16.msra.mxu0 0
      %6539 = vmatprep.subr.bf16.mxu0 0
      %6540 = vmatpush1.bf16.msra.mxu0 0
      %6541 = vmatprep.subr.bf16.mxu0 0
      %6542 = vmatpush1.bf16.msra.mxu0 0
      %6543 = vmatprep.subr.bf16.mxu0 0
      %6544 = vmatpush1.bf16.msra.mxu0 0
      %6545 = vmatprep.mubr.bf16.mxu0 0
      %6546 = vmatmul.mubr.bf16.gmra.mrb[0].mxu0 %v6463
      %v6547 = vpop.f32.mrb[0].mxu0
      %v6548 = vadd.f32 0.0, %v6547
      %v6549 = vpop.f32.mrb[0].mxu0
      %v6550 = vpop.f32.mrb[0].mxu0
      %v6551 = vadd.f32 0.0, %v6550
      %v6552 = vpop.f32.mrb[0].mxu0
      %6553 = vmatprep.mubr.bf16.mxu0 0
      %6554 = vmatmul.mubr.bf16.gmra.mrb[0].mxu0 %v6466
      %v6555 = vpop.f32.mrb[0].mxu0
      %v6556 = vadd.f32 0.0, %v6555
      %v6557 = vpop.f32.mrb[0].mxu0
      %v6558 = vpop.f32.mrb[0].mxu0
      %v6559 = vadd.f32 0.0, %v6558
      %v6560 = vpop.f32.mrb[0].mxu0
      %6561 = vmatprep.mubr.bf16.mxu0 0
      %6562 = vmatmul.mubr.bf16.gmra.mrb[0].mxu0 %v6469
      %v6563 = vpop.f32.mrb[0].mxu0
      %v6564 = vadd.f32 0.0, %v6563
      %v6565 = vpop.f32.mrb[0].mxu0
      %v6566 = vpop.f32.mrb[0].mxu0
      %v6567 = vadd.f32 0.0, %v6566
      %v6568 = vpop.f32.mrb[0].mxu0
      %6569 = vmatprep.mubr.bf16.mxu0 0
      %6570 = vmatmul.mubr.bf16.gmra.mrb[0].mxu0 %v6472
      %v6571 = vpop.f32.mrb[0].mxu0
      %v6572 = vadd.f32 0.0, %v6571
      %v6573 = vpop.f32.mrb[0].mxu0
      %v6574 = vpop.f32.mrb[0].mxu0
      %v6575 = vadd.f32 0.0, %v6574
      %v6576 = vpop.f32.mrb[0].mxu0
      %6577 = vmatprep.mubr.bf16.mxu0 0
      %6578 = vmatmul.mubr.bf16.gmra.mrb[0].mxu0 %v6475
      %v6579 = vpop.f32.mrb[0].mxu0
      %v6580 = vadd.f32 0.0, %v6579
      %v6581 = vpop.f32.mrb[0].mxu0
      %v6582 = vpop.f32.mrb[0].mxu0
      %v6583 = vadd.f32 0.0, %v6582
      %v6584 = vpop.f32.mrb[0].mxu0
      %6585 = vmatprep.mubr.bf16.mxu0 0
      %6586 = vmatmul.mubr.bf16.gmra.mrb[0].mxu0 %v6478
      %v6587 = vpop.f32.mrb[0].mxu0
      %v6588 = vadd.f32 0.0, %v6587
      %v6589 = vpop.f32.mrb[0].mxu0
      %v6590 = vpop.f32.mrb[0].mxu0
      %v6591 = vadd.f32 0.0, %v6590
      %v6592 = vpop.f32.mrb[0].mxu0
      %6593 = vmatprep.mubr.bf16.mxu0 0
      %6594 = vmatmul.mubr.bf16.gmra.mrb[0].mxu0 %v6481
      %v6595 = vpop.f32.mrb[0].mxu0
      %v6596 = vadd.f32 0.0, %v6595
      %v6597 = vpop.f32.mrb[0].mxu0
      %v6598 = vpop.f32.mrb[0].mxu0
      %v6599 = vadd.f32 0.0, %v6598
      %v6600 = vpop.f32.mrb[0].mxu0
      %6601 = vmatprep.mubr.bf16.mxu0 0
      %6602 = vmatmul.mubr.bf16.gmra.mrb[0].mxu0 %v6484
      %v6603 = vpop.f32.mrb[0].mxu0
      %v6604 = vadd.f32 0.0, %v6603
      %v6605 = vpop.f32.mrb[0].mxu0
      %v6606 = vpop.f32.mrb[0].mxu0
      %v6607 = vadd.f32 0.0, %v6606
      %v6608 = vpop.f32.mrb[0].mxu0
      %6609 = vmatprep.mubr.bf16.mxu0 0
      %6610 = vmatmul.mubr.bf16.gmra.mrb[0].mxu0 %v6487
      %v6611 = vpop.f32.mrb[0].mxu0
      %v6612 = vadd.f32 0.0, %v6611
      %v6613 = vpop.f32.mrb[0].mxu0
      %v6614 = vpop.f32.mrb[0].mxu0
      %v6615 = vadd.f32 0.0, %v6614
      %v6616 = vpop.f32.mrb[0].mxu0
      %6617 = vmatprep.mubr.bf16.mxu0 0
      %6618 = vmatmul.mubr.bf16.gmra.mrb[0].mxu0 %v6490
      %v6619 = vpop.f32.mrb[0].mxu0
      %v6620 = vadd.f32 0.0, %v6619
      %v6621 = vpop.f32.mrb[0].mxu0
      %v6622 = vpop.f32.mrb[0].mxu0
      %v6623 = vadd.f32 0.0, %v6622
      %v6624 = vpop.f32.mrb[0].mxu0
      %6625 = vmatprep.mubr.bf16.mxu0 0
      %6626 = vmatmul.mubr.bf16.gmra.mrb[0].mxu0 %v6493
      %v6627 = vpop.f32.mrb[0].mxu0
      %v6628 = vadd.f32 0.0, %v6627
      %v6629 = vpop.f32.mrb[0].mxu0
      %v6630 = vpop.f32.mrb[0].mxu0
      %v6631 = vadd.f32 0.0, %v6630
      %v6632 = vpop.f32.mrb[0].mxu0
      %6633 = vmatprep.mubr.bf16.mxu0 0
      %6634 = vmatmul.mubr.bf16.gmra.mrb[0].mxu0 %v6496
      %v6635 = vpop.f32.mrb[0].mxu0
      %v6636 = vadd.f32 0.0, %v6635
      %v6637 = vpop.f32.mrb[0].mxu0
      %v6638 = vpop.f32.mrb[0].mxu0
      %v6639 = vadd.f32 0.0, %v6638
      %v6640 = vpop.f32.mrb[0].mxu0
      %6641 = vmatprep.mubr.bf16.mxu0 0
      %6642 = vmatmul.mubr.bf16.gmra.mrb[0].mxu0 %v6499
      %v6643 = vpop.f32.mrb[0].mxu0
      %v6644 = vadd.f32 0.0, %v6643
      %v6645 = vpop.f32.mrb[0].mxu0
      %v6646 = vpop.f32.mrb[0].mxu0
      %v6647 = vadd.f32 0.0, %v6646
      %v6648 = vpop.f32.mrb[0].mxu0
      %6649 = vmatprep.mubr.bf16.mxu0 0
      %6650 = vmatmul.mubr.bf16.gmra.mrb[0].mxu0 %v6502
      %v6651 = vpop.f32.mrb[0].mxu0
      %v6652 = vadd.f32 0.0, %v6651
      %v6653 = vpop.f32.mrb[0].mxu0
      %v6654 = vpop.f32.mrb[0].mxu0
      %v6655 = vadd.f32 0.0, %v6654
      %v6656 = vpop.f32.mrb[0].mxu0
      %6657 = vmatprep.mubr.bf16.mxu0 0
      %6658 = vmatmul.mubr.bf16.gmra.mrb[0].mxu0 %v6505
      %v6659 = vpop.f32.mrb[0].mxu0
      %v6660 = vadd.f32 0.0, %v6659
      %v6661 = vpop.f32.mrb[0].mxu0
      %v6662 = vpop.f32.mrb[0].mxu0
      %v6663 = vadd.f32 0.0, %v6662
      %v6664 = vpop.f32.mrb[0].mxu0
      %6665 = vmatprep.mubr.bf16.mxu0 0
      %6666 = vmatmul.mubr.bf16.gmra.mrb[0].mxu0 %v6508
      %v6667 = vpop.f32.mrb[0].mxu0
      %v6668 = vadd.f32 0.0, %v6667
      %v6669 = vpop.f32.mrb[0].mxu0
      %v6670 = vpop.f32.mrb[0].mxu0
      %v6671 = vadd.f32 0.0, %v6670
      %v6672 = vpop.f32.mrb[0].mxu0
      %6673 = vdwg.mxu0
      %v6675 = vsel %vm361, %v6397, 0
      %v6678 = vsel %vm361, %v6398, 0
      %v6681 = vsel %vm361, %v6399, 0
      %v6684 = vsel %vm361, %v6400, 0
      %v6687 = vsel %vm361, %v6401, 0
      %v6690 = vsel %vm361, %v6402, 0
      %v6693 = vsel %vm361, %v6403, 0
      %v6696 = vsel %vm361, %v6404, 0
      %v6699 = vsel %vm361, %v6405, 0
      %v6702 = vsel %vm361, %v6406, 0
      %v6705 = vsel %vm361, %v6407, 0
      %v6708 = vsel %vm361, %v6408, 0
      %v6711 = vsel %vm361, %v6409, 0
      %v6714 = vsel %vm361, %v6410, 0
      %v6717 = vsel %vm361, %v6411, 0
      %v6720 = vsel %vm361, %v6412, 0
      %v6723 = vsel %vm514, %v6396, 0
      %6725 = vmatprep.subr.bf16.mxu0 0
      %6726 = vmatpush1.bf16.msra.mxu0 %v6723
      %6727 = vmatprep.subr.bf16.mxu0 0
      %6728 = vmatpush1.bf16.msra.mxu0 0
      %6729 = vmatprep.subr.bf16.mxu0 0
      %6730 = vmatpush1.bf16.msra.mxu0 0
      %6731 = vmatprep.subr.bf16.mxu0 0
      %6732 = vmatpush1.bf16.msra.mxu0 0
      %6733 = vmatprep.subr.bf16.mxu0 0
      %6734 = vmatpush1.bf16.msra.mxu0 0
      %6735 = vmatprep.subr.bf16.mxu0 0
      %6736 = vmatpush1.bf16.msra.mxu0 0
      %6737 = vmatprep.subr.bf16.mxu0 0
      %6738 = vmatpush1.bf16.msra.mxu0 0
      %6739 = vmatprep.subr.bf16.mxu0 0
      %6740 = vmatpush1.bf16.msra.mxu0 0
      %6741 = vmatprep.subr.bf16.mxu0 0
      %6742 = vmatpush1.bf16.msra.mxu0 0
      %6743 = vmatprep.subr.bf16.mxu0 0
      %6744 = vmatpush1.bf16.msra.mxu0 0
      %6745 = vmatprep.subr.bf16.mxu0 0
      %6746 = vmatpush1.bf16.msra.mxu0 0
      %6747 = vmatprep.subr.bf16.mxu0 0
      %6748 = vmatpush1.bf16.msra.mxu0 0
      %6749 = vmatprep.subr.bf16.mxu0 0
      %6750 = vmatpush1.bf16.msra.mxu0 0
      %6751 = vmatprep.subr.bf16.mxu0 0
      %6752 = vmatpush1.bf16.msra.mxu0 0
      %6753 = vmatprep.subr.bf16.mxu0 0
      %6754 = vmatpush1.bf16.msra.mxu0 0
      %6755 = vmatprep.subr.bf16.mxu0 0
      %6756 = vmatpush1.bf16.msra.mxu0 0
      %6757 = vmatprep.mubr.bf16.mxu0 0
      %6758 = vmatmul.mubr.bf16.gmra.mrb[0].mxu0 %v6675
      %v6759 = vpop.f32.mrb[0].mxu0
      %v6760 = vadd.f32 %v6548, %v6759
      %v6761 = vpop.f32.mrb[0].mxu0
      %v6762 = vpop.f32.mrb[0].mxu0
      %v6763 = vadd.f32 %v6551, %v6762
      %v6764 = vpop.f32.mrb[0].mxu0
      %6765 = vmatprep.mubr.bf16.mxu0 0
      %6766 = vmatmul.mubr.bf16.gmra.mrb[0].mxu0 %v6678
      %v6767 = vpop.f32.mrb[0].mxu0
      %v6768 = vadd.f32 %v6556, %v6767
      %v6769 = vpop.f32.mrb[0].mxu0
      %v6770 = vpop.f32.mrb[0].mxu0
      %v6771 = vadd.f32 %v6559, %v6770
      %v6772 = vpop.f32.mrb[0].mxu0
      %6773 = vmatprep.mubr.bf16.mxu0 0
      %6774 = vmatmul.mubr.bf16.gmra.mrb[0].mxu0 %v6681
      %v6775 = vpop.f32.mrb[0].mxu0
      %v6776 = vadd.f32 %v6564, %v6775
      %v6777 = vpop.f32.mrb[0].mxu0
      %v6778 = vpop.f32.mrb[0].mxu0
      %v6779 = vadd.f32 %v6567, %v6778
      %v6780 = vpop.f32.mrb[0].mxu0
      %6781 = vmatprep.mubr.bf16.mxu0 0
      %6782 = vmatmul.mubr.bf16.gmra.mrb[0].mxu0 %v6684
      %v6783 = vpop.f32.mrb[0].mxu0
      %v6784 = vadd.f32 %v6572, %v6783
      %v6785 = vpop.f32.mrb[0].mxu0
      %v6786 = vpop.f32.mrb[0].mxu0
      %v6787 = vadd.f32 %v6575, %v6786
      %v6788 = vpop.f32.mrb[0].mxu0
      %6789 = vmatprep.mubr.bf16.mxu0 0
      %6790 = vmatmul.mubr.bf16.gmra.mrb[0].mxu0 %v6687
      %v6791 = vpop.f32.mrb[0].mxu0
      %v6792 = vadd.f32 %v6580, %v6791
      %v6793 = vpop.f32.mrb[0].mxu0
      %v6794 = vpop.f32.mrb[0].mxu0
      %v6795 = vadd.f32 %v6583, %v6794
      %v6796 = vpop.f32.mrb[0].mxu0
      %6797 = vmatprep.mubr.bf16.mxu0 0
      %6798 = vmatmul.mubr.bf16.gmra.mrb[0].mxu0 %v6690
      %v6799 = vpop.f32.mrb[0].mxu0
      %v6800 = vadd.f32 %v6588, %v6799
      %v6801 = vpop.f32.mrb[0].mxu0
      %v6802 = vpop.f32.mrb[0].mxu0
      %v6803 = vadd.f32 %v6591, %v6802
      %v6804 = vpop.f32.mrb[0].mxu0
      %6805 = vmatprep.mubr.bf16.mxu0 0
      %6806 = vmatmul.mubr.bf16.gmra.mrb[0].mxu0 %v6693
      %v6807 = vpop.f32.mrb[0].mxu0
      %v6808 = vadd.f32 %v6596, %v6807
      %v6809 = vpop.f32.mrb[0].mxu0
      %v6810 = vpop.f32.mrb[0].mxu0
      %v6811 = vadd.f32 %v6599, %v6810
      %v6812 = vpop.f32.mrb[0].mxu0
      %6813 = vmatprep.mubr.bf16.mxu0 0
      %6814 = vmatmul.mubr.bf16.gmra.mrb[0].mxu0 %v6696
      %v6815 = vpop.f32.mrb[0].mxu0
      %v6816 = vadd.f32 %v6604, %v6815
      %v6817 = vpop.f32.mrb[0].mxu0
      %v6818 = vpop.f32.mrb[0].mxu0
      %v6819 = vadd.f32 %v6607, %v6818
      %v6820 = vpop.f32.mrb[0].mxu0
      %6821 = vmatprep.mubr.bf16.mxu0 0
      %6822 = vmatmul.mubr.bf16.gmra.mrb[0].mxu0 %v6699
      %v6823 = vpop.f32.mrb[0].mxu0
      %v6824 = vadd.f32 %v6612, %v6823
      %v6825 = vpop.f32.mrb[0].mxu0
      %v6826 = vpop.f32.mrb[0].mxu0
      %v6827 = vadd.f32 %v6615, %v6826
      %v6828 = vpop.f32.mrb[0].mxu0
      %6829 = vmatprep.mubr.bf16.mxu0 0
      %6830 = vmatmul.mubr.bf16.gmra.mrb[0].mxu0 %v6702
      %v6831 = vpop.f32.mrb[0].mxu0
      %v6832 = vadd.f32 %v6620, %v6831
      %v6833 = vpop.f32.mrb[0].mxu0
      %v6834 = vpop.f32.mrb[0].mxu0
      %v6835 = vadd.f32 %v6623, %v6834
      %v6836 = vpop.f32.mrb[0].mxu0
      %6837 = vmatprep.mubr.bf16.mxu0 0
      %6838 = vmatmul.mubr.bf16.gmra.mrb[0].mxu0 %v6705
      %v6839 = vpop.f32.mrb[0].mxu0
      %v6840 = vadd.f32 %v6628, %v6839
      %v6841 = vpop.f32.mrb[0].mxu0
      %v6842 = vpop.f32.mrb[0].mxu0
      %v6843 = vadd.f32 %v6631, %v6842
      %v6844 = vpop.f32.mrb[0].mxu0
      %6845 = vmatprep.mubr.bf16.mxu0 0
      %6846 = vmatmul.mubr.bf16.gmra.mrb[0].mxu0 %v6708
      %v6847 = vpop.f32.mrb[0].mxu0
      %v6848 = vadd.f32 %v6636, %v6847
      %v6849 = vpop.f32.mrb[0].mxu0
      %v6850 = vpop.f32.mrb[0].mxu0
      %v6851 = vadd.f32 %v6639, %v6850
      %v6852 = vpop.f32.mrb[0].mxu0
      %6853 = vmatprep.mubr.bf16.mxu0 0
      %6854 = vmatmul.mubr.bf16.gmra.mrb[0].mxu0 %v6711
      %v6855 = vpop.f32.mrb[0].mxu0
      %v6856 = vadd.f32 %v6644, %v6855
      %v6857 = vpop.f32.mrb[0].mxu0
      %v6858 = vpop.f32.mrb[0].mxu0
      %v6859 = vadd.f32 %v6647, %v6858
      %v6860 = vpop.f32.mrb[0].mxu0
      %6861 = vmatprep.mubr.bf16.mxu0 0
      %6862 = vmatmul.mubr.bf16.gmra.mrb[0].mxu0 %v6714
      %v6863 = vpop.f32.mrb[0].mxu0
      %v6864 = vadd.f32 %v6652, %v6863
      %v6865 = vpop.f32.mrb[0].mxu0
      %v6866 = vpop.f32.mrb[0].mxu0
      %v6867 = vadd.f32 %v6655, %v6866
      %v6868 = vpop.f32.mrb[0].mxu0
      %6869 = vmatprep.mubr.bf16.mxu0 0
      %6870 = vmatmul.mubr.bf16.gmra.mrb[0].mxu0 %v6717
      %v6871 = vpop.f32.mrb[0].mxu0
      %v6872 = vadd.f32 %v6660, %v6871
      %v6873 = vpop.f32.mrb[0].mxu0
      %v6874 = vpop.f32.mrb[0].mxu0
      %v6875 = vadd.f32 %v6663, %v6874
      %v6876 = vpop.f32.mrb[0].mxu0
      %6877 = vmatprep.mubr.bf16.mxu0 0
      %6878 = vmatmul.mubr.bf16.gmra.mrb[0].mxu0 %v6720
      %v6879 = vpop.f32.mrb[0].mxu0
      %v6880 = vadd.f32 %v6668, %v6879
      %v6881 = vpop.f32.mrb[0].mxu0
      %v6882 = vpop.f32.mrb[0].mxu0
      %v6883 = vadd.f32 %v6671, %v6882
      %v6884 = vpop.f32.mrb[0].mxu0
      %6885 = vdwg.mxu0
      %v6886 = vld [vmem:[%s9] sm:$0x3]
      %v6887 = vlaneseq
      %v6888 = vshrl.u32 %v6887, 7
      %v6889 = vsub.s32 0, %v6888
      %v6890 = vrot.slane %v6886, %v6889
      %v6891 = vmul.f32 %v6760, %v6890
      %v6892 = vmul.f32 %v6763, %v6890
      %v6893 = vmul.f32 %v6768, %v6890
      %v6894 = vmul.f32 %v6771, %v6890
      %v6895 = vmul.f32 %v6776, %v6890
      %v6896 = vmul.f32 %v6779, %v6890
      %v6897 = vmul.f32 %v6784, %v6890
      %v6898 = vmul.f32 %v6787, %v6890
      %v6899 = vmul.f32 %v6792, %v6890
      %v6900 = vmul.f32 %v6795, %v6890
      %v6901 = vmul.f32 %v6800, %v6890
      %v6902 = vmul.f32 %v6803, %v6890
      %v6903 = vmul.f32 %v6808, %v6890
      %v6904 = vmul.f32 %v6811, %v6890
      %v6905 = vmul.f32 %v6816, %v6890
      %v6906 = vmul.f32 %v6819, %v6890
      %v6907 = vmul.f32 %v6824, %v6890
      %v6908 = vmul.f32 %v6827, %v6890
      %v6909 = vmul.f32 %v6832, %v6890
      %v6910 = vmul.f32 %v6835, %v6890
      %v6911 = vmul.f32 %v6840, %v6890
      %v6912 = vmul.f32 %v6843, %v6890
      %v6913 = vmul.f32 %v6848, %v6890
      %v6914 = vmul.f32 %v6851, %v6890
      %v6915 = vmul.f32 %v6856, %v6890
      %v6916 = vmul.f32 %v6859, %v6890
      %v6917 = vmul.f32 %v6864, %v6890
      %v6918 = vmul.f32 %v6867, %v6890
      %v6919 = vmul.f32 %v6872, %v6890
      %v6920 = vmul.f32 %v6875, %v6890
      %v6921 = vmul.f32 %v6880, %v6890
      %v6922 = vmul.f32 %v6883, %v6890
      %v6923 = vlaneseq
      %v6924 = vshrl.u32 %v6923, 7
      %v6925 = vsub.s32 1, %v6924
      %v6926 = vrot.slane %v6886, %v6925
      %v6927 = vadd.f32 %v6891, %v6926
      %v6928 = vadd.f32 %v6892, %v6926
      %v6929 = vadd.f32 %v6893, %v6926
      %v6930 = vadd.f32 %v6894, %v6926
      %v6931 = vadd.f32 %v6895, %v6926
      %v6932 = vadd.f32 %v6896, %v6926
      %v6933 = vadd.f32 %v6897, %v6926
      %v6934 = vadd.f32 %v6898, %v6926
      %v6935 = vadd.f32 %v6899, %v6926
      %v6936 = vadd.f32 %v6900, %v6926
      %v6937 = vadd.f32 %v6901, %v6926
      %v6938 = vadd.f32 %v6902, %v6926
      %v6939 = vadd.f32 %v6903, %v6926
      %v6940 = vadd.f32 %v6904, %v6926
      %v6941 = vadd.f32 %v6905, %v6926
      %v6942 = vadd.f32 %v6906, %v6926
      %v6943 = vadd.f32 %v6907, %v6926
      %v6944 = vadd.f32 %v6908, %v6926
      %v6945 = vadd.f32 %v6909, %v6926
      %v6946 = vadd.f32 %v6910, %v6926
      %v6947 = vadd.f32 %v6911, %v6926
      %v6948 = vadd.f32 %v6912, %v6926
      %v6949 = vadd.f32 %v6913, %v6926
      %v6950 = vadd.f32 %v6914, %v6926
      %v6951 = vadd.f32 %v6915, %v6926
      %v6952 = vadd.f32 %v6916, %v6926
      %v6953 = vadd.f32 %v6917, %v6926
      %v6954 = vadd.f32 %v6918, %v6926
      %v6955 = vadd.f32 %v6919, %v6926
      %v6956 = vadd.f32 %v6920, %v6926
      %v6957 = vadd.f32 %v6921, %v6926
      %v6958 = vadd.f32 %v6922, %v6926
      %v6959 = vxor.u32 %v6927, 2147483648
      %v6960 = vxor.u32 %v6928, 2147483648
      %v6961 = vxor.u32 %v6929, 2147483648
      %v6962 = vxor.u32 %v6930, 2147483648
      %v6963 = vxor.u32 %v6931, 2147483648
      %v6964 = vxor.u32 %v6932, 2147483648
      %v6965 = vxor.u32 %v6933, 2147483648
      %v6966 = vxor.u32 %v6934, 2147483648
      %v6967 = vxor.u32 %v6935, 2147483648
      %v6968 = vxor.u32 %v6936, 2147483648
      %v6969 = vxor.u32 %v6937, 2147483648
      %v6970 = vxor.u32 %v6938, 2147483648
      %v6971 = vxor.u32 %v6939, 2147483648
      %v6972 = vxor.u32 %v6940, 2147483648
      %v6973 = vxor.u32 %v6941, 2147483648
      %v6974 = vxor.u32 %v6942, 2147483648
      %v6975 = vxor.u32 %v6943, 2147483648
      %v6976 = vxor.u32 %v6944, 2147483648
      %v6977 = vxor.u32 %v6945, 2147483648
      %v6978 = vxor.u32 %v6946, 2147483648
      %v6979 = vxor.u32 %v6947, 2147483648
      %v6980 = vxor.u32 %v6948, 2147483648
      %v6981 = vxor.u32 %v6949, 2147483648
      %v6982 = vxor.u32 %v6950, 2147483648
      %v6983 = vxor.u32 %v6951, 2147483648
      %v6984 = vxor.u32 %v6952, 2147483648
      %v6985 = vxor.u32 %v6953, 2147483648
      %v6986 = vxor.u32 %v6954, 2147483648
      %v6987 = vxor.u32 %v6955, 2147483648
      %v6988 = vxor.u32 %v6956, 2147483648
      %v6989 = vxor.u32 %v6957, 2147483648
      %v6990 = vxor.u32 %v6958, 2147483648
      %v6991 = vmul.f32 %v6959, 1.442695
      %v6992 = vpow.pop %v6991
      %v6993 = vmul.f32 %v6960, 1.442695
      %v6994 = vpow.pop %v6993
      %v6995 = vmul.f32 %v6961, 1.442695
      %v6996 = vpow.pop %v6995
      %v6997 = vmul.f32 %v6962, 1.442695
      %v6998 = vpow.pop %v6997
      %v6999 = vmul.f32 %v6963, 1.442695
      %v7000 = vpow.pop %v6999
      %v7001 = vmul.f32 %v6964, 1.442695
      %v7002 = vpow.pop %v7001
      %v7003 = vmul.f32 %v6965, 1.442695
      %v7004 = vpow.pop %v7003
      %v7005 = vmul.f32 %v6966, 1.442695
      %v7006 = vpow.pop %v7005
      %v7007 = vmul.f32 %v6967, 1.442695
      %v7008 = vpow.pop %v7007
      %v7009 = vmul.f32 %v6968, 1.442695
      %v7010 = vpow.pop %v7009
      %v7011 = vmul.f32 %v6969, 1.442695
      %v7012 = vpow.pop %v7011
      %v7013 = vmul.f32 %v6970, 1.442695
      %v7014 = vpow.pop %v7013
      %v7015 = vmul.f32 %v6971, 1.442695
      %v7016 = vpow.pop %v7015
      %v7017 = vmul.f32 %v6972, 1.442695
      %v7018 = vpow.pop %v7017
      %v7019 = vmul.f32 %v6973, 1.442695
      %v7020 = vpow.pop %v7019
      %v7021 = vmul.f32 %v6974, 1.442695
      %v7022 = vpow.pop %v7021
      %v7023 = vmul.f32 %v6975, 1.442695
      %v7024 = vpow.pop %v7023
      %v7025 = vmul.f32 %v6976, 1.442695
      %v7026 = vpow.pop %v7025
      %v7027 = vmul.f32 %v6977, 1.442695
      %v7028 = vpow.pop %v7027
      %v7029 = vmul.f32 %v6978, 1.442695
      %v7030 = vpow.pop %v7029
      %v7031 = vmul.f32 %v6979, 1.442695
      %v7032 = vpow.pop %v7031
      %v7033 = vmul.f32 %v6980, 1.442695
      %v7034 = vpow.pop %v7033
      %v7035 = vmul.f32 %v6981, 1.442695
      %v7036 = vpow.pop %v7035
      %v7037 = vmul.f32 %v6982, 1.442695
      %v7038 = vpow.pop %v7037
      %v7039 = vmul.f32 %v6983, 1.442695
      %v7040 = vpow.pop %v7039
      %v7041 = vmul.f32 %v6984, 1.442695
      %v7042 = vpow.pop %v7041
      %v7043 = vmul.f32 %v6985, 1.442695
      %v7044 = vpow.pop %v7043
      %v7045 = vmul.f32 %v6986, 1.442695
      %v7046 = vpow.pop %v7045
      %v7047 = vmul.f32 %v6987, 1.442695
      %v7048 = vpow.pop %v7047
      %v7049 = vmul.f32 %v6988, 1.442695
      %v7050 = vpow.pop %v7049
      %v7051 = vmul.f32 %v6989, 1.442695
      %v7052 = vpow.pop %v7051
      %v7053 = vmul.f32 %v6990, 1.442695
      %v7054 = vpow.pop %v7053
      %v7055 = vadd.f32 %v6992, 1.0
      %v7056 = vadd.f32 %v6994, 1.0
      %v7057 = vadd.f32 %v6996, 1.0
      %v7058 = vadd.f32 %v6998, 1.0
      %v7059 = vadd.f32 %v7000, 1.0
      %v7060 = vadd.f32 %v7002, 1.0
      %v7061 = vadd.f32 %v7004, 1.0
      %v7062 = vadd.f32 %v7006, 1.0
      %v7063 = vadd.f32 %v7008, 1.0
      %v7064 = vadd.f32 %v7010, 1.0
      %v7065 = vadd.f32 %v7012, 1.0
      %v7066 = vadd.f32 %v7014, 1.0
      %v7067 = vadd.f32 %v7016, 1.0
      %v7068 = vadd.f32 %v7018, 1.0
      %v7069 = vadd.f32 %v7020, 1.0
      %v7070 = vadd.f32 %v7022, 1.0
      %v7071 = vadd.f32 %v7024, 1.0
      %v7072 = vadd.f32 %v7026, 1.0
      %v7073 = vadd.f32 %v7028, 1.0
      %v7074 = vadd.f32 %v7030, 1.0
      %v7075 = vadd.f32 %v7032, 1.0
      %v7076 = vadd.f32 %v7034, 1.0
      %v7077 = vadd.f32 %v7036, 1.0
      %v7078 = vadd.f32 %v7038, 1.0
      %v7079 = vadd.f32 %v7040, 1.0
      %v7080 = vadd.f32 %v7042, 1.0
      %v7081 = vadd.f32 %v7044, 1.0
      %v7082 = vadd.f32 %v7046, 1.0
      %v7083 = vadd.f32 %v7048, 1.0
      %v7084 = vadd.f32 %v7050, 1.0
      %v7085 = vadd.f32 %v7052, 1.0
      %v7086 = vadd.f32 %v7054, 1.0
      %v7087 = vrcp.pop %v7055
      %v7088 = vmul.f32 1.0, %v7087
      %v7089 = vrcp.pop %v7056
      %v7090 = vmul.f32 1.0, %v7089
      %v7091 = vrcp.pop %v7057
      %v7092 = vmul.f32 1.0, %v7091
      %v7093 = vrcp.pop %v7058
      %v7094 = vmul.f32 1.0, %v7093
      %v7095 = vrcp.pop %v7059
      %v7096 = vmul.f32 1.0, %v7095
      %v7097 = vrcp.pop %v7060
      %v7098 = vmul.f32 1.0, %v7097
      %v7099 = vrcp.pop %v7061
      %v7100 = vmul.f32 1.0, %v7099
      %v7101 = vrcp.pop %v7062
      %v7102 = vmul.f32 1.0, %v7101
      %v7103 = vrcp.pop %v7063
      %v7104 = vmul.f32 1.0, %v7103
      %v7105 = vrcp.pop %v7064
      %v7106 = vmul.f32 1.0, %v7105
      %v7107 = vrcp.pop %v7065
      %v7108 = vmul.f32 1.0, %v7107
      %v7109 = vrcp.pop %v7066
      %v7110 = vmul.f32 1.0, %v7109
      %v7111 = vrcp.pop %v7067
      %v7112 = vmul.f32 1.0, %v7111
      %v7113 = vrcp.pop %v7068
      %v7114 = vmul.f32 1.0, %v7113
      %v7115 = vrcp.pop %v7069
      %v7116 = vmul.f32 1.0, %v7115
      %v7117 = vrcp.pop %v7070
      %v7118 = vmul.f32 1.0, %v7117
      %v7119 = vrcp.pop %v7071
      %v7120 = vmul.f32 1.0, %v7119
      %v7121 = vrcp.pop %v7072
      %v7122 = vmul.f32 1.0, %v7121
      %v7123 = vrcp.pop %v7073
      %v7124 = vmul.f32 1.0, %v7123
      %v7125 = vrcp.pop %v7074
      %v7126 = vmul.f32 1.0, %v7125
      %v7127 = vrcp.pop %v7075
      %v7128 = vmul.f32 1.0, %v7127
      %v7129 = vrcp.pop %v7076
      %v7130 = vmul.f32 1.0, %v7129
      %v7131 = vrcp.pop %v7077
      %v7132 = vmul.f32 1.0, %v7131
      %v7133 = vrcp.pop %v7078
      %v7134 = vmul.f32 1.0, %v7133
      %v7135 = vrcp.pop %v7079
      %v7136 = vmul.f32 1.0, %v7135
      %v7137 = vrcp.pop %v7080
      %v7138 = vmul.f32 1.0, %v7137
      %v7139 = vrcp.pop %v7081
      %v7140 = vmul.f32 1.0, %v7139
      %v7141 = vrcp.pop %v7082
      %v7142 = vmul.f32 1.0, %v7141
      %v7143 = vrcp.pop %v7083
      %v7144 = vmul.f32 1.0, %v7143
      %v7145 = vrcp.pop %v7084
      %v7146 = vmul.f32 1.0, %v7145
      %v7147 = vrcp.pop %v7085
      %v7148 = vmul.f32 1.0, %v7147
      %v7149 = vrcp.pop %v7086
      %v7150 = vmul.f32 1.0, %v7149
      %v7151 = vmul.f32 %v6927, %v7088
      %v7152 = vmul.f32 %v6928, %v7090
      %v7153 = vmul.f32 %v6929, %v7092
      %v7154 = vmul.f32 %v6930, %v7094
      %v7155 = vmul.f32 %v6931, %v7096
      %v7156 = vmul.f32 %v6932, %v7098
      %v7157 = vmul.f32 %v6933, %v7100
      %v7158 = vmul.f32 %v6934, %v7102
      %v7159 = vmul.f32 %v6935, %v7104
      %v7160 = vmul.f32 %v6936, %v7106
      %v7161 = vmul.f32 %v6937, %v7108
      %v7162 = vmul.f32 %v6938, %v7110
      %v7163 = vmul.f32 %v6939, %v7112
      %v7164 = vmul.f32 %v6940, %v7114
      %v7165 = vmul.f32 %v6941, %v7116
      %v7166 = vmul.f32 %v6942, %v7118
      %v7167 = vmul.f32 %v6943, %v7120
      %v7168 = vmul.f32 %v6944, %v7122
      %v7169 = vmul.f32 %v6945, %v7124
      %v7170 = vmul.f32 %v6946, %v7126
      %v7171 = vmul.f32 %v6947, %v7128
      %v7172 = vmul.f32 %v6948, %v7130
      %v7173 = vmul.f32 %v6949, %v7132
      %v7174 = vmul.f32 %v6950, %v7134
      %v7175 = vmul.f32 %v6951, %v7136
      %v7176 = vmul.f32 %v6952, %v7138
      %v7177 = vmul.f32 %v6953, %v7140
      %v7178 = vmul.f32 %v6954, %v7142
      %v7179 = vmul.f32 %v6955, %v7144
      %v7180 = vmul.f32 %v6956, %v7146
      %v7181 = vmul.f32 %v6957, %v7148
      %v7182 = vmul.f32 %v6958, %v7150
      %7183 = vst.msk [vmem:[%s359] sm:$0xff] %vm2880, %v7151
      %7184 = vst.msk [vmem:[%s359 + $0x8] sm:$0xff] %vm2880, %v7152
      %7185 = vst.msk [vmem:[%s359 + $0x10] sm:$0xff] %vm2880, %v7153
      %7186 = vst.msk [vmem:[%s359 + $0x18] sm:$0xff] %vm2880, %v7154
      %7187 = vst.msk [vmem:[%s359 + $0x20] sm:$0xff] %vm2880, %v7155
      %7188 = vst.msk [vmem:[%s359 + $0x28] sm:$0xff] %vm2880, %v7156
      %7189 = vst.msk [vmem:[%s359 + $0x30] sm:$0xff] %vm2880, %v7157
      %7190 = vst.msk [vmem:[%s359 + $0x38] sm:$0xff] %vm2880, %v7158
      %7191 = vst.msk [vmem:[%s359 + $0x40] sm:$0xff] %vm2880, %v7159
      %7192 = vst.msk [vmem:[%s359 + $0x48] sm:$0xff] %vm2880, %v7160
      %7193 = vst.msk [vmem:[%s359 + $0x50] sm:$0xff] %vm2880, %v7161
      %7194 = vst.msk [vmem:[%s359 + $0x58] sm:$0xff] %vm2880, %v7162
      %7195 = vst.msk [vmem:[%s359 + $0x60] sm:$0xff] %vm2880, %v7163
      %7196 = vst.msk [vmem:[%s359 + $0x68] sm:$0xff] %vm2880, %v7164
      %7197 = vst.msk [vmem:[%s359 + $0x70] sm:$0xff] %vm2880, %v7165
      %7198 = vst.msk [vmem:[%s359 + $0x78] sm:$0xff] %vm2880, %v7166
      %7199 = vst.msk [vmem:[%s359 + $0x80] sm:$0xff] %vm2880, %v7167
      %7200 = vst.msk [vmem:[%s359 + $0x88] sm:$0xff] %vm2880, %v7168
      %7201 = vst.msk [vmem:[%s359 + $0x90] sm:$0xff] %vm2880, %v7169
      %7202 = vst.msk [vmem:[%s359 + $0x98] sm:$0xff] %vm2880, %v7170
      %7203 = vst.msk [vmem:[%s359 + $0xa0] sm:$0xff] %vm2880, %v7171
      %7204 = vst.msk [vmem:[%s359 + $0xa8] sm:$0xff] %vm2880, %v7172
      %7205 = vst.msk [vmem:[%s359 + $0xb0] sm:$0xff] %vm2880, %v7173
      %7206 = vst.msk [vmem:[%s359 + $0xb8] sm:$0xff] %vm2880, %v7174
      %7207 = vst.msk [vmem:[%s359 + $0xc0] sm:$0xff] %vm2880, %v7175
      %7208 = vst.msk [vmem:[%s359 + $0xc8] sm:$0xff] %vm2880, %v7176
      %7209 = vst.msk [vmem:[%s359 + $0xd0] sm:$0xff] %vm2880, %v7177
      %7210 = vst.msk [vmem:[%s359 + $0xd8] sm:$0xff] %vm2880, %v7178
      %7211 = vst.msk [vmem:[%s359 + $0xe0] sm:$0xff] %vm2880, %v7179
      %7212 = vst.msk [vmem:[%s359 + $0xe8] sm:$0xff] %vm2880, %v7180
      %7213 = vst.msk [vmem:[%s359 + $0xf0] sm:$0xff] %vm2880, %v7181
      %7214 = vst.msk [vmem:[%s359 + $0xf8] sm:$0xff] %vm2880, %v7182
      %p7215 = scmp.lt.s32.totalorder %s21, 1
      %s7216 = scalar_select %p7215, %s21, 1
      %s7217 = smul.addr %s7216, 32
      %s7218 = smul.addr %s7217, 8
      %s7219 = scalar_lea.vmem %s10, %s7218
      // Predicated region
      $region61: #{tpu_custom_call.1} parent=59 // pred_check
        %p7220 = pneg %p254
      $region62: #{tpu_custom_call.1} parent=59 // pred_check_branch
        %7222 = sbr.rel (%p7220) target = $region64
      $region63: #{tpu_custom_call.1} parent=59 // pred_region
        _
      $region64: #{tpu_custom_call.1} parent=59 // pred_fallthru
        _
    $region60: #{tpu_custom_call.1} parent=5 // pred_fallthru
      _
    %p7223 = scmp.le.s32.totalorder 2, %s16
    // Predicated region
    $region65: #{tpu_custom_call.1} parent=5 // pred_check
      %p7224 = pneg %p7223
    $region66: #{tpu_custom_call.1} parent=5 // pred_check_branch
      %7226 = sbr.rel (%p7224) target = $region68
    $region67: #{tpu_custom_call.1} parent=5 // pred_region
      %s7227 = ssub.s32 %s16, 2
      // Predicated region
      $region69: #{tpu_custom_call.1} parent=67 // pred_check
        %p7228 = pneg %p260
      $region70: #{tpu_custom_call.1} parent=67 // pred_check_branch
        %7230 = sbr.rel (%p7228) target = $region72
      $region71: #{tpu_custom_call.1} parent=67 // pred_region
        %p7231 = scmp.lt.s32.totalorder %s22, 1
        %s7232 = scalar_select %p7231, %s22, 1
        %s7233 = smul.addr %s7232, 32
        %s7234 = smul.addr %s7233, 8
        %s7235 = scalar_lea.vmem %s10, %s7234
      $region72: #{tpu_custom_call.1} parent=67 // pred_fallthru
        _
    $region68: #{tpu_custom_call.1} parent=5 // pred_fallthru
      _
  $region6: #{tpu_custom_call.1} parent=0 // loop_footer
    %s20 = sadd.s32 1, %s16
  $region7: #{tpu_custom_call.1} parent=0 // loop_footer_branch
    %15 = sbr.rel target = $region3
  $region8: #{tpu_custom_call.1} parent=0 // loop_exit
    _

</llo_original>
